<compile_context>
chip_gen: v5e
topology: v5e:2x2
jax: 0.10.0
libtpu: 0.0.40
codegen_flags: <defaults>
</compile_context>

<pallas_src>
import jax
import jax.numpy as jnp
import numpy as np
from jax import lax
from jax.experimental import pallas as pl
from jax.experimental.pallas import tpu as pltpu


# --------------------------------------------------------------------------
# Kernel 1: Linear(100 -> 25600) + bias + ReLU, tiled over the output dim.
# --------------------------------------------------------------------------
def linear_relu_kernel(x_ref, w_ref, b_ref, o_ref):
    x_bf = x_ref[...].astype(jnp.bfloat16)              # (1, K): one tiny cast
    y = jnp.dot(x_bf, w_ref[...], preferred_element_type=jnp.float32)
    o_ref[...] = jnp.maximum(y + b_ref[...], 0.0)


def linear_relu(x, w_bf16, b, *, tn=6400):
    # x: (1, K) f32, w_bf16: (K, N) bf16 (pre-transposed), b: (N,) f32
    K, N = w_bf16.shape
    b2 = b.reshape(1, N)
    return pl.pallas_call(
        linear_relu_kernel,
        out_shape=jax.ShapeDtypeStruct((1, N), jnp.float32),
        grid=(N // tn,),
        in_specs=[
            pl.BlockSpec((1, K), lambda i: (0, 0)),
            pl.BlockSpec((K, tn), lambda i: (0, i)),
            pl.BlockSpec((1, tn), lambda i: (0, i)),
        ],
        out_specs=pl.BlockSpec((1, tn), lambda i: (0, i)),
        compiler_params=pltpu.CompilerParams(
            dimension_semantics=("parallel",)),
    )(x, w_bf16, b2)


# --------------------------------------------------------------------------
# Kernel 2: fused ConvTranspose1d chain (4 layers, single pallas_call).
# --------------------------------------------------------------------------
def _convt_parity(xp, we_ref, wo_ref, b_ref, *, relu):
    # xp: (C_in, L+2) bf16 zero-padded input.
    # we_ref/wo_ref: (C_out, 2*C_in) bf16 fused weights [W1^T|W3^T] / [W0^T|W2^T].
    # Returns even, odd: (C_out, L) f32 (bias + activation applied).
    L = xp.shape[1] - 2
    xc = xp[:, 1:L + 1]          # x[:, j]
    xr = xp[:, 0:L]              # x[:, j-1]   (zero at the left edge)
    xl = xp[:, 2:L + 2]          # x[:, j+1]   (zero at the right edge)
    xe = jnp.concatenate([xc, xr], axis=0)   # (2*C_in, L) bf16
    xo = jnp.concatenate([xl, xc], axis=0)   # (2*C_in, L) bf16
    b = b_ref[...]                           # (C_out, 1) f32

    even = jnp.dot(we_ref[...], xe, preferred_element_type=jnp.float32) + b
    odd = jnp.dot(wo_ref[...], xo, preferred_element_type=jnp.float32) + b
    if relu:
        even = jnp.maximum(even, 0.0)
        odd = jnp.maximum(odd, 0.0)
    else:  # sigmoid
        even = jax.nn.sigmoid(even)
        odd = jax.nn.sigmoid(odd)
    return even, odd


def _interleave(even, odd, re_ref, ro_ref):
    # even/odd: (C_out, L) f32.  re/ro: precomputed exact 0/1 selectors (L, 2L+2) bf16.
    # Returns the next layer's zero-padded bf16 input (C_out, 2L+2):
    #   out[:, 1+2t] = even[:, t],  out[:, 2+2t] = odd[:, t],  zero pad at both edges.
    e_bf = even.astype(jnp.bfloat16)
    o_bf = odd.astype(jnp.bfloat16)
    y = (jnp.dot(e_bf, re_ref[...], preferred_element_type=jnp.float32)
         + jnp.dot(o_bf, ro_ref[...], preferred_element_type=jnp.float32))
    return y.astype(jnp.bfloat16)


def fused_convs_kernel(xp_ref,
                       we1, wo1, b1, re1, ro1,
                       we2, wo2, b2, re2, ro2,
                       we3, wo3, b3, re3, ro3,
                       we4, wo4, b4,
                       oe_ref, oo_ref):
    h = xp_ref[...]                                                # (512,  52) bf16
    e, o = _convt_parity(h, we1, wo1, b1, relu=True)               # (256,  50) f32
    h = _interleave(e, o, re1, ro1)                                # (256, 102) bf16
    e, o = _convt_parity(h, we2, wo2, b2, relu=True)               # (128, 100) f32
    h = _interleave(e, o, re2, ro2)                                # (128, 202) bf16
    e, o = _convt_parity(h, we3, wo3, b3, relu=True)               # ( 64, 200) f32
    h = _interleave(e, o, re3, ro3)                                # ( 64, 402) bf16
    e, o = _convt_parity(h, we4, wo4, b4, relu=False)              # (  1, 400) f32, sigmoid
    oe_ref[...] = e
    oo_ref[...] = o


def conv_chain(xp_bf, conv_params):
    # xp_bf: (512, 52) bf16 (padded, post-ReLU linear output).  Runs all 4 layers fused.
    n_layers = len(conv_params)
    l_half = (xp_bf.shape[1] - 2) * (2 ** (n_layers - 1))   # 400

    flat_args = [xp_bf]
    in_specs = [pl.BlockSpec(xp_bf.shape, lambda i: (0, 0))]
    for layer in conv_params:
        for a in layer:
            flat_args.append(a)
            in_specs.append(pl.BlockSpec(a.shape, lambda i: (0, 0)))

    return pl.pallas_call(
        fused_convs_kernel,
        out_shape=(jax.ShapeDtypeStruct((1, l_half), jnp.float32),
                   jax.ShapeDtypeStruct((1, l_half), jnp.float32)),
        grid=(1,),
        in_specs=in_specs,
        out_specs=(pl.BlockSpec((1, l_half), lambda i: (0, 0)),
                   pl.BlockSpec((1, l_half), lambda i: (0, 0))),
    )(*flat_args)


# --------------------------------------------------------------------------
# Parameter prep (once, outside the forward): bf16 weights, fused per-parity
# conv weights, precomputed interleave selectors.
# --------------------------------------------------------------------------
def _make_selectors(L):
    W = 2 * L + 2
    re_m = np.zeros((L, W), np.float32)
    ro_m = np.zeros((L, W), np.float32)
    t = np.arange(L)
    re_m[t, 1 + 2 * t] = 1.0
    ro_m[t, 2 + 2 * t] = 1.0
    return jnp.asarray(re_m, jnp.bfloat16), jnp.asarray(ro_m, jnp.bfloat16)


def prepare_params(params, l0=50):
    (Wl, bl), convs = params                      # Wl: (25600, 100); conv w: (C_in, C_out, 4)
    wl_t = jnp.asarray(np.asarray(Wl, np.float32).T, dtype=jnp.bfloat16)   # (100, 25600)
    bl_f = jnp.asarray(bl, jnp.float32)

    conv_params = []
    L = l0
    for li, (w, b) in enumerate(convs):
        w_np = np.asarray(w, np.float32)                             # (C_in, C_out, 4)
        we = np.concatenate([w_np[:, :, 1].T, w_np[:, :, 3].T], axis=1)   # (C_out, 2*C_in)
        wo = np.concatenate([w_np[:, :, 0].T, w_np[:, :, 2].T], axis=1)   # (C_out, 2*C_in)
        layer = [jnp.asarray(we, jnp.bfloat16),
                 jnp.asarray(wo, jnp.bfloat16),
                 jnp.asarray(np.asarray(b, np.float32).reshape(-1, 1), jnp.float32)]
        if li < len(convs) - 1:                   # last layer's interleave is in the wrapper
            re_m, ro_m = _make_selectors(L)
            layer += [re_m, ro_m]
        conv_params.append(tuple(layer))
        L *= 2
    return wl_t, bl_f, conv_params


# --------------------------------------------------------------------------
# Full forward pass of G (jitted: two pallas_calls + trivial reshape/pad glue).
# --------------------------------------------------------------------------
@jax.jit
def g_forward(x, wl_t, bl, conv_params):
    y = linear_relu(x, wl_t, bl)                          # (1, 25600) f32, ReLU applied
    h = y.reshape(512, 50).astype(jnp.bfloat16)           # view(1, 512, 50), bf16 for convs
    xp = jnp.pad(h, ((0, 0), (1, 1)))                     # (512, 52) bf16
    even, odd = conv_chain(xp, conv_params)               # (1, 400) f32 each
    out = jnp.stack([even[0], odd[0]], axis=-1).reshape(1, 1, 800)
    return out


# --------------------------------------------------------------------------
# Pure-JAX reference (bf16-rounded weights, f32 activations everywhere).
# --------------------------------------------------------------------------
def ref_convt(x, w, b):
    # transposed conv as dilated conv with flipped kernel
    lhs = x[None]                                   # (1, C_in, L)
    rhs = jnp.flip(w, axis=2).transpose(1, 0, 2)    # (C_out, C_in, 4)
    out = lax.conv_general_dilated(
        lhs, rhs, window_strides=(1,), padding=[(2, 2)],
        lhs_dilation=(2,), dimension_numbers=("NCH", "OIH", "NCH"))
    return out[0] + b[:, None]


def g_forward_ref(x, Wl, bl, convs):
    wl_bf = Wl.astype(jnp.bfloat16).astype(jnp.float32)
    y = jnp.maximum(x @ wl_bf.T + bl, 0.0)
    h = y.reshape(512, 50)
    n = len(convs)
    for i, (w, b) in enumerate(convs):
        w_bf = w.astype(jnp.bfloat16).astype(jnp.float32)
        h = ref_convt(h, w_bf, b)
        h = jax.nn.sigmoid(h) if i == n - 1 else jnp.maximum(h, 0.0)
    return h.reshape(1, 1, 800)


if __name__ == "__main__":
    key = jax.random.PRNGKey(0)
    keys = jax.random.split(key, 12)

    # input consistent with Linear(100, .) and view(1, 512, 50): batch = 1
    x = jax.random.normal(keys[0], (1, 100), jnp.float32)

    # deterministic synthetic parameters (PyTorch layouts)
    Wl = jax.random.normal(keys[1], (25600, 100), jnp.float32) * 0.02
    bl = jax.random.normal(keys[2], (25600,), jnp.float32) * 0.02

    chan_pairs = [(512, 256), (256, 128), (128, 64), (64, 1)]
    convs = []
    ki = 3
    for cin, cout in chan_pairs:
        w = jax.random.normal(keys[ki], (cin, cout, 4), jnp.float32) * 0.05
        b = jax.random.normal(keys[ki + 1], (cout,), jnp.float32) * 0.05
        convs.append((w, b))
        ki += 2

    wl_t, bl_f, conv_params = prepare_params(((Wl, bl), convs))

    out = jax.block_until_ready(g_forward(x, wl_t, bl_f, conv_params))
    assert out.shape == (1, 1, 800), out.shape

    ref = jax.block_until_ready(g_forward_ref(x, Wl, bl, convs))
    # bf16 weights + bf16 inter-layer activations in the kernels => loosen tolerance
    np.testing.assert_allclose(np.asarray(out), np.asarray(ref), rtol=2e-2, atol=2e-2)

    print("KERNEL_OK")
</pallas_src>

<mosaic_0001>
module attributes {stable_mosaic.version = 11 : i64} {
  func.func @linear_relu_kernel(%arg0: i32, %arg1: memref<1x100xf32, #tpu.memory_space<vmem>>, %arg2: memref<100x6400xbf16, #tpu.memory_space<vmem>>, %arg3: memref<1x6400xf32, #tpu.memory_space<vmem>>, %arg4: memref<1x6400xf32, #tpu.memory_space<vmem>>) attributes {dimension_semantics = [#tpu.dimension_semantics<parallel>], iteration_bounds = array<i64: 4>, scalar_prefetch = 0 : i64, scratch_operands = 0 : i64, tpu.core_type = #tpu.core_type<tc>, window_params = [{pipeline_mode = #tpu.pipeline_mode<synchronous>, transform_indices = @transform_0, window_bounds = array<i64: 1, 100>}, {transform_indices = @transform_1, window_bounds = array<i64: 100, 6400>}, {transform_indices = @transform_2, window_bounds = array<i64: 1, 6400>}, {transform_indices = @transform_3, window_bounds = array<i64: 1, 6400>}]} {
    %c0 = arith.constant 0 : index
    %c0_0 = arith.constant 0 : index
    %0 = vector.load %arg1[%c0, %c0_0] : memref<1x100xf32, #tpu.memory_space<vmem>>, vector<1x100xf32>
    %1 = arith.truncf %0 : vector<1x100xf32> to vector<1x100xbf16>
    %c0_1 = arith.constant 0 : index
    %c0_2 = arith.constant 0 : index
    %2 = vector.load %arg2[%c0_1, %c0_2] : memref<100x6400xbf16, #tpu.memory_space<vmem>>, vector<100x6400xbf16>
    %cst = arith.constant dense<0.000000e+00> : vector<1x6400xf32>
    %3 = tpu.matmul %1, %2, %cst {dimension_numbers = #tpu.dot_dimension_numbers<[1], [0], [0], [1], [0, 0, 1, 1], [], []>} : vector<1x100xbf16>, vector<100x6400xbf16>, vector<1x6400xf32> -> vector<1x6400xf32>
    %c0_3 = arith.constant 0 : index
    %c0_4 = arith.constant 0 : index
    %4 = vector.load %arg3[%c0_3, %c0_4] : memref<1x6400xf32, #tpu.memory_space<vmem>>, vector<1x6400xf32>
    %5 = arith.addf %3, %4 : vector<1x6400xf32>
    %cst_5 = arith.constant 0.000000e+00 : f32
    %6 = vector.broadcast %cst_5 : f32 to vector<1x6400xf32>
    %7 = arith.maximumf %5, %6 : vector<1x6400xf32>
    %c0_6 = arith.constant 0 : index
    %c0_7 = arith.constant 0 : index
    %8 = vector.load %arg4[%c0_6, %c0_7] : memref<1x6400xf32, #tpu.memory_space<vmem>>, vector<1x6400xf32>
    tpu.vector_store %arg4[%c0_6, %c0_7], %7 {strides = array<i32>} : memref<1x6400xf32, #tpu.memory_space<vmem>>, vector<1x6400xf32>,
    return
  }
  func.func @transform_0(%arg0: i32) -> (i32, i32) {
    %c0_i32 = arith.constant 0 : i32
    %c0_i32_0 = arith.constant 0 : i32
    %c0_i32_1 = arith.constant 0 : i32
    return %c0_i32, %c0_i32_0 : i32, i32
  }
  func.func @transform_1(%arg0: i32) -> (i32, i32) {
    %c0_i32 = arith.constant 0 : i32
    %c0_i32_0 = arith.constant 0 : i32
    return %c0_i32, %arg0 : i32, i32
  }
  func.func @transform_2(%arg0: i32) -> (i32, i32) {
    %c0_i32 = arith.constant 0 : i32
    %c0_i32_0 = arith.constant 0 : i32
    return %c0_i32, %arg0 : i32, i32
  }
  func.func @transform_3(%arg0: i32) -> (i32, i32) {
    %c0_i32 = arith.constant 0 : i32
    %c0_i32_0 = arith.constant 0 : i32
    return %c0_i32, %arg0 : i32, i32
  }
}

module attributes {stable_mosaic.version = 11 : i64} {
  func.func @fused_convs_kernel(%arg0: i32, %arg1: memref<512x52xbf16, #tpu.memory_space<vmem>>, %arg2: memref<256x1024xbf16, #tpu.memory_space<vmem>>, %arg3: memref<256x1024xbf16, #tpu.memory_space<vmem>>, %arg4: memref<256x1xf32, #tpu.memory_space<vmem>>, %arg5: memref<50x102xbf16, #tpu.memory_space<vmem>>, %arg6: memref<50x102xbf16, #tpu.memory_space<vmem>>, %arg7: memref<128x512xbf16, #tpu.memory_space<vmem>>, %arg8: memref<128x512xbf16, #tpu.memory_space<vmem>>, %arg9: memref<128x1xf32, #tpu.memory_space<vmem>>, %arg10: memref<100x202xbf16, #tpu.memory_space<vmem>>, %arg11: memref<100x202xbf16, #tpu.memory_space<vmem>>, %arg12: memref<64x256xbf16, #tpu.memory_space<vmem>>, %arg13: memref<64x256xbf16, #tpu.memory_space<vmem>>, %arg14: memref<64x1xf32, #tpu.memory_space<vmem>>, %arg15: memref<200x402xbf16, #tpu.memory_space<vmem>>, %arg16: memref<200x402xbf16, #tpu.memory_space<vmem>>, %arg17: memref<1x128xbf16, #tpu.memory_space<vmem>>, %arg18: memref<1x128xbf16, #tpu.memory_space<vmem>>, %arg19: memref<1x1xf32, #tpu.memory_space<vmem>>, %arg20: memref<1x400xf32, #tpu.memory_space<vmem>>, %arg21: memref<1x400xf32, #tpu.memory_space<vmem>>) attributes {dimension_semantics = [#tpu.dimension_semantics<arbitrary>], iteration_bounds = array<i64: 1>, scalar_prefetch = 0 : i64, scratch_operands = 0 : i64, tpu.core_type = #tpu.core_type<tc>, window_params = [{pipeline_mode = #tpu.pipeline_mode<synchronous>, transform_indices = @transform_0, window_bounds = array<i64: 512, 52>}, {pipeline_mode = #tpu.pipeline_mode<synchronous>, transform_indices = @transform_1, window_bounds = array<i64: 256, 1024>}, {pipeline_mode = #tpu.pipeline_mode<synchronous>, transform_indices = @transform_2, window_bounds = array<i64: 256, 1024>}, {pipeline_mode = #tpu.pipeline_mode<synchronous>, transform_indices = @transform_3, window_bounds = array<i64: 256, 1>}, {pipeline_mode = #tpu.pipeline_mode<synchronous>, transform_indices = @transform_4, window_bounds = array<i64: 50, 102>}, {pipeline_mode = #tpu.pipeline_mode<synchronous>, transform_indices = @transform_5, window_bounds = array<i64: 50, 102>}, {pipeline_mode = #tpu.pipeline_mode<synchronous>, transform_indices = @transform_6, window_bounds = array<i64: 128, 512>}, {pipeline_mode = #tpu.pipeline_mode<synchronous>, transform_indices = @transform_7, window_bounds = array<i64: 128, 512>}, {pipeline_mode = #tpu.pipeline_mode<synchronous>, transform_indices = @transform_8, window_bounds = array<i64: 128, 1>}, {pipeline_mode = #tpu.pipeline_mode<synchronous>, transform_indices = @transform_9, window_bounds = array<i64: 100, 202>}, {pipeline_mode = #tpu.pipeline_mode<synchronous>, transform_indices = @transform_10, window_bounds = array<i64: 100, 202>}, {pipeline_mode = #tpu.pipeline_mode<synchronous>, transform_indices = @transform_11, window_bounds = array<i64: 64, 256>}, {pipeline_mode = #tpu.pipeline_mode<synchronous>, transform_indices = @transform_12, window_bounds = array<i64: 64, 256>}, {pipeline_mode = #tpu.pipeline_mode<synchronous>, transform_indices = @transform_13, window_bounds = array<i64: 64, 1>}, {pipeline_mode = #tpu.pipeline_mode<synchronous>, transform_indices = @transform_14, window_bounds = array<i64: 200, 402>}, {pipeline_mode = #tpu.pipeline_mode<synchronous>, transform_indices = @transform_15, window_bounds = array<i64: 200, 402>}, {pipeline_mode = #tpu.pipeline_mode<synchronous>, transform_indices = @transform_16, window_bounds = array<i64: 1, 128>}, {pipeline_mode = #tpu.pipeline_mode<synchronous>, transform_indices = @transform_17, window_bounds = array<i64: 1, 128>}, {pipeline_mode = #tpu.pipeline_mode<synchronous>, transform_indices = @transform_18, window_bounds = array<i64: 1, 1>}, {pipeline_mode = #tpu.pipeline_mode<synchronous>, transform_indices = @transform_19, window_bounds = array<i64: 1, 400>}, {pipeline_mode = #tpu.pipeline_mode<synchronous>, transform_indices = @transform_20, window_bounds = array<i64: 1, 400>}]} {
    %c0 = arith.constant 0 : index
    %c0_0 = arith.constant 0 : index
    %0 = vector.load %arg1[%c0, %c0_0] : memref<512x52xbf16, #tpu.memory_space<vmem>>, vector<512x52xbf16>
    %1 = vector.extract_strided_slice %0 {offsets = [0, 1], sizes = [512, 50], strides = [1, 1]} : vector<512x52xbf16> to vector<512x50xbf16>
    %2 = vector.extract_strided_slice %0 {offsets = [0, 0], sizes = [512, 50], strides = [1, 1]} : vector<512x52xbf16> to vector<512x50xbf16>
    %3 = vector.extract_strided_slice %0 {offsets = [0, 2], sizes = [512, 50], strides = [1, 1]} : vector<512x52xbf16> to vector<512x50xbf16>
    %4 = tpu.concatenate %1, %2 in 0 : vector<512x50xbf16>, vector<512x50xbf16> -> vector<1024x50xbf16>
    %5 = tpu.concatenate %3, %1 in 0 : vector<512x50xbf16>, vector<512x50xbf16> -> vector<1024x50xbf16>
    %c0_1 = arith.constant 0 : index
    %c0_2 = arith.constant 0 : index
    %6 = vector.load %arg4[%c0_1, %c0_2] : memref<256x1xf32, #tpu.memory_space<vmem>>, vector<256x1xf32>
    %c0_3 = arith.constant 0 : index
    %c0_4 = arith.constant 0 : index
    %7 = vector.load %arg2[%c0_3, %c0_4] : memref<256x1024xbf16, #tpu.memory_space<vmem>>, vector<256x1024xbf16>
    %cst = arith.constant dense<0.000000e+00> : vector<256x50xf32>
    %8 = tpu.matmul %7, %4, %cst {dimension_numbers = #tpu.dot_dimension_numbers<[1], [0], [0], [1], [0, 0, 1, 1], [], []>} : vector<256x1024xbf16>, vector<1024x50xbf16>, vector<256x50xf32> -> vector<256x50xf32>
    %9 = vector.broadcast %6 : vector<256x1xf32> to vector<256x50xf32>
    %10 = arith.addf %8, %9 : vector<256x50xf32>
    %c0_5 = arith.constant 0 : index
    %c0_6 = arith.constant 0 : index
    %11 = vector.load %arg3[%c0_5, %c0_6] : memref<256x1024xbf16, #tpu.memory_space<vmem>>, vector<256x1024xbf16>
    %cst_7 = arith.constant dense<0.000000e+00> : vector<256x50xf32>
    %12 = tpu.matmul %11, %5, %cst_7 {dimension_numbers = #tpu.dot_dimension_numbers<[1], [0], [0], [1], [0, 0, 1, 1], [], []>} : vector<256x1024xbf16>, vector<1024x50xbf16>, vector<256x50xf32> -> vector<256x50xf32>
    %13 = vector.broadcast %6 : vector<256x1xf32> to vector<256x50xf32>
    %14 = arith.addf %12, %13 : vector<256x50xf32>
    %cst_8 = arith.constant 0.000000e+00 : f32
    %15 = vector.broadcast %cst_8 : f32 to vector<256x50xf32>
    %16 = arith.maximumf %10, %15 : vector<256x50xf32>
    %cst_9 = arith.constant 0.000000e+00 : f32
    %17 = vector.broadcast %cst_9 : f32 to vector<256x50xf32>
    %18 = arith.maximumf %14, %17 : vector<256x50xf32>
    %19 = arith.truncf %16 : vector<256x50xf32> to vector<256x50xbf16>
    %20 = arith.truncf %18 : vector<256x50xf32> to vector<256x50xbf16>
    %c0_10 = arith.constant 0 : index
    %c0_11 = arith.constant 0 : index
    %21 = vector.load %arg5[%c0_10, %c0_11] : memref<50x102xbf16, #tpu.memory_space<vmem>>, vector<50x102xbf16>
    %cst_12 = arith.constant dense<0.000000e+00> : vector<256x102xf32>
    %22 = tpu.matmul %19, %21, %cst_12 {dimension_numbers = #tpu.dot_dimension_numbers<[1], [0], [0], [1], [0, 0, 1, 1], [], []>} : vector<256x50xbf16>, vector<50x102xbf16>, vector<256x102xf32> -> vector<256x102xf32>
    %c0_13 = arith.constant 0 : index
    %c0_14 = arith.constant 0 : index
    %23 = vector.load %arg6[%c0_13, %c0_14] : memref<50x102xbf16, #tpu.memory_space<vmem>>, vector<50x102xbf16>
    %cst_15 = arith.constant dense<0.000000e+00> : vector<256x102xf32>
    %24 = tpu.matmul %20, %23, %cst_15 {dimension_numbers = #tpu.dot_dimension_numbers<[1], [0], [0], [1], [0, 0, 1, 1], [], []>} : vector<256x50xbf16>, vector<50x102xbf16>, vector<256x102xf32> -> vector<256x102xf32>
    %25 = arith.addf %22, %24 : vector<256x102xf32>
    %26 = arith.truncf %25 : vector<256x102xf32> to vector<256x102xbf16>
    %27 = vector.extract_strided_slice %26 {offsets = [0, 1], sizes = [256, 100], strides = [1, 1]} : vector<256x102xbf16> to vector<256x100xbf16>
    %28 = vector.extract_strided_slice %26 {offsets = [0, 0], sizes = [256, 100], strides = [1, 1]} : vector<256x102xbf16> to vector<256x100xbf16>
    %29 = vector.extract_strided_slice %26 {offsets = [0, 2], sizes = [256, 100], strides = [1, 1]} : vector<256x102xbf16> to vector<256x100xbf16>
    %30 = tpu.concatenate %27, %28 in 0 : vector<256x100xbf16>, vector<256x100xbf16> -> vector<512x100xbf16>
    %31 = tpu.concatenate %29, %27 in 0 : vector<256x100xbf16>, vector<256x100xbf16> -> vector<512x100xbf16>
    %c0_16 = arith.constant 0 : index
    %c0_17 = arith.constant 0 : index
    %32 = vector.load %arg9[%c0_16, %c0_17] : memref<128x1xf32, #tpu.memory_space<vmem>>, vector<128x1xf32>
    %c0_18 = arith.constant 0 : index
    %c0_19 = arith.constant 0 : index
    %33 = vector.load %arg7[%c0_18, %c0_19] : memref<128x512xbf16, #tpu.memory_space<vmem>>, vector<128x512xbf16>
    %cst_20 = arith.constant dense<0.000000e+00> : vector<128x100xf32>
    %34 = tpu.matmul %33, %30, %cst_20 {dimension_numbers = #tpu.dot_dimension_numbers<[1], [0], [0], [1], [0, 0, 1, 1], [], []>} : vector<128x512xbf16>, vector<512x100xbf16>, vector<128x100xf32> -> vector<128x100xf32>
    %35 = vector.broadcast %32 : vector<128x1xf32> to vector<128x100xf32>
    %36 = arith.addf %34, %35 : vector<128x100xf32>
    %c0_21 = arith.constant 0 : index
    %c0_22 = arith.constant 0 : index
    %37 = vector.load %arg8[%c0_21, %c0_22] : memref<128x512xbf16, #tpu.memory_space<vmem>>, vector<128x512xbf16>
    %cst_23 = arith.constant dense<0.000000e+00> : vector<128x100xf32>
    %38 = tpu.matmul %37, %31, %cst_23 {dimension_numbers = #tpu.dot_dimension_numbers<[1], [0], [0], [1], [0, 0, 1, 1], [], []>} : vector<128x512xbf16>, vector<512x100xbf16>, vector<128x100xf32> -> vector<128x100xf32>
    %39 = vector.broadcast %32 : vector<128x1xf32> to vector<128x100xf32>
    %40 = arith.addf %38, %39 : vector<128x100xf32>
    %cst_24 = arith.constant 0.000000e+00 : f32
    %41 = vector.broadcast %cst_24 : f32 to vector<128x100xf32>
    %42 = arith.maximumf %36, %41 : vector<128x100xf32>
    %cst_25 = arith.constant 0.000000e+00 : f32
    %43 = vector.broadcast %cst_25 : f32 to vector<128x100xf32>
    %44 = arith.maximumf %40, %43 : vector<128x100xf32>
    %45 = arith.truncf %42 : vector<128x100xf32> to vector<128x100xbf16>
    %46 = arith.truncf %44 : vector<128x100xf32> to vector<128x100xbf16>
    %c0_26 = arith.constant 0 : index
    %c0_27 = arith.constant 0 : index
    %47 = vector.load %arg10[%c0_26, %c0_27] : memref<100x202xbf16, #tpu.memory_space<vmem>>, vector<100x202xbf16>
    %cst_28 = arith.constant dense<0.000000e+00> : vector<128x202xf32>
    %48 = tpu.matmul %45, %47, %cst_28 {dimension_numbers = #tpu.dot_dimension_numbers<[1], [0], [0], [1], [0, 0, 1, 1], [], []>} : vector<128x100xbf16>, vector<100x202xbf16>, vector<128x202xf32> -> vector<128x202xf32>
    %c0_29 = arith.constant 0 : index
    %c0_30 = arith.constant 0 : index
    %49 = vector.load %arg11[%c0_29, %c0_30] : memref<100x202xbf16, #tpu.memory_space<vmem>>, vector<100x202xbf16>
    %cst_31 = arith.constant dense<0.000000e+00> : vector<128x202xf32>
    %50 = tpu.matmul %46, %49, %cst_31 {dimension_numbers = #tpu.dot_dimension_numbers<[1], [0], [0], [1], [0, 0, 1, 1], [], []>} : vector<128x100xbf16>, vector<100x202xbf16>, vector<128x202xf32> -> vector<128x202xf32>
    %51 = arith.addf %48, %50 : vector<128x202xf32>
    %52 = arith.truncf %51 : vector<128x202xf32> to vector<128x202xbf16>
    %53 = vector.extract_strided_slice %52 {offsets = [0, 1], sizes = [128, 200], strides = [1, 1]} : vector<128x202xbf16> to vector<128x200xbf16>
    %54 = vector.extract_strided_slice %52 {offsets = [0, 0], sizes = [128, 200], strides = [1, 1]} : vector<128x202xbf16> to vector<128x200xbf16>
    %55 = vector.extract_strided_slice %52 {offsets = [0, 2], sizes = [128, 200], strides = [1, 1]} : vector<128x202xbf16> to vector<128x200xbf16>
    %56 = tpu.concatenate %53, %54 in 0 : vector<128x200xbf16>, vector<128x200xbf16> -> vector<256x200xbf16>
    %57 = tpu.concatenate %55, %53 in 0 : vector<128x200xbf16>, vector<128x200xbf16> -> vector<256x200xbf16>
    %c0_32 = arith.constant 0 : index
    %c0_33 = arith.constant 0 : index
    %58 = vector.load %arg14[%c0_32, %c0_33] : memref<64x1xf32, #tpu.memory_space<vmem>>, vector<64x1xf32>
    %c0_34 = arith.constant 0 : index
    %c0_35 = arith.constant 0 : index
    %59 = vector.load %arg12[%c0_34, %c0_35] : memref<64x256xbf16, #tpu.memory_space<vmem>>, vector<64x256xbf16>
    %cst_36 = arith.constant dense<0.000000e+00> : vector<64x200xf32>
    %60 = tpu.matmul %59, %56, %cst_36 {dimension_numbers = #tpu.dot_dimension_numbers<[1], [0], [0], [1], [0, 0, 1, 1], [], []>} : vector<64x256xbf16>, vector<256x200xbf16>, vector<64x200xf32> -> vector<64x200xf32>
    %61 = vector.broadcast %58 : vector<64x1xf32> to vector<64x200xf32>
    %62 = arith.addf %60, %61 : vector<64x200xf32>
    %c0_37 = arith.constant 0 : index
    %c0_38 = arith.constant 0 : index
    %63 = vector.load %arg13[%c0_37, %c0_38] : memref<64x256xbf16, #tpu.memory_space<vmem>>, vector<64x256xbf16>
    %cst_39 = arith.constant dense<0.000000e+00> : vector<64x200xf32>
    %64 = tpu.matmul %63, %57, %cst_39 {dimension_numbers = #tpu.dot_dimension_numbers<[1], [0], [0], [1], [0, 0, 1, 1], [], []>} : vector<64x256xbf16>, vector<256x200xbf16>, vector<64x200xf32> -> vector<64x200xf32>
    %65 = vector.broadcast %58 : vector<64x1xf32> to vector<64x200xf32>
    %66 = arith.addf %64, %65 : vector<64x200xf32>
    %cst_40 = arith.constant 0.000000e+00 : f32
    %67 = vector.broadcast %cst_40 : f32 to vector<64x200xf32>
    %68 = arith.maximumf %62, %67 : vector<64x200xf32>
    %cst_41 = arith.constant 0.000000e+00 : f32
    %69 = vector.broadcast %cst_41 : f32 to vector<64x200xf32>
    %70 = arith.maximumf %66, %69 : vector<64x200xf32>
    %71 = arith.truncf %68 : vector<64x200xf32> to vector<64x200xbf16>
    %72 = arith.truncf %70 : vector<64x200xf32> to vector<64x200xbf16>
    %c0_42 = arith.constant 0 : index
    %c0_43 = arith.constant 0 : index
    %73 = vector.load %arg15[%c0_42, %c0_43] : memref<200x402xbf16, #tpu.memory_space<vmem>>, vector<200x402xbf16>
    %cst_44 = arith.constant dense<0.000000e+00> : vector<64x402xf32>
    %74 = tpu.matmul %71, %73, %cst_44 {dimension_numbers = #tpu.dot_dimension_numbers<[1], [0], [0], [1], [0, 0, 1, 1], [], []>} : vector<64x200xbf16>, vector<200x402xbf16>, vector<64x402xf32> -> vector<64x402xf32>
    %c0_45 = arith.constant 0 : index
    %c0_46 = arith.constant 0 : index
    %75 = vector.load %arg16[%c0_45, %c0_46] : memref<200x402xbf16, #tpu.memory_space<vmem>>, vector<200x402xbf16>
    %cst_47 = arith.constant dense<0.000000e+00> : vector<64x402xf32>
    %76 = tpu.matmul %72, %75, %cst_47 {dimension_numbers = #tpu.dot_dimension_numbers<[1], [0], [0], [1], [0, 0, 1, 1], [], []>} : vector<64x200xbf16>, vector<200x402xbf16>, vector<64x402xf32> -> vector<64x402xf32>
    %77 = arith.addf %74, %76 : vector<64x402xf32>
    %78 = arith.truncf %77 : vector<64x402xf32> to vector<64x402xbf16>
    %79 = vector.extract_strided_slice %78 {offsets = [0, 1], sizes = [64, 400], strides = [1, 1]} : vector<64x402xbf16> to vector<64x400xbf16>
    %80 = vector.extract_strided_slice %78 {offsets = [0, 0], sizes = [64, 400], strides = [1, 1]} : vector<64x402xbf16> to vector<64x400xbf16>
    %81 = vector.extract_strided_slice %78 {offsets = [0, 2], sizes = [64, 400], strides = [1, 1]} : vector<64x402xbf16> to vector<64x400xbf16>
    %82 = tpu.concatenate %79, %80 in 0 : vector<64x400xbf16>, vector<64x400xbf16> -> vector<128x400xbf16>
    %83 = tpu.concatenate %81, %79 in 0 : vector<64x400xbf16>, vector<64x400xbf16> -> vector<128x400xbf16>
    %c0_48 = arith.constant 0 : index
    %c0_49 = arith.constant 0 : index
    %84 = vector.load %arg19[%c0_48, %c0_49] : memref<1x1xf32, #tpu.memory_space<vmem>>, vector<1x1xf32>
    %c0_50 = arith.constant 0 : index
    %c0_51 = arith.constant 0 : index
    %85 = vector.load %arg17[%c0_50, %c0_51] : memref<1x128xbf16, #tpu.memory_space<vmem>>, vector<1x128xbf16>
    %cst_52 = arith.constant dense<0.000000e+00> : vector<1x400xf32>
    %86 = tpu.matmul %85, %82, %cst_52 {dimension_numbers = #tpu.dot_dimension_numbers<[1], [0], [0], [1], [0, 0, 1, 1], [], []>} : vector<1x128xbf16>, vector<128x400xbf16>, vector<1x400xf32> -> vector<1x400xf32>
    %87 = vector.broadcast %84 : vector<1x1xf32> to vector<1x400xf32>
    %88 = arith.addf %86, %87 : vector<1x400xf32>
    %c0_53 = arith.constant 0 : index
    %c0_54 = arith.constant 0 : index
    %89 = vector.load %arg18[%c0_53, %c0_54] : memref<1x128xbf16, #tpu.memory_space<vmem>>, vector<1x128xbf16>
    %cst_55 = arith.constant dense<0.000000e+00> : vector<1x400xf32>
    %90 = tpu.matmul %89, %83, %cst_55 {dimension_numbers = #tpu.dot_dimension_numbers<[1], [0], [0], [1], [0, 0, 1, 1], [], []>} : vector<1x128xbf16>, vector<128x400xbf16>, vector<1x400xf32> -> vector<1x400xf32>
    %91 = vector.broadcast %84 : vector<1x1xf32> to vector<1x400xf32>
    %92 = arith.addf %90, %91 : vector<1x400xf32>
    %93 = arith.negf %88 : vector<1x400xf32>
    %94 = math.exp %93 : vector<1x400xf32>
    %cst_56 = arith.constant 1.000000e+00 : f32
    %95 = vector.broadcast %cst_56 : f32 to vector<1x400xf32>
    %96 = arith.addf %95, %94 : vector<1x400xf32>
    %97 = arith.divf %95, %96 : vector<1x400xf32>
    %98 = arith.negf %92 : vector<1x400xf32>
    %99 = math.exp %98 : vector<1x400xf32>
    %cst_57 = arith.constant 1.000000e+00 : f32
    %100 = vector.broadcast %cst_57 : f32 to vector<1x400xf32>
    %101 = arith.addf %100, %99 : vector<1x400xf32>
    %102 = arith.divf %100, %101 : vector<1x400xf32>
    %c0_58 = arith.constant 0 : index
    %c0_59 = arith.constant 0 : index
    %103 = vector.load %arg20[%c0_58, %c0_59] : memref<1x400xf32, #tpu.memory_space<vmem>>, vector<1x400xf32>
    tpu.vector_store %arg20[%c0_58, %c0_59], %97 {strides = array<i32>} : memref<1x400xf32, #tpu.memory_space<vmem>>, vector<1x400xf32>,
    %c0_60 = arith.constant 0 : index
    %c0_61 = arith.constant 0 : index
    %104 = vector.load %arg21[%c0_60, %c0_61] : memref<1x400xf32, #tpu.memory_space<vmem>>, vector<1x400xf32>
    tpu.vector_store %arg21[%c0_60, %c0_61], %102 {strides = array<i32>} : memref<1x400xf32, #tpu.memory_space<vmem>>, vector<1x400xf32>,
    return
  }
  func.func @transform_0(%arg0: i32) -> (i32, i32) {
    %c0_i32 = arith.constant 0 : i32
    %c0_i32_0 = arith.constant 0 : i32
    %c0_i32_1 = arith.constant 0 : i32
    return %c0_i32, %c0_i32_0 : i32, i32
  }
  func.func @transform_1(%arg0: i32) -> (i32, i32) {
    %c0_i32 = arith.constant 0 : i32
    %c0_i32_0 = arith.constant 0 : i32
    %c0_i32_1 = arith.constant 0 : i32
    return %c0_i32, %c0_i32_0 : i32, i32
  }
  func.func @transform_2(%arg0: i32) -> (i32, i32) {
    %c0_i32 = arith.constant 0 : i32
    %c0_i32_0 = arith.constant 0 : i32
    %c0_i32_1 = arith.constant 0 : i32
    return %c0_i32, %c0_i32_0 : i32, i32
  }
  func.func @transform_3(%arg0: i32) -> (i32, i32) {
    %c0_i32 = arith.constant 0 : i32
    %c0_i32_0 = arith.constant 0 : i32
    %c0_i32_1 = arith.constant 0 : i32
    return %c0_i32, %c0_i32_0 : i32, i32
  }
  func.func @transform_4(%arg0: i32) -> (i32, i32) {
    %c0_i32 = arith.constant 0 : i32
    %c0_i32_0 = arith.constant 0 : i32
    %c0_i32_1 = arith.constant 0 : i32
    return %c0_i32, %c0_i32_0 : i32, i32
  }
  func.func @transform_5(%arg0: i32) -> (i32, i32) {
    %c0_i32 = arith.constant 0 : i32
    %c0_i32_0 = arith.constant 0 : i32
    %c0_i32_1 = arith.constant 0 : i32
    return %c0_i32, %c0_i32_0 : i32, i32
  }
  func.func @transform_6(%arg0: i32) -> (i32, i32) {
    %c0_i32 = arith.constant 0 : i32
    %c0_i32_0 = arith.constant 0 : i32
    %c0_i32_1 = arith.constant 0 : i32
    return %c0_i32, %c0_i32_0 : i32, i32
  }
  func.func @transform_7(%arg0: i32) -> (i32, i32) {
    %c0_i32 = arith.constant 0 : i32
    %c0_i32_0 = arith.constant 0 : i32
    %c0_i32_1 = arith.constant 0 : i32
    return %c0_i32, %c0_i32_0 : i32, i32
  }
  func.func @transform_8(%arg0: i32) -> (i32, i32) {
    %c0_i32 = arith.constant 0 : i32
    %c0_i32_0 = arith.constant 0 : i32
    %c0_i32_1 = arith.constant 0 : i32
    return %c0_i32, %c0_i32_0 : i32, i32
  }
  func.func @transform_9(%arg0: i32) -> (i32, i32) {
    %c0_i32 = arith.constant 0 : i32
    %c0_i32_0 = arith.constant 0 : i32
    %c0_i32_1 = arith.constant 0 : i32
    return %c0_i32, %c0_i32_0 : i32, i32
  }
  func.func @transform_10(%arg0: i32) -> (i32, i32) {
    %c0_i32 = arith.constant 0 : i32
    %c0_i32_0 = arith.constant 0 : i32
    %c0_i32_1 = arith.constant 0 : i32
    return %c0_i32, %c0_i32_0 : i32, i32
  }
  func.func @transform_11(%arg0: i32) -> (i32, i32) {
    %c0_i32 = arith.constant 0 : i32
    %c0_i32_0 = arith.constant 0 : i32
    %c0_i32_1 = arith.constant 0 : i32
    return %c0_i32, %c0_i32_0 : i32, i32
  }
  func.func @transform_12(%arg0: i32) -> (i32, i32) {
    %c0_i32 = arith.constant 0 : i32
    %c0_i32_0 = arith.constant 0 : i32
    %c0_i32_1 = arith.constant 0 : i32
    return %c0_i32, %c0_i32_0 : i32, i32
  }
  func.func @transform_13(%arg0: i32) -> (i32, i32) {
    %c0_i32 = arith.constant 0 : i32
    %c0_i32_0 = arith.constant 0 : i32
    %c0_i32_1 = arith.constant 0 : i32
    return %c0_i32, %c0_i32_0 : i32, i32
  }
  func.func @transform_14(%arg0: i32) -> (i32, i32) {
    %c0_i32 = arith.constant 0 : i32
    %c0_i32_0 = arith.constant 0 : i32
    %c0_i32_1 = arith.constant 0 : i32
    return %c0_i32, %c0_i32_0 : i32, i32
  }
  func.func @transform_15(%arg0: i32) -> (i32, i32) {
    %c0_i32 = arith.constant 0 : i32
    %c0_i32_0 = arith.constant 0 : i32
    %c0_i32_1 = arith.constant 0 : i32
    return %c0_i32, %c0_i32_0 : i32, i32
  }
  func.func @transform_16(%arg0: i32) -> (i32, i32) {
    %c0_i32 = arith.constant 0 : i32
    %c0_i32_0 = arith.constant 0 : i32
    %c0_i32_1 = arith.constant 0 : i32
    return %c0_i32, %c0_i32_0 : i32, i32
  }
  func.func @transform_17(%arg0: i32) -> (i32, i32) {
    %c0_i32 = arith.constant 0 : i32
    %c0_i32_0 = arith.constant 0 : i32
    %c0_i32_1 = arith.constant 0 : i32
    return %c0_i32, %c0_i32_0 : i32, i32
  }
  func.func @transform_18(%arg0: i32) -> (i32, i32) {
    %c0_i32 = arith.constant 0 : i32
    %c0_i32_0 = arith.constant 0 : i32
    %c0_i32_1 = arith.constant 0 : i32
    return %c0_i32, %c0_i32_0 : i32, i32
  }
  func.func @transform_19(%arg0: i32) -> (i32, i32) {
    %c0_i32 = arith.constant 0 : i32
    %c0_i32_0 = arith.constant 0 : i32
    %c0_i32_1 = arith.constant 0 : i32
    return %c0_i32, %c0_i32_0 : i32, i32
  }
  func.func @transform_20(%arg0: i32) -> (i32, i32) {
    %c0_i32 = arith.constant 0 : i32
    %c0_i32_0 = arith.constant 0 : i32
    %c0_i32_1 = arith.constant 0 : i32
    return %c0_i32, %c0_i32_0 : i32, i32
  }
}

</mosaic_0001>

<llo_original>
// kernel: g_forward.2
$region0: #{g_forward.2}
  #allocation0 [shape = 'u32[]', space=smem, size = 0x4, offset = 0x4, fixed_abs, tag = 'smem constant byte address 0x4 - core index']
  #allocation1 [shape = 'u32[72,128]{1,0:T(1,128)}', space=vmem, size = 0x9000, scoped, tag = 'internal scratch']
  %s0 = inlined_call_operand.hbm [shape: f32[1,100], index: 0, kind: input, shape index: {}]
  %s1 = inlined_call_operand.hbm [shape: bf16[100,25600], index: 1, kind: input, shape index: {}]
  %s2 = inlined_call_operand.hbm [shape: f32[1,25600], index: 2, kind: input, shape index: {}]
  %s3 = inlined_call_operand.vmem [shape: f32[1,25600], index: 3, kind: output, shape index: {}]
  %s4 = sld [smem:[#allocation0]]
  $region57: #{g_forward.2} parent=0
    _
  %s6 = ssub.s32 1, %s4
  %s7 = scalar_select 0, %s6, %s4
  $region1: #{g_forward.2} parent=0
    #allocation2 [shape = 'u8[512]{0}', space=vmem, size = 0x400, scoped, tag = 'input window, operand 0, single buffered']
    #allocation3 [shape = 's32[2]{0}', space=sflag, size = 0x8, scoped, tag = 'scoped memory for g_forward.2']
    #allocation4 [shape = 'u8[2662400]{0}', space=vmem, size = 0x28a000, scoped, tag = 'input window, operand 1']
    #allocation5 [shape = 's32[2]{0}', space=sflag, size = 0x8, scoped, tag = 'scoped memory for g_forward.2']
    #allocation6 [shape = 'u8[51200]{0}', space=vmem, size = 0xc800, scoped, tag = 'input window, operand 2']
    %8 = vsyncpa [#allocation3], 0
    %9 = vsyncpa [#allocation5], 0
    %s10 = scalar_lea.sflag [#allocation5], 1
    %11 = vsyncpa %s10, 0
    loop: start=0, step=1, limit=6
    $region2: #{g_forward.2} parent=1 // loop_pre_header
      _
    $region3: #{g_forward.2} parent=1 // loop_header
      %s13 = sphi 0, %s17
      %p14 = scmp.ge.s32.totalorder %s13, 6
      %s21 = sphi 0, %s21
      %s23 = sphi 0, %s21
      %s24 = sphi 0, %s23
      %s38 = sphi 0, %s24
      %s44 = sphi 0, %s46
      %s47 = sphi 0, %s44
      %s48 = sphi 0, %s47
      %s64 = sphi 0, %s48
      %s70 = sphi 0, %s72
      %s73 = sphi 0, %s70
      %s74 = sphi 0, %s73
      %s90 = sphi 0, %s74
      %s96 = sphi 0, %s98
      %s99 = sphi 0, %s96
      %s100 = sphi 0, %s99
      %s116 = sphi 0, %s100
    $region4: #{g_forward.2} parent=1 // loop_header_branch
      %16 = sbr.rel (%p14) target = $region8
    $region5: #{g_forward.2} parent=1 // loop_body
      %s18 = ssub.s32 %s13, 1
      %s19 = ssub.s32 %s13, 2
      %s20 = sadd.s32 %s13, 1
      %s22 = sadd.s32 %s21, 1
      %p25 = scmp.eq.s32.totalorder %s13, 3
      %p26 = scmp.ne.s32.totalorder %s21, %s23
      %p27 = scmp.eq.s32.totalorder %s13, 0
      %p28 = por %p26, %p27
      %p29 = scmp.ne.s32.totalorder %s21, %s23
      %p30 = scmp.eq.s32.totalorder %s18, 3
      %p31 = por %p29, %p30
      %p32 = scmp.ne.s32.totalorder %s23, %s24
      %p33 = scmp.eq.s32.totalorder %s18, 0
      %p34 = por %p32, %p33
      %p35 = scmp.ne.s32.totalorder %s23, %s24
      %p36 = scmp.eq.s32.totalorder %s19, 3
      %p37 = por %p35, %p36
      %p39 = scmp.ne.s32.totalorder %s24, %s38
      %p40 = scmp.eq.s32.totalorder %s19, 0
      %p41 = por %p39, %p40
      %s42 = ssub.s32 %s13, %s20
      %p43 = scmp.eq.s32.totalorder %s42, 0
      %s45 = sadd.s32 %s44, 1
      %s46 = scalar_select %p43, %s44, %s45
      %p49 = pneg %p43
      %p50 = scmp.eq.s32.totalorder %s13, 3
      %p51 = por %p49, %p50
      %p52 = scmp.ne.s32.totalorder %s44, %s47
      %p53 = scmp.eq.s32.totalorder %s13, 0
      %p54 = por %p52, %p53
      %p55 = scmp.ne.s32.totalorder %s44, %s47
      %p56 = scmp.eq.s32.totalorder %s18, 3
      %p57 = por %p55, %p56
      %p58 = scmp.ne.s32.totalorder %s47, %s48
      %p59 = scmp.eq.s32.totalorder %s18, 0
      %p60 = por %p58, %p59
      %p61 = scmp.ne.s32.totalorder %s47, %s48
      %p62 = scmp.eq.s32.totalorder %s19, 3
      %p63 = por %p61, %p62
      %p65 = scmp.ne.s32.totalorder %s48, %s64
      %p66 = scmp.eq.s32.totalorder %s19, 0
      %p67 = por %p65, %p66
      %s68 = ssub.s32 %s13, %s20
      %p69 = scmp.eq.s32.totalorder %s68, 0
      %s71 = sadd.s32 %s70, 1
      %s72 = scalar_select %p69, %s70, %s71
      %p75 = pneg %p69
      %p76 = scmp.eq.s32.totalorder %s13, 3
      %p77 = por %p75, %p76
      %p78 = scmp.ne.s32.totalorder %s70, %s73
      %p79 = scmp.eq.s32.totalorder %s13, 0
      %p80 = por %p78, %p79
      %p81 = scmp.ne.s32.totalorder %s70, %s73
      %p82 = scmp.eq.s32.totalorder %s18, 3
      %p83 = por %p81, %p82
      %p84 = scmp.ne.s32.totalorder %s73, %s74
      %p85 = scmp.eq.s32.totalorder %s18, 0
      %p86 = por %p84, %p85
      %p87 = scmp.ne.s32.totalorder %s73, %s74
      %p88 = scmp.eq.s32.totalorder %s19, 3
      %p89 = por %p87, %p88
      %p91 = scmp.ne.s32.totalorder %s74, %s90
      %p92 = scmp.eq.s32.totalorder %s19, 0
      %p93 = por %p91, %p92
      %s94 = ssub.s32 %s13, %s20
      %p95 = scmp.eq.s32.totalorder %s94, 0
      %s97 = sadd.s32 %s96, 1
      %s98 = scalar_select %p95, %s96, %s97
      %p101 = pneg %p95
      %p102 = scmp.eq.s32.totalorder %s13, 3
      %p103 = por %p101, %p102
      %p104 = scmp.ne.s32.totalorder %s96, %s99
      %p105 = scmp.eq.s32.totalorder %s13, 0
      %p106 = por %p104, %p105
      %p107 = scmp.ne.s32.totalorder %s96, %s99
      %p108 = scmp.eq.s32.totalorder %s18, 3
      %p109 = por %p107, %p108
      %p110 = scmp.ne.s32.totalorder %s99, %s100
      %p111 = scmp.eq.s32.totalorder %s18, 0
      %p112 = por %p110, %p111
      %p113 = scmp.ne.s32.totalorder %s99, %s100
      %p114 = scmp.eq.s32.totalorder %s19, 3
      %p115 = por %p113, %p114
      %p117 = scmp.ne.s32.totalorder %s100, %s116
      %p118 = scmp.eq.s32.totalorder %s19, 0
      %p119 = por %p117, %p118
      %p120 = scmp.le.s32.totalorder 1, %s13
      %p121 = scmp.lt.s32.totalorder %s13, 5
      %p122 = pnand %p120, %p121
      %p123 = pneg %p122
      // Predicated region
      $region9: #{g_forward.2} parent=5 // pred_check
        _
      $region10: #{g_forward.2} parent=5 // pred_check_branch
        %125 = sbr.rel (%p122) target = $region12
      $region11: #{g_forward.2} parent=5 // pred_region
        %s126 = ssub.s32 %s13, 1
        // Predicated region
        $region13: #{g_forward.2} parent=11 // pred_check
          %p127 = pneg %p34
        $region14: #{g_forward.2} parent=11 // pred_check_branch
          %129 = sbr.rel (%p127) target = $region16
        $region15: #{g_forward.2} parent=11 // pred_region
          %131 = vsyncadd [#allocation3], 0
          %s133 = sshll.u32 %s0, 4
          %s134 = int_to_ptr.hbm [resolvable:$true] %s133
          %s135 = sshll.u32 [#allocation2], 4
          %s136 = int_to_ptr.vmem [resolvable:$true] %s135
          %138 = dma.hbm_to_vmem [thread:$0]  %s134, 16, %s136, [#allocation3]
        $region16: #{g_forward.2} parent=11 // pred_fallthru
          _
      $region12: #{g_forward.2} parent=5 // pred_fallthru
        _
      %p139 = scmp.lt.s32.totalorder %s13, 4
      // Predicated region
      $region17: #{g_forward.2} parent=5 // pred_check
        %p140 = pneg %p139
      $region18: #{g_forward.2} parent=5 // pred_check_branch
        %142 = sbr.rel (%p140) target = $region20
      $region19: #{g_forward.2} parent=5 // pred_region
        // Predicated region
        $region21: #{g_forward.2} parent=19 // pred_check
          %p143 = pneg %p54
        $region22: #{g_forward.2} parent=19 // pred_check_branch
          %145 = sbr.rel (%p143) target = $region24
        $region23: #{g_forward.2} parent=19 // pred_region
          %s146 = sand.u32 %s13, 1
          %s147 = scalar_lea.sflag [#allocation5], %s146
          %s148 = sand.u32 %s44, 1
          %s149 = smul.addr %s148, 2600
          %s150 = scalar_lea.vmem [#allocation4], %s149
          %s151 = smul.u32 50, %s13
          %153 = vsyncadd %s147, 0
          %s154 = smul.addr %s151, 4
          %s155 = scalar_lea.hbm %s1, %s154
          %s156 = sshll.u32 %s155, 4
          %s157 = int_to_ptr.hbm [resolvable:$true] %s156
          %s158 = sshll.u32 %s150, 4
          %s159 = int_to_ptr.vmem [resolvable:$true] %s158
          %164 = dma.hbm_to_vmem [thread:$0]  %s157, 41600, %s159, %s147, 12800, 3200, 200
        $region24: #{g_forward.2} parent=19 // pred_fallthru
          _
        // Predicated region
        $region25: #{g_forward.2} parent=19 // pred_check
          %p165 = pneg %p80
        $region26: #{g_forward.2} parent=19 // pred_check_branch
          %167 = sbr.rel (%p165) target = $region28
        $region27: #{g_forward.2} parent=19 // pred_region
          %s168 = sand.u32 %s13, 1
          %s169 = scalar_lea.sflag [#allocation5], %s168
          %s170 = sand.u32 %s70, 1
          %s171 = smul.addr %s170, 50
          %s172 = scalar_lea.vmem [#allocation6], %s171
          %s173 = smul.u32 50, %s13
          %175 = vsyncadd %s169, 0
          %s176 = scalar_lea.hbm %s2, %s173
          %s178 = sshll.u32 %s176, 4
          %s179 = int_to_ptr.hbm [resolvable:$true] %s178
          %s180 = sshll.u32 %s172, 4
          %s181 = int_to_ptr.vmem [resolvable:$true] %s180
          %183 = dma.hbm_to_vmem [thread:$0]  %s179, 800, %s181, %s169
        $region28: #{g_forward.2} parent=19 // pred_fallthru
          _
      $region20: #{g_forward.2} parent=5 // pred_fallthru
        _
      %p184 = scmp.le.s32.totalorder 1, %s13
      %p185 = scmp.lt.s32.totalorder %s13, 5
      %p186 = pnand %p184, %p185
      %p187 = pneg %p186
      // Predicated region
      $region29: #{g_forward.2} parent=5 // pred_check
        _
      $region30: #{g_forward.2} parent=5 // pred_check_branch
        %189 = sbr.rel (%p186) target = $region32
      $region31: #{g_forward.2} parent=5 // pred_region
        %s190 = ssub.s32 %s13, 1
        // Predicated region
        $region33: #{g_forward.2} parent=31 // pred_check
          %p191 = pneg %p34
        $region34: #{g_forward.2} parent=31 // pred_check_branch
          %193 = sbr.rel (%p191) target = $region36
        $region35: #{g_forward.2} parent=31 // pred_region
          %195 = dma.done [#allocation3], 16
        $region36: #{g_forward.2} parent=31 // pred_fallthru
          _
        %s196 = sand.u32 %s18, 1
        %s197 = scalar_lea.sflag [#allocation5], %s196
        %s198 = sand.u32 %s47, 1
        %s199 = smul.addr %s198, 2600
        %s200 = scalar_lea.vmem [#allocation4], %s199
        // Predicated region
        $region37: #{g_forward.2} parent=31 // pred_check
          %p201 = pneg %p60
        $region38: #{g_forward.2} parent=31 // pred_check_branch
          %203 = sbr.rel (%p201) target = $region40
        $region39: #{g_forward.2} parent=31 // pred_region
          %205 = dma.done %s197, 41600
        $region40: #{g_forward.2} parent=31 // pred_fallthru
          _
        %s206 = sand.u32 %s18, 1
        %s207 = scalar_lea.sflag [#allocation5], %s206
        %s208 = sand.u32 %s73, 1
        %s209 = smul.addr %s208, 50
        %s210 = scalar_lea.vmem [#allocation6], %s209
        // Predicated region
        $region41: #{g_forward.2} parent=31 // pred_check
          %p211 = pneg %p86
        $region42: #{g_forward.2} parent=31 // pred_check_branch
          %213 = sbr.rel (%p211) target = $region44
        $region43: #{g_forward.2} parent=31 // pred_region
          %215 = dma.done %s207, 800
        $region44: #{g_forward.2} parent=31 // pred_fallthru
          _
        %p216 = pneg %p34
        %p217 = pneg %p31
        %s218 = sand.u32 %s18, 1
        %s219 = scalar_lea.sflag [#allocation5], %s218
        %s220 = sand.u32 %s47, 1
        %s221 = smul.addr %s220, 2600
        %s222 = scalar_lea.vmem [#allocation4], %s221
        %p223 = pneg %p60
        %p224 = pneg %p57
        %s225 = sand.u32 %s18, 1
        %s226 = scalar_lea.sflag [#allocation5], %s225
        %s227 = sand.u32 %s73, 1
        %s228 = smul.addr %s227, 50
        %s229 = scalar_lea.vmem [#allocation6], %s228
        %p230 = pneg %p86
        %p231 = pneg %p83
        %p232 = pneg %p112
        %p233 = pneg %p109
        %s234 = smul.u32 50, %s18
        %p235 = scmp.lt.s32.totalorder %s234, 199
        %s236 = scalar_select %p235, %s234, 199
        %s237 = scalar_lea.vmem %s3, %s236
        %s238 = smul.u32 50, %s18
        %s239 = smul.u32 50, %s18
        %s240 = smul.u32 50, %s18
        %p241 = scmp.lt.s32.totalorder %s240, 199
        %s242 = scalar_select %p241, %s240, 199
        %s243 = scalar_lea.vmem %s3, %s242
        %s244 = smul.u32 50, %s18
        %v246 = vld [vmem:[#allocation2] sm:$0x1]
        %v247 = vpack.c.bf16 %v246, %v246
        %v248 = vld [vmem:[%s200] sm:$0xff]
        %v249 = vld [vmem:[%s200 + $0x8] sm:$0xff]
        %v250 = vld [vmem:[%s200 + $0x10] sm:$0xff]
        %v251 = vld [vmem:[%s200 + $0x18] sm:$0xff]
        %v252 = vld [vmem:[%s200 + $0x20] sm:$0xff]
        %v253 = vld [vmem:[%s200 + $0x28] sm:$0xff]
        %v254 = vld [vmem:[%s200 + $0x30] sm:$0xff]
        %v255 = vld [vmem:[%s200 + $0x38] sm:$0xff]
        %v256 = vld [vmem:[%s200 + $0x40] sm:$0xff]
        %v257 = vld [vmem:[%s200 + $0x48] sm:$0xff]
        %v258 = vld [vmem:[%s200 + $0x50] sm:$0xff]
        %v259 = vld [vmem:[%s200 + $0x58] sm:$0xff]
        %v260 = vld [vmem:[%s200 + $0x60] sm:$0xff]
        %v261 = vld [vmem:[%s200 + $0x68] sm:$0xff]
        %v262 = vld [vmem:[%s200 + $0x70] sm:$0xff]
        %v263 = vld [vmem:[%s200 + $0x78] sm:$0xff]
        %v264 = vld [vmem:[%s200 + $0x80] sm:$0xff]
        %v265 = vld [vmem:[%s200 + $0x88] sm:$0xff]
        %v266 = vld [vmem:[%s200 + $0x90] sm:$0xff]
        %v267 = vld [vmem:[%s200 + $0x98] sm:$0xff]
        %v268 = vld [vmem:[%s200 + $0xa0] sm:$0xff]
        %v269 = vld [vmem:[%s200 + $0xa8] sm:$0xff]
        %v270 = vld [vmem:[%s200 + $0xb0] sm:$0xff]
        %v271 = vld [vmem:[%s200 + $0xb8] sm:$0xff]
        %v272 = vld [vmem:[%s200 + $0xc0] sm:$0xff]
        %v273 = vld [vmem:[%s200 + $0xc8] sm:$0xff]
        %v274 = vld [vmem:[%s200 + $0xd0] sm:$0xff]
        %v275 = vld [vmem:[%s200 + $0xd8] sm:$0xff]
        %v276 = vld [vmem:[%s200 + $0xe0] sm:$0xff]
        %v277 = vld [vmem:[%s200 + $0xe8] sm:$0xff]
        %v278 = vld [vmem:[%s200 + $0xf0] sm:$0xff]
        %v279 = vld [vmem:[%s200 + $0xf8] sm:$0xff]
        %v280 = vld [vmem:[%s200 + $0x100] sm:$0xff]
        %v281 = vld [vmem:[%s200 + $0x108] sm:$0xff]
        %v282 = vld [vmem:[%s200 + $0x110] sm:$0xff]
        %v283 = vld [vmem:[%s200 + $0x118] sm:$0xff]
        %v284 = vld [vmem:[%s200 + $0x120] sm:$0xff]
        %v285 = vld [vmem:[%s200 + $0x128] sm:$0xff]
        %v286 = vld [vmem:[%s200 + $0x130] sm:$0xff]
        %v287 = vld [vmem:[%s200 + $0x138] sm:$0xff]
        %v288 = vld [vmem:[%s200 + $0x140] sm:$0xff]
        %v289 = vld [vmem:[%s200 + $0x148] sm:$0xff]
        %v290 = vld [vmem:[%s200 + $0x150] sm:$0xff]
        %v291 = vld [vmem:[%s200 + $0x158] sm:$0xff]
        %v292 = vld [vmem:[%s200 + $0x160] sm:$0xff]
        %v293 = vld [vmem:[%s200 + $0x168] sm:$0xff]
        %v294 = vld [vmem:[%s200 + $0x170] sm:$0xff]
        %v295 = vld [vmem:[%s200 + $0x178] sm:$0xff]
        %v296 = vld [vmem:[%s200 + $0x180] sm:$0xff]
        %v297 = vld [vmem:[%s200 + $0x188] sm:$0xff]
        %v298 = vld [vmem:[%s200 + $0x190] sm:$0xff]
        %v299 = vld [vmem:[%s200 + $0x198] sm:$0xff]
        %v300 = vld [vmem:[%s200 + $0x1a0] sm:$0xff]
        %v301 = vld [vmem:[%s200 + $0x1a8] sm:$0xff]
        %v302 = vld [vmem:[%s200 + $0x1b0] sm:$0xff]
        %v303 = vld [vmem:[%s200 + $0x1b8] sm:$0xff]
        %v304 = vld [vmem:[%s200 + $0x1c0] sm:$0xff]
        %v305 = vld [vmem:[%s200 + $0x1c8] sm:$0xff]
        %v306 = vld [vmem:[%s200 + $0x1d0] sm:$0xff]
        %v307 = vld [vmem:[%s200 + $0x1d8] sm:$0xff]
        %v308 = vld [vmem:[%s200 + $0x1e0] sm:$0xff]
        %v309 = vld [vmem:[%s200 + $0x1e8] sm:$0xff]
        %v310 = vld [vmem:[%s200 + $0x1f0] sm:$0xff]
        %v311 = vld [vmem:[%s200 + $0x1f8] sm:$0xff]
        %v312 = vld [vmem:[%s200 + $0x200] sm:$0xff]
        %v313 = vld [vmem:[%s200 + $0x208] sm:$0xff]
        %v314 = vld [vmem:[%s200 + $0x210] sm:$0xff]
        %v315 = vld [vmem:[%s200 + $0x218] sm:$0xff]
        %v316 = vld [vmem:[%s200 + $0x220] sm:$0xff]
        %v317 = vld [vmem:[%s200 + $0x228] sm:$0xff]
        %v318 = vld [vmem:[%s200 + $0x230] sm:$0xff]
        %v319 = vld [vmem:[%s200 + $0x238] sm:$0xff]
        %v320 = vld [vmem:[%s200 + $0x240] sm:$0xff]
        %v321 = vld [vmem:[%s200 + $0x248] sm:$0xff]
        %v322 = vld [vmem:[%s200 + $0x250] sm:$0xff]
        %v323 = vld [vmem:[%s200 + $0x258] sm:$0xff]
        %v324 = vld [vmem:[%s200 + $0x260] sm:$0xff]
        %v325 = vld [vmem:[%s200 + $0x268] sm:$0xff]
        %v326 = vld [vmem:[%s200 + $0x270] sm:$0xff]
        %v327 = vld [vmem:[%s200 + $0x278] sm:$0xff]
        %v328 = vld [vmem:[%s200 + $0x280] sm:$0xff]
        %v329 = vld [vmem:[%s200 + $0x288] sm:$0xff]
        %v330 = vld [vmem:[%s200 + $0x290] sm:$0xff]
        %v331 = vld [vmem:[%s200 + $0x298] sm:$0xff]
        %v332 = vld [vmem:[%s200 + $0x2a0] sm:$0xff]
        %v333 = vld [vmem:[%s200 + $0x2a8] sm:$0xff]
        %v334 = vld [vmem:[%s200 + $0x2b0] sm:$0xff]
        %v335 = vld [vmem:[%s200 + $0x2b8] sm:$0xff]
        %v336 = vld [vmem:[%s200 + $0x2c0] sm:$0xff]
        %v337 = vld [vmem:[%s200 + $0x2c8] sm:$0xff]
        %v338 = vld [vmem:[%s200 + $0x2d0] sm:$0xff]
        %v339 = vld [vmem:[%s200 + $0x2d8] sm:$0xff]
        %v340 = vld [vmem:[%s200 + $0x2e0] sm:$0xff]
        %v341 = vld [vmem:[%s200 + $0x2e8] sm:$0xff]
        %v342 = vld [vmem:[%s200 + $0x2f0] sm:$0xff]
        %v343 = vld [vmem:[%s200 + $0x2f8] sm:$0xff]
        %v344 = vld [vmem:[%s200 + $0x300] sm:$0xff]
        %v345 = vld [vmem:[%s200 + $0x308] sm:$0xff]
        %v346 = vld [vmem:[%s200 + $0x310] sm:$0xff]
        %v347 = vld [vmem:[%s200 + $0x318] sm:$0xff]
        %v348 = vld [vmem:[%s200 + $0x320] sm:$0xff]
        %v349 = vld [vmem:[%s200 + $0x328] sm:$0xff]
        %v350 = vld [vmem:[%s200 + $0x330] sm:$0xff]
        %v351 = vld [vmem:[%s200 + $0x338] sm:$0xff]
        %v352 = vld [vmem:[%s200 + $0x340] sm:$0xff]
        %v353 = vld [vmem:[%s200 + $0x348] sm:$0xff]
        %v354 = vld [vmem:[%s200 + $0x350] sm:$0xff]
        %v355 = vld [vmem:[%s200 + $0x358] sm:$0xff]
        %v356 = vld [vmem:[%s200 + $0x360] sm:$0xff]
        %v357 = vld [vmem:[%s200 + $0x368] sm:$0xff]
        %v358 = vld [vmem:[%s200 + $0x370] sm:$0xff]
        %v359 = vld [vmem:[%s200 + $0x378] sm:$0xff]
        %v360 = vld [vmem:[%s200 + $0x380] sm:$0xff]
        %v361 = vld [vmem:[%s200 + $0x388] sm:$0xff]
        %v362 = vld [vmem:[%s200 + $0x390] sm:$0xff]
        %v363 = vld [vmem:[%s200 + $0x398] sm:$0xff]
        %v364 = vld [vmem:[%s200 + $0x3a0] sm:$0xff]
        %v365 = vld [vmem:[%s200 + $0x3a8] sm:$0xff]
        %v366 = vld [vmem:[%s200 + $0x3b0] sm:$0xff]
        %v367 = vld [vmem:[%s200 + $0x3b8] sm:$0xff]
        %v368 = vld [vmem:[%s200 + $0x3c0] sm:$0xff]
        %v369 = vld [vmem:[%s200 + $0x3c8] sm:$0xff]
        %v370 = vld [vmem:[%s200 + $0x3d0] sm:$0xff]
        %v371 = vld [vmem:[%s200 + $0x3d8] sm:$0xff]
        %v372 = vld [vmem:[%s200 + $0x3e0] sm:$0xff]
        %v373 = vld [vmem:[%s200 + $0x3e8] sm:$0xff]
        %v374 = vld [vmem:[%s200 + $0x3f0] sm:$0xff]
        %v375 = vld [vmem:[%s200 + $0x3f8] sm:$0xff]
        %v376 = vld [vmem:[%s200 + $0x400] sm:$0xff]
        %v377 = vld [vmem:[%s200 + $0x408] sm:$0xff]
        %v378 = vld [vmem:[%s200 + $0x410] sm:$0xff]
        %v379 = vld [vmem:[%s200 + $0x418] sm:$0xff]
        %v380 = vld [vmem:[%s200 + $0x420] sm:$0xff]
        %v381 = vld [vmem:[%s200 + $0x428] sm:$0xff]
        %v382 = vld [vmem:[%s200 + $0x430] sm:$0xff]
        %v383 = vld [vmem:[%s200 + $0x438] sm:$0xff]
        %v384 = vld [vmem:[%s200 + $0x440] sm:$0xff]
        %v385 = vld [vmem:[%s200 + $0x448] sm:$0xff]
        %v386 = vld [vmem:[%s200 + $0x450] sm:$0xff]
        %v387 = vld [vmem:[%s200 + $0x458] sm:$0xff]
        %v388 = vld [vmem:[%s200 + $0x460] sm:$0xff]
        %v389 = vld [vmem:[%s200 + $0x468] sm:$0xff]
        %v390 = vld [vmem:[%s200 + $0x470] sm:$0xff]
        %v391 = vld [vmem:[%s200 + $0x478] sm:$0xff]
        %v392 = vld [vmem:[%s200 + $0x480] sm:$0xff]
        %v393 = vld [vmem:[%s200 + $0x488] sm:$0xff]
        %v394 = vld [vmem:[%s200 + $0x490] sm:$0xff]
        %v395 = vld [vmem:[%s200 + $0x498] sm:$0xff]
        %v396 = vld [vmem:[%s200 + $0x4a0] sm:$0xff]
        %v397 = vld [vmem:[%s200 + $0x4a8] sm:$0xff]
        %v398 = vld [vmem:[%s200 + $0x4b0] sm:$0xff]
        %v399 = vld [vmem:[%s200 + $0x4b8] sm:$0xff]
        %v400 = vld [vmem:[%s200 + $0x4c0] sm:$0xff]
        %v401 = vld [vmem:[%s200 + $0x4c8] sm:$0xff]
        %v402 = vld [vmem:[%s200 + $0x4d0] sm:$0xff]
        %v403 = vld [vmem:[%s200 + $0x4d8] sm:$0xff]
        %v404 = vld [vmem:[%s200 + $0x4e0] sm:$0xff]
        %v405 = vld [vmem:[%s200 + $0x4e8] sm:$0xff]
        %v406 = vld [vmem:[%s200 + $0x4f0] sm:$0xff]
        %v407 = vld [vmem:[%s200 + $0x4f8] sm:$0xff]
        %v408 = vld [vmem:[%s200 + $0x500] sm:$0xff]
        %v409 = vld [vmem:[%s200 + $0x508] sm:$0xff]
        %v410 = vld [vmem:[%s200 + $0x510] sm:$0xff]
        %v411 = vld [vmem:[%s200 + $0x518] sm:$0xff]
        %v412 = vld [vmem:[%s200 + $0x520] sm:$0xff]
        %v413 = vld [vmem:[%s200 + $0x528] sm:$0xff]
        %v414 = vld [vmem:[%s200 + $0x530] sm:$0xff]
        %v415 = vld [vmem:[%s200 + $0x538] sm:$0xff]
        %v416 = vld [vmem:[%s200 + $0x540] sm:$0xff]
        %v417 = vld [vmem:[%s200 + $0x548] sm:$0xff]
        %v418 = vld [vmem:[%s200 + $0x550] sm:$0xff]
        %v419 = vld [vmem:[%s200 + $0x558] sm:$0xff]
        %v420 = vld [vmem:[%s200 + $0x560] sm:$0xff]
        %v421 = vld [vmem:[%s200 + $0x568] sm:$0xff]
        %v422 = vld [vmem:[%s200 + $0x570] sm:$0xff]
        %v423 = vld [vmem:[%s200 + $0x578] sm:$0xff]
        %v424 = vld [vmem:[%s200 + $0x580] sm:$0xff]
        %v425 = vld [vmem:[%s200 + $0x588] sm:$0xff]
        %v426 = vld [vmem:[%s200 + $0x590] sm:$0xff]
        %v427 = vld [vmem:[%s200 + $0x598] sm:$0xff]
        %v428 = vld [vmem:[%s200 + $0x5a0] sm:$0xff]
        %v429 = vld [vmem:[%s200 + $0x5a8] sm:$0xff]
        %v430 = vld [vmem:[%s200 + $0x5b0] sm:$0xff]
        %v431 = vld [vmem:[%s200 + $0x5b8] sm:$0xff]
        %v432 = vld [vmem:[%s200 + $0x5c0] sm:$0xff]
        %v433 = vld [vmem:[%s200 + $0x5c8] sm:$0xff]
        %v434 = vld [vmem:[%s200 + $0x5d0] sm:$0xff]
        %v435 = vld [vmem:[%s200 + $0x5d8] sm:$0xff]
        %v436 = vld [vmem:[%s200 + $0x5e0] sm:$0xff]
        %v437 = vld [vmem:[%s200 + $0x5e8] sm:$0xff]
        %v438 = vld [vmem:[%s200 + $0x5f0] sm:$0xff]
        %v439 = vld [vmem:[%s200 + $0x5f8] sm:$0xff]
        %v440 = vld [vmem:[%s200 + $0x600] sm:$0xff]
        %v441 = vld [vmem:[%s200 + $0x608] sm:$0xff]
        %v442 = vld [vmem:[%s200 + $0x610] sm:$0xff]
        %v443 = vld [vmem:[%s200 + $0x618] sm:$0xff]
        %v444 = vld [vmem:[%s200 + $0x620] sm:$0xff]
        %v445 = vld [vmem:[%s200 + $0x628] sm:$0xff]
        %v446 = vld [vmem:[%s200 + $0x630] sm:$0xff]
        %v447 = vld [vmem:[%s200 + $0x638] sm:$0xff]
        %v448 = vld [vmem:[%s200 + $0x640] sm:$0xff]
        %v449 = vld [vmem:[%s200 + $0x648] sm:$0xff]
        %v450 = vld [vmem:[%s200 + $0x650] sm:$0xff]
        %v451 = vld [vmem:[%s200 + $0x658] sm:$0xff]
        %v452 = vld [vmem:[%s200 + $0x660] sm:$0xff]
        %v453 = vld [vmem:[%s200 + $0x668] sm:$0xff]
        %v454 = vld [vmem:[%s200 + $0x670] sm:$0xff]
        %v455 = vld [vmem:[%s200 + $0x678] sm:$0xff]
        %v456 = vld [vmem:[%s200 + $0x680] sm:$0xff]
        %v457 = vld [vmem:[%s200 + $0x688] sm:$0xff]
        %v458 = vld [vmem:[%s200 + $0x690] sm:$0xff]
        %v459 = vld [vmem:[%s200 + $0x698] sm:$0xff]
        %v460 = vld [vmem:[%s200 + $0x6a0] sm:$0xff]
        %v461 = vld [vmem:[%s200 + $0x6a8] sm:$0xff]
        %v462 = vld [vmem:[%s200 + $0x6b0] sm:$0xff]
        %v463 = vld [vmem:[%s200 + $0x6b8] sm:$0xff]
        %v464 = vld [vmem:[%s200 + $0x6c0] sm:$0xff]
        %v465 = vld [vmem:[%s200 + $0x6c8] sm:$0xff]
        %v466 = vld [vmem:[%s200 + $0x6d0] sm:$0xff]
        %v467 = vld [vmem:[%s200 + $0x6d8] sm:$0xff]
        %v468 = vld [vmem:[%s200 + $0x6e0] sm:$0xff]
        %v469 = vld [vmem:[%s200 + $0x6e8] sm:$0xff]
        %v470 = vld [vmem:[%s200 + $0x6f0] sm:$0xff]
        %v471 = vld [vmem:[%s200 + $0x6f8] sm:$0xff]
        %v472 = vld [vmem:[%s200 + $0x700] sm:$0xff]
        %v473 = vld [vmem:[%s200 + $0x708] sm:$0xff]
        %v474 = vld [vmem:[%s200 + $0x710] sm:$0xff]
        %v475 = vld [vmem:[%s200 + $0x718] sm:$0xff]
        %v476 = vld [vmem:[%s200 + $0x720] sm:$0xff]
        %v477 = vld [vmem:[%s200 + $0x728] sm:$0xff]
        %v478 = vld [vmem:[%s200 + $0x730] sm:$0xff]
        %v479 = vld [vmem:[%s200 + $0x738] sm:$0xff]
        %v480 = vld [vmem:[%s200 + $0x740] sm:$0xff]
        %v481 = vld [vmem:[%s200 + $0x748] sm:$0xff]
        %v482 = vld [vmem:[%s200 + $0x750] sm:$0xff]
        %v483 = vld [vmem:[%s200 + $0x758] sm:$0xff]
        %v484 = vld [vmem:[%s200 + $0x760] sm:$0xff]
        %v485 = vld [vmem:[%s200 + $0x768] sm:$0xff]
        %v486 = vld [vmem:[%s200 + $0x770] sm:$0xff]
        %v487 = vld [vmem:[%s200 + $0x778] sm:$0xff]
        %v488 = vld [vmem:[%s200 + $0x780] sm:$0xff]
        %v489 = vld [vmem:[%s200 + $0x788] sm:$0xff]
        %v490 = vld [vmem:[%s200 + $0x790] sm:$0xff]
        %v491 = vld [vmem:[%s200 + $0x798] sm:$0xff]
        %v492 = vld [vmem:[%s200 + $0x7a0] sm:$0xff]
        %v493 = vld [vmem:[%s200 + $0x7a8] sm:$0xff]
        %v494 = vld [vmem:[%s200 + $0x7b0] sm:$0xff]
        %v495 = vld [vmem:[%s200 + $0x7b8] sm:$0xff]
        %v496 = vld [vmem:[%s200 + $0x7c0] sm:$0xff]
        %v497 = vld [vmem:[%s200 + $0x7c8] sm:$0xff]
        %v498 = vld [vmem:[%s200 + $0x7d0] sm:$0xff]
        %v499 = vld [vmem:[%s200 + $0x7d8] sm:$0xff]
        %v500 = vld [vmem:[%s200 + $0x7e0] sm:$0xff]
        %v501 = vld [vmem:[%s200 + $0x7e8] sm:$0xff]
        %v502 = vld [vmem:[%s200 + $0x7f0] sm:$0xff]
        %v503 = vld [vmem:[%s200 + $0x7f8] sm:$0xff]
        %v504 = vld [vmem:[%s200 + $0x800] sm:$0xff]
        %v505 = vld [vmem:[%s200 + $0x808] sm:$0xff]
        %v506 = vld [vmem:[%s200 + $0x810] sm:$0xff]
        %v507 = vld [vmem:[%s200 + $0x818] sm:$0xff]
        %v508 = vld [vmem:[%s200 + $0x820] sm:$0xff]
        %v509 = vld [vmem:[%s200 + $0x828] sm:$0xff]
        %v510 = vld [vmem:[%s200 + $0x830] sm:$0xff]
        %v511 = vld [vmem:[%s200 + $0x838] sm:$0xff]
        %v512 = vld [vmem:[%s200 + $0x840] sm:$0xff]
        %v513 = vld [vmem:[%s200 + $0x848] sm:$0xff]
        %v514 = vld [vmem:[%s200 + $0x850] sm:$0xff]
        %v515 = vld [vmem:[%s200 + $0x858] sm:$0xff]
        %v516 = vld [vmem:[%s200 + $0x860] sm:$0xff]
        %v517 = vld [vmem:[%s200 + $0x868] sm:$0xff]
        %v518 = vld [vmem:[%s200 + $0x870] sm:$0xff]
        %v519 = vld [vmem:[%s200 + $0x878] sm:$0xff]
        %v520 = vld [vmem:[%s200 + $0x880] sm:$0xff]
        %v521 = vld [vmem:[%s200 + $0x888] sm:$0xff]
        %v522 = vld [vmem:[%s200 + $0x890] sm:$0xff]
        %v523 = vld [vmem:[%s200 + $0x898] sm:$0xff]
        %v524 = vld [vmem:[%s200 + $0x8a0] sm:$0xff]
        %v525 = vld [vmem:[%s200 + $0x8a8] sm:$0xff]
        %v526 = vld [vmem:[%s200 + $0x8b0] sm:$0xff]
        %v527 = vld [vmem:[%s200 + $0x8b8] sm:$0xff]
        %v528 = vld [vmem:[%s200 + $0x8c0] sm:$0xff]
        %v529 = vld [vmem:[%s200 + $0x8c8] sm:$0xff]
        %v530 = vld [vmem:[%s200 + $0x8d0] sm:$0xff]
        %v531 = vld [vmem:[%s200 + $0x8d8] sm:$0xff]
        %v532 = vld [vmem:[%s200 + $0x8e0] sm:$0xff]
        %v533 = vld [vmem:[%s200 + $0x8e8] sm:$0xff]
        %v534 = vld [vmem:[%s200 + $0x8f0] sm:$0xff]
        %v535 = vld [vmem:[%s200 + $0x8f8] sm:$0xff]
        %v536 = vld [vmem:[%s200 + $0x900] sm:$0xff]
        %v537 = vld [vmem:[%s200 + $0x908] sm:$0xff]
        %v538 = vld [vmem:[%s200 + $0x910] sm:$0xff]
        %v539 = vld [vmem:[%s200 + $0x918] sm:$0xff]
        %v540 = vld [vmem:[%s200 + $0x920] sm:$0xff]
        %v541 = vld [vmem:[%s200 + $0x928] sm:$0xff]
        %v542 = vld [vmem:[%s200 + $0x930] sm:$0xff]
        %v543 = vld [vmem:[%s200 + $0x938] sm:$0xff]
        %v544 = vld [vmem:[%s200 + $0x940] sm:$0xff]
        %v545 = vld [vmem:[%s200 + $0x948] sm:$0xff]
        %v546 = vld [vmem:[%s200 + $0x950] sm:$0xff]
        %v547 = vld [vmem:[%s200 + $0x958] sm:$0xff]
        %v548 = vld [vmem:[%s200 + $0x960] sm:$0x33]
        %v549 = vld [vmem:[%s200 + $0x968] sm:$0x33]
        %v550 = vld [vmem:[%s200 + $0x970] sm:$0x33]
        %v551 = vld [vmem:[%s200 + $0x978] sm:$0x33]
        %v552 = vld [vmem:[%s200 + $0x980] sm:$0x33]
        %v553 = vld [vmem:[%s200 + $0x988] sm:$0x33]
        %v554 = vld [vmem:[%s200 + $0x990] sm:$0x33]
        %v555 = vld [vmem:[%s200 + $0x998] sm:$0x33]
        %v556 = vld [vmem:[%s200 + $0x9a0] sm:$0x33]
        %v557 = vld [vmem:[%s200 + $0x9a8] sm:$0x33]
        %v558 = vld [vmem:[%s200 + $0x9b0] sm:$0x33]
        %v559 = vld [vmem:[%s200 + $0x9b8] sm:$0x33]
        %v560 = vld [vmem:[%s200 + $0x9c0] sm:$0x33]
        %v561 = vld [vmem:[%s200 + $0x9c8] sm:$0x33]
        %v562 = vld [vmem:[%s200 + $0x9d0] sm:$0x33]
        %v563 = vld [vmem:[%s200 + $0x9d8] sm:$0x33]
        %v564 = vld [vmem:[%s200 + $0x9e0] sm:$0x33]
        %v565 = vld [vmem:[%s200 + $0x9e8] sm:$0x33]
        %v566 = vld [vmem:[%s200 + $0x9f0] sm:$0x33]
        %v567 = vld [vmem:[%s200 + $0x9f8] sm:$0x33]
        %v568 = vld [vmem:[%s200 + $0xa00] sm:$0x33]
        %v569 = vld [vmem:[%s200 + $0xa08] sm:$0x33]
        %v570 = vld [vmem:[%s200 + $0xa10] sm:$0x33]
        %v571 = vld [vmem:[%s200 + $0xa18] sm:$0x33]
        %v572 = vld [vmem:[%s200 + $0xa20] sm:$0x33]
        %v573 = vld [vmem:[%s210] sm:$0xff]
        %v574 = vld [vmem:[%s210 + $0x8] sm:$0xff]
        %v575 = vld [vmem:[%s210 + $0x10] sm:$0xff]
        %v576 = vld [vmem:[%s210 + $0x18] sm:$0xff]
        %v577 = vld [vmem:[%s210 + $0x20] sm:$0xff]
        %v578 = vld [vmem:[%s210 + $0x28] sm:$0xff]
        %v579 = vld [vmem:[%s210 + $0x30] sm:$0x3]
        %v905 = vunpack.c.l.b16 %v248
        %v906 = vunpack.c.h.b16 %v248
        %v907 = vunpack.c.l.b16 %v249
        %v908 = vunpack.c.h.b16 %v249
        %v909 = vunpack.c.l.b16 %v250
        %v910 = vunpack.c.h.b16 %v250
        %v911 = vunpack.c.l.b16 %v251
        %v912 = vunpack.c.h.b16 %v251
        %v913 = vunpack.c.l.b16 %v252
        %v914 = vunpack.c.h.b16 %v252
        %v915 = vunpack.c.l.b16 %v253
        %v916 = vunpack.c.h.b16 %v253
        %v917 = vunpack.c.l.b16 %v254
        %v918 = vunpack.c.h.b16 %v254
        %v919 = vunpack.c.l.b16 %v255
        %v920 = vunpack.c.h.b16 %v255
        %v921 = vunpack.c.l.b16 %v256
        %v922 = vunpack.c.h.b16 %v256
        %v923 = vunpack.c.l.b16 %v257
        %v924 = vunpack.c.h.b16 %v257
        %v925 = vunpack.c.l.b16 %v258
        %v926 = vunpack.c.h.b16 %v258
        %v927 = vunpack.c.l.b16 %v259
        %v928 = vunpack.c.h.b16 %v259
        %v929 = vunpack.c.l.b16 %v260
        %v930 = vunpack.c.h.b16 %v260
        %v931 = vunpack.c.l.b16 %v261
        %v932 = vunpack.c.h.b16 %v261
        %v933 = vunpack.c.l.b16 %v262
        %v934 = vunpack.c.h.b16 %v262
        %v935 = vunpack.c.l.b16 %v263
        %v936 = vunpack.c.h.b16 %v263
        %v937 = vunpack.c.l.b16 %v264
        %v938 = vunpack.c.h.b16 %v264
        %v939 = vunpack.c.l.b16 %v265
        %v940 = vunpack.c.h.b16 %v265
        %v941 = vunpack.c.l.b16 %v266
        %v942 = vunpack.c.h.b16 %v266
        %v943 = vunpack.c.l.b16 %v267
        %v944 = vunpack.c.h.b16 %v267
        %v945 = vunpack.c.l.b16 %v268
        %v946 = vunpack.c.h.b16 %v268
        %v947 = vunpack.c.l.b16 %v269
        %v948 = vunpack.c.h.b16 %v269
        %v949 = vunpack.c.l.b16 %v270
        %v950 = vunpack.c.h.b16 %v270
        %v951 = vunpack.c.l.b16 %v271
        %v952 = vunpack.c.h.b16 %v271
        %v953 = vunpack.c.l.b16 %v272
        %v954 = vunpack.c.h.b16 %v272
        %v955 = vunpack.c.l.b16 %v273
        %v956 = vunpack.c.h.b16 %v273
        %v957 = vunpack.c.l.b16 %v274
        %v958 = vunpack.c.h.b16 %v274
        %v959 = vunpack.c.l.b16 %v275
        %v960 = vunpack.c.h.b16 %v275
        %v961 = vunpack.c.l.b16 %v276
        %v962 = vunpack.c.h.b16 %v276
        %v963 = vunpack.c.l.b16 %v277
        %v964 = vunpack.c.h.b16 %v277
        %v965 = vunpack.c.l.b16 %v278
        %v966 = vunpack.c.h.b16 %v278
        %v967 = vunpack.c.l.b16 %v279
        %v968 = vunpack.c.h.b16 %v279
        %v969 = vunpack.c.l.b16 %v280
        %v970 = vunpack.c.h.b16 %v280
        %v971 = vunpack.c.l.b16 %v281
        %v972 = vunpack.c.h.b16 %v281
        %v973 = vunpack.c.l.b16 %v282
        %v974 = vunpack.c.h.b16 %v282
        %v975 = vunpack.c.l.b16 %v283
        %v976 = vunpack.c.h.b16 %v283
        %v977 = vunpack.c.l.b16 %v284
        %v978 = vunpack.c.h.b16 %v284
        %v979 = vunpack.c.l.b16 %v285
        %v980 = vunpack.c.h.b16 %v285
        %v981 = vunpack.c.l.b16 %v286
        %v982 = vunpack.c.h.b16 %v286
        %v983 = vunpack.c.l.b16 %v287
        %v984 = vunpack.c.h.b16 %v287
        %v985 = vunpack.c.l.b16 %v288
        %v986 = vunpack.c.h.b16 %v288
        %v987 = vunpack.c.l.b16 %v289
        %v988 = vunpack.c.h.b16 %v289
        %v989 = vunpack.c.l.b16 %v290
        %v990 = vunpack.c.h.b16 %v290
        %v991 = vunpack.c.l.b16 %v291
        %v992 = vunpack.c.h.b16 %v291
        %v993 = vunpack.c.l.b16 %v292
        %v994 = vunpack.c.h.b16 %v292
        %v995 = vunpack.c.l.b16 %v293
        %v996 = vunpack.c.h.b16 %v293
        %v997 = vunpack.c.l.b16 %v294
        %v998 = vunpack.c.h.b16 %v294
        %v999 = vunpack.c.l.b16 %v295
        %v1000 = vunpack.c.h.b16 %v295
        %v1001 = vunpack.c.l.b16 %v296
        %v1002 = vunpack.c.h.b16 %v296
        %v1003 = vunpack.c.l.b16 %v297
        %v1004 = vunpack.c.h.b16 %v297
        %v1005 = vunpack.c.l.b16 %v298
        %v1006 = vunpack.c.h.b16 %v298
        %v1007 = vunpack.c.l.b16 %v299
        %v1008 = vunpack.c.h.b16 %v299
        %v1009 = vunpack.c.l.b16 %v300
        %v1010 = vunpack.c.h.b16 %v300
        %v1011 = vunpack.c.l.b16 %v301
        %v1012 = vunpack.c.h.b16 %v301
        %v1013 = vunpack.c.l.b16 %v302
        %v1014 = vunpack.c.h.b16 %v302
        %v1015 = vunpack.c.l.b16 %v303
        %v1016 = vunpack.c.h.b16 %v303
        %v1017 = vunpack.c.l.b16 %v304
        %v1018 = vunpack.c.h.b16 %v304
        %v1019 = vunpack.c.l.b16 %v305
        %v1020 = vunpack.c.h.b16 %v305
        %v1021 = vunpack.c.l.b16 %v306
        %v1022 = vunpack.c.h.b16 %v306
        %v1023 = vunpack.c.l.b16 %v307
        %v1024 = vunpack.c.h.b16 %v307
        %v1025 = vunpack.c.l.b16 %v308
        %v1026 = vunpack.c.h.b16 %v308
        %v1027 = vunpack.c.l.b16 %v309
        %v1028 = vunpack.c.h.b16 %v309
        %v1029 = vunpack.c.l.b16 %v310
        %v1030 = vunpack.c.h.b16 %v310
        %v1031 = vunpack.c.l.b16 %v311
        %v1032 = vunpack.c.h.b16 %v311
        %v1033 = vunpack.c.l.b16 %v312
        %v1034 = vunpack.c.h.b16 %v312
        %v1035 = vunpack.c.l.b16 %v313
        %v1036 = vunpack.c.h.b16 %v313
        %v1037 = vunpack.c.l.b16 %v314
        %v1038 = vunpack.c.h.b16 %v314
        %v1039 = vunpack.c.l.b16 %v315
        %v1040 = vunpack.c.h.b16 %v315
        %v1041 = vunpack.c.l.b16 %v316
        %v1042 = vunpack.c.h.b16 %v316
        %v1043 = vunpack.c.l.b16 %v317
        %v1044 = vunpack.c.h.b16 %v317
        %v1045 = vunpack.c.l.b16 %v318
        %v1046 = vunpack.c.h.b16 %v318
        %v1047 = vunpack.c.l.b16 %v319
        %v1048 = vunpack.c.h.b16 %v319
        %v1049 = vunpack.c.l.b16 %v320
        %v1050 = vunpack.c.h.b16 %v320
        %v1051 = vunpack.c.l.b16 %v321
        %v1052 = vunpack.c.h.b16 %v321
        %v1053 = vunpack.c.l.b16 %v322
        %v1054 = vunpack.c.h.b16 %v322
        %v1055 = vunpack.c.l.b16 %v323
        %v1056 = vunpack.c.h.b16 %v323
        %v1057 = vunpack.c.l.b16 %v324
        %v1058 = vunpack.c.h.b16 %v324
        %v1059 = vunpack.c.l.b16 %v325
        %v1060 = vunpack.c.h.b16 %v325
        %v1061 = vunpack.c.l.b16 %v326
        %v1062 = vunpack.c.h.b16 %v326
        %v1063 = vunpack.c.l.b16 %v327
        %v1064 = vunpack.c.h.b16 %v327
        %v1065 = vunpack.c.l.b16 %v328
        %v1066 = vunpack.c.h.b16 %v328
        %v1067 = vunpack.c.l.b16 %v329
        %v1068 = vunpack.c.h.b16 %v329
        %v1069 = vunpack.c.l.b16 %v330
        %v1070 = vunpack.c.h.b16 %v330
        %v1071 = vunpack.c.l.b16 %v331
        %v1072 = vunpack.c.h.b16 %v331
        %v1073 = vunpack.c.l.b16 %v332
        %v1074 = vunpack.c.h.b16 %v332
        %v1075 = vunpack.c.l.b16 %v333
        %v1076 = vunpack.c.h.b16 %v333
        %v1077 = vunpack.c.l.b16 %v334
        %v1078 = vunpack.c.h.b16 %v334
        %v1079 = vunpack.c.l.b16 %v335
        %v1080 = vunpack.c.h.b16 %v335
        %v1081 = vunpack.c.l.b16 %v336
        %v1082 = vunpack.c.h.b16 %v336
        %v1083 = vunpack.c.l.b16 %v337
        %v1084 = vunpack.c.h.b16 %v337
        %v1085 = vunpack.c.l.b16 %v338
        %v1086 = vunpack.c.h.b16 %v338
        %v1087 = vunpack.c.l.b16 %v339
        %v1088 = vunpack.c.h.b16 %v339
        %v1089 = vunpack.c.l.b16 %v340
        %v1090 = vunpack.c.h.b16 %v340
        %v1091 = vunpack.c.l.b16 %v341
        %v1092 = vunpack.c.h.b16 %v341
        %v1093 = vunpack.c.l.b16 %v342
        %v1094 = vunpack.c.h.b16 %v342
        %v1095 = vunpack.c.l.b16 %v343
        %v1096 = vunpack.c.h.b16 %v343
        %v1097 = vunpack.c.l.b16 %v344
        %v1098 = vunpack.c.h.b16 %v344
        %v1099 = vunpack.c.l.b16 %v345
        %v1100 = vunpack.c.h.b16 %v345
        %v1101 = vunpack.c.l.b16 %v346
        %v1102 = vunpack.c.h.b16 %v346
        %v1103 = vunpack.c.l.b16 %v347
        %v1104 = vunpack.c.h.b16 %v347
        %v1105 = vunpack.c.l.b16 %v348
        %v1106 = vunpack.c.h.b16 %v348
        %v1107 = vunpack.c.l.b16 %v349
        %v1108 = vunpack.c.h.b16 %v349
        %v1109 = vunpack.c.l.b16 %v350
        %v1110 = vunpack.c.h.b16 %v350
        %v1111 = vunpack.c.l.b16 %v351
        %v1112 = vunpack.c.h.b16 %v351
        %v1113 = vunpack.c.l.b16 %v352
        %v1114 = vunpack.c.h.b16 %v352
        %v1115 = vunpack.c.l.b16 %v353
        %v1116 = vunpack.c.h.b16 %v353
        %v1117 = vunpack.c.l.b16 %v354
        %v1118 = vunpack.c.h.b16 %v354
        %v1119 = vunpack.c.l.b16 %v355
        %v1120 = vunpack.c.h.b16 %v355
        %v1121 = vunpack.c.l.b16 %v356
        %v1122 = vunpack.c.h.b16 %v356
        %v1123 = vunpack.c.l.b16 %v357
        %v1124 = vunpack.c.h.b16 %v357
        %v1125 = vunpack.c.l.b16 %v358
        %v1126 = vunpack.c.h.b16 %v358
        %v1127 = vunpack.c.l.b16 %v359
        %v1128 = vunpack.c.h.b16 %v359
        %v1129 = vunpack.c.l.b16 %v360
        %v1130 = vunpack.c.h.b16 %v360
        %v1131 = vunpack.c.l.b16 %v361
        %v1132 = vunpack.c.h.b16 %v361
        %v1133 = vunpack.c.l.b16 %v362
        %v1134 = vunpack.c.h.b16 %v362
        %v1135 = vunpack.c.l.b16 %v363
        %v1136 = vunpack.c.h.b16 %v363
        %v1137 = vunpack.c.l.b16 %v364
        %v1138 = vunpack.c.h.b16 %v364
        %v1139 = vunpack.c.l.b16 %v365
        %v1140 = vunpack.c.h.b16 %v365
        %v1141 = vunpack.c.l.b16 %v366
        %v1142 = vunpack.c.h.b16 %v366
        %v1143 = vunpack.c.l.b16 %v367
        %v1144 = vunpack.c.h.b16 %v367
        %v1145 = vunpack.c.l.b16 %v368
        %v1146 = vunpack.c.h.b16 %v368
        %v1147 = vunpack.c.l.b16 %v369
        %v1148 = vunpack.c.h.b16 %v369
        %v1149 = vunpack.c.l.b16 %v370
        %v1150 = vunpack.c.h.b16 %v370
        %v1151 = vunpack.c.l.b16 %v371
        %v1152 = vunpack.c.h.b16 %v371
        %v1153 = vunpack.c.l.b16 %v372
        %v1154 = vunpack.c.h.b16 %v372
        %v1155 = vunpack.c.l.b16 %v373
        %v1156 = vunpack.c.h.b16 %v373
        %v1157 = vunpack.c.l.b16 %v374
        %v1158 = vunpack.c.h.b16 %v374
        %v1159 = vunpack.c.l.b16 %v375
        %v1160 = vunpack.c.h.b16 %v375
        %v1161 = vunpack.c.l.b16 %v376
        %v1162 = vunpack.c.h.b16 %v376
        %v1163 = vunpack.c.l.b16 %v377
        %v1164 = vunpack.c.h.b16 %v377
        %v1165 = vunpack.c.l.b16 %v378
        %v1166 = vunpack.c.h.b16 %v378
        %v1167 = vunpack.c.l.b16 %v379
        %v1168 = vunpack.c.h.b16 %v379
        %v1169 = vunpack.c.l.b16 %v380
        %v1170 = vunpack.c.h.b16 %v380
        %v1171 = vunpack.c.l.b16 %v381
        %v1172 = vunpack.c.h.b16 %v381
        %v1173 = vunpack.c.l.b16 %v382
        %v1174 = vunpack.c.h.b16 %v382
        %v1175 = vunpack.c.l.b16 %v383
        %v1176 = vunpack.c.h.b16 %v383
        %v1177 = vunpack.c.l.b16 %v384
        %v1178 = vunpack.c.h.b16 %v384
        %v1179 = vunpack.c.l.b16 %v385
        %v1180 = vunpack.c.h.b16 %v385
        %v1181 = vunpack.c.l.b16 %v386
        %v1182 = vunpack.c.h.b16 %v386
        %v1183 = vunpack.c.l.b16 %v387
        %v1184 = vunpack.c.h.b16 %v387
        %v1185 = vunpack.c.l.b16 %v388
        %v1186 = vunpack.c.h.b16 %v388
        %v1187 = vunpack.c.l.b16 %v389
        %v1188 = vunpack.c.h.b16 %v389
        %v1189 = vunpack.c.l.b16 %v390
        %v1190 = vunpack.c.h.b16 %v390
        %v1191 = vunpack.c.l.b16 %v391
        %v1192 = vunpack.c.h.b16 %v391
        %v1193 = vunpack.c.l.b16 %v392
        %v1194 = vunpack.c.h.b16 %v392
        %v1195 = vunpack.c.l.b16 %v393
        %v1196 = vunpack.c.h.b16 %v393
        %v1197 = vunpack.c.l.b16 %v394
        %v1198 = vunpack.c.h.b16 %v394
        %v1199 = vunpack.c.l.b16 %v395
        %v1200 = vunpack.c.h.b16 %v395
        %v1201 = vunpack.c.l.b16 %v396
        %v1202 = vunpack.c.h.b16 %v396
        %v1203 = vunpack.c.l.b16 %v397
        %v1204 = vunpack.c.h.b16 %v397
        %v1205 = vunpack.c.l.b16 %v398
        %v1206 = vunpack.c.h.b16 %v398
        %v1207 = vunpack.c.l.b16 %v399
        %v1208 = vunpack.c.h.b16 %v399
        %v1209 = vunpack.c.l.b16 %v400
        %v1210 = vunpack.c.h.b16 %v400
        %v1211 = vunpack.c.l.b16 %v401
        %v1212 = vunpack.c.h.b16 %v401
        %v1213 = vunpack.c.l.b16 %v402
        %v1214 = vunpack.c.h.b16 %v402
        %v1215 = vunpack.c.l.b16 %v403
        %v1216 = vunpack.c.h.b16 %v403
        %v1217 = vunpack.c.l.b16 %v404
        %v1218 = vunpack.c.h.b16 %v404
        %v1219 = vunpack.c.l.b16 %v405
        %v1220 = vunpack.c.h.b16 %v405
        %v1221 = vunpack.c.l.b16 %v406
        %v1222 = vunpack.c.h.b16 %v406
        %v1223 = vunpack.c.l.b16 %v407
        %v1224 = vunpack.c.h.b16 %v407
        %v1225 = vunpack.c.l.b16 %v408
        %v1226 = vunpack.c.h.b16 %v408
        %v1227 = vunpack.c.l.b16 %v409
        %v1228 = vunpack.c.h.b16 %v409
        %v1229 = vunpack.c.l.b16 %v410
        %v1230 = vunpack.c.h.b16 %v410
        %v1231 = vunpack.c.l.b16 %v411
        %v1232 = vunpack.c.h.b16 %v411
        %v1233 = vunpack.c.l.b16 %v412
        %v1234 = vunpack.c.h.b16 %v412
        %v1235 = vunpack.c.l.b16 %v413
        %v1236 = vunpack.c.h.b16 %v413
        %v1237 = vunpack.c.l.b16 %v414
        %v1238 = vunpack.c.h.b16 %v414
        %v1239 = vunpack.c.l.b16 %v415
        %v1240 = vunpack.c.h.b16 %v415
        %v1241 = vunpack.c.l.b16 %v416
        %v1242 = vunpack.c.h.b16 %v416
        %v1243 = vunpack.c.l.b16 %v417
        %v1244 = vunpack.c.h.b16 %v417
        %v1245 = vunpack.c.l.b16 %v418
        %v1246 = vunpack.c.h.b16 %v418
        %v1247 = vunpack.c.l.b16 %v419
        %v1248 = vunpack.c.h.b16 %v419
        %v1249 = vunpack.c.l.b16 %v420
        %v1250 = vunpack.c.h.b16 %v420
        %v1251 = vunpack.c.l.b16 %v421
        %v1252 = vunpack.c.h.b16 %v421
        %v1253 = vunpack.c.l.b16 %v422
        %v1254 = vunpack.c.h.b16 %v422
        %v1255 = vunpack.c.l.b16 %v423
        %v1256 = vunpack.c.h.b16 %v423
        %v1257 = vunpack.c.l.b16 %v424
        %v1258 = vunpack.c.h.b16 %v424
        %v1259 = vunpack.c.l.b16 %v425
        %v1260 = vunpack.c.h.b16 %v425
        %v1261 = vunpack.c.l.b16 %v426
        %v1262 = vunpack.c.h.b16 %v426
        %v1263 = vunpack.c.l.b16 %v427
        %v1264 = vunpack.c.h.b16 %v427
        %v1265 = vunpack.c.l.b16 %v428
        %v1266 = vunpack.c.h.b16 %v428
        %v1267 = vunpack.c.l.b16 %v429
        %v1268 = vunpack.c.h.b16 %v429
        %v1269 = vunpack.c.l.b16 %v430
        %v1270 = vunpack.c.h.b16 %v430
        %v1271 = vunpack.c.l.b16 %v431
        %v1272 = vunpack.c.h.b16 %v431
        %v1273 = vunpack.c.l.b16 %v432
        %v1274 = vunpack.c.h.b16 %v432
        %v1275 = vunpack.c.l.b16 %v433
        %v1276 = vunpack.c.h.b16 %v433
        %v1277 = vunpack.c.l.b16 %v434
        %v1278 = vunpack.c.h.b16 %v434
        %v1279 = vunpack.c.l.b16 %v435
        %v1280 = vunpack.c.h.b16 %v435
        %v1281 = vunpack.c.l.b16 %v436
        %v1282 = vunpack.c.h.b16 %v436
        %v1283 = vunpack.c.l.b16 %v437
        %v1284 = vunpack.c.h.b16 %v437
        %v1285 = vunpack.c.l.b16 %v438
        %v1286 = vunpack.c.h.b16 %v438
        %v1287 = vunpack.c.l.b16 %v439
        %v1288 = vunpack.c.h.b16 %v439
        %v1289 = vunpack.c.l.b16 %v440
        %v1290 = vunpack.c.h.b16 %v440
        %v1291 = vunpack.c.l.b16 %v441
        %v1292 = vunpack.c.h.b16 %v441
        %v1293 = vunpack.c.l.b16 %v442
        %v1294 = vunpack.c.h.b16 %v442
        %v1295 = vunpack.c.l.b16 %v443
        %v1296 = vunpack.c.h.b16 %v443
        %v1297 = vunpack.c.l.b16 %v444
        %v1298 = vunpack.c.h.b16 %v444
        %v1299 = vunpack.c.l.b16 %v445
        %v1300 = vunpack.c.h.b16 %v445
        %v1301 = vunpack.c.l.b16 %v446
        %v1302 = vunpack.c.h.b16 %v446
        %v1303 = vunpack.c.l.b16 %v447
        %v1304 = vunpack.c.h.b16 %v447
        %v1305 = vunpack.c.l.b16 %v448
        %v1306 = vunpack.c.h.b16 %v448
        %v1307 = vunpack.c.l.b16 %v449
        %v1308 = vunpack.c.h.b16 %v449
        %v1309 = vunpack.c.l.b16 %v450
        %v1310 = vunpack.c.h.b16 %v450
        %v1311 = vunpack.c.l.b16 %v451
        %v1312 = vunpack.c.h.b16 %v451
        %v1313 = vunpack.c.l.b16 %v452
        %v1314 = vunpack.c.h.b16 %v452
        %v1315 = vunpack.c.l.b16 %v453
        %v1316 = vunpack.c.h.b16 %v453
        %v1317 = vunpack.c.l.b16 %v454
        %v1318 = vunpack.c.h.b16 %v454
        %v1319 = vunpack.c.l.b16 %v455
        %v1320 = vunpack.c.h.b16 %v455
        %v1321 = vunpack.c.l.b16 %v456
        %v1322 = vunpack.c.h.b16 %v456
        %v1323 = vunpack.c.l.b16 %v457
        %v1324 = vunpack.c.h.b16 %v457
        %v1325 = vunpack.c.l.b16 %v458
        %v1326 = vunpack.c.h.b16 %v458
        %v1327 = vunpack.c.l.b16 %v459
        %v1328 = vunpack.c.h.b16 %v459
        %v1329 = vunpack.c.l.b16 %v460
        %v1330 = vunpack.c.h.b16 %v460
        %v1331 = vunpack.c.l.b16 %v461
        %v1332 = vunpack.c.h.b16 %v461
        %v1333 = vunpack.c.l.b16 %v462
        %v1334 = vunpack.c.h.b16 %v462
        %v1335 = vunpack.c.l.b16 %v463
        %v1336 = vunpack.c.h.b16 %v463
        %v1337 = vunpack.c.l.b16 %v464
        %v1338 = vunpack.c.h.b16 %v464
        %v1339 = vunpack.c.l.b16 %v465
        %v1340 = vunpack.c.h.b16 %v465
        %v1341 = vunpack.c.l.b16 %v466
        %v1342 = vunpack.c.h.b16 %v466
        %v1343 = vunpack.c.l.b16 %v467
        %v1344 = vunpack.c.h.b16 %v467
        %v1345 = vunpack.c.l.b16 %v468
        %v1346 = vunpack.c.h.b16 %v468
        %v1347 = vunpack.c.l.b16 %v469
        %v1348 = vunpack.c.h.b16 %v469
        %v1349 = vunpack.c.l.b16 %v470
        %v1350 = vunpack.c.h.b16 %v470
        %v1351 = vunpack.c.l.b16 %v471
        %v1352 = vunpack.c.h.b16 %v471
        %v1353 = vunpack.c.l.b16 %v472
        %v1354 = vunpack.c.h.b16 %v472
        %v1355 = vunpack.c.l.b16 %v473
        %v1356 = vunpack.c.h.b16 %v473
        %v1357 = vunpack.c.l.b16 %v474
        %v1358 = vunpack.c.h.b16 %v474
        %v1359 = vunpack.c.l.b16 %v475
        %v1360 = vunpack.c.h.b16 %v475
        %v1361 = vunpack.c.l.b16 %v476
        %v1362 = vunpack.c.h.b16 %v476
        %v1363 = vunpack.c.l.b16 %v477
        %v1364 = vunpack.c.h.b16 %v477
        %v1365 = vunpack.c.l.b16 %v478
        %v1366 = vunpack.c.h.b16 %v478
        %v1367 = vunpack.c.l.b16 %v479
        %v1368 = vunpack.c.h.b16 %v479
        %v1369 = vunpack.c.l.b16 %v480
        %v1370 = vunpack.c.h.b16 %v480
        %v1371 = vunpack.c.l.b16 %v481
        %v1372 = vunpack.c.h.b16 %v481
        %v1373 = vunpack.c.l.b16 %v482
        %v1374 = vunpack.c.h.b16 %v482
        %v1375 = vunpack.c.l.b16 %v483
        %v1376 = vunpack.c.h.b16 %v483
        %v1377 = vunpack.c.l.b16 %v484
        %v1378 = vunpack.c.h.b16 %v484
        %v1379 = vunpack.c.l.b16 %v485
        %v1380 = vunpack.c.h.b16 %v485
        %v1381 = vunpack.c.l.b16 %v486
        %v1382 = vunpack.c.h.b16 %v486
        %v1383 = vunpack.c.l.b16 %v487
        %v1384 = vunpack.c.h.b16 %v487
        %v1385 = vunpack.c.l.b16 %v488
        %v1386 = vunpack.c.h.b16 %v488
        %v1387 = vunpack.c.l.b16 %v489
        %v1388 = vunpack.c.h.b16 %v489
        %v1389 = vunpack.c.l.b16 %v490
        %v1390 = vunpack.c.h.b16 %v490
        %v1391 = vunpack.c.l.b16 %v491
        %v1392 = vunpack.c.h.b16 %v491
        %v1393 = vunpack.c.l.b16 %v492
        %v1394 = vunpack.c.h.b16 %v492
        %v1395 = vunpack.c.l.b16 %v493
        %v1396 = vunpack.c.h.b16 %v493
        %v1397 = vunpack.c.l.b16 %v494
        %v1398 = vunpack.c.h.b16 %v494
        %v1399 = vunpack.c.l.b16 %v495
        %v1400 = vunpack.c.h.b16 %v495
        %v1401 = vunpack.c.l.b16 %v496
        %v1402 = vunpack.c.h.b16 %v496
        %v1403 = vunpack.c.l.b16 %v497
        %v1404 = vunpack.c.h.b16 %v497
        %v1405 = vunpack.c.l.b16 %v498
        %v1406 = vunpack.c.h.b16 %v498
        %v1407 = vunpack.c.l.b16 %v499
        %v1408 = vunpack.c.h.b16 %v499
        %v1409 = vunpack.c.l.b16 %v500
        %v1410 = vunpack.c.h.b16 %v500
        %v1411 = vunpack.c.l.b16 %v501
        %v1412 = vunpack.c.h.b16 %v501
        %v1413 = vunpack.c.l.b16 %v502
        %v1414 = vunpack.c.h.b16 %v502
        %v1415 = vunpack.c.l.b16 %v503
        %v1416 = vunpack.c.h.b16 %v503
        %v1417 = vunpack.c.l.b16 %v504
        %v1418 = vunpack.c.h.b16 %v504
        %v1419 = vunpack.c.l.b16 %v505
        %v1420 = vunpack.c.h.b16 %v505
        %v1421 = vunpack.c.l.b16 %v506
        %v1422 = vunpack.c.h.b16 %v506
        %v1423 = vunpack.c.l.b16 %v507
        %v1424 = vunpack.c.h.b16 %v507
        %v1425 = vunpack.c.l.b16 %v508
        %v1426 = vunpack.c.h.b16 %v508
        %v1427 = vunpack.c.l.b16 %v509
        %v1428 = vunpack.c.h.b16 %v509
        %v1429 = vunpack.c.l.b16 %v510
        %v1430 = vunpack.c.h.b16 %v510
        %v1431 = vunpack.c.l.b16 %v511
        %v1432 = vunpack.c.h.b16 %v511
        %v1433 = vunpack.c.l.b16 %v512
        %v1434 = vunpack.c.h.b16 %v512
        %v1435 = vunpack.c.l.b16 %v513
        %v1436 = vunpack.c.h.b16 %v513
        %v1437 = vunpack.c.l.b16 %v514
        %v1438 = vunpack.c.h.b16 %v514
        %v1439 = vunpack.c.l.b16 %v515
        %v1440 = vunpack.c.h.b16 %v515
        %v1441 = vunpack.c.l.b16 %v516
        %v1442 = vunpack.c.h.b16 %v516
        %v1443 = vunpack.c.l.b16 %v517
        %v1444 = vunpack.c.h.b16 %v517
        %v1445 = vunpack.c.l.b16 %v518
        %v1446 = vunpack.c.h.b16 %v518
        %v1447 = vunpack.c.l.b16 %v519
        %v1448 = vunpack.c.h.b16 %v519
        %v1449 = vunpack.c.l.b16 %v520
        %v1450 = vunpack.c.h.b16 %v520
        %v1451 = vunpack.c.l.b16 %v521
        %v1452 = vunpack.c.h.b16 %v521
        %v1453 = vunpack.c.l.b16 %v522
        %v1454 = vunpack.c.h.b16 %v522
        %v1455 = vunpack.c.l.b16 %v523
        %v1456 = vunpack.c.h.b16 %v523
        %v1457 = vunpack.c.l.b16 %v524
        %v1458 = vunpack.c.h.b16 %v524
        %v1459 = vunpack.c.l.b16 %v525
        %v1460 = vunpack.c.h.b16 %v525
        %v1461 = vunpack.c.l.b16 %v526
        %v1462 = vunpack.c.h.b16 %v526
        %v1463 = vunpack.c.l.b16 %v527
        %v1464 = vunpack.c.h.b16 %v527
        %v1465 = vunpack.c.l.b16 %v528
        %v1466 = vunpack.c.h.b16 %v528
        %v1467 = vunpack.c.l.b16 %v529
        %v1468 = vunpack.c.h.b16 %v529
        %v1469 = vunpack.c.l.b16 %v530
        %v1470 = vunpack.c.h.b16 %v530
        %v1471 = vunpack.c.l.b16 %v531
        %v1472 = vunpack.c.h.b16 %v531
        %v1473 = vunpack.c.l.b16 %v532
        %v1474 = vunpack.c.h.b16 %v532
        %v1475 = vunpack.c.l.b16 %v533
        %v1476 = vunpack.c.h.b16 %v533
        %v1477 = vunpack.c.l.b16 %v534
        %v1478 = vunpack.c.h.b16 %v534
        %v1479 = vunpack.c.l.b16 %v535
        %v1480 = vunpack.c.h.b16 %v535
        %v1481 = vunpack.c.l.b16 %v536
        %v1482 = vunpack.c.h.b16 %v536
        %v1483 = vunpack.c.l.b16 %v537
        %v1484 = vunpack.c.h.b16 %v537
        %v1485 = vunpack.c.l.b16 %v538
        %v1486 = vunpack.c.h.b16 %v538
        %v1487 = vunpack.c.l.b16 %v539
        %v1488 = vunpack.c.h.b16 %v539
        %v1489 = vunpack.c.l.b16 %v540
        %v1490 = vunpack.c.h.b16 %v540
        %v1491 = vunpack.c.l.b16 %v541
        %v1492 = vunpack.c.h.b16 %v541
        %v1493 = vunpack.c.l.b16 %v542
        %v1494 = vunpack.c.h.b16 %v542
        %v1495 = vunpack.c.l.b16 %v543
        %v1496 = vunpack.c.h.b16 %v543
        %v1497 = vunpack.c.l.b16 %v544
        %v1498 = vunpack.c.h.b16 %v544
        %v1499 = vunpack.c.l.b16 %v545
        %v1500 = vunpack.c.h.b16 %v545
        %v1501 = vunpack.c.l.b16 %v546
        %v1502 = vunpack.c.h.b16 %v546
        %v1503 = vunpack.c.l.b16 %v547
        %v1504 = vunpack.c.h.b16 %v547
        %v1505 = vunpack.c.l.b16 %v548
        %v1506 = vunpack.c.h.b16 %v548
        %v1507 = vunpack.c.l.b16 %v549
        %v1508 = vunpack.c.h.b16 %v549
        %v1509 = vunpack.c.l.b16 %v550
        %v1510 = vunpack.c.h.b16 %v550
        %v1511 = vunpack.c.l.b16 %v551
        %v1512 = vunpack.c.h.b16 %v551
        %v1513 = vunpack.c.l.b16 %v552
        %v1514 = vunpack.c.h.b16 %v552
        %v1515 = vunpack.c.l.b16 %v553
        %v1516 = vunpack.c.h.b16 %v553
        %v1517 = vunpack.c.l.b16 %v554
        %v1518 = vunpack.c.h.b16 %v554
        %v1519 = vunpack.c.l.b16 %v555
        %v1520 = vunpack.c.h.b16 %v555
        %v1521 = vunpack.c.l.b16 %v556
        %v1522 = vunpack.c.h.b16 %v556
        %v1523 = vunpack.c.l.b16 %v557
        %v1524 = vunpack.c.h.b16 %v557
        %v1525 = vunpack.c.l.b16 %v558
        %v1526 = vunpack.c.h.b16 %v558
        %v1527 = vunpack.c.l.b16 %v559
        %v1528 = vunpack.c.h.b16 %v559
        %v1529 = vunpack.c.l.b16 %v560
        %v1530 = vunpack.c.h.b16 %v560
        %v1531 = vunpack.c.l.b16 %v561
        %v1532 = vunpack.c.h.b16 %v561
        %v1533 = vunpack.c.l.b16 %v562
        %v1534 = vunpack.c.h.b16 %v562
        %v1535 = vunpack.c.l.b16 %v563
        %v1536 = vunpack.c.h.b16 %v563
        %v1537 = vunpack.c.l.b16 %v564
        %v1538 = vunpack.c.h.b16 %v564
        %v1539 = vunpack.c.l.b16 %v565
        %v1540 = vunpack.c.h.b16 %v565
        %v1541 = vunpack.c.l.b16 %v566
        %v1542 = vunpack.c.h.b16 %v566
        %v1543 = vunpack.c.l.b16 %v567
        %v1544 = vunpack.c.h.b16 %v567
        %v1545 = vunpack.c.l.b16 %v568
        %v1546 = vunpack.c.h.b16 %v568
        %v1547 = vunpack.c.l.b16 %v569
        %v1548 = vunpack.c.h.b16 %v569
        %v1549 = vunpack.c.l.b16 %v570
        %v1550 = vunpack.c.h.b16 %v570
        %v1551 = vunpack.c.l.b16 %v571
        %v1552 = vunpack.c.h.b16 %v571
        %v1553 = vunpack.c.l.b16 %v572
        %v1554 = vunpack.c.h.b16 %v572
        %v1555 = vpack.c.b16 %v955, %v905
        %v1556 = vpack.c.b16 %v956, %v906
        %v1557 = vpack.c.b16 %v957, %v907
        %v1558 = vpack.c.b16 %v958, %v908
        %v1559 = vpack.c.b16 %v959, %v909
        %v1560 = vpack.c.b16 %v960, %v910
        %v1561 = vpack.c.b16 %v961, %v911
        %v1562 = vpack.c.b16 %v962, %v912
        %v1563 = vpack.c.b16 %v963, %v913
        %v1564 = vpack.c.b16 %v964, %v914
        %v1565 = vpack.c.b16 %v965, %v915
        %v1566 = vpack.c.b16 %v966, %v916
        %v1567 = vpack.c.b16 %v967, %v917
        %v1568 = vpack.c.b16 %v968, %v918
        %v1569 = vpack.c.b16 %v969, %v919
        %v1570 = vpack.c.b16 %v970, %v920
        %v1571 = vpack.c.b16 %v971, %v921
        %v1572 = vpack.c.b16 %v972, %v922
        %v1573 = vpack.c.b16 %v973, %v923
        %v1574 = vpack.c.b16 %v974, %v924
        %v1575 = vpack.c.b16 %v975, %v925
        %v1576 = vpack.c.b16 %v976, %v926
        %v1577 = vpack.c.b16 %v977, %v927
        %v1578 = vpack.c.b16 %v978, %v928
        %v1579 = vpack.c.b16 %v979, %v929
        %v1580 = vpack.c.b16 %v980, %v930
        %v1581 = vpack.c.b16 %v981, %v931
        %v1582 = vpack.c.b16 %v982, %v932
        %v1583 = vpack.c.b16 %v983, %v933
        %v1584 = vpack.c.b16 %v984, %v934
        %v1585 = vpack.c.b16 %v985, %v935
        %v1586 = vpack.c.b16 %v986, %v936
        %v1587 = vpack.c.b16 %v987, %v937
        %v1588 = vpack.c.b16 %v988, %v938
        %v1589 = vpack.c.b16 %v989, %v939
        %v1590 = vpack.c.b16 %v990, %v940
        %v1591 = vpack.c.b16 %v991, %v941
        %v1592 = vpack.c.b16 %v992, %v942
        %v1593 = vpack.c.b16 %v993, %v943
        %v1594 = vpack.c.b16 %v994, %v944
        %v1595 = vpack.c.b16 %v995, %v945
        %v1596 = vpack.c.b16 %v996, %v946
        %v1597 = vpack.c.b16 %v997, %v947
        %v1598 = vpack.c.b16 %v998, %v948
        %v1599 = vpack.c.b16 %v999, %v949
        %v1600 = vpack.c.b16 %v1000, %v950
        %v1601 = vpack.c.b16 %v1001, %v951
        %v1602 = vpack.c.b16 %v1002, %v952
        %v1603 = vpack.c.b16 %v1003, %v953
        %v1604 = vpack.c.b16 %v1004, %v954
        %v1605 = vpack.c.b16 %v1055, %v1005
        %v1606 = vpack.c.b16 %v1056, %v1006
        %v1607 = vpack.c.b16 %v1057, %v1007
        %v1608 = vpack.c.b16 %v1058, %v1008
        %v1609 = vpack.c.b16 %v1059, %v1009
        %v1610 = vpack.c.b16 %v1060, %v1010
        %v1611 = vpack.c.b16 %v1061, %v1011
        %v1612 = vpack.c.b16 %v1062, %v1012
        %v1613 = vpack.c.b16 %v1063, %v1013
        %v1614 = vpack.c.b16 %v1064, %v1014
        %v1615 = vpack.c.b16 %v1065, %v1015
        %v1616 = vpack.c.b16 %v1066, %v1016
        %v1617 = vpack.c.b16 %v1067, %v1017
        %v1618 = vpack.c.b16 %v1068, %v1018
        %v1619 = vpack.c.b16 %v1069, %v1019
        %v1620 = vpack.c.b16 %v1070, %v1020
        %v1621 = vpack.c.b16 %v1071, %v1021
        %v1622 = vpack.c.b16 %v1072, %v1022
        %v1623 = vpack.c.b16 %v1073, %v1023
        %v1624 = vpack.c.b16 %v1074, %v1024
        %v1625 = vpack.c.b16 %v1075, %v1025
        %v1626 = vpack.c.b16 %v1076, %v1026
        %v1627 = vpack.c.b16 %v1077, %v1027
        %v1628 = vpack.c.b16 %v1078, %v1028
        %v1629 = vpack.c.b16 %v1079, %v1029
        %v1630 = vpack.c.b16 %v1080, %v1030
        %v1631 = vpack.c.b16 %v1081, %v1031
        %v1632 = vpack.c.b16 %v1082, %v1032
        %v1633 = vpack.c.b16 %v1083, %v1033
        %v1634 = vpack.c.b16 %v1084, %v1034
        %v1635 = vpack.c.b16 %v1085, %v1035
        %v1636 = vpack.c.b16 %v1086, %v1036
        %v1637 = vpack.c.b16 %v1087, %v1037
        %v1638 = vpack.c.b16 %v1088, %v1038
        %v1639 = vpack.c.b16 %v1089, %v1039
        %v1640 = vpack.c.b16 %v1090, %v1040
        %v1641 = vpack.c.b16 %v1091, %v1041
        %v1642 = vpack.c.b16 %v1092, %v1042
        %v1643 = vpack.c.b16 %v1093, %v1043
        %v1644 = vpack.c.b16 %v1094, %v1044
        %v1645 = vpack.c.b16 %v1095, %v1045
        %v1646 = vpack.c.b16 %v1096, %v1046
        %v1647 = vpack.c.b16 %v1097, %v1047
        %v1648 = vpack.c.b16 %v1098, %v1048
        %v1649 = vpack.c.b16 %v1099, %v1049
        %v1650 = vpack.c.b16 %v1100, %v1050
        %v1651 = vpack.c.b16 %v1101, %v1051
        %v1652 = vpack.c.b16 %v1102, %v1052
        %v1653 = vpack.c.b16 %v1103, %v1053
        %v1654 = vpack.c.b16 %v1104, %v1054
        %v1655 = vpack.c.b16 %v1155, %v1105
        %v1656 = vpack.c.b16 %v1156, %v1106
        %v1657 = vpack.c.b16 %v1157, %v1107
        %v1658 = vpack.c.b16 %v1158, %v1108
        %v1659 = vpack.c.b16 %v1159, %v1109
        %v1660 = vpack.c.b16 %v1160, %v1110
        %v1661 = vpack.c.b16 %v1161, %v1111
        %v1662 = vpack.c.b16 %v1162, %v1112
        %v1663 = vpack.c.b16 %v1163, %v1113
        %v1664 = vpack.c.b16 %v1164, %v1114
        %v1665 = vpack.c.b16 %v1165, %v1115
        %v1666 = vpack.c.b16 %v1166, %v1116
        %v1667 = vpack.c.b16 %v1167, %v1117
        %v1668 = vpack.c.b16 %v1168, %v1118
        %v1669 = vpack.c.b16 %v1169, %v1119
        %v1670 = vpack.c.b16 %v1170, %v1120
        %v1671 = vpack.c.b16 %v1171, %v1121
        %v1672 = vpack.c.b16 %v1172, %v1122
        %v1673 = vpack.c.b16 %v1173, %v1123
        %v1674 = vpack.c.b16 %v1174, %v1124
        %v1675 = vpack.c.b16 %v1175, %v1125
        %v1676 = vpack.c.b16 %v1176, %v1126
        %v1677 = vpack.c.b16 %v1177, %v1127
        %v1678 = vpack.c.b16 %v1178, %v1128
        %v1679 = vpack.c.b16 %v1179, %v1129
        %v1680 = vpack.c.b16 %v1180, %v1130
        %v1681 = vpack.c.b16 %v1181, %v1131
        %v1682 = vpack.c.b16 %v1182, %v1132
        %v1683 = vpack.c.b16 %v1183, %v1133
        %v1684 = vpack.c.b16 %v1184, %v1134
        %v1685 = vpack.c.b16 %v1185, %v1135
        %v1686 = vpack.c.b16 %v1186, %v1136
        %v1687 = vpack.c.b16 %v1187, %v1137
        %v1688 = vpack.c.b16 %v1188, %v1138
        %v1689 = vpack.c.b16 %v1189, %v1139
        %v1690 = vpack.c.b16 %v1190, %v1140
        %v1691 = vpack.c.b16 %v1191, %v1141
        %v1692 = vpack.c.b16 %v1192, %v1142
        %v1693 = vpack.c.b16 %v1193, %v1143
        %v1694 = vpack.c.b16 %v1194, %v1144
        %v1695 = vpack.c.b16 %v1195, %v1145
        %v1696 = vpack.c.b16 %v1196, %v1146
        %v1697 = vpack.c.b16 %v1197, %v1147
        %v1698 = vpack.c.b16 %v1198, %v1148
        %v1699 = vpack.c.b16 %v1199, %v1149
        %v1700 = vpack.c.b16 %v1200, %v1150
        %v1701 = vpack.c.b16 %v1201, %v1151
        %v1702 = vpack.c.b16 %v1202, %v1152
        %v1703 = vpack.c.b16 %v1203, %v1153
        %v1704 = vpack.c.b16 %v1204, %v1154
        %v1705 = vpack.c.b16 %v1255, %v1205
        %v1706 = vpack.c.b16 %v1256, %v1206
        %v1707 = vpack.c.b16 %v1257, %v1207
        %v1708 = vpack.c.b16 %v1258, %v1208
        %v1709 = vpack.c.b16 %v1259, %v1209
        %v1710 = vpack.c.b16 %v1260, %v1210
        %v1711 = vpack.c.b16 %v1261, %v1211
        %v1712 = vpack.c.b16 %v1262, %v1212
        %v1713 = vpack.c.b16 %v1263, %v1213
        %v1714 = vpack.c.b16 %v1264, %v1214
        %v1715 = vpack.c.b16 %v1265, %v1215
        %v1716 = vpack.c.b16 %v1266, %v1216
        %v1717 = vpack.c.b16 %v1267, %v1217
        %v1718 = vpack.c.b16 %v1268, %v1218
        %v1719 = vpack.c.b16 %v1269, %v1219
        %v1720 = vpack.c.b16 %v1270, %v1220
        %v1721 = vpack.c.b16 %v1271, %v1221
        %v1722 = vpack.c.b16 %v1272, %v1222
        %v1723 = vpack.c.b16 %v1273, %v1223
        %v1724 = vpack.c.b16 %v1274, %v1224
        %v1725 = vpack.c.b16 %v1275, %v1225
        %v1726 = vpack.c.b16 %v1276, %v1226
        %v1727 = vpack.c.b16 %v1277, %v1227
        %v1728 = vpack.c.b16 %v1278, %v1228
        %v1729 = vpack.c.b16 %v1279, %v1229
        %v1730 = vpack.c.b16 %v1280, %v1230
        %v1731 = vpack.c.b16 %v1281, %v1231
        %v1732 = vpack.c.b16 %v1282, %v1232
        %v1733 = vpack.c.b16 %v1283, %v1233
        %v1734 = vpack.c.b16 %v1284, %v1234
        %v1735 = vpack.c.b16 %v1285, %v1235
        %v1736 = vpack.c.b16 %v1286, %v1236
        %v1737 = vpack.c.b16 %v1287, %v1237
        %v1738 = vpack.c.b16 %v1288, %v1238
        %v1739 = vpack.c.b16 %v1289, %v1239
        %v1740 = vpack.c.b16 %v1290, %v1240
        %v1741 = vpack.c.b16 %v1291, %v1241
        %v1742 = vpack.c.b16 %v1292, %v1242
        %v1743 = vpack.c.b16 %v1293, %v1243
        %v1744 = vpack.c.b16 %v1294, %v1244
        %v1745 = vpack.c.b16 %v1295, %v1245
        %v1746 = vpack.c.b16 %v1296, %v1246
        %v1747 = vpack.c.b16 %v1297, %v1247
        %v1748 = vpack.c.b16 %v1298, %v1248
        %v1749 = vpack.c.b16 %v1299, %v1249
        %v1750 = vpack.c.b16 %v1300, %v1250
        %v1751 = vpack.c.b16 %v1301, %v1251
        %v1752 = vpack.c.b16 %v1302, %v1252
        %v1753 = vpack.c.b16 %v1303, %v1253
        %v1754 = vpack.c.b16 %v1304, %v1254
        %v1755 = vpack.c.b16 %v1355, %v1305
        %v1756 = vpack.c.b16 %v1356, %v1306
        %v1757 = vpack.c.b16 %v1357, %v1307
        %v1758 = vpack.c.b16 %v1358, %v1308
        %v1759 = vpack.c.b16 %v1359, %v1309
        %v1760 = vpack.c.b16 %v1360, %v1310
        %v1761 = vpack.c.b16 %v1361, %v1311
        %v1762 = vpack.c.b16 %v1362, %v1312
        %v1763 = vpack.c.b16 %v1363, %v1313
        %v1764 = vpack.c.b16 %v1364, %v1314
        %v1765 = vpack.c.b16 %v1365, %v1315
        %v1766 = vpack.c.b16 %v1366, %v1316
        %v1767 = vpack.c.b16 %v1367, %v1317
        %v1768 = vpack.c.b16 %v1368, %v1318
        %v1769 = vpack.c.b16 %v1369, %v1319
        %v1770 = vpack.c.b16 %v1370, %v1320
        %v1771 = vpack.c.b16 %v1371, %v1321
        %v1772 = vpack.c.b16 %v1372, %v1322
        %v1773 = vpack.c.b16 %v1373, %v1323
        %v1774 = vpack.c.b16 %v1374, %v1324
        %v1775 = vpack.c.b16 %v1375, %v1325
        %v1776 = vpack.c.b16 %v1376, %v1326
        %v1777 = vpack.c.b16 %v1377, %v1327
        %v1778 = vpack.c.b16 %v1378, %v1328
        %v1779 = vpack.c.b16 %v1379, %v1329
        %v1780 = vpack.c.b16 %v1380, %v1330
        %v1781 = vpack.c.b16 %v1381, %v1331
        %v1782 = vpack.c.b16 %v1382, %v1332
        %v1783 = vpack.c.b16 %v1383, %v1333
        %v1784 = vpack.c.b16 %v1384, %v1334
        %v1785 = vpack.c.b16 %v1385, %v1335
        %v1786 = vpack.c.b16 %v1386, %v1336
        %v1787 = vpack.c.b16 %v1387, %v1337
        %v1788 = vpack.c.b16 %v1388, %v1338
        %v1789 = vpack.c.b16 %v1389, %v1339
        %v1790 = vpack.c.b16 %v1390, %v1340
        %v1791 = vpack.c.b16 %v1391, %v1341
        %v1792 = vpack.c.b16 %v1392, %v1342
        %v1793 = vpack.c.b16 %v1393, %v1343
        %v1794 = vpack.c.b16 %v1394, %v1344
        %v1795 = vpack.c.b16 %v1395, %v1345
        %v1796 = vpack.c.b16 %v1396, %v1346
        %v1797 = vpack.c.b16 %v1397, %v1347
        %v1798 = vpack.c.b16 %v1398, %v1348
        %v1799 = vpack.c.b16 %v1399, %v1349
        %v1800 = vpack.c.b16 %v1400, %v1350
        %v1801 = vpack.c.b16 %v1401, %v1351
        %v1802 = vpack.c.b16 %v1402, %v1352
        %v1803 = vpack.c.b16 %v1403, %v1353
        %v1804 = vpack.c.b16 %v1404, %v1354
        %v1805 = vpack.c.b16 %v1455, %v1405
        %v1806 = vpack.c.b16 %v1456, %v1406
        %v1807 = vpack.c.b16 %v1457, %v1407
        %v1808 = vpack.c.b16 %v1458, %v1408
        %v1809 = vpack.c.b16 %v1459, %v1409
        %v1810 = vpack.c.b16 %v1460, %v1410
        %v1811 = vpack.c.b16 %v1461, %v1411
        %v1812 = vpack.c.b16 %v1462, %v1412
        %v1813 = vpack.c.b16 %v1463, %v1413
        %v1814 = vpack.c.b16 %v1464, %v1414
        %v1815 = vpack.c.b16 %v1465, %v1415
        %v1816 = vpack.c.b16 %v1466, %v1416
        %v1817 = vpack.c.b16 %v1467, %v1417
        %v1818 = vpack.c.b16 %v1468, %v1418
        %v1819 = vpack.c.b16 %v1469, %v1419
        %v1820 = vpack.c.b16 %v1470, %v1420
        %v1821 = vpack.c.b16 %v1471, %v1421
        %v1822 = vpack.c.b16 %v1472, %v1422
        %v1823 = vpack.c.b16 %v1473, %v1423
        %v1824 = vpack.c.b16 %v1474, %v1424
        %v1825 = vpack.c.b16 %v1475, %v1425
        %v1826 = vpack.c.b16 %v1476, %v1426
        %v1827 = vpack.c.b16 %v1477, %v1427
        %v1828 = vpack.c.b16 %v1478, %v1428
        %v1829 = vpack.c.b16 %v1479, %v1429
        %v1830 = vpack.c.b16 %v1480, %v1430
        %v1831 = vpack.c.b16 %v1481, %v1431
        %v1832 = vpack.c.b16 %v1482, %v1432
        %v1833 = vpack.c.b16 %v1483, %v1433
        %v1834 = vpack.c.b16 %v1484, %v1434
        %v1835 = vpack.c.b16 %v1485, %v1435
        %v1836 = vpack.c.b16 %v1486, %v1436
        %v1837 = vpack.c.b16 %v1487, %v1437
        %v1838 = vpack.c.b16 %v1488, %v1438
        %v1839 = vpack.c.b16 %v1489, %v1439
        %v1840 = vpack.c.b16 %v1490, %v1440
        %v1841 = vpack.c.b16 %v1491, %v1441
        %v1842 = vpack.c.b16 %v1492, %v1442
        %v1843 = vpack.c.b16 %v1493, %v1443
        %v1844 = vpack.c.b16 %v1494, %v1444
        %v1845 = vpack.c.b16 %v1495, %v1445
        %v1846 = vpack.c.b16 %v1496, %v1446
        %v1847 = vpack.c.b16 %v1497, %v1447
        %v1848 = vpack.c.b16 %v1498, %v1448
        %v1849 = vpack.c.b16 %v1499, %v1449
        %v1850 = vpack.c.b16 %v1500, %v1450
        %v1851 = vpack.c.b16 %v1501, %v1451
        %v1852 = vpack.c.b16 %v1502, %v1452
        %v1853 = vpack.c.b16 %v1503, %v1453
        %v1854 = vpack.c.b16 %v1504, %v1454
        %v1855 = vpack.c.b16 %v1505, %v1505
        %v1856 = vpack.c.b16 %v1506, %v1506
        %v1857 = vpack.c.b16 %v1507, %v1507
        %v1858 = vpack.c.b16 %v1508, %v1508
        %v1859 = vpack.c.b16 %v1509, %v1509
        %v1860 = vpack.c.b16 %v1510, %v1510
        %v1861 = vpack.c.b16 %v1511, %v1511
        %v1862 = vpack.c.b16 %v1512, %v1512
        %v1863 = vpack.c.b16 %v1513, %v1513
        %v1864 = vpack.c.b16 %v1514, %v1514
        %v1865 = vpack.c.b16 %v1515, %v1515
        %v1866 = vpack.c.b16 %v1516, %v1516
        %v1867 = vpack.c.b16 %v1517, %v1517
        %v1868 = vpack.c.b16 %v1518, %v1518
        %v1869 = vpack.c.b16 %v1519, %v1519
        %v1870 = vpack.c.b16 %v1520, %v1520
        %v1871 = vpack.c.b16 %v1521, %v1521
        %v1872 = vpack.c.b16 %v1522, %v1522
        %v1873 = vpack.c.b16 %v1523, %v1523
        %v1874 = vpack.c.b16 %v1524, %v1524
        %v1875 = vpack.c.b16 %v1525, %v1525
        %v1876 = vpack.c.b16 %v1526, %v1526
        %v1877 = vpack.c.b16 %v1527, %v1527
        %v1878 = vpack.c.b16 %v1528, %v1528
        %v1879 = vpack.c.b16 %v1529, %v1529
        %v1880 = vpack.c.b16 %v1530, %v1530
        %v1881 = vpack.c.b16 %v1531, %v1531
        %v1882 = vpack.c.b16 %v1532, %v1532
        %v1883 = vpack.c.b16 %v1533, %v1533
        %v1884 = vpack.c.b16 %v1534, %v1534
        %v1885 = vpack.c.b16 %v1535, %v1535
        %v1886 = vpack.c.b16 %v1536, %v1536
        %v1887 = vpack.c.b16 %v1537, %v1537
        %v1888 = vpack.c.b16 %v1538, %v1538
        %v1889 = vpack.c.b16 %v1539, %v1539
        %v1890 = vpack.c.b16 %v1540, %v1540
        %v1891 = vpack.c.b16 %v1541, %v1541
        %v1892 = vpack.c.b16 %v1542, %v1542
        %v1893 = vpack.c.b16 %v1543, %v1543
        %v1894 = vpack.c.b16 %v1544, %v1544
        %v1895 = vpack.c.b16 %v1545, %v1545
        %v1896 = vpack.c.b16 %v1546, %v1546
        %v1897 = vpack.c.b16 %v1547, %v1547
        %v1898 = vpack.c.b16 %v1548, %v1548
        %v1899 = vpack.c.b16 %v1549, %v1549
        %v1900 = vpack.c.b16 %v1550, %v1550
        %v1901 = vpack.c.b16 %v1551, %v1551
        %v1902 = vpack.c.b16 %v1552, %v1552
        %v1903 = vpack.c.b16 %v1553, %v1553
        %v1904 = vpack.c.b16 %v1554, %v1554
        %v2212 = vperm.slane %v573, 0
        %v2213 = vperm.slane %v573, 1
        %v2214 = vperm.slane %v573, 2
        %v2215 = vperm.slane %v573, 3
        %v2216 = vperm.slane %v573, 4
        %v2217 = vperm.slane %v573, 5
        %v2218 = vperm.slane %v573, 6
        %v2219 = vperm.slane %v573, 7
        %v2220 = vperm.slane %v574, 0
        %v2221 = vperm.slane %v574, 1
        %v2222 = vperm.slane %v574, 2
        %v2223 = vperm.slane %v574, 3
        %v2224 = vperm.slane %v574, 4
        %v2225 = vperm.slane %v574, 5
        %v2226 = vperm.slane %v574, 6
        %v2227 = vperm.slane %v574, 7
        %v2228 = vperm.slane %v575, 0
        %v2229 = vperm.slane %v575, 1
        %v2230 = vperm.slane %v575, 2
        %v2231 = vperm.slane %v575, 3
        %v2232 = vperm.slane %v575, 4
        %v2233 = vperm.slane %v575, 5
        %v2234 = vperm.slane %v575, 6
        %v2235 = vperm.slane %v575, 7
        %v2236 = vperm.slane %v576, 0
        %v2237 = vperm.slane %v576, 1
        %v2238 = vperm.slane %v576, 2
        %v2239 = vperm.slane %v576, 3
        %v2240 = vperm.slane %v576, 4
        %v2241 = vperm.slane %v576, 5
        %v2242 = vperm.slane %v576, 6
        %v2243 = vperm.slane %v576, 7
        %v2244 = vperm.slane %v577, 0
        %v2245 = vperm.slane %v577, 1
        %v2246 = vperm.slane %v577, 2
        %v2247 = vperm.slane %v577, 3
        %v2248 = vperm.slane %v577, 4
        %v2249 = vperm.slane %v577, 5
        %v2250 = vperm.slane %v577, 6
        %v2251 = vperm.slane %v577, 7
        %v2252 = vperm.slane %v578, 0
        %v2253 = vperm.slane %v578, 1
        %v2254 = vperm.slane %v578, 2
        %v2255 = vperm.slane %v578, 3
        %v2256 = vperm.slane %v578, 4
        %v2257 = vperm.slane %v578, 5
        %v2258 = vperm.slane %v578, 6
        %v2259 = vperm.slane %v578, 7
        %v2260 = vperm.slane %v579, 0
        %v2261 = vperm.slane %v579, 1
        %vm2312 = vcmask 818176
        %v2314 = vsel %vm2312, %v247, 0
        %vm2316 = vcmask 1041408
        %v2318 = vsel %vm2316, %v1855, 0
        %v2321 = vsel %vm2316, %v1856, 0
        %v2324 = vsel %vm2316, %v1857, 0
        %v2327 = vsel %vm2316, %v1858, 0
        %v2330 = vsel %vm2316, %v1859, 0
        %v2333 = vsel %vm2316, %v1860, 0
        %v2336 = vsel %vm2316, %v1861, 0
        %v2339 = vsel %vm2316, %v1862, 0
        %v2342 = vsel %vm2316, %v1863, 0
        %v2345 = vsel %vm2316, %v1864, 0
        %v2348 = vsel %vm2316, %v1865, 0
        %v2351 = vsel %vm2316, %v1866, 0
        %v2354 = vsel %vm2316, %v1867, 0
        %v2357 = vsel %vm2316, %v1868, 0
        %v2360 = vsel %vm2316, %v1869, 0
        %v2363 = vsel %vm2316, %v1870, 0
        %v2366 = vsel %vm2316, %v1871, 0
        %v2369 = vsel %vm2316, %v1872, 0
        %v2372 = vsel %vm2316, %v1873, 0
        %v2375 = vsel %vm2316, %v1874, 0
        %v2378 = vsel %vm2316, %v1875, 0
        %v2381 = vsel %vm2316, %v1876, 0
        %v2384 = vsel %vm2316, %v1877, 0
        %v2387 = vsel %vm2316, %v1878, 0
        %v2390 = vsel %vm2316, %v1879, 0
        %v2393 = vsel %vm2316, %v1880, 0
        %v2396 = vsel %vm2316, %v1881, 0
        %v2399 = vsel %vm2316, %v1882, 0
        %v2402 = vsel %vm2316, %v1883, 0
        %v2405 = vsel %vm2316, %v1884, 0
        %v2408 = vsel %vm2316, %v1885, 0
        %v2411 = vsel %vm2316, %v1886, 0
        %v2414 = vsel %vm2316, %v1887, 0
        %v2417 = vsel %vm2316, %v1888, 0
        %v2420 = vsel %vm2316, %v1889, 0
        %v2423 = vsel %vm2316, %v1890, 0
        %v2426 = vsel %vm2316, %v1891, 0
        %v2429 = vsel %vm2316, %v1892, 0
        %v2432 = vsel %vm2316, %v1893, 0
        %v2435 = vsel %vm2316, %v1894, 0
        %v2438 = vsel %vm2316, %v1895, 0
        %v2441 = vsel %vm2316, %v1896, 0
        %v2444 = vsel %vm2316, %v1897, 0
        %v2447 = vsel %vm2316, %v1898, 0
        %v2450 = vsel %vm2316, %v1899, 0
        %v2453 = vsel %vm2316, %v1900, 0
        %v2456 = vsel %vm2316, %v1901, 0
        %v2459 = vsel %vm2316, %v1902, 0
        %v2462 = vsel %vm2316, %v1903, 0
        %v2465 = vsel %vm2316, %v1904, 0
        %2467 = vmatpush.bf16.msra.mxu0 0
        %2468 = vmatpush.bf16.msra.mxu0 %v2318
        %2469 = vmatpush.bf16.msra.mxu0 %v1805
        %2470 = vmatpush.bf16.msra.mxu0 %v1755
        %2471 = vmatpush.bf16.msra.mxu0 %v1705
        %2472 = vmatpush.bf16.msra.mxu0 %v1655
        %2473 = vmatpush.bf16.msra.mxu0 %v1605
        %2474 = vmatpush.bf16.msra.mxu0 %v1555
        %2475 = vmatmul.bf16.gmra.mxu0 %v2314
        %v2476 = vpop.f32.mrf.mxu0
        %v2477 = vadd.f32 %v2212, %v2476
        %v2478 = vpop.f32.mrf.mxu0
        %2479 = vdwg.mxu0
        %2480 = vmatpush.bf16.msra.mxu0 0
        %2481 = vmatpush.bf16.msra.mxu0 %v2321
        %2482 = vmatpush.bf16.msra.mxu0 %v1806
        %2483 = vmatpush.bf16.msra.mxu0 %v1756
        %2484 = vmatpush.bf16.msra.mxu0 %v1706
        %2485 = vmatpush.bf16.msra.mxu0 %v1656
        %2486 = vmatpush.bf16.msra.mxu0 %v1606
        %2487 = vmatpush.bf16.msra.mxu0 %v1556
        %2488 = vmatmul.bf16.gmra.mxu0 %v2314
        %v2489 = vpop.f32.mrf.mxu0
        %v2490 = vadd.f32 %v2213, %v2489
        %v2491 = vpop.f32.mrf.mxu0
        %2492 = vdwg.mxu0
        %2493 = vmatpush.bf16.msra.mxu0 0
        %2494 = vmatpush.bf16.msra.mxu0 %v2324
        %2495 = vmatpush.bf16.msra.mxu0 %v1807
        %2496 = vmatpush.bf16.msra.mxu0 %v1757
        %2497 = vmatpush.bf16.msra.mxu0 %v1707
        %2498 = vmatpush.bf16.msra.mxu0 %v1657
        %2499 = vmatpush.bf16.msra.mxu0 %v1607
        %2500 = vmatpush.bf16.msra.mxu0 %v1557
        %2501 = vmatmul.bf16.gmra.mxu0 %v2314
        %v2502 = vpop.f32.mrf.mxu0
        %v2503 = vadd.f32 %v2214, %v2502
        %v2504 = vpop.f32.mrf.mxu0
        %2505 = vdwg.mxu0
        %2506 = vmatpush.bf16.msra.mxu0 0
        %2507 = vmatpush.bf16.msra.mxu0 %v2327
        %2508 = vmatpush.bf16.msra.mxu0 %v1808
        %2509 = vmatpush.bf16.msra.mxu0 %v1758
        %2510 = vmatpush.bf16.msra.mxu0 %v1708
        %2511 = vmatpush.bf16.msra.mxu0 %v1658
        %2512 = vmatpush.bf16.msra.mxu0 %v1608
        %2513 = vmatpush.bf16.msra.mxu0 %v1558
        %2514 = vmatmul.bf16.gmra.mxu0 %v2314
        %v2515 = vpop.f32.mrf.mxu0
        %v2516 = vadd.f32 %v2215, %v2515
        %v2517 = vpop.f32.mrf.mxu0
        %2518 = vdwg.mxu0
        %2519 = vmatpush.bf16.msra.mxu0 0
        %2520 = vmatpush.bf16.msra.mxu0 %v2330
        %2521 = vmatpush.bf16.msra.mxu0 %v1809
        %2522 = vmatpush.bf16.msra.mxu0 %v1759
        %2523 = vmatpush.bf16.msra.mxu0 %v1709
        %2524 = vmatpush.bf16.msra.mxu0 %v1659
        %2525 = vmatpush.bf16.msra.mxu0 %v1609
        %2526 = vmatpush.bf16.msra.mxu0 %v1559
        %2527 = vmatmul.bf16.gmra.mxu0 %v2314
        %v2528 = vpop.f32.mrf.mxu0
        %v2529 = vadd.f32 %v2216, %v2528
        %v2530 = vpop.f32.mrf.mxu0
        %2531 = vdwg.mxu0
        %2532 = vmatpush.bf16.msra.mxu0 0
        %2533 = vmatpush.bf16.msra.mxu0 %v2333
        %2534 = vmatpush.bf16.msra.mxu0 %v1810
        %2535 = vmatpush.bf16.msra.mxu0 %v1760
        %2536 = vmatpush.bf16.msra.mxu0 %v1710
        %2537 = vmatpush.bf16.msra.mxu0 %v1660
        %2538 = vmatpush.bf16.msra.mxu0 %v1610
        %2539 = vmatpush.bf16.msra.mxu0 %v1560
        %2540 = vmatmul.bf16.gmra.mxu0 %v2314
        %v2541 = vpop.f32.mrf.mxu0
        %v2542 = vadd.f32 %v2217, %v2541
        %v2543 = vpop.f32.mrf.mxu0
        %2544 = vdwg.mxu0
        %2545 = vmatpush.bf16.msra.mxu0 0
        %2546 = vmatpush.bf16.msra.mxu0 %v2336
        %2547 = vmatpush.bf16.msra.mxu0 %v1811
        %2548 = vmatpush.bf16.msra.mxu0 %v1761
        %2549 = vmatpush.bf16.msra.mxu0 %v1711
        %2550 = vmatpush.bf16.msra.mxu0 %v1661
        %2551 = vmatpush.bf16.msra.mxu0 %v1611
        %2552 = vmatpush.bf16.msra.mxu0 %v1561
        %2553 = vmatmul.bf16.gmra.mxu0 %v2314
        %v2554 = vpop.f32.mrf.mxu0
        %v2555 = vadd.f32 %v2218, %v2554
        %v2556 = vpop.f32.mrf.mxu0
        %2557 = vdwg.mxu0
        %2558 = vmatpush.bf16.msra.mxu0 0
        %2559 = vmatpush.bf16.msra.mxu0 %v2339
        %2560 = vmatpush.bf16.msra.mxu0 %v1812
        %2561 = vmatpush.bf16.msra.mxu0 %v1762
        %2562 = vmatpush.bf16.msra.mxu0 %v1712
        %2563 = vmatpush.bf16.msra.mxu0 %v1662
        %2564 = vmatpush.bf16.msra.mxu0 %v1612
        %2565 = vmatpush.bf16.msra.mxu0 %v1562
        %2566 = vmatmul.bf16.gmra.mxu0 %v2314
        %v2567 = vpop.f32.mrf.mxu0
        %v2568 = vadd.f32 %v2219, %v2567
        %v2569 = vpop.f32.mrf.mxu0
        %2570 = vdwg.mxu0
        %2571 = vmatpush.bf16.msra.mxu0 0
        %2572 = vmatpush.bf16.msra.mxu0 %v2342
        %2573 = vmatpush.bf16.msra.mxu0 %v1813
        %2574 = vmatpush.bf16.msra.mxu0 %v1763
        %2575 = vmatpush.bf16.msra.mxu0 %v1713
        %2576 = vmatpush.bf16.msra.mxu0 %v1663
        %2577 = vmatpush.bf16.msra.mxu0 %v1613
        %2578 = vmatpush.bf16.msra.mxu0 %v1563
        %2579 = vmatmul.bf16.gmra.mxu0 %v2314
        %v2580 = vpop.f32.mrf.mxu0
        %v2581 = vadd.f32 %v2220, %v2580
        %v2582 = vpop.f32.mrf.mxu0
        %2583 = vdwg.mxu0
        %2584 = vmatpush.bf16.msra.mxu0 0
        %2585 = vmatpush.bf16.msra.mxu0 %v2345
        %2586 = vmatpush.bf16.msra.mxu0 %v1814
        %2587 = vmatpush.bf16.msra.mxu0 %v1764
        %2588 = vmatpush.bf16.msra.mxu0 %v1714
        %2589 = vmatpush.bf16.msra.mxu0 %v1664
        %2590 = vmatpush.bf16.msra.mxu0 %v1614
        %2591 = vmatpush.bf16.msra.mxu0 %v1564
        %2592 = vmatmul.bf16.gmra.mxu0 %v2314
        %v2593 = vpop.f32.mrf.mxu0
        %v2594 = vadd.f32 %v2221, %v2593
        %v2595 = vpop.f32.mrf.mxu0
        %2596 = vdwg.mxu0
        %2597 = vmatpush.bf16.msra.mxu0 0
        %2598 = vmatpush.bf16.msra.mxu0 %v2348
        %2599 = vmatpush.bf16.msra.mxu0 %v1815
        %2600 = vmatpush.bf16.msra.mxu0 %v1765
        %2601 = vmatpush.bf16.msra.mxu0 %v1715
        %2602 = vmatpush.bf16.msra.mxu0 %v1665
        %2603 = vmatpush.bf16.msra.mxu0 %v1615
        %2604 = vmatpush.bf16.msra.mxu0 %v1565
        %2605 = vmatmul.bf16.gmra.mxu0 %v2314
        %v2606 = vpop.f32.mrf.mxu0
        %v2607 = vadd.f32 %v2222, %v2606
        %v2608 = vpop.f32.mrf.mxu0
        %2609 = vdwg.mxu0
        %2610 = vmatpush.bf16.msra.mxu0 0
        %2611 = vmatpush.bf16.msra.mxu0 %v2351
        %2612 = vmatpush.bf16.msra.mxu0 %v1816
        %2613 = vmatpush.bf16.msra.mxu0 %v1766
        %2614 = vmatpush.bf16.msra.mxu0 %v1716
        %2615 = vmatpush.bf16.msra.mxu0 %v1666
        %2616 = vmatpush.bf16.msra.mxu0 %v1616
        %2617 = vmatpush.bf16.msra.mxu0 %v1566
        %2618 = vmatmul.bf16.gmra.mxu0 %v2314
        %v2619 = vpop.f32.mrf.mxu0
        %v2620 = vadd.f32 %v2223, %v2619
        %v2621 = vpop.f32.mrf.mxu0
        %2622 = vdwg.mxu0
        %2623 = vmatpush.bf16.msra.mxu0 0
        %2624 = vmatpush.bf16.msra.mxu0 %v2354
        %2625 = vmatpush.bf16.msra.mxu0 %v1817
        %2626 = vmatpush.bf16.msra.mxu0 %v1767
        %2627 = vmatpush.bf16.msra.mxu0 %v1717
        %2628 = vmatpush.bf16.msra.mxu0 %v1667
        %2629 = vmatpush.bf16.msra.mxu0 %v1617
        %2630 = vmatpush.bf16.msra.mxu0 %v1567
        %2631 = vmatmul.bf16.gmra.mxu0 %v2314
        %v2632 = vpop.f32.mrf.mxu0
        %v2633 = vadd.f32 %v2224, %v2632
        %v2634 = vpop.f32.mrf.mxu0
        %2635 = vdwg.mxu0
        %2636 = vmatpush.bf16.msra.mxu0 0
        %2637 = vmatpush.bf16.msra.mxu0 %v2357
        %2638 = vmatpush.bf16.msra.mxu0 %v1818
        %2639 = vmatpush.bf16.msra.mxu0 %v1768
        %2640 = vmatpush.bf16.msra.mxu0 %v1718
        %2641 = vmatpush.bf16.msra.mxu0 %v1668
        %2642 = vmatpush.bf16.msra.mxu0 %v1618
        %2643 = vmatpush.bf16.msra.mxu0 %v1568
        %2644 = vmatmul.bf16.gmra.mxu0 %v2314
        %v2645 = vpop.f32.mrf.mxu0
        %v2646 = vadd.f32 %v2225, %v2645
        %v2647 = vpop.f32.mrf.mxu0
        %2648 = vdwg.mxu0
        %2649 = vmatpush.bf16.msra.mxu0 0
        %2650 = vmatpush.bf16.msra.mxu0 %v2360
        %2651 = vmatpush.bf16.msra.mxu0 %v1819
        %2652 = vmatpush.bf16.msra.mxu0 %v1769
        %2653 = vmatpush.bf16.msra.mxu0 %v1719
        %2654 = vmatpush.bf16.msra.mxu0 %v1669
        %2655 = vmatpush.bf16.msra.mxu0 %v1619
        %2656 = vmatpush.bf16.msra.mxu0 %v1569
        %2657 = vmatmul.bf16.gmra.mxu0 %v2314
        %v2658 = vpop.f32.mrf.mxu0
        %v2659 = vadd.f32 %v2226, %v2658
        %v2660 = vpop.f32.mrf.mxu0
        %2661 = vdwg.mxu0
        %2662 = vmatpush.bf16.msra.mxu0 0
        %2663 = vmatpush.bf16.msra.mxu0 %v2363
        %2664 = vmatpush.bf16.msra.mxu0 %v1820
        %2665 = vmatpush.bf16.msra.mxu0 %v1770
        %2666 = vmatpush.bf16.msra.mxu0 %v1720
        %2667 = vmatpush.bf16.msra.mxu0 %v1670
        %2668 = vmatpush.bf16.msra.mxu0 %v1620
        %2669 = vmatpush.bf16.msra.mxu0 %v1570
        %2670 = vmatmul.bf16.gmra.mxu0 %v2314
        %v2671 = vpop.f32.mrf.mxu0
        %v2672 = vadd.f32 %v2227, %v2671
        %v2673 = vpop.f32.mrf.mxu0
        %2674 = vdwg.mxu0
        %2675 = vmatpush.bf16.msra.mxu0 0
        %2676 = vmatpush.bf16.msra.mxu0 %v2366
        %2677 = vmatpush.bf16.msra.mxu0 %v1821
        %2678 = vmatpush.bf16.msra.mxu0 %v1771
        %2679 = vmatpush.bf16.msra.mxu0 %v1721
        %2680 = vmatpush.bf16.msra.mxu0 %v1671
        %2681 = vmatpush.bf16.msra.mxu0 %v1621
        %2682 = vmatpush.bf16.msra.mxu0 %v1571
        %2683 = vmatmul.bf16.gmra.mxu0 %v2314
        %v2684 = vpop.f32.mrf.mxu0
        %v2685 = vadd.f32 %v2228, %v2684
        %v2686 = vpop.f32.mrf.mxu0
        %2687 = vdwg.mxu0
        %2688 = vmatpush.bf16.msra.mxu0 0
        %2689 = vmatpush.bf16.msra.mxu0 %v2369
        %2690 = vmatpush.bf16.msra.mxu0 %v1822
        %2691 = vmatpush.bf16.msra.mxu0 %v1772
        %2692 = vmatpush.bf16.msra.mxu0 %v1722
        %2693 = vmatpush.bf16.msra.mxu0 %v1672
        %2694 = vmatpush.bf16.msra.mxu0 %v1622
        %2695 = vmatpush.bf16.msra.mxu0 %v1572
        %2696 = vmatmul.bf16.gmra.mxu0 %v2314
        %v2697 = vpop.f32.mrf.mxu0
        %v2698 = vadd.f32 %v2229, %v2697
        %v2699 = vpop.f32.mrf.mxu0
        %2700 = vdwg.mxu0
        %2701 = vmatpush.bf16.msra.mxu0 0
        %2702 = vmatpush.bf16.msra.mxu0 %v2372
        %2703 = vmatpush.bf16.msra.mxu0 %v1823
        %2704 = vmatpush.bf16.msra.mxu0 %v1773
        %2705 = vmatpush.bf16.msra.mxu0 %v1723
        %2706 = vmatpush.bf16.msra.mxu0 %v1673
        %2707 = vmatpush.bf16.msra.mxu0 %v1623
        %2708 = vmatpush.bf16.msra.mxu0 %v1573
        %2709 = vmatmul.bf16.gmra.mxu0 %v2314
        %v2710 = vpop.f32.mrf.mxu0
        %v2711 = vadd.f32 %v2230, %v2710
        %v2712 = vpop.f32.mrf.mxu0
        %2713 = vdwg.mxu0
        %2714 = vmatpush.bf16.msra.mxu0 0
        %2715 = vmatpush.bf16.msra.mxu0 %v2375
        %2716 = vmatpush.bf16.msra.mxu0 %v1824
        %2717 = vmatpush.bf16.msra.mxu0 %v1774
        %2718 = vmatpush.bf16.msra.mxu0 %v1724
        %2719 = vmatpush.bf16.msra.mxu0 %v1674
        %2720 = vmatpush.bf16.msra.mxu0 %v1624
        %2721 = vmatpush.bf16.msra.mxu0 %v1574
        %2722 = vmatmul.bf16.gmra.mxu0 %v2314
        %v2723 = vpop.f32.mrf.mxu0
        %v2724 = vadd.f32 %v2231, %v2723
        %v2725 = vpop.f32.mrf.mxu0
        %2726 = vdwg.mxu0
        %2727 = vmatpush.bf16.msra.mxu0 0
        %2728 = vmatpush.bf16.msra.mxu0 %v2378
        %2729 = vmatpush.bf16.msra.mxu0 %v1825
        %2730 = vmatpush.bf16.msra.mxu0 %v1775
        %2731 = vmatpush.bf16.msra.mxu0 %v1725
        %2732 = vmatpush.bf16.msra.mxu0 %v1675
        %2733 = vmatpush.bf16.msra.mxu0 %v1625
        %2734 = vmatpush.bf16.msra.mxu0 %v1575
        %2735 = vmatmul.bf16.gmra.mxu0 %v2314
        %v2736 = vpop.f32.mrf.mxu0
        %v2737 = vadd.f32 %v2232, %v2736
        %v2738 = vpop.f32.mrf.mxu0
        %2739 = vdwg.mxu0
        %2740 = vmatpush.bf16.msra.mxu0 0
        %2741 = vmatpush.bf16.msra.mxu0 %v2381
        %2742 = vmatpush.bf16.msra.mxu0 %v1826
        %2743 = vmatpush.bf16.msra.mxu0 %v1776
        %2744 = vmatpush.bf16.msra.mxu0 %v1726
        %2745 = vmatpush.bf16.msra.mxu0 %v1676
        %2746 = vmatpush.bf16.msra.mxu0 %v1626
        %2747 = vmatpush.bf16.msra.mxu0 %v1576
        %2748 = vmatmul.bf16.gmra.mxu0 %v2314
        %v2749 = vpop.f32.mrf.mxu0
        %v2750 = vadd.f32 %v2233, %v2749
        %v2751 = vpop.f32.mrf.mxu0
        %2752 = vdwg.mxu0
        %2753 = vmatpush.bf16.msra.mxu0 0
        %2754 = vmatpush.bf16.msra.mxu0 %v2384
        %2755 = vmatpush.bf16.msra.mxu0 %v1827
        %2756 = vmatpush.bf16.msra.mxu0 %v1777
        %2757 = vmatpush.bf16.msra.mxu0 %v1727
        %2758 = vmatpush.bf16.msra.mxu0 %v1677
        %2759 = vmatpush.bf16.msra.mxu0 %v1627
        %2760 = vmatpush.bf16.msra.mxu0 %v1577
        %2761 = vmatmul.bf16.gmra.mxu0 %v2314
        %v2762 = vpop.f32.mrf.mxu0
        %v2763 = vadd.f32 %v2234, %v2762
        %v2764 = vpop.f32.mrf.mxu0
        %2765 = vdwg.mxu0
        %2766 = vmatpush.bf16.msra.mxu0 0
        %2767 = vmatpush.bf16.msra.mxu0 %v2387
        %2768 = vmatpush.bf16.msra.mxu0 %v1828
        %2769 = vmatpush.bf16.msra.mxu0 %v1778
        %2770 = vmatpush.bf16.msra.mxu0 %v1728
        %2771 = vmatpush.bf16.msra.mxu0 %v1678
        %2772 = vmatpush.bf16.msra.mxu0 %v1628
        %2773 = vmatpush.bf16.msra.mxu0 %v1578
        %2774 = vmatmul.bf16.gmra.mxu0 %v2314
        %v2775 = vpop.f32.mrf.mxu0
        %v2776 = vadd.f32 %v2235, %v2775
        %v2777 = vpop.f32.mrf.mxu0
        %2778 = vdwg.mxu0
        %2779 = vmatpush.bf16.msra.mxu0 0
        %2780 = vmatpush.bf16.msra.mxu0 %v2390
        %2781 = vmatpush.bf16.msra.mxu0 %v1829
        %2782 = vmatpush.bf16.msra.mxu0 %v1779
        %2783 = vmatpush.bf16.msra.mxu0 %v1729
        %2784 = vmatpush.bf16.msra.mxu0 %v1679
        %2785 = vmatpush.bf16.msra.mxu0 %v1629
        %2786 = vmatpush.bf16.msra.mxu0 %v1579
        %2787 = vmatmul.bf16.gmra.mxu0 %v2314
        %v2788 = vpop.f32.mrf.mxu0
        %v2789 = vadd.f32 %v2236, %v2788
        %v2790 = vpop.f32.mrf.mxu0
        %2791 = vdwg.mxu0
        %2792 = vmatpush.bf16.msra.mxu0 0
        %2793 = vmatpush.bf16.msra.mxu0 %v2393
        %2794 = vmatpush.bf16.msra.mxu0 %v1830
        %2795 = vmatpush.bf16.msra.mxu0 %v1780
        %2796 = vmatpush.bf16.msra.mxu0 %v1730
        %2797 = vmatpush.bf16.msra.mxu0 %v1680
        %2798 = vmatpush.bf16.msra.mxu0 %v1630
        %2799 = vmatpush.bf16.msra.mxu0 %v1580
        %2800 = vmatmul.bf16.gmra.mxu0 %v2314
        %v2801 = vpop.f32.mrf.mxu0
        %v2802 = vadd.f32 %v2237, %v2801
        %v2803 = vpop.f32.mrf.mxu0
        %2804 = vdwg.mxu0
        %2805 = vmatpush.bf16.msra.mxu0 0
        %2806 = vmatpush.bf16.msra.mxu0 %v2396
        %2807 = vmatpush.bf16.msra.mxu0 %v1831
        %2808 = vmatpush.bf16.msra.mxu0 %v1781
        %2809 = vmatpush.bf16.msra.mxu0 %v1731
        %2810 = vmatpush.bf16.msra.mxu0 %v1681
        %2811 = vmatpush.bf16.msra.mxu0 %v1631
        %2812 = vmatpush.bf16.msra.mxu0 %v1581
        %2813 = vmatmul.bf16.gmra.mxu0 %v2314
        %v2814 = vpop.f32.mrf.mxu0
        %v2815 = vadd.f32 %v2238, %v2814
        %v2816 = vpop.f32.mrf.mxu0
        %2817 = vdwg.mxu0
        %2818 = vmatpush.bf16.msra.mxu0 0
        %2819 = vmatpush.bf16.msra.mxu0 %v2399
        %2820 = vmatpush.bf16.msra.mxu0 %v1832
        %2821 = vmatpush.bf16.msra.mxu0 %v1782
        %2822 = vmatpush.bf16.msra.mxu0 %v1732
        %2823 = vmatpush.bf16.msra.mxu0 %v1682
        %2824 = vmatpush.bf16.msra.mxu0 %v1632
        %2825 = vmatpush.bf16.msra.mxu0 %v1582
        %2826 = vmatmul.bf16.gmra.mxu0 %v2314
        %v2827 = vpop.f32.mrf.mxu0
        %v2828 = vadd.f32 %v2239, %v2827
        %v2829 = vpop.f32.mrf.mxu0
        %2830 = vdwg.mxu0
        %2831 = vmatpush.bf16.msra.mxu0 0
        %2832 = vmatpush.bf16.msra.mxu0 %v2402
        %2833 = vmatpush.bf16.msra.mxu0 %v1833
        %2834 = vmatpush.bf16.msra.mxu0 %v1783
        %2835 = vmatpush.bf16.msra.mxu0 %v1733
        %2836 = vmatpush.bf16.msra.mxu0 %v1683
        %2837 = vmatpush.bf16.msra.mxu0 %v1633
        %2838 = vmatpush.bf16.msra.mxu0 %v1583
        %2839 = vmatmul.bf16.gmra.mxu0 %v2314
        %v2840 = vpop.f32.mrf.mxu0
        %v2841 = vadd.f32 %v2240, %v2840
        %v2842 = vpop.f32.mrf.mxu0
        %2843 = vdwg.mxu0
        %2844 = vmatpush.bf16.msra.mxu0 0
        %2845 = vmatpush.bf16.msra.mxu0 %v2405
        %2846 = vmatpush.bf16.msra.mxu0 %v1834
        %2847 = vmatpush.bf16.msra.mxu0 %v1784
        %2848 = vmatpush.bf16.msra.mxu0 %v1734
        %2849 = vmatpush.bf16.msra.mxu0 %v1684
        %2850 = vmatpush.bf16.msra.mxu0 %v1634
        %2851 = vmatpush.bf16.msra.mxu0 %v1584
        %2852 = vmatmul.bf16.gmra.mxu0 %v2314
        %v2853 = vpop.f32.mrf.mxu0
        %v2854 = vadd.f32 %v2241, %v2853
        %v2855 = vpop.f32.mrf.mxu0
        %2856 = vdwg.mxu0
        %2857 = vmatpush.bf16.msra.mxu0 0
        %2858 = vmatpush.bf16.msra.mxu0 %v2408
        %2859 = vmatpush.bf16.msra.mxu0 %v1835
        %2860 = vmatpush.bf16.msra.mxu0 %v1785
        %2861 = vmatpush.bf16.msra.mxu0 %v1735
        %2862 = vmatpush.bf16.msra.mxu0 %v1685
        %2863 = vmatpush.bf16.msra.mxu0 %v1635
        %2864 = vmatpush.bf16.msra.mxu0 %v1585
        %2865 = vmatmul.bf16.gmra.mxu0 %v2314
        %v2866 = vpop.f32.mrf.mxu0
        %v2867 = vadd.f32 %v2242, %v2866
        %v2868 = vpop.f32.mrf.mxu0
        %2869 = vdwg.mxu0
        %2870 = vmatpush.bf16.msra.mxu0 0
        %2871 = vmatpush.bf16.msra.mxu0 %v2411
        %2872 = vmatpush.bf16.msra.mxu0 %v1836
        %2873 = vmatpush.bf16.msra.mxu0 %v1786
        %2874 = vmatpush.bf16.msra.mxu0 %v1736
        %2875 = vmatpush.bf16.msra.mxu0 %v1686
        %2876 = vmatpush.bf16.msra.mxu0 %v1636
        %2877 = vmatpush.bf16.msra.mxu0 %v1586
        %2878 = vmatmul.bf16.gmra.mxu0 %v2314
        %v2879 = vpop.f32.mrf.mxu0
        %v2880 = vadd.f32 %v2243, %v2879
        %v2881 = vpop.f32.mrf.mxu0
        %2882 = vdwg.mxu0
        %2883 = vmatpush.bf16.msra.mxu0 0
        %2884 = vmatpush.bf16.msra.mxu0 %v2414
        %2885 = vmatpush.bf16.msra.mxu0 %v1837
        %2886 = vmatpush.bf16.msra.mxu0 %v1787
        %2887 = vmatpush.bf16.msra.mxu0 %v1737
        %2888 = vmatpush.bf16.msra.mxu0 %v1687
        %2889 = vmatpush.bf16.msra.mxu0 %v1637
        %2890 = vmatpush.bf16.msra.mxu0 %v1587
        %2891 = vmatmul.bf16.gmra.mxu0 %v2314
        %v2892 = vpop.f32.mrf.mxu0
        %v2893 = vadd.f32 %v2244, %v2892
        %v2894 = vpop.f32.mrf.mxu0
        %2895 = vdwg.mxu0
        %2896 = vmatpush.bf16.msra.mxu0 0
        %2897 = vmatpush.bf16.msra.mxu0 %v2417
        %2898 = vmatpush.bf16.msra.mxu0 %v1838
        %2899 = vmatpush.bf16.msra.mxu0 %v1788
        %2900 = vmatpush.bf16.msra.mxu0 %v1738
        %2901 = vmatpush.bf16.msra.mxu0 %v1688
        %2902 = vmatpush.bf16.msra.mxu0 %v1638
        %2903 = vmatpush.bf16.msra.mxu0 %v1588
        %2904 = vmatmul.bf16.gmra.mxu0 %v2314
        %v2905 = vpop.f32.mrf.mxu0
        %v2906 = vadd.f32 %v2245, %v2905
        %v2907 = vpop.f32.mrf.mxu0
        %2908 = vdwg.mxu0
        %2909 = vmatpush.bf16.msra.mxu0 0
        %2910 = vmatpush.bf16.msra.mxu0 %v2420
        %2911 = vmatpush.bf16.msra.mxu0 %v1839
        %2912 = vmatpush.bf16.msra.mxu0 %v1789
        %2913 = vmatpush.bf16.msra.mxu0 %v1739
        %2914 = vmatpush.bf16.msra.mxu0 %v1689
        %2915 = vmatpush.bf16.msra.mxu0 %v1639
        %2916 = vmatpush.bf16.msra.mxu0 %v1589
        %2917 = vmatmul.bf16.gmra.mxu0 %v2314
        %v2918 = vpop.f32.mrf.mxu0
        %v2919 = vadd.f32 %v2246, %v2918
        %v2920 = vpop.f32.mrf.mxu0
        %2921 = vdwg.mxu0
        %2922 = vmatpush.bf16.msra.mxu0 0
        %2923 = vmatpush.bf16.msra.mxu0 %v2423
        %2924 = vmatpush.bf16.msra.mxu0 %v1840
        %2925 = vmatpush.bf16.msra.mxu0 %v1790
        %2926 = vmatpush.bf16.msra.mxu0 %v1740
        %2927 = vmatpush.bf16.msra.mxu0 %v1690
        %2928 = vmatpush.bf16.msra.mxu0 %v1640
        %2929 = vmatpush.bf16.msra.mxu0 %v1590
        %2930 = vmatmul.bf16.gmra.mxu0 %v2314
        %v2931 = vpop.f32.mrf.mxu0
        %v2932 = vadd.f32 %v2247, %v2931
        %v2933 = vpop.f32.mrf.mxu0
        %2934 = vdwg.mxu0
        %2935 = vmatpush.bf16.msra.mxu0 0
        %2936 = vmatpush.bf16.msra.mxu0 %v2426
        %2937 = vmatpush.bf16.msra.mxu0 %v1841
        %2938 = vmatpush.bf16.msra.mxu0 %v1791
        %2939 = vmatpush.bf16.msra.mxu0 %v1741
        %2940 = vmatpush.bf16.msra.mxu0 %v1691
        %2941 = vmatpush.bf16.msra.mxu0 %v1641
        %2942 = vmatpush.bf16.msra.mxu0 %v1591
        %2943 = vmatmul.bf16.gmra.mxu0 %v2314
        %v2944 = vpop.f32.mrf.mxu0
        %v2945 = vadd.f32 %v2248, %v2944
        %v2946 = vpop.f32.mrf.mxu0
        %2947 = vdwg.mxu0
        %2948 = vmatpush.bf16.msra.mxu0 0
        %2949 = vmatpush.bf16.msra.mxu0 %v2429
        %2950 = vmatpush.bf16.msra.mxu0 %v1842
        %2951 = vmatpush.bf16.msra.mxu0 %v1792
        %2952 = vmatpush.bf16.msra.mxu0 %v1742
        %2953 = vmatpush.bf16.msra.mxu0 %v1692
        %2954 = vmatpush.bf16.msra.mxu0 %v1642
        %2955 = vmatpush.bf16.msra.mxu0 %v1592
        %2956 = vmatmul.bf16.gmra.mxu0 %v2314
        %v2957 = vpop.f32.mrf.mxu0
        %v2958 = vadd.f32 %v2249, %v2957
        %v2959 = vpop.f32.mrf.mxu0
        %2960 = vdwg.mxu0
        %2961 = vmatpush.bf16.msra.mxu0 0
        %2962 = vmatpush.bf16.msra.mxu0 %v2432
        %2963 = vmatpush.bf16.msra.mxu0 %v1843
        %2964 = vmatpush.bf16.msra.mxu0 %v1793
        %2965 = vmatpush.bf16.msra.mxu0 %v1743
        %2966 = vmatpush.bf16.msra.mxu0 %v1693
        %2967 = vmatpush.bf16.msra.mxu0 %v1643
        %2968 = vmatpush.bf16.msra.mxu0 %v1593
        %2969 = vmatmul.bf16.gmra.mxu0 %v2314
        %v2970 = vpop.f32.mrf.mxu0
        %v2971 = vadd.f32 %v2250, %v2970
        %v2972 = vpop.f32.mrf.mxu0
        %2973 = vdwg.mxu0
        %2974 = vmatpush.bf16.msra.mxu0 0
        %2975 = vmatpush.bf16.msra.mxu0 %v2435
        %2976 = vmatpush.bf16.msra.mxu0 %v1844
        %2977 = vmatpush.bf16.msra.mxu0 %v1794
        %2978 = vmatpush.bf16.msra.mxu0 %v1744
        %2979 = vmatpush.bf16.msra.mxu0 %v1694
        %2980 = vmatpush.bf16.msra.mxu0 %v1644
        %2981 = vmatpush.bf16.msra.mxu0 %v1594
        %2982 = vmatmul.bf16.gmra.mxu0 %v2314
        %v2983 = vpop.f32.mrf.mxu0
        %v2984 = vadd.f32 %v2251, %v2983
        %v2985 = vpop.f32.mrf.mxu0
        %2986 = vdwg.mxu0
        %2987 = vmatpush.bf16.msra.mxu0 0
        %2988 = vmatpush.bf16.msra.mxu0 %v2438
        %2989 = vmatpush.bf16.msra.mxu0 %v1845
        %2990 = vmatpush.bf16.msra.mxu0 %v1795
        %2991 = vmatpush.bf16.msra.mxu0 %v1745
        %2992 = vmatpush.bf16.msra.mxu0 %v1695
        %2993 = vmatpush.bf16.msra.mxu0 %v1645
        %2994 = vmatpush.bf16.msra.mxu0 %v1595
        %2995 = vmatmul.bf16.gmra.mxu0 %v2314
        %v2996 = vpop.f32.mrf.mxu0
        %v2997 = vadd.f32 %v2252, %v2996
        %v2998 = vpop.f32.mrf.mxu0
        %2999 = vdwg.mxu0
        %3000 = vmatpush.bf16.msra.mxu0 0
        %3001 = vmatpush.bf16.msra.mxu0 %v2441
        %3002 = vmatpush.bf16.msra.mxu0 %v1846
        %3003 = vmatpush.bf16.msra.mxu0 %v1796
        %3004 = vmatpush.bf16.msra.mxu0 %v1746
        %3005 = vmatpush.bf16.msra.mxu0 %v1696
        %3006 = vmatpush.bf16.msra.mxu0 %v1646
        %3007 = vmatpush.bf16.msra.mxu0 %v1596
        %3008 = vmatmul.bf16.gmra.mxu0 %v2314
        %v3009 = vpop.f32.mrf.mxu0
        %v3010 = vadd.f32 %v2253, %v3009
        %v3011 = vpop.f32.mrf.mxu0
        %3012 = vdwg.mxu0
        %3013 = vmatpush.bf16.msra.mxu0 0
        %3014 = vmatpush.bf16.msra.mxu0 %v2444
        %3015 = vmatpush.bf16.msra.mxu0 %v1847
        %3016 = vmatpush.bf16.msra.mxu0 %v1797
        %3017 = vmatpush.bf16.msra.mxu0 %v1747
        %3018 = vmatpush.bf16.msra.mxu0 %v1697
        %3019 = vmatpush.bf16.msra.mxu0 %v1647
        %3020 = vmatpush.bf16.msra.mxu0 %v1597
        %3021 = vmatmul.bf16.gmra.mxu0 %v2314
        %v3022 = vpop.f32.mrf.mxu0
        %v3023 = vadd.f32 %v2254, %v3022
        %v3024 = vpop.f32.mrf.mxu0
        %3025 = vdwg.mxu0
        %3026 = vmatpush.bf16.msra.mxu0 0
        %3027 = vmatpush.bf16.msra.mxu0 %v2447
        %3028 = vmatpush.bf16.msra.mxu0 %v1848
        %3029 = vmatpush.bf16.msra.mxu0 %v1798
        %3030 = vmatpush.bf16.msra.mxu0 %v1748
        %3031 = vmatpush.bf16.msra.mxu0 %v1698
        %3032 = vmatpush.bf16.msra.mxu0 %v1648
        %3033 = vmatpush.bf16.msra.mxu0 %v1598
        %3034 = vmatmul.bf16.gmra.mxu0 %v2314
        %v3035 = vpop.f32.mrf.mxu0
        %v3036 = vadd.f32 %v2255, %v3035
        %v3037 = vpop.f32.mrf.mxu0
        %3038 = vdwg.mxu0
        %3039 = vmatpush.bf16.msra.mxu0 0
        %3040 = vmatpush.bf16.msra.mxu0 %v2450
        %3041 = vmatpush.bf16.msra.mxu0 %v1849
        %3042 = vmatpush.bf16.msra.mxu0 %v1799
        %3043 = vmatpush.bf16.msra.mxu0 %v1749
        %3044 = vmatpush.bf16.msra.mxu0 %v1699
        %3045 = vmatpush.bf16.msra.mxu0 %v1649
        %3046 = vmatpush.bf16.msra.mxu0 %v1599
        %3047 = vmatmul.bf16.gmra.mxu0 %v2314
        %v3048 = vpop.f32.mrf.mxu0
        %v3049 = vadd.f32 %v2256, %v3048
        %v3050 = vpop.f32.mrf.mxu0
        %3051 = vdwg.mxu0
        %3052 = vmatpush.bf16.msra.mxu0 0
        %3053 = vmatpush.bf16.msra.mxu0 %v2453
        %3054 = vmatpush.bf16.msra.mxu0 %v1850
        %3055 = vmatpush.bf16.msra.mxu0 %v1800
        %3056 = vmatpush.bf16.msra.mxu0 %v1750
        %3057 = vmatpush.bf16.msra.mxu0 %v1700
        %3058 = vmatpush.bf16.msra.mxu0 %v1650
        %3059 = vmatpush.bf16.msra.mxu0 %v1600
        %3060 = vmatmul.bf16.gmra.mxu0 %v2314
        %v3061 = vpop.f32.mrf.mxu0
        %v3062 = vadd.f32 %v2257, %v3061
        %v3063 = vpop.f32.mrf.mxu0
        %3064 = vdwg.mxu0
        %3065 = vmatpush.bf16.msra.mxu0 0
        %3066 = vmatpush.bf16.msra.mxu0 %v2456
        %3067 = vmatpush.bf16.msra.mxu0 %v1851
        %3068 = vmatpush.bf16.msra.mxu0 %v1801
        %3069 = vmatpush.bf16.msra.mxu0 %v1751
        %3070 = vmatpush.bf16.msra.mxu0 %v1701
        %3071 = vmatpush.bf16.msra.mxu0 %v1651
        %3072 = vmatpush.bf16.msra.mxu0 %v1601
        %3073 = vmatmul.bf16.gmra.mxu0 %v2314
        %v3074 = vpop.f32.mrf.mxu0
        %v3075 = vadd.f32 %v2258, %v3074
        %v3076 = vpop.f32.mrf.mxu0
        %3077 = vdwg.mxu0
        %3078 = vmatpush.bf16.msra.mxu0 0
        %3079 = vmatpush.bf16.msra.mxu0 %v2459
        %3080 = vmatpush.bf16.msra.mxu0 %v1852
        %3081 = vmatpush.bf16.msra.mxu0 %v1802
        %3082 = vmatpush.bf16.msra.mxu0 %v1752
        %3083 = vmatpush.bf16.msra.mxu0 %v1702
        %3084 = vmatpush.bf16.msra.mxu0 %v1652
        %3085 = vmatpush.bf16.msra.mxu0 %v1602
        %3086 = vmatmul.bf16.gmra.mxu0 %v2314
        %v3087 = vpop.f32.mrf.mxu0
        %v3088 = vadd.f32 %v2259, %v3087
        %v3089 = vpop.f32.mrf.mxu0
        %3090 = vdwg.mxu0
        %3091 = vmatpush.bf16.msra.mxu0 0
        %3092 = vmatpush.bf16.msra.mxu0 %v2462
        %3093 = vmatpush.bf16.msra.mxu0 %v1853
        %3094 = vmatpush.bf16.msra.mxu0 %v1803
        %3095 = vmatpush.bf16.msra.mxu0 %v1753
        %3096 = vmatpush.bf16.msra.mxu0 %v1703
        %3097 = vmatpush.bf16.msra.mxu0 %v1653
        %3098 = vmatpush.bf16.msra.mxu0 %v1603
        %3099 = vmatmul.bf16.gmra.mxu0 %v2314
        %v3100 = vpop.f32.mrf.mxu0
        %v3101 = vadd.f32 %v2260, %v3100
        %v3102 = vpop.f32.mrf.mxu0
        %3103 = vdwg.mxu0
        %3104 = vmatpush.bf16.msra.mxu0 0
        %3105 = vmatpush.bf16.msra.mxu0 %v2465
        %3106 = vmatpush.bf16.msra.mxu0 %v1854
        %3107 = vmatpush.bf16.msra.mxu0 %v1804
        %3108 = vmatpush.bf16.msra.mxu0 %v1754
        %3109 = vmatpush.bf16.msra.mxu0 %v1704
        %3110 = vmatpush.bf16.msra.mxu0 %v1654
        %3111 = vmatpush.bf16.msra.mxu0 %v1604
        %3112 = vmatmul.bf16.gmra.mxu0 %v2314
        %v3113 = vpop.f32.mrf.mxu0
        %v3114 = vadd.f32 %v2261, %v3113
        %v3115 = vpop.f32.mrf.mxu0
        %3116 = vdwg.mxu0
        %v3117 = vmax.f32 %v2477, 0.0
        %v3118 = vmax.f32 %v2490, 0.0
        %v3119 = vmax.f32 %v2503, 0.0
        %v3120 = vmax.f32 %v2516, 0.0
        %v3121 = vmax.f32 %v2529, 0.0
        %v3122 = vmax.f32 %v2542, 0.0
        %v3123 = vmax.f32 %v2555, 0.0
        %v3124 = vmax.f32 %v2568, 0.0
        %v3125 = vmax.f32 %v2581, 0.0
        %v3126 = vmax.f32 %v2594, 0.0
        %v3127 = vmax.f32 %v2607, 0.0
        %v3128 = vmax.f32 %v2620, 0.0
        %v3129 = vmax.f32 %v2633, 0.0
        %v3130 = vmax.f32 %v2646, 0.0
        %v3131 = vmax.f32 %v2659, 0.0
        %v3132 = vmax.f32 %v2672, 0.0
        %v3133 = vmax.f32 %v2685, 0.0
        %v3134 = vmax.f32 %v2698, 0.0
        %v3135 = vmax.f32 %v2711, 0.0
        %v3136 = vmax.f32 %v2724, 0.0
        %v3137 = vmax.f32 %v2737, 0.0
        %v3138 = vmax.f32 %v2750, 0.0
        %v3139 = vmax.f32 %v2763, 0.0
        %v3140 = vmax.f32 %v2776, 0.0
        %v3141 = vmax.f32 %v2789, 0.0
        %v3142 = vmax.f32 %v2802, 0.0
        %v3143 = vmax.f32 %v2815, 0.0
        %v3144 = vmax.f32 %v2828, 0.0
        %v3145 = vmax.f32 %v2841, 0.0
        %v3146 = vmax.f32 %v2854, 0.0
        %v3147 = vmax.f32 %v2867, 0.0
        %v3148 = vmax.f32 %v2880, 0.0
        %v3149 = vmax.f32 %v2893, 0.0
        %v3150 = vmax.f32 %v2906, 0.0
        %v3151 = vmax.f32 %v2919, 0.0
        %v3152 = vmax.f32 %v2932, 0.0
        %v3153 = vmax.f32 %v2945, 0.0
        %v3154 = vmax.f32 %v2958, 0.0
        %v3155 = vmax.f32 %v2971, 0.0
        %v3156 = vmax.f32 %v2984, 0.0
        %v3157 = vmax.f32 %v2997, 0.0
        %v3158 = vmax.f32 %v3010, 0.0
        %v3159 = vmax.f32 %v3023, 0.0
        %v3160 = vmax.f32 %v3036, 0.0
        %v3161 = vmax.f32 %v3049, 0.0
        %v3162 = vmax.f32 %v3062, 0.0
        %v3163 = vmax.f32 %v3075, 0.0
        %v3164 = vmax.f32 %v3088, 0.0
        %v3165 = vmax.f32 %v3101, 0.0
        %v3166 = vmax.f32 %v3114, 0.0
        %v3217 = vrot.slane %v3118, 7
        %v3218 = vrot.slane %v3119, 6
        %v3219 = vrot.slane %v3120, 5
        %v3220 = vrot.slane %v3121, 4
        %v3221 = vrot.slane %v3122, 3
        %v3222 = vrot.slane %v3123, 2
        %v3223 = vrot.slane %v3124, 1
        %v3224 = vrot.slane %v3126, 7
        %v3225 = vrot.slane %v3127, 6
        %v3226 = vrot.slane %v3128, 5
        %v3227 = vrot.slane %v3129, 4
        %v3228 = vrot.slane %v3130, 3
        %v3229 = vrot.slane %v3131, 2
        %v3230 = vrot.slane %v3132, 1
        %v3231 = vrot.slane %v3134, 7
        %v3232 = vrot.slane %v3135, 6
        %v3233 = vrot.slane %v3136, 5
        %v3234 = vrot.slane %v3137, 4
        %v3235 = vrot.slane %v3138, 3
        %v3236 = vrot.slane %v3139, 2
        %v3237 = vrot.slane %v3140, 1
        %v3238 = vrot.slane %v3142, 7
        %v3239 = vrot.slane %v3143, 6
        %v3240 = vrot.slane %v3144, 5
        %v3241 = vrot.slane %v3145, 4
        %v3242 = vrot.slane %v3146, 3
        %v3243 = vrot.slane %v3147, 2
        %v3244 = vrot.slane %v3148, 1
        %v3245 = vrot.slane %v3150, 7
        %v3246 = vrot.slane %v3151, 6
        %v3247 = vrot.slane %v3152, 5
        %v3248 = vrot.slane %v3153, 4
        %v3249 = vrot.slane %v3154, 3
        %v3250 = vrot.slane %v3155, 2
        %v3251 = vrot.slane %v3156, 1
        %v3252 = vrot.slane %v3158, 7
        %v3253 = vrot.slane %v3159, 6
        %v3254 = vrot.slane %v3160, 5
        %v3255 = vrot.slane %v3161, 4
        %v3256 = vrot.slane %v3162, 3
        %v3257 = vrot.slane %v3163, 2
        %v3258 = vrot.slane %v3164, 1
        %v3259 = vrot.slane %v3166, 7
        %vm3260 = vcmask 1040384
        %v3261 = vsel %vm3260, %v3117, %v3217
        %vm3262 = vcmask 1042434
        %v3263 = vsel %vm3262, %v3218, %v3219
        %v3264 = vsel %vm2316, %v3261, %v3263
        %vm3265 = vcmask 1044484
        %v3266 = vsel %vm3265, %v3220, %v3221
        %vm3267 = vcmask 1046534
        %v3268 = vsel %vm3267, %v3222, %v3223
        %vm3269 = vcmask 1045508
        %v3270 = vsel %vm3269, %v3266, %v3268
        %vm3271 = vcmask 1043456
        %v3272 = vsel %vm3271, %v3264, %v3270
        %v3273 = vsel %vm3260, %v3125, %v3224
        %v3274 = vsel %vm3262, %v3225, %v3226
        %v3275 = vsel %vm2316, %v3273, %v3274
        %v3276 = vsel %vm3265, %v3227, %v3228
        %v3277 = vsel %vm3267, %v3229, %v3230
        %v3278 = vsel %vm3269, %v3276, %v3277
        %v3279 = vsel %vm3271, %v3275, %v3278
        %v3280 = vsel %vm3260, %v3133, %v3231
        %v3281 = vsel %vm3262, %v3232, %v3233
        %v3282 = vsel %vm2316, %v3280, %v3281
        %v3283 = vsel %vm3265, %v3234, %v3235
        %v3284 = vsel %vm3267, %v3236, %v3237
        %v3285 = vsel %vm3269, %v3283, %v3284
        %v3286 = vsel %vm3271, %v3282, %v3285
        %v3287 = vsel %vm3260, %v3141, %v3238
        %v3288 = vsel %vm3262, %v3239, %v3240
        %v3289 = vsel %vm2316, %v3287, %v3288
        %v3290 = vsel %vm3265, %v3241, %v3242
        %v3291 = vsel %vm3267, %v3243, %v3244
        %v3292 = vsel %vm3269, %v3290, %v3291
        %v3293 = vsel %vm3271, %v3289, %v3292
        %v3294 = vsel %vm3260, %v3149, %v3245
        %v3295 = vsel %vm3262, %v3246, %v3247
        %v3296 = vsel %vm2316, %v3294, %v3295
        %v3297 = vsel %vm3265, %v3248, %v3249
        %v3298 = vsel %vm3267, %v3250, %v3251
        %v3299 = vsel %vm3269, %v3297, %v3298
        %v3300 = vsel %vm3271, %v3296, %v3299
        %v3301 = vsel %vm3260, %v3157, %v3252
        %v3302 = vsel %vm3262, %v3253, %v3254
        %v3303 = vsel %vm2316, %v3301, %v3302
        %v3304 = vsel %vm3265, %v3255, %v3256
        %v3305 = vsel %vm3267, %v3257, %v3258
        %v3306 = vsel %vm3269, %v3304, %v3305
        %v3307 = vsel %vm3271, %v3303, %v3306
        %v3308 = vsel %vm3260, %v3165, %v3259
        %3316 = vst [vmem:[%s243] sm:$0xff] %v3272
        %3317 = vst [vmem:[%s243 + $0x8] sm:$0xff] %v3279
        %3318 = vst [vmem:[%s243 + $0x10] sm:$0xff] %v3286
        %3319 = vst [vmem:[%s243 + $0x18] sm:$0xff] %v3293
        %3320 = vst [vmem:[%s243 + $0x20] sm:$0xff] %v3300
        %3321 = vst [vmem:[%s243 + $0x28] sm:$0xff] %v3307
        %v3322 = vlaneseq
        %vm3323 = vcmp.ge.s32.totalorder %v3322, 0
        %vm3324 = vcmp.lt.s32.totalorder %v3322, 256
        %vm3325 = vmand %vm3323, %vm3324
        %3326 = vst.msk [vmem:[%s243 + $0x30] sm:$0x3] %vm3325, %v3308
        %s3327 = smul.u32 50, %s18
        %p3328 = scmp.lt.s32.totalorder %s3327, 199
        %s3329 = scalar_select %p3328, %s3327, 199
        %s3330 = scalar_lea.vmem %s3, %s3329
        // Predicated region
        $region45: #{g_forward.2} parent=31 // pred_check
          %p3331 = pneg %p109
        $region46: #{g_forward.2} parent=31 // pred_check_branch
          %3333 = sbr.rel (%p3331) target = $region48
        $region47: #{g_forward.2} parent=31 // pred_region
          %s3334 = smul.u32 50, %s18
        $region48: #{g_forward.2} parent=31 // pred_fallthru
          _
      $region32: #{g_forward.2} parent=5 // pred_fallthru
        _
      %p3335 = scmp.le.s32.totalorder 2, %s13
      // Predicated region
      $region49: #{g_forward.2} parent=5 // pred_check
        %p3336 = pneg %p3335
      $region50: #{g_forward.2} parent=5 // pred_check_branch
        %3338 = sbr.rel (%p3336) target = $region52
      $region51: #{g_forward.2} parent=5 // pred_region
        %s3339 = ssub.s32 %s13, 2
        // Predicated region
        $region53: #{g_forward.2} parent=51 // pred_check
          %p3340 = pneg %p115
        $region54: #{g_forward.2} parent=51 // pred_check_branch
          %3342 = sbr.rel (%p3340) target = $region56
        $region55: #{g_forward.2} parent=51 // pred_region
          %s3343 = smul.u32 50, %s19
          %p3344 = scmp.lt.s32.totalorder %s3343, 199
          %s3345 = scalar_select %p3344, %s3343, 199
          %s3346 = scalar_lea.vmem %s3, %s3345
        $region56: #{g_forward.2} parent=51 // pred_fallthru
          _
      $region52: #{g_forward.2} parent=5 // pred_fallthru
        _
    $region6: #{g_forward.2} parent=1 // loop_footer
      %s17 = sadd.s32 1, %s13
    $region7: #{g_forward.2} parent=1 // loop_footer_branch
      %12 = sbr.rel target = $region3
    $region8: #{g_forward.2} parent=1 // loop_exit
      _
    %3347 = vsyncpa [#allocation3], 1
    %s3348 = scalar_lea.sflag [#allocation3], 1
    %3349 = vsyncpa %s3348, 1
    %3350 = vsyncpa [#allocation5], 1
    %s3351 = scalar_lea.sflag [#allocation5], 1
    %3352 = vsyncpa %s3351, 1

// kernel: g_forward.3
$region0: #{g_forward.3}
  #allocation0 [shape = 'u32[]', space=smem, size = 0x4, offset = 0x4, fixed_abs, tag = 'smem constant byte address 0x4 - core index']
  #allocation1 [shape = 'u32[72,128]{1,0:T(1,128)}', space=vmem, size = 0x9000, scoped, tag = 'internal scratch']
  #allocation2 [shape = 'f32[1,1]{1,0:T(1,128)S(1)}', space=vmem, size = 0x200, scoped, tag = 'scoped memory for g_forward.3']
  %s0 = inlined_call_operand.vmem [shape: bf16[512,52], index: 0, kind: input, shape index: {}]
  %s1 = inlined_call_operand.hbm [shape: bf16[256,1024], index: 1, kind: input, shape index: {}]
  %s2 = inlined_call_operand.hbm [shape: bf16[256,1024], index: 2, kind: input, shape index: {}]
  %s3 = inlined_call_operand.vmem [shape: f32[256,1], index: 3, kind: input, shape index: {}]
  %s4 = inlined_call_operand.hbm [shape: bf16[50,102], index: 4, kind: input, shape index: {}]
  %s5 = inlined_call_operand.hbm [shape: bf16[50,102], index: 5, kind: input, shape index: {}]
  %s6 = inlined_call_operand.hbm [shape: bf16[128,512], index: 6, kind: input, shape index: {}]
  %s7 = inlined_call_operand.hbm [shape: bf16[128,512], index: 7, kind: input, shape index: {}]
  %s8 = inlined_call_operand.vmem [shape: f32[128,1], index: 8, kind: input, shape index: {}]
  %s9 = inlined_call_operand.hbm [shape: bf16[100,202], index: 9, kind: input, shape index: {}]
  %s10 = inlined_call_operand.hbm [shape: bf16[100,202], index: 10, kind: input, shape index: {}]
  %s11 = inlined_call_operand.hbm [shape: bf16[64,256], index: 11, kind: input, shape index: {}]
  %s12 = inlined_call_operand.hbm [shape: bf16[64,256], index: 12, kind: input, shape index: {}]
  %s13 = inlined_call_operand.vmem [shape: f32[64,1], index: 13, kind: input, shape index: {}]
  %s14 = inlined_call_operand.hbm [shape: bf16[200,402], index: 14, kind: input, shape index: {}]
  %s15 = inlined_call_operand.hbm [shape: bf16[200,402], index: 15, kind: input, shape index: {}]
  %s16 = inlined_call_operand.hbm [shape: bf16[1,128], index: 16, kind: input, shape index: {}]
  %s17 = inlined_call_operand.hbm [shape: bf16[1,128], index: 17, kind: input, shape index: {}]
  %s18 = inlined_call_operand.<no memory space> [shape: f32[1,1], index: 18, kind: input, shape index: {}]
  %s19 = inlined_call_operand.vmem [shape: f32[1,400], index: 19, kind: output, shape index: {0}]
  %s20 = inlined_call_operand.vmem [shape: f32[1,400], index: 20, kind: output, shape index: {1}]
  %21 = xla_tuple %s19, %s20
  %s22 = sld [smem:[#allocation0]]
  $region150: #{g_forward.3} parent=0
    _
  %s24 = ssub.s32 1, %s22
  %s25 = scalar_select 0, %s24, %s22
  %v26 = vstv %s18
  %27 = vst [vmem:[#allocation2] sm:$0x1] %v26
  $region1: #{g_forward.3} parent=0
    #allocation3 [shape = 'u8[524288]{0}', space=vmem, size = 0x80000, scoped, tag = 'input window, operand 1, single buffered']
    #allocation4 [shape = 's32[1]{0}', space=sflag, size = 0x4, scoped, tag = 'scoped memory for g_forward.3']
    #allocation5 [shape = 'u8[524288]{0}', space=vmem, size = 0x80000, scoped, tag = 'input window, operand 2, single buffered']
    #allocation6 [shape = 's32[1]{0}', space=sflag, size = 0x4, scoped, tag = 'scoped memory for g_forward.3']
    #allocation7 [shape = 'u8[14336]{0}', space=vmem, size = 0x3800, scoped, tag = 'input window, operand 4, single buffered']
    #allocation8 [shape = 'u8[14336]{0}', space=vmem, size = 0x3800, scoped, tag = 'input window, operand 5, single buffered']
    #allocation9 [shape = 's32[1]{0}', space=sflag, size = 0x4, scoped, tag = 'scoped memory for g_forward.3']
    #allocation10 [shape = 'u8[131072]{0}', space=vmem, size = 0x20000, scoped, tag = 'input window, operand 6, single buffered']
    #allocation11 [shape = 'u8[131072]{0}', space=vmem, size = 0x20000, scoped, tag = 'input window, operand 7, single buffered']
    #allocation12 [shape = 's32[1]{0}', space=sflag, size = 0x4, scoped, tag = 'scoped memory for g_forward.3']
    #allocation13 [shape = 'u8[53248]{0}', space=vmem, size = 0xd000, scoped, tag = 'input window, operand 9, single buffered']
    #allocation14 [shape = 'u8[53248]{0}', space=vmem, size = 0xd000, scoped, tag = 'input window, operand 10, single buffered']
    #allocation15 [shape = 's32[1]{0}', space=sflag, size = 0x4, scoped, tag = 'scoped memory for g_forward.3']
    #allocation16 [shape = 'u8[32768]{0}', space=vmem, size = 0x8000, scoped, tag = 'input window, operand 11, single buffered']
    #allocation17 [shape = 'u8[32768]{0}', space=vmem, size = 0x8000, scoped, tag = 'input window, operand 12, single buffered']
    #allocation18 [shape = 's32[1]{0}', space=sflag, size = 0x4, scoped, tag = 'scoped memory for g_forward.3']
    #allocation19 [shape = 'u8[204800]{0}', space=vmem, size = 0x32000, scoped, tag = 'input window, operand 14, single buffered']
    #allocation20 [shape = 'u8[204800]{0}', space=vmem, size = 0x32000, scoped, tag = 'input window, operand 15, single buffered']
    #allocation21 [shape = 's32[1]{0}', space=sflag, size = 0x4, scoped, tag = 'scoped memory for g_forward.3']
    #allocation22 [shape = 'u8[512]{0}', space=vmem, size = 0x400, scoped, tag = 'input window, operand 16, single buffered']
    #allocation23 [shape = 'u8[512]{0}', space=vmem, size = 0x400, scoped, tag = 'input window, operand 17, single buffered']
    #allocation24 [shape = 's32[1]{0}', space=sflag, size = 0x4, scoped, tag = 'scoped memory for g_forward.3']
    %28 = vsyncpa [#allocation4], 0
    %29 = vsyncpa [#allocation6], 0
    %30 = vsyncpa [#allocation9], 0
    %31 = vsyncpa [#allocation12], 0
    %32 = vsyncpa [#allocation15], 0
    %33 = vsyncpa [#allocation18], 0
    %34 = vsyncpa [#allocation21], 0
    %35 = vsyncpa [#allocation24], 0
    // Predicated region
    $region2: #{g_forward.3} parent=1 // pred_check
      _
    $region3: #{g_forward.3} parent=1 // pred_check_branch
      %37 = sbr.rel (0) target = $region5
    $region4: #{g_forward.3} parent=1 // pred_region
      _
    $region5: #{g_forward.3} parent=1 // pred_fallthru
      _
    // Predicated region
    $region6: #{g_forward.3} parent=1 // pred_check
      _
    $region7: #{g_forward.3} parent=1 // pred_check_branch
      %39 = sbr.rel (0) target = $region9
    $region8: #{g_forward.3} parent=1 // pred_region
      %41 = vsyncadd [#allocation4], 0
      %s42 = sshll.u32 %s1, 4
      %s43 = int_to_ptr.hbm [resolvable:$true] %s42
      %s44 = sshll.u32 [#allocation3], 4
      %s45 = int_to_ptr.vmem [resolvable:$true] %s44
      %50 = dma.hbm_to_vmem [thread:$0]  %s43, 16384, %s45, [#allocation4], 512, 512, 32
    $region9: #{g_forward.3} parent=1 // pred_fallthru
      _
    // Predicated region
    $region10: #{g_forward.3} parent=1 // pred_check
      _
    $region11: #{g_forward.3} parent=1 // pred_check_branch
      %52 = sbr.rel (0) target = $region13
    $region12: #{g_forward.3} parent=1 // pred_region
      %54 = vsyncadd [#allocation6], 0
      %s55 = sshll.u32 %s2, 4
      %s56 = int_to_ptr.hbm [resolvable:$true] %s55
      %s57 = sshll.u32 [#allocation5], 4
      %s58 = int_to_ptr.vmem [resolvable:$true] %s57
      %63 = dma.hbm_to_vmem [thread:$0]  %s56, 16384, %s58, [#allocation6], 512, 512, 32
    $region13: #{g_forward.3} parent=1 // pred_fallthru
      _
    // Predicated region
    $region14: #{g_forward.3} parent=1 // pred_check
      _
    $region15: #{g_forward.3} parent=1 // pred_check_branch
      %65 = sbr.rel (0) target = $region17
    $region16: #{g_forward.3} parent=1 // pred_region
      _
    $region17: #{g_forward.3} parent=1 // pred_fallthru
      _
    // Predicated region
    $region18: #{g_forward.3} parent=1 // pred_check
      _
    $region19: #{g_forward.3} parent=1 // pred_check_branch
      %67 = sbr.rel (0) target = $region21
    $region20: #{g_forward.3} parent=1 // pred_region
      %69 = vsyncadd [#allocation6], 0
      %s70 = sshll.u32 %s4, 4
      %s71 = int_to_ptr.hbm [resolvable:$true] %s70
      %s72 = sshll.u32 [#allocation7], 4
      %s73 = int_to_ptr.vmem [resolvable:$true] %s72
      %78 = dma.hbm_to_vmem [thread:$0]  %s71, 448, %s73, [#allocation6], 64, 64, 4
    $region21: #{g_forward.3} parent=1 // pred_fallthru
      _
    // Predicated region
    $region22: #{g_forward.3} parent=1 // pred_check
      _
    $region23: #{g_forward.3} parent=1 // pred_check_branch
      %80 = sbr.rel (0) target = $region25
    $region24: #{g_forward.3} parent=1 // pred_region
      %82 = vsyncadd [#allocation9], 0
      %s83 = sshll.u32 %s5, 4
      %s84 = int_to_ptr.hbm [resolvable:$true] %s83
      %s85 = sshll.u32 [#allocation8], 4
      %s86 = int_to_ptr.vmem [resolvable:$true] %s85
      %91 = dma.hbm_to_vmem [thread:$0]  %s84, 448, %s86, [#allocation9], 64, 64, 4
    $region25: #{g_forward.3} parent=1 // pred_fallthru
      _
    // Predicated region
    $region26: #{g_forward.3} parent=1 // pred_check
      _
    $region27: #{g_forward.3} parent=1 // pred_check_branch
      %93 = sbr.rel (0) target = $region29
    $region28: #{g_forward.3} parent=1 // pred_region
      %95 = vsyncadd [#allocation9], 0
      %s96 = sshll.u32 %s6, 4
      %s97 = int_to_ptr.hbm [resolvable:$true] %s96
      %s98 = sshll.u32 [#allocation10], 4
      %s99 = int_to_ptr.vmem [resolvable:$true] %s98
      %104 = dma.hbm_to_vmem [thread:$0]  %s97, 4096, %s99, [#allocation9], 256, 256, 16
    $region29: #{g_forward.3} parent=1 // pred_fallthru
      _
    // Predicated region
    $region30: #{g_forward.3} parent=1 // pred_check
      _
    $region31: #{g_forward.3} parent=1 // pred_check_branch
      %106 = sbr.rel (0) target = $region33
    $region32: #{g_forward.3} parent=1 // pred_region
      %108 = vsyncadd [#allocation12], 0
      %s109 = sshll.u32 %s7, 4
      %s110 = int_to_ptr.hbm [resolvable:$true] %s109
      %s111 = sshll.u32 [#allocation11], 4
      %s112 = int_to_ptr.vmem [resolvable:$true] %s111
      %117 = dma.hbm_to_vmem [thread:$0]  %s110, 4096, %s112, [#allocation12], 256, 256, 16
    $region33: #{g_forward.3} parent=1 // pred_fallthru
      _
    // Predicated region
    $region34: #{g_forward.3} parent=1 // pred_check
      _
    $region35: #{g_forward.3} parent=1 // pred_check_branch
      %119 = sbr.rel (0) target = $region37
    $region36: #{g_forward.3} parent=1 // pred_region
      _
    $region37: #{g_forward.3} parent=1 // pred_fallthru
      _
    // Predicated region
    $region38: #{g_forward.3} parent=1 // pred_check
      _
    $region39: #{g_forward.3} parent=1 // pred_check_branch
      %121 = sbr.rel (0) target = $region41
    $region40: #{g_forward.3} parent=1 // pred_region
      %123 = vsyncadd [#allocation12], 0
      %s124 = sshll.u32 %s9, 4
      %s125 = int_to_ptr.hbm [resolvable:$true] %s124
      %s126 = sshll.u32 [#allocation13], 4
      %s127 = int_to_ptr.vmem [resolvable:$true] %s126
      %132 = dma.hbm_to_vmem [thread:$0]  %s125, 1664, %s127, [#allocation12], 128, 128, 8
    $region41: #{g_forward.3} parent=1 // pred_fallthru
      _
    // Predicated region
    $region42: #{g_forward.3} parent=1 // pred_check
      _
    $region43: #{g_forward.3} parent=1 // pred_check_branch
      %134 = sbr.rel (0) target = $region45
    $region44: #{g_forward.3} parent=1 // pred_region
      %136 = vsyncadd [#allocation15], 0
      %s137 = sshll.u32 %s10, 4
      %s138 = int_to_ptr.hbm [resolvable:$true] %s137
      %s139 = sshll.u32 [#allocation14], 4
      %s140 = int_to_ptr.vmem [resolvable:$true] %s139
      %145 = dma.hbm_to_vmem [thread:$0]  %s138, 1664, %s140, [#allocation15], 128, 128, 8
    $region45: #{g_forward.3} parent=1 // pred_fallthru
      _
    // Predicated region
    $region46: #{g_forward.3} parent=1 // pred_check
      _
    $region47: #{g_forward.3} parent=1 // pred_check_branch
      %147 = sbr.rel (0) target = $region49
    $region48: #{g_forward.3} parent=1 // pred_region
      %149 = vsyncadd [#allocation15], 0
      %s150 = sshll.u32 %s11, 4
      %s151 = int_to_ptr.hbm [resolvable:$true] %s150
      %s152 = sshll.u32 [#allocation16], 4
      %s153 = int_to_ptr.vmem [resolvable:$true] %s152
      %158 = dma.hbm_to_vmem [thread:$0]  %s151, 1024, %s153, [#allocation15], 128, 128, 8
    $region49: #{g_forward.3} parent=1 // pred_fallthru
      _
    // Predicated region
    $region50: #{g_forward.3} parent=1 // pred_check
      _
    $region51: #{g_forward.3} parent=1 // pred_check_branch
      %160 = sbr.rel (0) target = $region53
    $region52: #{g_forward.3} parent=1 // pred_region
      %162 = vsyncadd [#allocation18], 0
      %s163 = sshll.u32 %s12, 4
      %s164 = int_to_ptr.hbm [resolvable:$true] %s163
      %s165 = sshll.u32 [#allocation17], 4
      %s166 = int_to_ptr.vmem [resolvable:$true] %s165
      %171 = dma.hbm_to_vmem [thread:$0]  %s164, 1024, %s166, [#allocation18], 128, 128, 8
    $region53: #{g_forward.3} parent=1 // pred_fallthru
      _
    // Predicated region
    $region54: #{g_forward.3} parent=1 // pred_check
      _
    $region55: #{g_forward.3} parent=1 // pred_check_branch
      %173 = sbr.rel (0) target = $region57
    $region56: #{g_forward.3} parent=1 // pred_region
      _
    $region57: #{g_forward.3} parent=1 // pred_fallthru
      _
    // Predicated region
    $region58: #{g_forward.3} parent=1 // pred_check
      _
    $region59: #{g_forward.3} parent=1 // pred_check_branch
      %175 = sbr.rel (0) target = $region61
    $region60: #{g_forward.3} parent=1 // pred_region
      %177 = vsyncadd [#allocation18], 0
      %s178 = sshll.u32 %s14, 4
      %s179 = int_to_ptr.hbm [resolvable:$true] %s178
      %s180 = sshll.u32 [#allocation19], 4
      %s181 = int_to_ptr.vmem [resolvable:$true] %s180
      %186 = dma.hbm_to_vmem [thread:$0]  %s179, 6400, %s181, [#allocation18], 256, 256, 16
    $region61: #{g_forward.3} parent=1 // pred_fallthru
      _
    // Predicated region
    $region62: #{g_forward.3} parent=1 // pred_check
      _
    $region63: #{g_forward.3} parent=1 // pred_check_branch
      %188 = sbr.rel (0) target = $region65
    $region64: #{g_forward.3} parent=1 // pred_region
      %190 = vsyncadd [#allocation21], 0
      %s191 = sshll.u32 %s15, 4
      %s192 = int_to_ptr.hbm [resolvable:$true] %s191
      %s193 = sshll.u32 [#allocation20], 4
      %s194 = int_to_ptr.vmem [resolvable:$true] %s193
      %199 = dma.hbm_to_vmem [thread:$0]  %s192, 6400, %s194, [#allocation21], 256, 256, 16
    $region65: #{g_forward.3} parent=1 // pred_fallthru
      _
    // Predicated region
    $region66: #{g_forward.3} parent=1 // pred_check
      _
    $region67: #{g_forward.3} parent=1 // pred_check_branch
      %201 = sbr.rel (0) target = $region69
    $region68: #{g_forward.3} parent=1 // pred_region
      %203 = vsyncadd [#allocation21], 0
      %s205 = sshll.u32 %s16, 4
      %s206 = int_to_ptr.hbm [resolvable:$true] %s205
      %s207 = sshll.u32 [#allocation22], 4
      %s208 = int_to_ptr.vmem [resolvable:$true] %s207
      %210 = dma.hbm_to_vmem [thread:$0]  %s206, 16, %s208, [#allocation21]
    $region69: #{g_forward.3} parent=1 // pred_fallthru
      _
    // Predicated region
    $region70: #{g_forward.3} parent=1 // pred_check
      _
    $region71: #{g_forward.3} parent=1 // pred_check_branch
      %212 = sbr.rel (0) target = $region73
    $region72: #{g_forward.3} parent=1 // pred_region
      %214 = vsyncadd [#allocation24], 0
      %s216 = sshll.u32 %s17, 4
      %s217 = int_to_ptr.hbm [resolvable:$true] %s216
      %s218 = sshll.u32 [#allocation23], 4
      %s219 = int_to_ptr.vmem [resolvable:$true] %s218
      %221 = dma.hbm_to_vmem [thread:$0]  %s217, 16, %s219, [#allocation24]
    $region73: #{g_forward.3} parent=1 // pred_fallthru
      _
    // Predicated region
    $region74: #{g_forward.3} parent=1 // pred_check
      _
    $region75: #{g_forward.3} parent=1 // pred_check_branch
      %223 = sbr.rel (0) target = $region77
    $region76: #{g_forward.3} parent=1 // pred_region
      _
    $region77: #{g_forward.3} parent=1 // pred_fallthru
      _
    // Predicated region
    $region78: #{g_forward.3} parent=1 // pred_check
      _
    $region79: #{g_forward.3} parent=1 // pred_check_branch
      %225 = sbr.rel (0) target = $region81
    $region80: #{g_forward.3} parent=1 // pred_region
      %227 = dma.done [#allocation4], 16384
    $region81: #{g_forward.3} parent=1 // pred_fallthru
      _
    // Predicated region
    $region82: #{g_forward.3} parent=1 // pred_check
      _
    $region83: #{g_forward.3} parent=1 // pred_check_branch
      %229 = sbr.rel (0) target = $region85
    $region84: #{g_forward.3} parent=1 // pred_region
      %231 = dma.done [#allocation6], 16384
    $region85: #{g_forward.3} parent=1 // pred_fallthru
      _
    // Predicated region
    $region86: #{g_forward.3} parent=1 // pred_check
      _
    $region87: #{g_forward.3} parent=1 // pred_check_branch
      %233 = sbr.rel (0) target = $region89
    $region88: #{g_forward.3} parent=1 // pred_region
      %235 = dma.done [#allocation6], 448
    $region89: #{g_forward.3} parent=1 // pred_fallthru
      _
    // Predicated region
    $region90: #{g_forward.3} parent=1 // pred_check
      _
    $region91: #{g_forward.3} parent=1 // pred_check_branch
      %237 = sbr.rel (0) target = $region93
    $region92: #{g_forward.3} parent=1 // pred_region
      %239 = dma.done [#allocation9], 448
    $region93: #{g_forward.3} parent=1 // pred_fallthru
      _
    // Predicated region
    $region94: #{g_forward.3} parent=1 // pred_check
      _
    $region95: #{g_forward.3} parent=1 // pred_check_branch
      %241 = sbr.rel (0) target = $region97
    $region96: #{g_forward.3} parent=1 // pred_region
      %243 = dma.done [#allocation9], 4096
    $region97: #{g_forward.3} parent=1 // pred_fallthru
      _
    // Predicated region
    $region98: #{g_forward.3} parent=1 // pred_check
      _
    $region99: #{g_forward.3} parent=1 // pred_check_branch
      %245 = sbr.rel (0) target = $region101
    $region100: #{g_forward.3} parent=1 // pred_region
      %247 = dma.done [#allocation12], 4096
    $region101: #{g_forward.3} parent=1 // pred_fallthru
      _
    // Predicated region
    $region102: #{g_forward.3} parent=1 // pred_check
      _
    $region103: #{g_forward.3} parent=1 // pred_check_branch
      %249 = sbr.rel (0) target = $region105
    $region104: #{g_forward.3} parent=1 // pred_region
      %251 = dma.done [#allocation12], 1664
    $region105: #{g_forward.3} parent=1 // pred_fallthru
      _
    // Predicated region
    $region106: #{g_forward.3} parent=1 // pred_check
      _
    $region107: #{g_forward.3} parent=1 // pred_check_branch
      %253 = sbr.rel (0) target = $region109
    $region108: #{g_forward.3} parent=1 // pred_region
      %255 = dma.done [#allocation15], 1664
    $region109: #{g_forward.3} parent=1 // pred_fallthru
      _
    // Predicated region
    $region110: #{g_forward.3} parent=1 // pred_check
      _
    $region111: #{g_forward.3} parent=1 // pred_check_branch
      %257 = sbr.rel (0) target = $region113
    $region112: #{g_forward.3} parent=1 // pred_region
      %259 = dma.done [#allocation15], 1024
    $region113: #{g_forward.3} parent=1 // pred_fallthru
      _
    // Predicated region
    $region114: #{g_forward.3} parent=1 // pred_check
      _
    $region115: #{g_forward.3} parent=1 // pred_check_branch
      %261 = sbr.rel (0) target = $region117
    $region116: #{g_forward.3} parent=1 // pred_region
      %263 = dma.done [#allocation18], 1024
    $region117: #{g_forward.3} parent=1 // pred_fallthru
      _
    // Predicated region
    $region118: #{g_forward.3} parent=1 // pred_check
      _
    $region119: #{g_forward.3} parent=1 // pred_check_branch
      %265 = sbr.rel (0) target = $region121
    $region120: #{g_forward.3} parent=1 // pred_region
      %267 = dma.done [#allocation18], 6400
    $region121: #{g_forward.3} parent=1 // pred_fallthru
      _
    // Predicated region
    $region122: #{g_forward.3} parent=1 // pred_check
      _
    $region123: #{g_forward.3} parent=1 // pred_check_branch
      %269 = sbr.rel (0) target = $region125
    $region124: #{g_forward.3} parent=1 // pred_region
      %271 = dma.done [#allocation21], 6400
    $region125: #{g_forward.3} parent=1 // pred_fallthru
      _
    // Predicated region
    $region126: #{g_forward.3} parent=1 // pred_check
      _
    $region127: #{g_forward.3} parent=1 // pred_check_branch
      %273 = sbr.rel (0) target = $region129
    $region128: #{g_forward.3} parent=1 // pred_region
      %275 = dma.done [#allocation21], 16
    $region129: #{g_forward.3} parent=1 // pred_fallthru
      _
    // Predicated region
    $region130: #{g_forward.3} parent=1 // pred_check
      _
    $region131: #{g_forward.3} parent=1 // pred_check_branch
      %277 = sbr.rel (0) target = $region133
    $region132: #{g_forward.3} parent=1 // pred_region
      %279 = dma.done [#allocation24], 16
    $region133: #{g_forward.3} parent=1 // pred_fallthru
      _
    %v281 = vld [vmem:[%s0] sm:$0xf]
    %v282 = vld [vmem:[%s0 + $0x4] sm:$0xf]
    %v283 = vld [vmem:[%s0 + $0x8] sm:$0xf]
    %v284 = vld [vmem:[%s0 + $0xc] sm:$0xf]
    %v285 = vld [vmem:[%s0 + $0x10] sm:$0xf]
    %v286 = vld [vmem:[%s0 + $0x14] sm:$0xf]
    %v287 = vld [vmem:[%s0 + $0x18] sm:$0xf]
    %v288 = vld [vmem:[%s0 + $0x1c] sm:$0xf]
    %v289 = vld [vmem:[%s0 + $0x20] sm:$0xf]
    %v290 = vld [vmem:[%s0 + $0x24] sm:$0xf]
    %v291 = vld [vmem:[%s0 + $0x28] sm:$0xf]
    %v292 = vld [vmem:[%s0 + $0x2c] sm:$0xf]
    %v293 = vld [vmem:[%s0 + $0x30] sm:$0xf]
    %v294 = vld [vmem:[%s0 + $0x34] sm:$0xf]
    %v295 = vld [vmem:[%s0 + $0x38] sm:$0xf]
    %v296 = vld [vmem:[%s0 + $0x3c] sm:$0xf]
    %v297 = vld [vmem:[%s0 + $0x40] sm:$0xf]
    %v298 = vld [vmem:[%s0 + $0x44] sm:$0xf]
    %v299 = vld [vmem:[%s0 + $0x48] sm:$0xf]
    %v300 = vld [vmem:[%s0 + $0x4c] sm:$0xf]
    %v301 = vld [vmem:[%s0 + $0x50] sm:$0xf]
    %v302 = vld [vmem:[%s0 + $0x54] sm:$0xf]
    %v303 = vld [vmem:[%s0 + $0x58] sm:$0xf]
    %v304 = vld [vmem:[%s0 + $0x5c] sm:$0xf]
    %v305 = vld [vmem:[%s0 + $0x60] sm:$0xf]
    %v306 = vld [vmem:[%s0 + $0x64] sm:$0xf]
    %v307 = vld [vmem:[%s0 + $0x68] sm:$0xf]
    %v308 = vld [vmem:[%s0 + $0x6c] sm:$0xf]
    %v309 = vld [vmem:[%s0 + $0x70] sm:$0xf]
    %v310 = vld [vmem:[%s0 + $0x74] sm:$0xf]
    %v311 = vld [vmem:[%s0 + $0x78] sm:$0xf]
    %v312 = vld [vmem:[%s0 + $0x7c] sm:$0xf]
    %v313 = vld [vmem:[%s0 + $0x80] sm:$0xf]
    %v314 = vld [vmem:[%s0 + $0x84] sm:$0xf]
    %v315 = vld [vmem:[%s0 + $0x88] sm:$0xf]
    %v316 = vld [vmem:[%s0 + $0x8c] sm:$0xf]
    %v317 = vld [vmem:[%s0 + $0x90] sm:$0xf]
    %v318 = vld [vmem:[%s0 + $0x94] sm:$0xf]
    %v319 = vld [vmem:[%s0 + $0x98] sm:$0xf]
    %v320 = vld [vmem:[%s0 + $0x9c] sm:$0xf]
    %v321 = vld [vmem:[%s0 + $0xa0] sm:$0xf]
    %v322 = vld [vmem:[%s0 + $0xa4] sm:$0xf]
    %v323 = vld [vmem:[%s0 + $0xa8] sm:$0xf]
    %v324 = vld [vmem:[%s0 + $0xac] sm:$0xf]
    %v325 = vld [vmem:[%s0 + $0xb0] sm:$0xf]
    %v326 = vld [vmem:[%s0 + $0xb4] sm:$0xf]
    %v327 = vld [vmem:[%s0 + $0xb8] sm:$0xf]
    %v328 = vld [vmem:[%s0 + $0xbc] sm:$0xf]
    %v329 = vld [vmem:[%s0 + $0xc0] sm:$0xf]
    %v330 = vld [vmem:[%s0 + $0xc4] sm:$0xf]
    %v331 = vld [vmem:[%s0 + $0xc8] sm:$0xf]
    %v332 = vld [vmem:[%s0 + $0xcc] sm:$0xf]
    %v333 = vld [vmem:[%s0 + $0xd0] sm:$0xf]
    %v334 = vld [vmem:[%s0 + $0xd4] sm:$0xf]
    %v335 = vld [vmem:[%s0 + $0xd8] sm:$0xf]
    %v336 = vld [vmem:[%s0 + $0xdc] sm:$0xf]
    %v337 = vld [vmem:[%s0 + $0xe0] sm:$0xf]
    %v338 = vld [vmem:[%s0 + $0xe4] sm:$0xf]
    %v339 = vld [vmem:[%s0 + $0xe8] sm:$0xf]
    %v340 = vld [vmem:[%s0 + $0xec] sm:$0xf]
    %v341 = vld [vmem:[%s0 + $0xf0] sm:$0xf]
    %v342 = vld [vmem:[%s0 + $0xf4] sm:$0xf]
    %v343 = vld [vmem:[%s0 + $0xf8] sm:$0xf]
    %v344 = vld [vmem:[%s0 + $0xfc] sm:$0xf]
    %v409 = vunpack.c.l.b16 %v281
    %v410 = vunpack.c.l.b16 %v282
    %v411 = vunpack.c.l.b16 %v283
    %v412 = vunpack.c.l.b16 %v284
    %v413 = vunpack.c.l.b16 %v285
    %v414 = vunpack.c.l.b16 %v286
    %v415 = vunpack.c.l.b16 %v287
    %v416 = vunpack.c.l.b16 %v288
    %v417 = vunpack.c.l.b16 %v289
    %v418 = vunpack.c.l.b16 %v290
    %v419 = vunpack.c.l.b16 %v291
    %v420 = vunpack.c.l.b16 %v292
    %v421 = vunpack.c.l.b16 %v293
    %v422 = vunpack.c.l.b16 %v294
    %v423 = vunpack.c.l.b16 %v295
    %v424 = vunpack.c.l.b16 %v296
    %v425 = vunpack.c.l.b16 %v297
    %v426 = vunpack.c.l.b16 %v298
    %v427 = vunpack.c.l.b16 %v299
    %v428 = vunpack.c.l.b16 %v300
    %v429 = vunpack.c.l.b16 %v301
    %v430 = vunpack.c.l.b16 %v302
    %v431 = vunpack.c.l.b16 %v303
    %v432 = vunpack.c.l.b16 %v304
    %v433 = vunpack.c.l.b16 %v305
    %v434 = vunpack.c.l.b16 %v306
    %v435 = vunpack.c.l.b16 %v307
    %v436 = vunpack.c.l.b16 %v308
    %v437 = vunpack.c.l.b16 %v309
    %v438 = vunpack.c.l.b16 %v310
    %v439 = vunpack.c.l.b16 %v311
    %v440 = vunpack.c.l.b16 %v312
    %v441 = vunpack.c.l.b16 %v313
    %v442 = vunpack.c.l.b16 %v314
    %v443 = vunpack.c.l.b16 %v315
    %v444 = vunpack.c.l.b16 %v316
    %v445 = vunpack.c.l.b16 %v317
    %v446 = vunpack.c.l.b16 %v318
    %v447 = vunpack.c.l.b16 %v319
    %v448 = vunpack.c.l.b16 %v320
    %v449 = vunpack.c.l.b16 %v321
    %v450 = vunpack.c.l.b16 %v322
    %v451 = vunpack.c.l.b16 %v323
    %v452 = vunpack.c.l.b16 %v324
    %v453 = vunpack.c.l.b16 %v325
    %v454 = vunpack.c.l.b16 %v326
    %v455 = vunpack.c.l.b16 %v327
    %v456 = vunpack.c.l.b16 %v328
    %v457 = vunpack.c.l.b16 %v329
    %v458 = vunpack.c.l.b16 %v330
    %v459 = vunpack.c.l.b16 %v331
    %v460 = vunpack.c.l.b16 %v332
    %v461 = vunpack.c.l.b16 %v333
    %v462 = vunpack.c.l.b16 %v334
    %v463 = vunpack.c.l.b16 %v335
    %v464 = vunpack.c.l.b16 %v336
    %v465 = vunpack.c.l.b16 %v337
    %v466 = vunpack.c.l.b16 %v338
    %v467 = vunpack.c.l.b16 %v339
    %v468 = vunpack.c.l.b16 %v340
    %v469 = vunpack.c.l.b16 %v341
    %v470 = vunpack.c.l.b16 %v342
    %v471 = vunpack.c.l.b16 %v343
    %v472 = vunpack.c.l.b16 %v344
    %v473 = vpack.c.b16 %v410, %v409
    %v474 = vpack.c.b16 %v412, %v411
    %v475 = vpack.c.b16 %v414, %v413
    %v476 = vpack.c.b16 %v416, %v415
    %v477 = vpack.c.b16 %v418, %v417
    %v478 = vpack.c.b16 %v420, %v419
    %v479 = vpack.c.b16 %v422, %v421
    %v480 = vpack.c.b16 %v424, %v423
    %v481 = vpack.c.b16 %v426, %v425
    %v482 = vpack.c.b16 %v428, %v427
    %v483 = vpack.c.b16 %v430, %v429
    %v484 = vpack.c.b16 %v432, %v431
    %v485 = vpack.c.b16 %v434, %v433
    %v486 = vpack.c.b16 %v436, %v435
    %v487 = vpack.c.b16 %v438, %v437
    %v488 = vpack.c.b16 %v440, %v439
    %v489 = vpack.c.b16 %v442, %v441
    %v490 = vpack.c.b16 %v444, %v443
    %v491 = vpack.c.b16 %v446, %v445
    %v492 = vpack.c.b16 %v448, %v447
    %v493 = vpack.c.b16 %v450, %v449
    %v494 = vpack.c.b16 %v452, %v451
    %v495 = vpack.c.b16 %v454, %v453
    %v496 = vpack.c.b16 %v456, %v455
    %v497 = vpack.c.b16 %v458, %v457
    %v498 = vpack.c.b16 %v460, %v459
    %v499 = vpack.c.b16 %v462, %v461
    %v500 = vpack.c.b16 %v464, %v463
    %v501 = vpack.c.b16 %v466, %v465
    %v502 = vpack.c.b16 %v468, %v467
    %v503 = vpack.c.b16 %v470, %v469
    %v504 = vpack.c.b16 %v472, %v471
    %505 = vrot.lane.b32.xlu0 %v473, 1
    %v506 = vpop.permute.xlu0 %505
    %507 = vrot.lane.b32.xlu0 %v474, 1
    %v508 = vpop.permute.xlu0 %507
    %509 = vrot.lane.b32.xlu0 %v475, 1
    %v510 = vpop.permute.xlu0 %509
    %511 = vrot.lane.b32.xlu0 %v476, 1
    %v512 = vpop.permute.xlu0 %511
    %513 = vrot.lane.b32.xlu0 %v477, 1
    %v514 = vpop.permute.xlu0 %513
    %515 = vrot.lane.b32.xlu0 %v478, 1
    %v516 = vpop.permute.xlu0 %515
    %517 = vrot.lane.b32.xlu0 %v479, 1
    %v518 = vpop.permute.xlu0 %517
    %519 = vrot.lane.b32.xlu0 %v480, 1
    %v520 = vpop.permute.xlu0 %519
    %521 = vrot.lane.b32.xlu0 %v481, 1
    %v522 = vpop.permute.xlu0 %521
    %523 = vrot.lane.b32.xlu0 %v482, 1
    %v524 = vpop.permute.xlu0 %523
    %525 = vrot.lane.b32.xlu0 %v483, 1
    %v526 = vpop.permute.xlu0 %525
    %527 = vrot.lane.b32.xlu0 %v484, 1
    %v528 = vpop.permute.xlu0 %527
    %529 = vrot.lane.b32.xlu0 %v485, 1
    %v530 = vpop.permute.xlu0 %529
    %531 = vrot.lane.b32.xlu0 %v486, 1
    %v532 = vpop.permute.xlu0 %531
    %533 = vrot.lane.b32.xlu0 %v487, 1
    %v534 = vpop.permute.xlu0 %533
    %535 = vrot.lane.b32.xlu0 %v488, 1
    %v536 = vpop.permute.xlu0 %535
    %537 = vrot.lane.b32.xlu0 %v489, 1
    %v538 = vpop.permute.xlu0 %537
    %539 = vrot.lane.b32.xlu0 %v490, 1
    %v540 = vpop.permute.xlu0 %539
    %541 = vrot.lane.b32.xlu0 %v491, 1
    %v542 = vpop.permute.xlu0 %541
    %543 = vrot.lane.b32.xlu0 %v492, 1
    %v544 = vpop.permute.xlu0 %543
    %545 = vrot.lane.b32.xlu0 %v493, 1
    %v546 = vpop.permute.xlu0 %545
    %547 = vrot.lane.b32.xlu0 %v494, 1
    %v548 = vpop.permute.xlu0 %547
    %549 = vrot.lane.b32.xlu0 %v495, 1
    %v550 = vpop.permute.xlu0 %549
    %551 = vrot.lane.b32.xlu0 %v496, 1
    %v552 = vpop.permute.xlu0 %551
    %553 = vrot.lane.b32.xlu0 %v497, 1
    %v554 = vpop.permute.xlu0 %553
    %555 = vrot.lane.b32.xlu0 %v498, 1
    %v556 = vpop.permute.xlu0 %555
    %557 = vrot.lane.b32.xlu0 %v499, 1
    %v558 = vpop.permute.xlu0 %557
    %559 = vrot.lane.b32.xlu0 %v500, 1
    %v560 = vpop.permute.xlu0 %559
    %561 = vrot.lane.b32.xlu0 %v501, 1
    %v562 = vpop.permute.xlu0 %561
    %563 = vrot.lane.b32.xlu0 %v502, 1
    %v564 = vpop.permute.xlu0 %563
    %565 = vrot.lane.b32.xlu0 %v503, 1
    %v566 = vpop.permute.xlu0 %565
    %567 = vrot.lane.b32.xlu0 %v504, 1
    %v568 = vpop.permute.xlu0 %567
    %v569 = vld [vmem:[%s3] sm:$0xff]
    %v570 = vld [vmem:[%s3 + $0x8] sm:$0xff]
    %v571 = vld [vmem:[%s3 + $0x10] sm:$0xff]
    %v572 = vld [vmem:[%s3 + $0x18] sm:$0xff]
    %v573 = vld [vmem:[%s3 + $0x20] sm:$0xff]
    %v574 = vld [vmem:[%s3 + $0x28] sm:$0xff]
    %v575 = vld [vmem:[%s3 + $0x30] sm:$0xff]
    %v576 = vld [vmem:[%s3 + $0x38] sm:$0xff]
    %v577 = vld [vmem:[%s3 + $0x40] sm:$0xff]
    %v578 = vld [vmem:[%s3 + $0x48] sm:$0xff]
    %v579 = vld [vmem:[%s3 + $0x50] sm:$0xff]
    %v580 = vld [vmem:[%s3 + $0x58] sm:$0xff]
    %v581 = vld [vmem:[%s3 + $0x60] sm:$0xff]
    %v582 = vld [vmem:[%s3 + $0x68] sm:$0xff]
    %v583 = vld [vmem:[%s3 + $0x70] sm:$0xff]
    %v584 = vld [vmem:[%s3 + $0x78] sm:$0xff]
    %v585 = vld [vmem:[%s3 + $0x80] sm:$0xff]
    %v586 = vld [vmem:[%s3 + $0x88] sm:$0xff]
    %v587 = vld [vmem:[%s3 + $0x90] sm:$0xff]
    %v588 = vld [vmem:[%s3 + $0x98] sm:$0xff]
    %v589 = vld [vmem:[%s3 + $0xa0] sm:$0xff]
    %v590 = vld [vmem:[%s3 + $0xa8] sm:$0xff]
    %v591 = vld [vmem:[%s3 + $0xb0] sm:$0xff]
    %v592 = vld [vmem:[%s3 + $0xb8] sm:$0xff]
    %v593 = vld [vmem:[%s3 + $0xc0] sm:$0xff]
    %v594 = vld [vmem:[%s3 + $0xc8] sm:$0xff]
    %v595 = vld [vmem:[%s3 + $0xd0] sm:$0xff]
    %v596 = vld [vmem:[%s3 + $0xd8] sm:$0xff]
    %v597 = vld [vmem:[%s3 + $0xe0] sm:$0xff]
    %v598 = vld [vmem:[%s3 + $0xe8] sm:$0xff]
    %v599 = vld [vmem:[%s3 + $0xf0] sm:$0xff]
    %v600 = vld [vmem:[%s3 + $0xf8] sm:$0xff]
    %v601 = vld [vmem:[#allocation3] sm:$0xff]
    %v602 = vld [vmem:[#allocation3 + $0x8] sm:$0xff]
    %v603 = vld [vmem:[#allocation3 + $0x10] sm:$0xff]
    %v604 = vld [vmem:[#allocation3 + $0x18] sm:$0xff]
    %v605 = vld [vmem:[#allocation3 + $0x20] sm:$0xff]
    %v606 = vld [vmem:[#allocation3 + $0x28] sm:$0xff]
    %v607 = vld [vmem:[#allocation3 + $0x30] sm:$0xff]
    %v608 = vld [vmem:[#allocation3 + $0x38] sm:$0xff]
    %v609 = vld [vmem:[#allocation3 + $0x40] sm:$0xff]
    %v610 = vld [vmem:[#allocation3 + $0x48] sm:$0xff]
    %v611 = vld [vmem:[#allocation3 + $0x50] sm:$0xff]
    %v612 = vld [vmem:[#allocation3 + $0x58] sm:$0xff]
    %v613 = vld [vmem:[#allocation3 + $0x60] sm:$0xff]
    %v614 = vld [vmem:[#allocation3 + $0x68] sm:$0xff]
    %v615 = vld [vmem:[#allocation3 + $0x70] sm:$0xff]
    %v616 = vld [vmem:[#allocation3 + $0x78] sm:$0xff]
    %v617 = vld [vmem:[#allocation3 + $0x80] sm:$0xff]
    %v618 = vld [vmem:[#allocation3 + $0x88] sm:$0xff]
    %v619 = vld [vmem:[#allocation3 + $0x90] sm:$0xff]
    %v620 = vld [vmem:[#allocation3 + $0x98] sm:$0xff]
    %v621 = vld [vmem:[#allocation3 + $0xa0] sm:$0xff]
    %v622 = vld [vmem:[#allocation3 + $0xa8] sm:$0xff]
    %v623 = vld [vmem:[#allocation3 + $0xb0] sm:$0xff]
    %v624 = vld [vmem:[#allocation3 + $0xb8] sm:$0xff]
    %v625 = vld [vmem:[#allocation3 + $0xc0] sm:$0xff]
    %v626 = vld [vmem:[#allocation3 + $0xc8] sm:$0xff]
    %v627 = vld [vmem:[#allocation3 + $0xd0] sm:$0xff]
    %v628 = vld [vmem:[#allocation3 + $0xd8] sm:$0xff]
    %v629 = vld [vmem:[#allocation3 + $0xe0] sm:$0xff]
    %v630 = vld [vmem:[#allocation3 + $0xe8] sm:$0xff]
    %v631 = vld [vmem:[#allocation3 + $0xf0] sm:$0xff]
    %v632 = vld [vmem:[#allocation3 + $0xf8] sm:$0xff]
    %v633 = vld [vmem:[#allocation3 + $0x100] sm:$0xff]
    %v634 = vld [vmem:[#allocation3 + $0x108] sm:$0xff]
    %v635 = vld [vmem:[#allocation3 + $0x110] sm:$0xff]
    %v636 = vld [vmem:[#allocation3 + $0x118] sm:$0xff]
    %v637 = vld [vmem:[#allocation3 + $0x120] sm:$0xff]
    %v638 = vld [vmem:[#allocation3 + $0x128] sm:$0xff]
    %v639 = vld [vmem:[#allocation3 + $0x130] sm:$0xff]
    %v640 = vld [vmem:[#allocation3 + $0x138] sm:$0xff]
    %v641 = vld [vmem:[#allocation3 + $0x140] sm:$0xff]
    %v642 = vld [vmem:[#allocation3 + $0x148] sm:$0xff]
    %v643 = vld [vmem:[#allocation3 + $0x150] sm:$0xff]
    %v644 = vld [vmem:[#allocation3 + $0x158] sm:$0xff]
    %v645 = vld [vmem:[#allocation3 + $0x160] sm:$0xff]
    %v646 = vld [vmem:[#allocation3 + $0x168] sm:$0xff]
    %v647 = vld [vmem:[#allocation3 + $0x170] sm:$0xff]
    %v648 = vld [vmem:[#allocation3 + $0x178] sm:$0xff]
    %v649 = vld [vmem:[#allocation3 + $0x180] sm:$0xff]
    %v650 = vld [vmem:[#allocation3 + $0x188] sm:$0xff]
    %v651 = vld [vmem:[#allocation3 + $0x190] sm:$0xff]
    %v652 = vld [vmem:[#allocation3 + $0x198] sm:$0xff]
    %v653 = vld [vmem:[#allocation3 + $0x1a0] sm:$0xff]
    %v654 = vld [vmem:[#allocation3 + $0x1a8] sm:$0xff]
    %v655 = vld [vmem:[#allocation3 + $0x1b0] sm:$0xff]
    %v656 = vld [vmem:[#allocation3 + $0x1b8] sm:$0xff]
    %v657 = vld [vmem:[#allocation3 + $0x1c0] sm:$0xff]
    %v658 = vld [vmem:[#allocation3 + $0x1c8] sm:$0xff]
    %v659 = vld [vmem:[#allocation3 + $0x1d0] sm:$0xff]
    %v660 = vld [vmem:[#allocation3 + $0x1d8] sm:$0xff]
    %v661 = vld [vmem:[#allocation3 + $0x1e0] sm:$0xff]
    %v662 = vld [vmem:[#allocation3 + $0x1e8] sm:$0xff]
    %v663 = vld [vmem:[#allocation3 + $0x1f0] sm:$0xff]
    %v664 = vld [vmem:[#allocation3 + $0x1f8] sm:$0xff]
    %v665 = vld [vmem:[#allocation3 + $0x200] sm:$0xff]
    %v666 = vld [vmem:[#allocation3 + $0x208] sm:$0xff]
    %v667 = vld [vmem:[#allocation3 + $0x210] sm:$0xff]
    %v668 = vld [vmem:[#allocation3 + $0x218] sm:$0xff]
    %v669 = vld [vmem:[#allocation3 + $0x220] sm:$0xff]
    %v670 = vld [vmem:[#allocation3 + $0x228] sm:$0xff]
    %v671 = vld [vmem:[#allocation3 + $0x230] sm:$0xff]
    %v672 = vld [vmem:[#allocation3 + $0x238] sm:$0xff]
    %v673 = vld [vmem:[#allocation3 + $0x240] sm:$0xff]
    %v674 = vld [vmem:[#allocation3 + $0x248] sm:$0xff]
    %v675 = vld [vmem:[#allocation3 + $0x250] sm:$0xff]
    %v676 = vld [vmem:[#allocation3 + $0x258] sm:$0xff]
    %v677 = vld [vmem:[#allocation3 + $0x260] sm:$0xff]
    %v678 = vld [vmem:[#allocation3 + $0x268] sm:$0xff]
    %v679 = vld [vmem:[#allocation3 + $0x270] sm:$0xff]
    %v680 = vld [vmem:[#allocation3 + $0x278] sm:$0xff]
    %v681 = vld [vmem:[#allocation3 + $0x280] sm:$0xff]
    %v682 = vld [vmem:[#allocation3 + $0x288] sm:$0xff]
    %v683 = vld [vmem:[#allocation3 + $0x290] sm:$0xff]
    %v684 = vld [vmem:[#allocation3 + $0x298] sm:$0xff]
    %v685 = vld [vmem:[#allocation3 + $0x2a0] sm:$0xff]
    %v686 = vld [vmem:[#allocation3 + $0x2a8] sm:$0xff]
    %v687 = vld [vmem:[#allocation3 + $0x2b0] sm:$0xff]
    %v688 = vld [vmem:[#allocation3 + $0x2b8] sm:$0xff]
    %v689 = vld [vmem:[#allocation3 + $0x2c0] sm:$0xff]
    %v690 = vld [vmem:[#allocation3 + $0x2c8] sm:$0xff]
    %v691 = vld [vmem:[#allocation3 + $0x2d0] sm:$0xff]
    %v692 = vld [vmem:[#allocation3 + $0x2d8] sm:$0xff]
    %v693 = vld [vmem:[#allocation3 + $0x2e0] sm:$0xff]
    %v694 = vld [vmem:[#allocation3 + $0x2e8] sm:$0xff]
    %v695 = vld [vmem:[#allocation3 + $0x2f0] sm:$0xff]
    %v696 = vld [vmem:[#allocation3 + $0x2f8] sm:$0xff]
    %v697 = vld [vmem:[#allocation3 + $0x300] sm:$0xff]
    %v698 = vld [vmem:[#allocation3 + $0x308] sm:$0xff]
    %v699 = vld [vmem:[#allocation3 + $0x310] sm:$0xff]
    %v700 = vld [vmem:[#allocation3 + $0x318] sm:$0xff]
    %v701 = vld [vmem:[#allocation3 + $0x320] sm:$0xff]
    %v702 = vld [vmem:[#allocation3 + $0x328] sm:$0xff]
    %v703 = vld [vmem:[#allocation3 + $0x330] sm:$0xff]
    %v704 = vld [vmem:[#allocation3 + $0x338] sm:$0xff]
    %v705 = vld [vmem:[#allocation3 + $0x340] sm:$0xff]
    %v706 = vld [vmem:[#allocation3 + $0x348] sm:$0xff]
    %v707 = vld [vmem:[#allocation3 + $0x350] sm:$0xff]
    %v708 = vld [vmem:[#allocation3 + $0x358] sm:$0xff]
    %v709 = vld [vmem:[#allocation3 + $0x360] sm:$0xff]
    %v710 = vld [vmem:[#allocation3 + $0x368] sm:$0xff]
    %v711 = vld [vmem:[#allocation3 + $0x370] sm:$0xff]
    %v712 = vld [vmem:[#allocation3 + $0x378] sm:$0xff]
    %v713 = vld [vmem:[#allocation3 + $0x380] sm:$0xff]
    %v714 = vld [vmem:[#allocation3 + $0x388] sm:$0xff]
    %v715 = vld [vmem:[#allocation3 + $0x390] sm:$0xff]
    %v716 = vld [vmem:[#allocation3 + $0x398] sm:$0xff]
    %v717 = vld [vmem:[#allocation3 + $0x3a0] sm:$0xff]
    %v718 = vld [vmem:[#allocation3 + $0x3a8] sm:$0xff]
    %v719 = vld [vmem:[#allocation3 + $0x3b0] sm:$0xff]
    %v720 = vld [vmem:[#allocation3 + $0x3b8] sm:$0xff]
    %v721 = vld [vmem:[#allocation3 + $0x3c0] sm:$0xff]
    %v722 = vld [vmem:[#allocation3 + $0x3c8] sm:$0xff]
    %v723 = vld [vmem:[#allocation3 + $0x3d0] sm:$0xff]
    %v724 = vld [vmem:[#allocation3 + $0x3d8] sm:$0xff]
    %v725 = vld [vmem:[#allocation3 + $0x3e0] sm:$0xff]
    %v726 = vld [vmem:[#allocation3 + $0x3e8] sm:$0xff]
    %v727 = vld [vmem:[#allocation3 + $0x3f0] sm:$0xff]
    %v728 = vld [vmem:[#allocation3 + $0x3f8] sm:$0xff]
    %730 = vset.pattern.permute.xlu0 0
    %731 = vperm.xlu0 %730, %v569
    %v732 = vpop.permute.xlu0 %731
    %735 = vset.pattern.permute.xlu0 0
    %736 = vperm.xlu0 %735, %v570
    %v737 = vpop.permute.xlu0 %736
    %740 = vset.pattern.permute.xlu0 0
    %741 = vperm.xlu0 %740, %v571
    %v742 = vpop.permute.xlu0 %741
    %745 = vset.pattern.permute.xlu0 0
    %746 = vperm.xlu0 %745, %v572
    %v747 = vpop.permute.xlu0 %746
    %750 = vset.pattern.permute.xlu0 0
    %751 = vperm.xlu0 %750, %v573
    %v752 = vpop.permute.xlu0 %751
    %755 = vset.pattern.permute.xlu0 0
    %756 = vperm.xlu0 %755, %v574
    %v757 = vpop.permute.xlu0 %756
    %760 = vset.pattern.permute.xlu0 0
    %761 = vperm.xlu0 %760, %v575
    %v762 = vpop.permute.xlu0 %761
    %765 = vset.pattern.permute.xlu0 0
    %766 = vperm.xlu0 %765, %v576
    %v767 = vpop.permute.xlu0 %766
    %770 = vset.pattern.permute.xlu0 0
    %771 = vperm.xlu0 %770, %v577
    %v772 = vpop.permute.xlu0 %771
    %775 = vset.pattern.permute.xlu0 0
    %776 = vperm.xlu0 %775, %v578
    %v777 = vpop.permute.xlu0 %776
    %780 = vset.pattern.permute.xlu0 0
    %781 = vperm.xlu0 %780, %v579
    %v782 = vpop.permute.xlu0 %781
    %785 = vset.pattern.permute.xlu0 0
    %786 = vperm.xlu0 %785, %v580
    %v787 = vpop.permute.xlu0 %786
    %790 = vset.pattern.permute.xlu0 0
    %791 = vperm.xlu0 %790, %v581
    %v792 = vpop.permute.xlu0 %791
    %795 = vset.pattern.permute.xlu0 0
    %796 = vperm.xlu0 %795, %v582
    %v797 = vpop.permute.xlu0 %796
    %800 = vset.pattern.permute.xlu0 0
    %801 = vperm.xlu0 %800, %v583
    %v802 = vpop.permute.xlu0 %801
    %805 = vset.pattern.permute.xlu0 0
    %806 = vperm.xlu0 %805, %v584
    %v807 = vpop.permute.xlu0 %806
    %810 = vset.pattern.permute.xlu0 0
    %811 = vperm.xlu0 %810, %v585
    %v812 = vpop.permute.xlu0 %811
    %815 = vset.pattern.permute.xlu0 0
    %816 = vperm.xlu0 %815, %v586
    %v817 = vpop.permute.xlu0 %816
    %820 = vset.pattern.permute.xlu0 0
    %821 = vperm.xlu0 %820, %v587
    %v822 = vpop.permute.xlu0 %821
    %825 = vset.pattern.permute.xlu0 0
    %826 = vperm.xlu0 %825, %v588
    %v827 = vpop.permute.xlu0 %826
    %830 = vset.pattern.permute.xlu0 0
    %831 = vperm.xlu0 %830, %v589
    %v832 = vpop.permute.xlu0 %831
    %835 = vset.pattern.permute.xlu0 0
    %836 = vperm.xlu0 %835, %v590
    %v837 = vpop.permute.xlu0 %836
    %840 = vset.pattern.permute.xlu0 0
    %841 = vperm.xlu0 %840, %v591
    %v842 = vpop.permute.xlu0 %841
    %845 = vset.pattern.permute.xlu0 0
    %846 = vperm.xlu0 %845, %v592
    %v847 = vpop.permute.xlu0 %846
    %850 = vset.pattern.permute.xlu0 0
    %851 = vperm.xlu0 %850, %v593
    %v852 = vpop.permute.xlu0 %851
    %855 = vset.pattern.permute.xlu0 0
    %856 = vperm.xlu0 %855, %v594
    %v857 = vpop.permute.xlu0 %856
    %860 = vset.pattern.permute.xlu0 0
    %861 = vperm.xlu0 %860, %v595
    %v862 = vpop.permute.xlu0 %861
    %865 = vset.pattern.permute.xlu0 0
    %866 = vperm.xlu0 %865, %v596
    %v867 = vpop.permute.xlu0 %866
    %870 = vset.pattern.permute.xlu0 0
    %871 = vperm.xlu0 %870, %v597
    %v872 = vpop.permute.xlu0 %871
    %875 = vset.pattern.permute.xlu0 0
    %876 = vperm.xlu0 %875, %v598
    %v877 = vpop.permute.xlu0 %876
    %880 = vset.pattern.permute.xlu0 0
    %881 = vperm.xlu0 %880, %v599
    %v882 = vpop.permute.xlu0 %881
    %885 = vset.pattern.permute.xlu0 0
    %886 = vperm.xlu0 %885, %v600
    %v887 = vpop.permute.xlu0 %886
    %v1017 = vunpack.c.l.b16 %v601
    %v1018 = vunpack.c.h.b16 %v601
    %v1019 = vunpack.c.l.b16 %v602
    %v1020 = vunpack.c.h.b16 %v602
    %v1021 = vunpack.c.l.b16 %v603
    %v1022 = vunpack.c.h.b16 %v603
    %v1023 = vunpack.c.l.b16 %v604
    %v1024 = vunpack.c.h.b16 %v604
    %v1025 = vunpack.c.l.b16 %v605
    %v1026 = vunpack.c.h.b16 %v605
    %v1027 = vunpack.c.l.b16 %v606
    %v1028 = vunpack.c.h.b16 %v606
    %v1029 = vunpack.c.l.b16 %v607
    %v1030 = vunpack.c.h.b16 %v607
    %v1031 = vunpack.c.l.b16 %v608
    %v1032 = vunpack.c.h.b16 %v608
    %v1033 = vunpack.c.l.b16 %v609
    %v1034 = vunpack.c.h.b16 %v609
    %v1035 = vunpack.c.l.b16 %v610
    %v1036 = vunpack.c.h.b16 %v610
    %v1037 = vunpack.c.l.b16 %v611
    %v1038 = vunpack.c.h.b16 %v611
    %v1039 = vunpack.c.l.b16 %v612
    %v1040 = vunpack.c.h.b16 %v612
    %v1041 = vunpack.c.l.b16 %v613
    %v1042 = vunpack.c.h.b16 %v613
    %v1043 = vunpack.c.l.b16 %v614
    %v1044 = vunpack.c.h.b16 %v614
    %v1045 = vunpack.c.l.b16 %v615
    %v1046 = vunpack.c.h.b16 %v615
    %v1047 = vunpack.c.l.b16 %v616
    %v1048 = vunpack.c.h.b16 %v616
    %v1049 = vunpack.c.l.b16 %v617
    %v1050 = vunpack.c.h.b16 %v617
    %v1051 = vunpack.c.l.b16 %v618
    %v1052 = vunpack.c.h.b16 %v618
    %v1053 = vunpack.c.l.b16 %v619
    %v1054 = vunpack.c.h.b16 %v619
    %v1055 = vunpack.c.l.b16 %v620
    %v1056 = vunpack.c.h.b16 %v620
    %v1057 = vunpack.c.l.b16 %v621
    %v1058 = vunpack.c.h.b16 %v621
    %v1059 = vunpack.c.l.b16 %v622
    %v1060 = vunpack.c.h.b16 %v622
    %v1061 = vunpack.c.l.b16 %v623
    %v1062 = vunpack.c.h.b16 %v623
    %v1063 = vunpack.c.l.b16 %v624
    %v1064 = vunpack.c.h.b16 %v624
    %v1065 = vunpack.c.l.b16 %v625
    %v1066 = vunpack.c.h.b16 %v625
    %v1067 = vunpack.c.l.b16 %v626
    %v1068 = vunpack.c.h.b16 %v626
    %v1069 = vunpack.c.l.b16 %v627
    %v1070 = vunpack.c.h.b16 %v627
    %v1071 = vunpack.c.l.b16 %v628
    %v1072 = vunpack.c.h.b16 %v628
    %v1073 = vunpack.c.l.b16 %v629
    %v1074 = vunpack.c.h.b16 %v629
    %v1075 = vunpack.c.l.b16 %v630
    %v1076 = vunpack.c.h.b16 %v630
    %v1077 = vunpack.c.l.b16 %v631
    %v1078 = vunpack.c.h.b16 %v631
    %v1079 = vunpack.c.l.b16 %v632
    %v1080 = vunpack.c.h.b16 %v632
    %v1081 = vunpack.c.l.b16 %v633
    %v1082 = vunpack.c.h.b16 %v633
    %v1083 = vunpack.c.l.b16 %v634
    %v1084 = vunpack.c.h.b16 %v634
    %v1085 = vunpack.c.l.b16 %v635
    %v1086 = vunpack.c.h.b16 %v635
    %v1087 = vunpack.c.l.b16 %v636
    %v1088 = vunpack.c.h.b16 %v636
    %v1089 = vunpack.c.l.b16 %v637
    %v1090 = vunpack.c.h.b16 %v637
    %v1091 = vunpack.c.l.b16 %v638
    %v1092 = vunpack.c.h.b16 %v638
    %v1093 = vunpack.c.l.b16 %v639
    %v1094 = vunpack.c.h.b16 %v639
    %v1095 = vunpack.c.l.b16 %v640
    %v1096 = vunpack.c.h.b16 %v640
    %v1097 = vunpack.c.l.b16 %v641
    %v1098 = vunpack.c.h.b16 %v641
    %v1099 = vunpack.c.l.b16 %v642
    %v1100 = vunpack.c.h.b16 %v642
    %v1101 = vunpack.c.l.b16 %v643
    %v1102 = vunpack.c.h.b16 %v643
    %v1103 = vunpack.c.l.b16 %v644
    %v1104 = vunpack.c.h.b16 %v644
    %v1105 = vunpack.c.l.b16 %v645
    %v1106 = vunpack.c.h.b16 %v645
    %v1107 = vunpack.c.l.b16 %v646
    %v1108 = vunpack.c.h.b16 %v646
    %v1109 = vunpack.c.l.b16 %v647
    %v1110 = vunpack.c.h.b16 %v647
    %v1111 = vunpack.c.l.b16 %v648
    %v1112 = vunpack.c.h.b16 %v648
    %v1113 = vunpack.c.l.b16 %v649
    %v1114 = vunpack.c.h.b16 %v649
    %v1115 = vunpack.c.l.b16 %v650
    %v1116 = vunpack.c.h.b16 %v650
    %v1117 = vunpack.c.l.b16 %v651
    %v1118 = vunpack.c.h.b16 %v651
    %v1119 = vunpack.c.l.b16 %v652
    %v1120 = vunpack.c.h.b16 %v652
    %v1121 = vunpack.c.l.b16 %v653
    %v1122 = vunpack.c.h.b16 %v653
    %v1123 = vunpack.c.l.b16 %v654
    %v1124 = vunpack.c.h.b16 %v654
    %v1125 = vunpack.c.l.b16 %v655
    %v1126 = vunpack.c.h.b16 %v655
    %v1127 = vunpack.c.l.b16 %v656
    %v1128 = vunpack.c.h.b16 %v656
    %v1129 = vunpack.c.l.b16 %v657
    %v1130 = vunpack.c.h.b16 %v657
    %v1131 = vunpack.c.l.b16 %v658
    %v1132 = vunpack.c.h.b16 %v658
    %v1133 = vunpack.c.l.b16 %v659
    %v1134 = vunpack.c.h.b16 %v659
    %v1135 = vunpack.c.l.b16 %v660
    %v1136 = vunpack.c.h.b16 %v660
    %v1137 = vunpack.c.l.b16 %v661
    %v1138 = vunpack.c.h.b16 %v661
    %v1139 = vunpack.c.l.b16 %v662
    %v1140 = vunpack.c.h.b16 %v662
    %v1141 = vunpack.c.l.b16 %v663
    %v1142 = vunpack.c.h.b16 %v663
    %v1143 = vunpack.c.l.b16 %v664
    %v1144 = vunpack.c.h.b16 %v664
    %v1145 = vunpack.c.l.b16 %v665
    %v1146 = vunpack.c.h.b16 %v665
    %v1147 = vunpack.c.l.b16 %v666
    %v1148 = vunpack.c.h.b16 %v666
    %v1149 = vunpack.c.l.b16 %v667
    %v1150 = vunpack.c.h.b16 %v667
    %v1151 = vunpack.c.l.b16 %v668
    %v1152 = vunpack.c.h.b16 %v668
    %v1153 = vunpack.c.l.b16 %v669
    %v1154 = vunpack.c.h.b16 %v669
    %v1155 = vunpack.c.l.b16 %v670
    %v1156 = vunpack.c.h.b16 %v670
    %v1157 = vunpack.c.l.b16 %v671
    %v1158 = vunpack.c.h.b16 %v671
    %v1159 = vunpack.c.l.b16 %v672
    %v1160 = vunpack.c.h.b16 %v672
    %v1161 = vunpack.c.l.b16 %v673
    %v1162 = vunpack.c.h.b16 %v673
    %v1163 = vunpack.c.l.b16 %v674
    %v1164 = vunpack.c.h.b16 %v674
    %v1165 = vunpack.c.l.b16 %v675
    %v1166 = vunpack.c.h.b16 %v675
    %v1167 = vunpack.c.l.b16 %v676
    %v1168 = vunpack.c.h.b16 %v676
    %v1169 = vunpack.c.l.b16 %v677
    %v1170 = vunpack.c.h.b16 %v677
    %v1171 = vunpack.c.l.b16 %v678
    %v1172 = vunpack.c.h.b16 %v678
    %v1173 = vunpack.c.l.b16 %v679
    %v1174 = vunpack.c.h.b16 %v679
    %v1175 = vunpack.c.l.b16 %v680
    %v1176 = vunpack.c.h.b16 %v680
    %v1177 = vunpack.c.l.b16 %v681
    %v1178 = vunpack.c.h.b16 %v681
    %v1179 = vunpack.c.l.b16 %v682
    %v1180 = vunpack.c.h.b16 %v682
    %v1181 = vunpack.c.l.b16 %v683
    %v1182 = vunpack.c.h.b16 %v683
    %v1183 = vunpack.c.l.b16 %v684
    %v1184 = vunpack.c.h.b16 %v684
    %v1185 = vunpack.c.l.b16 %v685
    %v1186 = vunpack.c.h.b16 %v685
    %v1187 = vunpack.c.l.b16 %v686
    %v1188 = vunpack.c.h.b16 %v686
    %v1189 = vunpack.c.l.b16 %v687
    %v1190 = vunpack.c.h.b16 %v687
    %v1191 = vunpack.c.l.b16 %v688
    %v1192 = vunpack.c.h.b16 %v688
    %v1193 = vunpack.c.l.b16 %v689
    %v1194 = vunpack.c.h.b16 %v689
    %v1195 = vunpack.c.l.b16 %v690
    %v1196 = vunpack.c.h.b16 %v690
    %v1197 = vunpack.c.l.b16 %v691
    %v1198 = vunpack.c.h.b16 %v691
    %v1199 = vunpack.c.l.b16 %v692
    %v1200 = vunpack.c.h.b16 %v692
    %v1201 = vunpack.c.l.b16 %v693
    %v1202 = vunpack.c.h.b16 %v693
    %v1203 = vunpack.c.l.b16 %v694
    %v1204 = vunpack.c.h.b16 %v694
    %v1205 = vunpack.c.l.b16 %v695
    %v1206 = vunpack.c.h.b16 %v695
    %v1207 = vunpack.c.l.b16 %v696
    %v1208 = vunpack.c.h.b16 %v696
    %v1209 = vunpack.c.l.b16 %v697
    %v1210 = vunpack.c.h.b16 %v697
    %v1211 = vunpack.c.l.b16 %v698
    %v1212 = vunpack.c.h.b16 %v698
    %v1213 = vunpack.c.l.b16 %v699
    %v1214 = vunpack.c.h.b16 %v699
    %v1215 = vunpack.c.l.b16 %v700
    %v1216 = vunpack.c.h.b16 %v700
    %v1217 = vunpack.c.l.b16 %v701
    %v1218 = vunpack.c.h.b16 %v701
    %v1219 = vunpack.c.l.b16 %v702
    %v1220 = vunpack.c.h.b16 %v702
    %v1221 = vunpack.c.l.b16 %v703
    %v1222 = vunpack.c.h.b16 %v703
    %v1223 = vunpack.c.l.b16 %v704
    %v1224 = vunpack.c.h.b16 %v704
    %v1225 = vunpack.c.l.b16 %v705
    %v1226 = vunpack.c.h.b16 %v705
    %v1227 = vunpack.c.l.b16 %v706
    %v1228 = vunpack.c.h.b16 %v706
    %v1229 = vunpack.c.l.b16 %v707
    %v1230 = vunpack.c.h.b16 %v707
    %v1231 = vunpack.c.l.b16 %v708
    %v1232 = vunpack.c.h.b16 %v708
    %v1233 = vunpack.c.l.b16 %v709
    %v1234 = vunpack.c.h.b16 %v709
    %v1235 = vunpack.c.l.b16 %v710
    %v1236 = vunpack.c.h.b16 %v710
    %v1237 = vunpack.c.l.b16 %v711
    %v1238 = vunpack.c.h.b16 %v711
    %v1239 = vunpack.c.l.b16 %v712
    %v1240 = vunpack.c.h.b16 %v712
    %v1241 = vunpack.c.l.b16 %v713
    %v1242 = vunpack.c.h.b16 %v713
    %v1243 = vunpack.c.l.b16 %v714
    %v1244 = vunpack.c.h.b16 %v714
    %v1245 = vunpack.c.l.b16 %v715
    %v1246 = vunpack.c.h.b16 %v715
    %v1247 = vunpack.c.l.b16 %v716
    %v1248 = vunpack.c.h.b16 %v716
    %v1249 = vunpack.c.l.b16 %v717
    %v1250 = vunpack.c.h.b16 %v717
    %v1251 = vunpack.c.l.b16 %v718
    %v1252 = vunpack.c.h.b16 %v718
    %v1253 = vunpack.c.l.b16 %v719
    %v1254 = vunpack.c.h.b16 %v719
    %v1255 = vunpack.c.l.b16 %v720
    %v1256 = vunpack.c.h.b16 %v720
    %v1257 = vunpack.c.l.b16 %v721
    %v1258 = vunpack.c.h.b16 %v721
    %v1259 = vunpack.c.l.b16 %v722
    %v1260 = vunpack.c.h.b16 %v722
    %v1261 = vunpack.c.l.b16 %v723
    %v1262 = vunpack.c.h.b16 %v723
    %v1263 = vunpack.c.l.b16 %v724
    %v1264 = vunpack.c.h.b16 %v724
    %v1265 = vunpack.c.l.b16 %v725
    %v1266 = vunpack.c.h.b16 %v725
    %v1267 = vunpack.c.l.b16 %v726
    %v1268 = vunpack.c.h.b16 %v726
    %v1269 = vunpack.c.l.b16 %v727
    %v1270 = vunpack.c.h.b16 %v727
    %v1271 = vunpack.c.l.b16 %v728
    %v1272 = vunpack.c.h.b16 %v728
    %v1273 = vpack.c.b16 %v1025, %v1017
    %v1274 = vpack.c.b16 %v1026, %v1018
    %v1275 = vpack.c.b16 %v1027, %v1019
    %v1276 = vpack.c.b16 %v1028, %v1020
    %v1277 = vpack.c.b16 %v1029, %v1021
    %v1278 = vpack.c.b16 %v1030, %v1022
    %v1279 = vpack.c.b16 %v1031, %v1023
    %v1280 = vpack.c.b16 %v1032, %v1024
    %v1281 = vpack.c.b16 %v1041, %v1033
    %v1282 = vpack.c.b16 %v1042, %v1034
    %v1283 = vpack.c.b16 %v1043, %v1035
    %v1284 = vpack.c.b16 %v1044, %v1036
    %v1285 = vpack.c.b16 %v1045, %v1037
    %v1286 = vpack.c.b16 %v1046, %v1038
    %v1287 = vpack.c.b16 %v1047, %v1039
    %v1288 = vpack.c.b16 %v1048, %v1040
    %v1289 = vpack.c.b16 %v1057, %v1049
    %v1290 = vpack.c.b16 %v1058, %v1050
    %v1291 = vpack.c.b16 %v1059, %v1051
    %v1292 = vpack.c.b16 %v1060, %v1052
    %v1293 = vpack.c.b16 %v1061, %v1053
    %v1294 = vpack.c.b16 %v1062, %v1054
    %v1295 = vpack.c.b16 %v1063, %v1055
    %v1296 = vpack.c.b16 %v1064, %v1056
    %v1297 = vpack.c.b16 %v1073, %v1065
    %v1298 = vpack.c.b16 %v1074, %v1066
    %v1299 = vpack.c.b16 %v1075, %v1067
    %v1300 = vpack.c.b16 %v1076, %v1068
    %v1301 = vpack.c.b16 %v1077, %v1069
    %v1302 = vpack.c.b16 %v1078, %v1070
    %v1303 = vpack.c.b16 %v1079, %v1071
    %v1304 = vpack.c.b16 %v1080, %v1072
    %v1305 = vpack.c.b16 %v1089, %v1081
    %v1306 = vpack.c.b16 %v1090, %v1082
    %v1307 = vpack.c.b16 %v1091, %v1083
    %v1308 = vpack.c.b16 %v1092, %v1084
    %v1309 = vpack.c.b16 %v1093, %v1085
    %v1310 = vpack.c.b16 %v1094, %v1086
    %v1311 = vpack.c.b16 %v1095, %v1087
    %v1312 = vpack.c.b16 %v1096, %v1088
    %v1313 = vpack.c.b16 %v1105, %v1097
    %v1314 = vpack.c.b16 %v1106, %v1098
    %v1315 = vpack.c.b16 %v1107, %v1099
    %v1316 = vpack.c.b16 %v1108, %v1100
    %v1317 = vpack.c.b16 %v1109, %v1101
    %v1318 = vpack.c.b16 %v1110, %v1102
    %v1319 = vpack.c.b16 %v1111, %v1103
    %v1320 = vpack.c.b16 %v1112, %v1104
    %v1321 = vpack.c.b16 %v1121, %v1113
    %v1322 = vpack.c.b16 %v1122, %v1114
    %v1323 = vpack.c.b16 %v1123, %v1115
    %v1324 = vpack.c.b16 %v1124, %v1116
    %v1325 = vpack.c.b16 %v1125, %v1117
    %v1326 = vpack.c.b16 %v1126, %v1118
    %v1327 = vpack.c.b16 %v1127, %v1119
    %v1328 = vpack.c.b16 %v1128, %v1120
    %v1329 = vpack.c.b16 %v1137, %v1129
    %v1330 = vpack.c.b16 %v1138, %v1130
    %v1331 = vpack.c.b16 %v1139, %v1131
    %v1332 = vpack.c.b16 %v1140, %v1132
    %v1333 = vpack.c.b16 %v1141, %v1133
    %v1334 = vpack.c.b16 %v1142, %v1134
    %v1335 = vpack.c.b16 %v1143, %v1135
    %v1336 = vpack.c.b16 %v1144, %v1136
    %v1337 = vpack.c.b16 %v1153, %v1145
    %v1338 = vpack.c.b16 %v1154, %v1146
    %v1339 = vpack.c.b16 %v1155, %v1147
    %v1340 = vpack.c.b16 %v1156, %v1148
    %v1341 = vpack.c.b16 %v1157, %v1149
    %v1342 = vpack.c.b16 %v1158, %v1150
    %v1343 = vpack.c.b16 %v1159, %v1151
    %v1344 = vpack.c.b16 %v1160, %v1152
    %v1345 = vpack.c.b16 %v1169, %v1161
    %v1346 = vpack.c.b16 %v1170, %v1162
    %v1347 = vpack.c.b16 %v1171, %v1163
    %v1348 = vpack.c.b16 %v1172, %v1164
    %v1349 = vpack.c.b16 %v1173, %v1165
    %v1350 = vpack.c.b16 %v1174, %v1166
    %v1351 = vpack.c.b16 %v1175, %v1167
    %v1352 = vpack.c.b16 %v1176, %v1168
    %v1353 = vpack.c.b16 %v1185, %v1177
    %v1354 = vpack.c.b16 %v1186, %v1178
    %v1355 = vpack.c.b16 %v1187, %v1179
    %v1356 = vpack.c.b16 %v1188, %v1180
    %v1357 = vpack.c.b16 %v1189, %v1181
    %v1358 = vpack.c.b16 %v1190, %v1182
    %v1359 = vpack.c.b16 %v1191, %v1183
    %v1360 = vpack.c.b16 %v1192, %v1184
    %v1361 = vpack.c.b16 %v1201, %v1193
    %v1362 = vpack.c.b16 %v1202, %v1194
    %v1363 = vpack.c.b16 %v1203, %v1195
    %v1364 = vpack.c.b16 %v1204, %v1196
    %v1365 = vpack.c.b16 %v1205, %v1197
    %v1366 = vpack.c.b16 %v1206, %v1198
    %v1367 = vpack.c.b16 %v1207, %v1199
    %v1368 = vpack.c.b16 %v1208, %v1200
    %v1369 = vpack.c.b16 %v1217, %v1209
    %v1370 = vpack.c.b16 %v1218, %v1210
    %v1371 = vpack.c.b16 %v1219, %v1211
    %v1372 = vpack.c.b16 %v1220, %v1212
    %v1373 = vpack.c.b16 %v1221, %v1213
    %v1374 = vpack.c.b16 %v1222, %v1214
    %v1375 = vpack.c.b16 %v1223, %v1215
    %v1376 = vpack.c.b16 %v1224, %v1216
    %v1377 = vpack.c.b16 %v1233, %v1225
    %v1378 = vpack.c.b16 %v1234, %v1226
    %v1379 = vpack.c.b16 %v1235, %v1227
    %v1380 = vpack.c.b16 %v1236, %v1228
    %v1381 = vpack.c.b16 %v1237, %v1229
    %v1382 = vpack.c.b16 %v1238, %v1230
    %v1383 = vpack.c.b16 %v1239, %v1231
    %v1384 = vpack.c.b16 %v1240, %v1232
    %v1385 = vpack.c.b16 %v1249, %v1241
    %v1386 = vpack.c.b16 %v1250, %v1242
    %v1387 = vpack.c.b16 %v1251, %v1243
    %v1388 = vpack.c.b16 %v1252, %v1244
    %v1389 = vpack.c.b16 %v1253, %v1245
    %v1390 = vpack.c.b16 %v1254, %v1246
    %v1391 = vpack.c.b16 %v1255, %v1247
    %v1392 = vpack.c.b16 %v1256, %v1248
    %v1393 = vpack.c.b16 %v1265, %v1257
    %v1394 = vpack.c.b16 %v1266, %v1258
    %v1395 = vpack.c.b16 %v1267, %v1259
    %v1396 = vpack.c.b16 %v1268, %v1260
    %v1397 = vpack.c.b16 %v1269, %v1261
    %v1398 = vpack.c.b16 %v1270, %v1262
    %v1399 = vpack.c.b16 %v1271, %v1263
    %v1400 = vpack.c.b16 %v1272, %v1264
    %1529 = vrot.lane.b32.xlu0 %v473, 127
    %v1530 = vpop.permute.xlu0 %1529
    %1531 = vrot.lane.b32.xlu0 %v474, 127
    %v1532 = vpop.permute.xlu0 %1531
    %1533 = vrot.lane.b32.xlu0 %v475, 127
    %v1534 = vpop.permute.xlu0 %1533
    %1535 = vrot.lane.b32.xlu0 %v476, 127
    %v1536 = vpop.permute.xlu0 %1535
    %1537 = vrot.lane.b32.xlu0 %v477, 127
    %v1538 = vpop.permute.xlu0 %1537
    %1539 = vrot.lane.b32.xlu0 %v478, 127
    %v1540 = vpop.permute.xlu0 %1539
    %1541 = vrot.lane.b32.xlu0 %v479, 127
    %v1542 = vpop.permute.xlu0 %1541
    %1543 = vrot.lane.b32.xlu0 %v480, 127
    %v1544 = vpop.permute.xlu0 %1543
    %1545 = vrot.lane.b32.xlu0 %v481, 127
    %v1546 = vpop.permute.xlu0 %1545
    %1547 = vrot.lane.b32.xlu0 %v482, 127
    %v1548 = vpop.permute.xlu0 %1547
    %1549 = vrot.lane.b32.xlu0 %v483, 127
    %v1550 = vpop.permute.xlu0 %1549
    %1551 = vrot.lane.b32.xlu0 %v484, 127
    %v1552 = vpop.permute.xlu0 %1551
    %1553 = vrot.lane.b32.xlu0 %v485, 127
    %v1554 = vpop.permute.xlu0 %1553
    %1555 = vrot.lane.b32.xlu0 %v486, 127
    %v1556 = vpop.permute.xlu0 %1555
    %1557 = vrot.lane.b32.xlu0 %v487, 127
    %v1558 = vpop.permute.xlu0 %1557
    %1559 = vrot.lane.b32.xlu0 %v488, 127
    %v1560 = vpop.permute.xlu0 %1559
    %1561 = vrot.lane.b32.xlu0 %v489, 127
    %v1562 = vpop.permute.xlu0 %1561
    %1563 = vrot.lane.b32.xlu0 %v490, 127
    %v1564 = vpop.permute.xlu0 %1563
    %1565 = vrot.lane.b32.xlu0 %v491, 127
    %v1566 = vpop.permute.xlu0 %1565
    %1567 = vrot.lane.b32.xlu0 %v492, 127
    %v1568 = vpop.permute.xlu0 %1567
    %1569 = vrot.lane.b32.xlu0 %v493, 127
    %v1570 = vpop.permute.xlu0 %1569
    %1571 = vrot.lane.b32.xlu0 %v494, 127
    %v1572 = vpop.permute.xlu0 %1571
    %1573 = vrot.lane.b32.xlu0 %v495, 127
    %v1574 = vpop.permute.xlu0 %1573
    %1575 = vrot.lane.b32.xlu0 %v496, 127
    %v1576 = vpop.permute.xlu0 %1575
    %1577 = vrot.lane.b32.xlu0 %v497, 127
    %v1578 = vpop.permute.xlu0 %1577
    %1579 = vrot.lane.b32.xlu0 %v498, 127
    %v1580 = vpop.permute.xlu0 %1579
    %1581 = vrot.lane.b32.xlu0 %v499, 127
    %v1582 = vpop.permute.xlu0 %1581
    %1583 = vrot.lane.b32.xlu0 %v500, 127
    %v1584 = vpop.permute.xlu0 %1583
    %1585 = vrot.lane.b32.xlu0 %v501, 127
    %v1586 = vpop.permute.xlu0 %1585
    %1587 = vrot.lane.b32.xlu0 %v502, 127
    %v1588 = vpop.permute.xlu0 %1587
    %1589 = vrot.lane.b32.xlu0 %v503, 127
    %v1590 = vpop.permute.xlu0 %1589
    %1591 = vrot.lane.b32.xlu0 %v504, 127
    %v1592 = vpop.permute.xlu0 %1591
    %1593 = vrot.lane.b32.xlu0 %v506, 127
    %v1594 = vpop.permute.xlu0 %1593
    %1595 = vrot.lane.b32.xlu0 %v508, 127
    %v1596 = vpop.permute.xlu0 %1595
    %1597 = vrot.lane.b32.xlu0 %v510, 127
    %v1598 = vpop.permute.xlu0 %1597
    %1599 = vrot.lane.b32.xlu0 %v512, 127
    %v1600 = vpop.permute.xlu0 %1599
    %1601 = vrot.lane.b32.xlu0 %v514, 127
    %v1602 = vpop.permute.xlu0 %1601
    %1603 = vrot.lane.b32.xlu0 %v516, 127
    %v1604 = vpop.permute.xlu0 %1603
    %1605 = vrot.lane.b32.xlu0 %v518, 127
    %v1606 = vpop.permute.xlu0 %1605
    %1607 = vrot.lane.b32.xlu0 %v520, 127
    %v1608 = vpop.permute.xlu0 %1607
    %1609 = vrot.lane.b32.xlu0 %v522, 127
    %v1610 = vpop.permute.xlu0 %1609
    %1611 = vrot.lane.b32.xlu0 %v524, 127
    %v1612 = vpop.permute.xlu0 %1611
    %1613 = vrot.lane.b32.xlu0 %v526, 127
    %v1614 = vpop.permute.xlu0 %1613
    %1615 = vrot.lane.b32.xlu0 %v528, 127
    %v1616 = vpop.permute.xlu0 %1615
    %1617 = vrot.lane.b32.xlu0 %v530, 127
    %v1618 = vpop.permute.xlu0 %1617
    %1619 = vrot.lane.b32.xlu0 %v532, 127
    %v1620 = vpop.permute.xlu0 %1619
    %1621 = vrot.lane.b32.xlu0 %v534, 127
    %v1622 = vpop.permute.xlu0 %1621
    %1623 = vrot.lane.b32.xlu0 %v536, 127
    %v1624 = vpop.permute.xlu0 %1623
    %1625 = vrot.lane.b32.xlu0 %v538, 127
    %v1626 = vpop.permute.xlu0 %1625
    %1627 = vrot.lane.b32.xlu0 %v540, 127
    %v1628 = vpop.permute.xlu0 %1627
    %1629 = vrot.lane.b32.xlu0 %v542, 127
    %v1630 = vpop.permute.xlu0 %1629
    %1631 = vrot.lane.b32.xlu0 %v544, 127
    %v1632 = vpop.permute.xlu0 %1631
    %1633 = vrot.lane.b32.xlu0 %v546, 127
    %v1634 = vpop.permute.xlu0 %1633
    %1635 = vrot.lane.b32.xlu0 %v548, 127
    %v1636 = vpop.permute.xlu0 %1635
    %1637 = vrot.lane.b32.xlu0 %v550, 127
    %v1638 = vpop.permute.xlu0 %1637
    %1639 = vrot.lane.b32.xlu0 %v552, 127
    %v1640 = vpop.permute.xlu0 %1639
    %1641 = vrot.lane.b32.xlu0 %v554, 127
    %v1642 = vpop.permute.xlu0 %1641
    %1643 = vrot.lane.b32.xlu0 %v556, 127
    %v1644 = vpop.permute.xlu0 %1643
    %1645 = vrot.lane.b32.xlu0 %v558, 127
    %v1646 = vpop.permute.xlu0 %1645
    %1647 = vrot.lane.b32.xlu0 %v560, 127
    %v1648 = vpop.permute.xlu0 %1647
    %1649 = vrot.lane.b32.xlu0 %v562, 127
    %v1650 = vpop.permute.xlu0 %1649
    %1651 = vrot.lane.b32.xlu0 %v564, 127
    %v1652 = vpop.permute.xlu0 %1651
    %1653 = vrot.lane.b32.xlu0 %v566, 127
    %v1654 = vpop.permute.xlu0 %1653
    %1655 = vrot.lane.b32.xlu0 %v568, 127
    %v1656 = vpop.permute.xlu0 %1655
    %1721 = vmatpush.bf16.msra.mxu0 %v1544
    %1722 = vmatpush.bf16.msra.mxu0 %v1542
    %1723 = vmatpush.bf16.msra.mxu0 %v1540
    %1724 = vmatpush.bf16.msra.mxu0 %v1538
    %1725 = vmatpush.bf16.msra.mxu0 %v1536
    %1726 = vmatpush.bf16.msra.mxu0 %v1534
    %1727 = vmatpush.bf16.msra.mxu0 %v1532
    %1728 = vmatpush.bf16.msra.mxu0 %v1530
    %1729 = vmatmul.bf16.gmra.mxu0 %v1273
    %v1730 = vpop.f32.mrf.mxu0
    %v1731 = vadd.f32 %v732, %v1730
    %v1732 = vpop.f32.mrf.mxu0
    %v1733 = vadd.f32 %v737, %v1732
    %1734 = vmatmul.bf16.gmra.mxu0 %v1281
    %v1735 = vpop.f32.mrf.mxu0
    %v1736 = vadd.f32 %v742, %v1735
    %v1737 = vpop.f32.mrf.mxu0
    %v1738 = vadd.f32 %v747, %v1737
    %1739 = vmatmul.bf16.gmra.mxu0 %v1289
    %v1740 = vpop.f32.mrf.mxu0
    %v1741 = vadd.f32 %v752, %v1740
    %v1742 = vpop.f32.mrf.mxu0
    %v1743 = vadd.f32 %v757, %v1742
    %1744 = vmatmul.bf16.gmra.mxu0 %v1297
    %v1745 = vpop.f32.mrf.mxu0
    %v1746 = vadd.f32 %v762, %v1745
    %v1747 = vpop.f32.mrf.mxu0
    %v1748 = vadd.f32 %v767, %v1747
    %1749 = vmatmul.bf16.gmra.mxu0 %v1305
    %v1750 = vpop.f32.mrf.mxu0
    %v1751 = vadd.f32 %v772, %v1750
    %v1752 = vpop.f32.mrf.mxu0
    %v1753 = vadd.f32 %v777, %v1752
    %1754 = vmatmul.bf16.gmra.mxu0 %v1313
    %v1755 = vpop.f32.mrf.mxu0
    %v1756 = vadd.f32 %v782, %v1755
    %v1757 = vpop.f32.mrf.mxu0
    %v1758 = vadd.f32 %v787, %v1757
    %1759 = vmatmul.bf16.gmra.mxu0 %v1321
    %v1760 = vpop.f32.mrf.mxu0
    %v1761 = vadd.f32 %v792, %v1760
    %v1762 = vpop.f32.mrf.mxu0
    %v1763 = vadd.f32 %v797, %v1762
    %1764 = vmatmul.bf16.gmra.mxu0 %v1329
    %v1765 = vpop.f32.mrf.mxu0
    %v1766 = vadd.f32 %v802, %v1765
    %v1767 = vpop.f32.mrf.mxu0
    %v1768 = vadd.f32 %v807, %v1767
    %1769 = vmatmul.bf16.gmra.mxu0 %v1337
    %v1770 = vpop.f32.mrf.mxu0
    %v1771 = vadd.f32 %v812, %v1770
    %v1772 = vpop.f32.mrf.mxu0
    %v1773 = vadd.f32 %v817, %v1772
    %1774 = vmatmul.bf16.gmra.mxu0 %v1345
    %v1775 = vpop.f32.mrf.mxu0
    %v1776 = vadd.f32 %v822, %v1775
    %v1777 = vpop.f32.mrf.mxu0
    %v1778 = vadd.f32 %v827, %v1777
    %1779 = vmatmul.bf16.gmra.mxu0 %v1353
    %v1780 = vpop.f32.mrf.mxu0
    %v1781 = vadd.f32 %v832, %v1780
    %v1782 = vpop.f32.mrf.mxu0
    %v1783 = vadd.f32 %v837, %v1782
    %1784 = vmatmul.bf16.gmra.mxu0 %v1361
    %v1785 = vpop.f32.mrf.mxu0
    %v1786 = vadd.f32 %v842, %v1785
    %v1787 = vpop.f32.mrf.mxu0
    %v1788 = vadd.f32 %v847, %v1787
    %1789 = vmatmul.bf16.gmra.mxu0 %v1369
    %v1790 = vpop.f32.mrf.mxu0
    %v1791 = vadd.f32 %v852, %v1790
    %v1792 = vpop.f32.mrf.mxu0
    %v1793 = vadd.f32 %v857, %v1792
    %1794 = vmatmul.bf16.gmra.mxu0 %v1377
    %v1795 = vpop.f32.mrf.mxu0
    %v1796 = vadd.f32 %v862, %v1795
    %v1797 = vpop.f32.mrf.mxu0
    %v1798 = vadd.f32 %v867, %v1797
    %1799 = vmatmul.bf16.gmra.mxu0 %v1385
    %v1800 = vpop.f32.mrf.mxu0
    %v1801 = vadd.f32 %v872, %v1800
    %v1802 = vpop.f32.mrf.mxu0
    %v1803 = vadd.f32 %v877, %v1802
    %1804 = vmatmul.bf16.gmra.mxu0 %v1393
    %v1805 = vpop.f32.mrf.mxu0
    %v1806 = vadd.f32 %v882, %v1805
    %v1807 = vpop.f32.mrf.mxu0
    %v1808 = vadd.f32 %v887, %v1807
    %1809 = vdwg.mxu0
    %1810 = vmatpush.bf16.msra.mxu0 %v1560
    %1811 = vmatpush.bf16.msra.mxu0 %v1558
    %1812 = vmatpush.bf16.msra.mxu0 %v1556
    %1813 = vmatpush.bf16.msra.mxu0 %v1554
    %1814 = vmatpush.bf16.msra.mxu0 %v1552
    %1815 = vmatpush.bf16.msra.mxu0 %v1550
    %1816 = vmatpush.bf16.msra.mxu0 %v1548
    %1817 = vmatpush.bf16.msra.mxu0 %v1546
    %1818 = vmatmul.bf16.gmra.mxu0 %v1274
    %v1819 = vpop.f32.mrf.mxu0
    %v1820 = vadd.f32 %v1731, %v1819
    %v1821 = vpop.f32.mrf.mxu0
    %v1822 = vadd.f32 %v1733, %v1821
    %1823 = vmatmul.bf16.gmra.mxu0 %v1282
    %v1824 = vpop.f32.mrf.mxu0
    %v1825 = vadd.f32 %v1736, %v1824
    %v1826 = vpop.f32.mrf.mxu0
    %v1827 = vadd.f32 %v1738, %v1826
    %1828 = vmatmul.bf16.gmra.mxu0 %v1290
    %v1829 = vpop.f32.mrf.mxu0
    %v1830 = vadd.f32 %v1741, %v1829
    %v1831 = vpop.f32.mrf.mxu0
    %v1832 = vadd.f32 %v1743, %v1831
    %1833 = vmatmul.bf16.gmra.mxu0 %v1298
    %v1834 = vpop.f32.mrf.mxu0
    %v1835 = vadd.f32 %v1746, %v1834
    %v1836 = vpop.f32.mrf.mxu0
    %v1837 = vadd.f32 %v1748, %v1836
    %1838 = vmatmul.bf16.gmra.mxu0 %v1306
    %v1839 = vpop.f32.mrf.mxu0
    %v1840 = vadd.f32 %v1751, %v1839
    %v1841 = vpop.f32.mrf.mxu0
    %v1842 = vadd.f32 %v1753, %v1841
    %1843 = vmatmul.bf16.gmra.mxu0 %v1314
    %v1844 = vpop.f32.mrf.mxu0
    %v1845 = vadd.f32 %v1756, %v1844
    %v1846 = vpop.f32.mrf.mxu0
    %v1847 = vadd.f32 %v1758, %v1846
    %1848 = vmatmul.bf16.gmra.mxu0 %v1322
    %v1849 = vpop.f32.mrf.mxu0
    %v1850 = vadd.f32 %v1761, %v1849
    %v1851 = vpop.f32.mrf.mxu0
    %v1852 = vadd.f32 %v1763, %v1851
    %1853 = vmatmul.bf16.gmra.mxu0 %v1330
    %v1854 = vpop.f32.mrf.mxu0
    %v1855 = vadd.f32 %v1766, %v1854
    %v1856 = vpop.f32.mrf.mxu0
    %v1857 = vadd.f32 %v1768, %v1856
    %1858 = vmatmul.bf16.gmra.mxu0 %v1338
    %v1859 = vpop.f32.mrf.mxu0
    %v1860 = vadd.f32 %v1771, %v1859
    %v1861 = vpop.f32.mrf.mxu0
    %v1862 = vadd.f32 %v1773, %v1861
    %1863 = vmatmul.bf16.gmra.mxu0 %v1346
    %v1864 = vpop.f32.mrf.mxu0
    %v1865 = vadd.f32 %v1776, %v1864
    %v1866 = vpop.f32.mrf.mxu0
    %v1867 = vadd.f32 %v1778, %v1866
    %1868 = vmatmul.bf16.gmra.mxu0 %v1354
    %v1869 = vpop.f32.mrf.mxu0
    %v1870 = vadd.f32 %v1781, %v1869
    %v1871 = vpop.f32.mrf.mxu0
    %v1872 = vadd.f32 %v1783, %v1871
    %1873 = vmatmul.bf16.gmra.mxu0 %v1362
    %v1874 = vpop.f32.mrf.mxu0
    %v1875 = vadd.f32 %v1786, %v1874
    %v1876 = vpop.f32.mrf.mxu0
    %v1877 = vadd.f32 %v1788, %v1876
    %1878 = vmatmul.bf16.gmra.mxu0 %v1370
    %v1879 = vpop.f32.mrf.mxu0
    %v1880 = vadd.f32 %v1791, %v1879
    %v1881 = vpop.f32.mrf.mxu0
    %v1882 = vadd.f32 %v1793, %v1881
    %1883 = vmatmul.bf16.gmra.mxu0 %v1378
    %v1884 = vpop.f32.mrf.mxu0
    %v1885 = vadd.f32 %v1796, %v1884
    %v1886 = vpop.f32.mrf.mxu0
    %v1887 = vadd.f32 %v1798, %v1886
    %1888 = vmatmul.bf16.gmra.mxu0 %v1386
    %v1889 = vpop.f32.mrf.mxu0
    %v1890 = vadd.f32 %v1801, %v1889
    %v1891 = vpop.f32.mrf.mxu0
    %v1892 = vadd.f32 %v1803, %v1891
    %1893 = vmatmul.bf16.gmra.mxu0 %v1394
    %v1894 = vpop.f32.mrf.mxu0
    %v1895 = vadd.f32 %v1806, %v1894
    %v1896 = vpop.f32.mrf.mxu0
    %v1897 = vadd.f32 %v1808, %v1896
    %1898 = vdwg.mxu0
    %1899 = vmatpush.bf16.msra.mxu0 %v1576
    %1900 = vmatpush.bf16.msra.mxu0 %v1574
    %1901 = vmatpush.bf16.msra.mxu0 %v1572
    %1902 = vmatpush.bf16.msra.mxu0 %v1570
    %1903 = vmatpush.bf16.msra.mxu0 %v1568
    %1904 = vmatpush.bf16.msra.mxu0 %v1566
    %1905 = vmatpush.bf16.msra.mxu0 %v1564
    %1906 = vmatpush.bf16.msra.mxu0 %v1562
    %1907 = vmatmul.bf16.gmra.mxu0 %v1275
    %v1908 = vpop.f32.mrf.mxu0
    %v1909 = vadd.f32 %v1820, %v1908
    %v1910 = vpop.f32.mrf.mxu0
    %v1911 = vadd.f32 %v1822, %v1910
    %1912 = vmatmul.bf16.gmra.mxu0 %v1283
    %v1913 = vpop.f32.mrf.mxu0
    %v1914 = vadd.f32 %v1825, %v1913
    %v1915 = vpop.f32.mrf.mxu0
    %v1916 = vadd.f32 %v1827, %v1915
    %1917 = vmatmul.bf16.gmra.mxu0 %v1291
    %v1918 = vpop.f32.mrf.mxu0
    %v1919 = vadd.f32 %v1830, %v1918
    %v1920 = vpop.f32.mrf.mxu0
    %v1921 = vadd.f32 %v1832, %v1920
    %1922 = vmatmul.bf16.gmra.mxu0 %v1299
    %v1923 = vpop.f32.mrf.mxu0
    %v1924 = vadd.f32 %v1835, %v1923
    %v1925 = vpop.f32.mrf.mxu0
    %v1926 = vadd.f32 %v1837, %v1925
    %1927 = vmatmul.bf16.gmra.mxu0 %v1307
    %v1928 = vpop.f32.mrf.mxu0
    %v1929 = vadd.f32 %v1840, %v1928
    %v1930 = vpop.f32.mrf.mxu0
    %v1931 = vadd.f32 %v1842, %v1930
    %1932 = vmatmul.bf16.gmra.mxu0 %v1315
    %v1933 = vpop.f32.mrf.mxu0
    %v1934 = vadd.f32 %v1845, %v1933
    %v1935 = vpop.f32.mrf.mxu0
    %v1936 = vadd.f32 %v1847, %v1935
    %1937 = vmatmul.bf16.gmra.mxu0 %v1323
    %v1938 = vpop.f32.mrf.mxu0
    %v1939 = vadd.f32 %v1850, %v1938
    %v1940 = vpop.f32.mrf.mxu0
    %v1941 = vadd.f32 %v1852, %v1940
    %1942 = vmatmul.bf16.gmra.mxu0 %v1331
    %v1943 = vpop.f32.mrf.mxu0
    %v1944 = vadd.f32 %v1855, %v1943
    %v1945 = vpop.f32.mrf.mxu0
    %v1946 = vadd.f32 %v1857, %v1945
    %1947 = vmatmul.bf16.gmra.mxu0 %v1339
    %v1948 = vpop.f32.mrf.mxu0
    %v1949 = vadd.f32 %v1860, %v1948
    %v1950 = vpop.f32.mrf.mxu0
    %v1951 = vadd.f32 %v1862, %v1950
    %1952 = vmatmul.bf16.gmra.mxu0 %v1347
    %v1953 = vpop.f32.mrf.mxu0
    %v1954 = vadd.f32 %v1865, %v1953
    %v1955 = vpop.f32.mrf.mxu0
    %v1956 = vadd.f32 %v1867, %v1955
    %1957 = vmatmul.bf16.gmra.mxu0 %v1355
    %v1958 = vpop.f32.mrf.mxu0
    %v1959 = vadd.f32 %v1870, %v1958
    %v1960 = vpop.f32.mrf.mxu0
    %v1961 = vadd.f32 %v1872, %v1960
    %1962 = vmatmul.bf16.gmra.mxu0 %v1363
    %v1963 = vpop.f32.mrf.mxu0
    %v1964 = vadd.f32 %v1875, %v1963
    %v1965 = vpop.f32.mrf.mxu0
    %v1966 = vadd.f32 %v1877, %v1965
    %1967 = vmatmul.bf16.gmra.mxu0 %v1371
    %v1968 = vpop.f32.mrf.mxu0
    %v1969 = vadd.f32 %v1880, %v1968
    %v1970 = vpop.f32.mrf.mxu0
    %v1971 = vadd.f32 %v1882, %v1970
    %1972 = vmatmul.bf16.gmra.mxu0 %v1379
    %v1973 = vpop.f32.mrf.mxu0
    %v1974 = vadd.f32 %v1885, %v1973
    %v1975 = vpop.f32.mrf.mxu0
    %v1976 = vadd.f32 %v1887, %v1975
    %1977 = vmatmul.bf16.gmra.mxu0 %v1387
    %v1978 = vpop.f32.mrf.mxu0
    %v1979 = vadd.f32 %v1890, %v1978
    %v1980 = vpop.f32.mrf.mxu0
    %v1981 = vadd.f32 %v1892, %v1980
    %1982 = vmatmul.bf16.gmra.mxu0 %v1395
    %v1983 = vpop.f32.mrf.mxu0
    %v1984 = vadd.f32 %v1895, %v1983
    %v1985 = vpop.f32.mrf.mxu0
    %v1986 = vadd.f32 %v1897, %v1985
    %1987 = vdwg.mxu0
    %1988 = vmatpush.bf16.msra.mxu0 %v1592
    %1989 = vmatpush.bf16.msra.mxu0 %v1590
    %1990 = vmatpush.bf16.msra.mxu0 %v1588
    %1991 = vmatpush.bf16.msra.mxu0 %v1586
    %1992 = vmatpush.bf16.msra.mxu0 %v1584
    %1993 = vmatpush.bf16.msra.mxu0 %v1582
    %1994 = vmatpush.bf16.msra.mxu0 %v1580
    %1995 = vmatpush.bf16.msra.mxu0 %v1578
    %1996 = vmatmul.bf16.gmra.mxu0 %v1276
    %v1997 = vpop.f32.mrf.mxu0
    %v1998 = vadd.f32 %v1909, %v1997
    %v1999 = vpop.f32.mrf.mxu0
    %v2000 = vadd.f32 %v1911, %v1999
    %2001 = vmatmul.bf16.gmra.mxu0 %v1284
    %v2002 = vpop.f32.mrf.mxu0
    %v2003 = vadd.f32 %v1914, %v2002
    %v2004 = vpop.f32.mrf.mxu0
    %v2005 = vadd.f32 %v1916, %v2004
    %2006 = vmatmul.bf16.gmra.mxu0 %v1292
    %v2007 = vpop.f32.mrf.mxu0
    %v2008 = vadd.f32 %v1919, %v2007
    %v2009 = vpop.f32.mrf.mxu0
    %v2010 = vadd.f32 %v1921, %v2009
    %2011 = vmatmul.bf16.gmra.mxu0 %v1300
    %v2012 = vpop.f32.mrf.mxu0
    %v2013 = vadd.f32 %v1924, %v2012
    %v2014 = vpop.f32.mrf.mxu0
    %v2015 = vadd.f32 %v1926, %v2014
    %2016 = vmatmul.bf16.gmra.mxu0 %v1308
    %v2017 = vpop.f32.mrf.mxu0
    %v2018 = vadd.f32 %v1929, %v2017
    %v2019 = vpop.f32.mrf.mxu0
    %v2020 = vadd.f32 %v1931, %v2019
    %2021 = vmatmul.bf16.gmra.mxu0 %v1316
    %v2022 = vpop.f32.mrf.mxu0
    %v2023 = vadd.f32 %v1934, %v2022
    %v2024 = vpop.f32.mrf.mxu0
    %v2025 = vadd.f32 %v1936, %v2024
    %2026 = vmatmul.bf16.gmra.mxu0 %v1324
    %v2027 = vpop.f32.mrf.mxu0
    %v2028 = vadd.f32 %v1939, %v2027
    %v2029 = vpop.f32.mrf.mxu0
    %v2030 = vadd.f32 %v1941, %v2029
    %2031 = vmatmul.bf16.gmra.mxu0 %v1332
    %v2032 = vpop.f32.mrf.mxu0
    %v2033 = vadd.f32 %v1944, %v2032
    %v2034 = vpop.f32.mrf.mxu0
    %v2035 = vadd.f32 %v1946, %v2034
    %2036 = vmatmul.bf16.gmra.mxu0 %v1340
    %v2037 = vpop.f32.mrf.mxu0
    %v2038 = vadd.f32 %v1949, %v2037
    %v2039 = vpop.f32.mrf.mxu0
    %v2040 = vadd.f32 %v1951, %v2039
    %2041 = vmatmul.bf16.gmra.mxu0 %v1348
    %v2042 = vpop.f32.mrf.mxu0
    %v2043 = vadd.f32 %v1954, %v2042
    %v2044 = vpop.f32.mrf.mxu0
    %v2045 = vadd.f32 %v1956, %v2044
    %2046 = vmatmul.bf16.gmra.mxu0 %v1356
    %v2047 = vpop.f32.mrf.mxu0
    %v2048 = vadd.f32 %v1959, %v2047
    %v2049 = vpop.f32.mrf.mxu0
    %v2050 = vadd.f32 %v1961, %v2049
    %2051 = vmatmul.bf16.gmra.mxu0 %v1364
    %v2052 = vpop.f32.mrf.mxu0
    %v2053 = vadd.f32 %v1964, %v2052
    %v2054 = vpop.f32.mrf.mxu0
    %v2055 = vadd.f32 %v1966, %v2054
    %2056 = vmatmul.bf16.gmra.mxu0 %v1372
    %v2057 = vpop.f32.mrf.mxu0
    %v2058 = vadd.f32 %v1969, %v2057
    %v2059 = vpop.f32.mrf.mxu0
    %v2060 = vadd.f32 %v1971, %v2059
    %2061 = vmatmul.bf16.gmra.mxu0 %v1380
    %v2062 = vpop.f32.mrf.mxu0
    %v2063 = vadd.f32 %v1974, %v2062
    %v2064 = vpop.f32.mrf.mxu0
    %v2065 = vadd.f32 %v1976, %v2064
    %2066 = vmatmul.bf16.gmra.mxu0 %v1388
    %v2067 = vpop.f32.mrf.mxu0
    %v2068 = vadd.f32 %v1979, %v2067
    %v2069 = vpop.f32.mrf.mxu0
    %v2070 = vadd.f32 %v1981, %v2069
    %2071 = vmatmul.bf16.gmra.mxu0 %v1396
    %v2072 = vpop.f32.mrf.mxu0
    %v2073 = vadd.f32 %v1984, %v2072
    %v2074 = vpop.f32.mrf.mxu0
    %v2075 = vadd.f32 %v1986, %v2074
    %2076 = vdwg.mxu0
    %2077 = vmatpush.bf16.msra.mxu0 %v1608
    %2078 = vmatpush.bf16.msra.mxu0 %v1606
    %2079 = vmatpush.bf16.msra.mxu0 %v1604
    %2080 = vmatpush.bf16.msra.mxu0 %v1602
    %2081 = vmatpush.bf16.msra.mxu0 %v1600
    %2082 = vmatpush.bf16.msra.mxu0 %v1598
    %2083 = vmatpush.bf16.msra.mxu0 %v1596
    %2084 = vmatpush.bf16.msra.mxu0 %v1594
    %2085 = vmatmul.bf16.gmra.mxu0 %v1277
    %v2086 = vpop.f32.mrf.mxu0
    %v2087 = vadd.f32 %v1998, %v2086
    %v2088 = vpop.f32.mrf.mxu0
    %v2089 = vadd.f32 %v2000, %v2088
    %2090 = vmatmul.bf16.gmra.mxu0 %v1285
    %v2091 = vpop.f32.mrf.mxu0
    %v2092 = vadd.f32 %v2003, %v2091
    %v2093 = vpop.f32.mrf.mxu0
    %v2094 = vadd.f32 %v2005, %v2093
    %2095 = vmatmul.bf16.gmra.mxu0 %v1293
    %v2096 = vpop.f32.mrf.mxu0
    %v2097 = vadd.f32 %v2008, %v2096
    %v2098 = vpop.f32.mrf.mxu0
    %v2099 = vadd.f32 %v2010, %v2098
    %2100 = vmatmul.bf16.gmra.mxu0 %v1301
    %v2101 = vpop.f32.mrf.mxu0
    %v2102 = vadd.f32 %v2013, %v2101
    %v2103 = vpop.f32.mrf.mxu0
    %v2104 = vadd.f32 %v2015, %v2103
    %2105 = vmatmul.bf16.gmra.mxu0 %v1309
    %v2106 = vpop.f32.mrf.mxu0
    %v2107 = vadd.f32 %v2018, %v2106
    %v2108 = vpop.f32.mrf.mxu0
    %v2109 = vadd.f32 %v2020, %v2108
    %2110 = vmatmul.bf16.gmra.mxu0 %v1317
    %v2111 = vpop.f32.mrf.mxu0
    %v2112 = vadd.f32 %v2023, %v2111
    %v2113 = vpop.f32.mrf.mxu0
    %v2114 = vadd.f32 %v2025, %v2113
    %2115 = vmatmul.bf16.gmra.mxu0 %v1325
    %v2116 = vpop.f32.mrf.mxu0
    %v2117 = vadd.f32 %v2028, %v2116
    %v2118 = vpop.f32.mrf.mxu0
    %v2119 = vadd.f32 %v2030, %v2118
    %2120 = vmatmul.bf16.gmra.mxu0 %v1333
    %v2121 = vpop.f32.mrf.mxu0
    %v2122 = vadd.f32 %v2033, %v2121
    %v2123 = vpop.f32.mrf.mxu0
    %v2124 = vadd.f32 %v2035, %v2123
    %2125 = vmatmul.bf16.gmra.mxu0 %v1341
    %v2126 = vpop.f32.mrf.mxu0
    %v2127 = vadd.f32 %v2038, %v2126
    %v2128 = vpop.f32.mrf.mxu0
    %v2129 = vadd.f32 %v2040, %v2128
    %2130 = vmatmul.bf16.gmra.mxu0 %v1349
    %v2131 = vpop.f32.mrf.mxu0
    %v2132 = vadd.f32 %v2043, %v2131
    %v2133 = vpop.f32.mrf.mxu0
    %v2134 = vadd.f32 %v2045, %v2133
    %2135 = vmatmul.bf16.gmra.mxu0 %v1357
    %v2136 = vpop.f32.mrf.mxu0
    %v2137 = vadd.f32 %v2048, %v2136
    %v2138 = vpop.f32.mrf.mxu0
    %v2139 = vadd.f32 %v2050, %v2138
    %2140 = vmatmul.bf16.gmra.mxu0 %v1365
    %v2141 = vpop.f32.mrf.mxu0
    %v2142 = vadd.f32 %v2053, %v2141
    %v2143 = vpop.f32.mrf.mxu0
    %v2144 = vadd.f32 %v2055, %v2143
    %2145 = vmatmul.bf16.gmra.mxu0 %v1373
    %v2146 = vpop.f32.mrf.mxu0
    %v2147 = vadd.f32 %v2058, %v2146
    %v2148 = vpop.f32.mrf.mxu0
    %v2149 = vadd.f32 %v2060, %v2148
    %2150 = vmatmul.bf16.gmra.mxu0 %v1381
    %v2151 = vpop.f32.mrf.mxu0
    %v2152 = vadd.f32 %v2063, %v2151
    %v2153 = vpop.f32.mrf.mxu0
    %v2154 = vadd.f32 %v2065, %v2153
    %2155 = vmatmul.bf16.gmra.mxu0 %v1389
    %v2156 = vpop.f32.mrf.mxu0
    %v2157 = vadd.f32 %v2068, %v2156
    %v2158 = vpop.f32.mrf.mxu0
    %v2159 = vadd.f32 %v2070, %v2158
    %2160 = vmatmul.bf16.gmra.mxu0 %v1397
    %v2161 = vpop.f32.mrf.mxu0
    %v2162 = vadd.f32 %v2073, %v2161
    %v2163 = vpop.f32.mrf.mxu0
    %v2164 = vadd.f32 %v2075, %v2163
    %2165 = vdwg.mxu0
    %2166 = vmatpush.bf16.msra.mxu0 %v1624
    %2167 = vmatpush.bf16.msra.mxu0 %v1622
    %2168 = vmatpush.bf16.msra.mxu0 %v1620
    %2169 = vmatpush.bf16.msra.mxu0 %v1618
    %2170 = vmatpush.bf16.msra.mxu0 %v1616
    %2171 = vmatpush.bf16.msra.mxu0 %v1614
    %2172 = vmatpush.bf16.msra.mxu0 %v1612
    %2173 = vmatpush.bf16.msra.mxu0 %v1610
    %2174 = vmatmul.bf16.gmra.mxu0 %v1278
    %v2175 = vpop.f32.mrf.mxu0
    %v2176 = vadd.f32 %v2087, %v2175
    %v2177 = vpop.f32.mrf.mxu0
    %v2178 = vadd.f32 %v2089, %v2177
    %2179 = vmatmul.bf16.gmra.mxu0 %v1286
    %v2180 = vpop.f32.mrf.mxu0
    %v2181 = vadd.f32 %v2092, %v2180
    %v2182 = vpop.f32.mrf.mxu0
    %v2183 = vadd.f32 %v2094, %v2182
    %2184 = vmatmul.bf16.gmra.mxu0 %v1294
    %v2185 = vpop.f32.mrf.mxu0
    %v2186 = vadd.f32 %v2097, %v2185
    %v2187 = vpop.f32.mrf.mxu0
    %v2188 = vadd.f32 %v2099, %v2187
    %2189 = vmatmul.bf16.gmra.mxu0 %v1302
    %v2190 = vpop.f32.mrf.mxu0
    %v2191 = vadd.f32 %v2102, %v2190
    %v2192 = vpop.f32.mrf.mxu0
    %v2193 = vadd.f32 %v2104, %v2192
    %2194 = vmatmul.bf16.gmra.mxu0 %v1310
    %v2195 = vpop.f32.mrf.mxu0
    %v2196 = vadd.f32 %v2107, %v2195
    %v2197 = vpop.f32.mrf.mxu0
    %v2198 = vadd.f32 %v2109, %v2197
    %2199 = vmatmul.bf16.gmra.mxu0 %v1318
    %v2200 = vpop.f32.mrf.mxu0
    %v2201 = vadd.f32 %v2112, %v2200
    %v2202 = vpop.f32.mrf.mxu0
    %v2203 = vadd.f32 %v2114, %v2202
    %2204 = vmatmul.bf16.gmra.mxu0 %v1326
    %v2205 = vpop.f32.mrf.mxu0
    %v2206 = vadd.f32 %v2117, %v2205
    %v2207 = vpop.f32.mrf.mxu0
    %v2208 = vadd.f32 %v2119, %v2207
    %2209 = vmatmul.bf16.gmra.mxu0 %v1334
    %v2210 = vpop.f32.mrf.mxu0
    %v2211 = vadd.f32 %v2122, %v2210
    %v2212 = vpop.f32.mrf.mxu0
    %v2213 = vadd.f32 %v2124, %v2212
    %2214 = vmatmul.bf16.gmra.mxu0 %v1342
    %v2215 = vpop.f32.mrf.mxu0
    %v2216 = vadd.f32 %v2127, %v2215
    %v2217 = vpop.f32.mrf.mxu0
    %v2218 = vadd.f32 %v2129, %v2217
    %2219 = vmatmul.bf16.gmra.mxu0 %v1350
    %v2220 = vpop.f32.mrf.mxu0
    %v2221 = vadd.f32 %v2132, %v2220
    %v2222 = vpop.f32.mrf.mxu0
    %v2223 = vadd.f32 %v2134, %v2222
    %2224 = vmatmul.bf16.gmra.mxu0 %v1358
    %v2225 = vpop.f32.mrf.mxu0
    %v2226 = vadd.f32 %v2137, %v2225
    %v2227 = vpop.f32.mrf.mxu0
    %v2228 = vadd.f32 %v2139, %v2227
    %2229 = vmatmul.bf16.gmra.mxu0 %v1366
    %v2230 = vpop.f32.mrf.mxu0
    %v2231 = vadd.f32 %v2142, %v2230
    %v2232 = vpop.f32.mrf.mxu0
    %v2233 = vadd.f32 %v2144, %v2232
    %2234 = vmatmul.bf16.gmra.mxu0 %v1374
    %v2235 = vpop.f32.mrf.mxu0
    %v2236 = vadd.f32 %v2147, %v2235
    %v2237 = vpop.f32.mrf.mxu0
    %v2238 = vadd.f32 %v2149, %v2237
    %2239 = vmatmul.bf16.gmra.mxu0 %v1382
    %v2240 = vpop.f32.mrf.mxu0
    %v2241 = vadd.f32 %v2152, %v2240
    %v2242 = vpop.f32.mrf.mxu0
    %v2243 = vadd.f32 %v2154, %v2242
    %2244 = vmatmul.bf16.gmra.mxu0 %v1390
    %v2245 = vpop.f32.mrf.mxu0
    %v2246 = vadd.f32 %v2157, %v2245
    %v2247 = vpop.f32.mrf.mxu0
    %v2248 = vadd.f32 %v2159, %v2247
    %2249 = vmatmul.bf16.gmra.mxu0 %v1398
    %v2250 = vpop.f32.mrf.mxu0
    %v2251 = vadd.f32 %v2162, %v2250
    %v2252 = vpop.f32.mrf.mxu0
    %v2253 = vadd.f32 %v2164, %v2252
    %2254 = vdwg.mxu0
    %2255 = vmatpush.bf16.msra.mxu0 %v1640
    %2256 = vmatpush.bf16.msra.mxu0 %v1638
    %2257 = vmatpush.bf16.msra.mxu0 %v1636
    %2258 = vmatpush.bf16.msra.mxu0 %v1634
    %2259 = vmatpush.bf16.msra.mxu0 %v1632
    %2260 = vmatpush.bf16.msra.mxu0 %v1630
    %2261 = vmatpush.bf16.msra.mxu0 %v1628
    %2262 = vmatpush.bf16.msra.mxu0 %v1626
    %2263 = vmatmul.bf16.gmra.mxu0 %v1279
    %v2264 = vpop.f32.mrf.mxu0
    %v2265 = vadd.f32 %v2176, %v2264
    %v2266 = vpop.f32.mrf.mxu0
    %v2267 = vadd.f32 %v2178, %v2266
    %2268 = vmatmul.bf16.gmra.mxu0 %v1287
    %v2269 = vpop.f32.mrf.mxu0
    %v2270 = vadd.f32 %v2181, %v2269
    %v2271 = vpop.f32.mrf.mxu0
    %v2272 = vadd.f32 %v2183, %v2271
    %2273 = vmatmul.bf16.gmra.mxu0 %v1295
    %v2274 = vpop.f32.mrf.mxu0
    %v2275 = vadd.f32 %v2186, %v2274
    %v2276 = vpop.f32.mrf.mxu0
    %v2277 = vadd.f32 %v2188, %v2276
    %2278 = vmatmul.bf16.gmra.mxu0 %v1303
    %v2279 = vpop.f32.mrf.mxu0
    %v2280 = vadd.f32 %v2191, %v2279
    %v2281 = vpop.f32.mrf.mxu0
    %v2282 = vadd.f32 %v2193, %v2281
    %2283 = vmatmul.bf16.gmra.mxu0 %v1311
    %v2284 = vpop.f32.mrf.mxu0
    %v2285 = vadd.f32 %v2196, %v2284
    %v2286 = vpop.f32.mrf.mxu0
    %v2287 = vadd.f32 %v2198, %v2286
    %2288 = vmatmul.bf16.gmra.mxu0 %v1319
    %v2289 = vpop.f32.mrf.mxu0
    %v2290 = vadd.f32 %v2201, %v2289
    %v2291 = vpop.f32.mrf.mxu0
    %v2292 = vadd.f32 %v2203, %v2291
    %2293 = vmatmul.bf16.gmra.mxu0 %v1327
    %v2294 = vpop.f32.mrf.mxu0
    %v2295 = vadd.f32 %v2206, %v2294
    %v2296 = vpop.f32.mrf.mxu0
    %v2297 = vadd.f32 %v2208, %v2296
    %2298 = vmatmul.bf16.gmra.mxu0 %v1335
    %v2299 = vpop.f32.mrf.mxu0
    %v2300 = vadd.f32 %v2211, %v2299
    %v2301 = vpop.f32.mrf.mxu0
    %v2302 = vadd.f32 %v2213, %v2301
    %2303 = vmatmul.bf16.gmra.mxu0 %v1343
    %v2304 = vpop.f32.mrf.mxu0
    %v2305 = vadd.f32 %v2216, %v2304
    %v2306 = vpop.f32.mrf.mxu0
    %v2307 = vadd.f32 %v2218, %v2306
    %2308 = vmatmul.bf16.gmra.mxu0 %v1351
    %v2309 = vpop.f32.mrf.mxu0
    %v2310 = vadd.f32 %v2221, %v2309
    %v2311 = vpop.f32.mrf.mxu0
    %v2312 = vadd.f32 %v2223, %v2311
    %2313 = vmatmul.bf16.gmra.mxu0 %v1359
    %v2314 = vpop.f32.mrf.mxu0
    %v2315 = vadd.f32 %v2226, %v2314
    %v2316 = vpop.f32.mrf.mxu0
    %v2317 = vadd.f32 %v2228, %v2316
    %2318 = vmatmul.bf16.gmra.mxu0 %v1367
    %v2319 = vpop.f32.mrf.mxu0
    %v2320 = vadd.f32 %v2231, %v2319
    %v2321 = vpop.f32.mrf.mxu0
    %v2322 = vadd.f32 %v2233, %v2321
    %2323 = vmatmul.bf16.gmra.mxu0 %v1375
    %v2324 = vpop.f32.mrf.mxu0
    %v2325 = vadd.f32 %v2236, %v2324
    %v2326 = vpop.f32.mrf.mxu0
    %v2327 = vadd.f32 %v2238, %v2326
    %2328 = vmatmul.bf16.gmra.mxu0 %v1383
    %v2329 = vpop.f32.mrf.mxu0
    %v2330 = vadd.f32 %v2241, %v2329
    %v2331 = vpop.f32.mrf.mxu0
    %v2332 = vadd.f32 %v2243, %v2331
    %2333 = vmatmul.bf16.gmra.mxu0 %v1391
    %v2334 = vpop.f32.mrf.mxu0
    %v2335 = vadd.f32 %v2246, %v2334
    %v2336 = vpop.f32.mrf.mxu0
    %v2337 = vadd.f32 %v2248, %v2336
    %2338 = vmatmul.bf16.gmra.mxu0 %v1399
    %v2339 = vpop.f32.mrf.mxu0
    %v2340 = vadd.f32 %v2251, %v2339
    %v2341 = vpop.f32.mrf.mxu0
    %v2342 = vadd.f32 %v2253, %v2341
    %2343 = vdwg.mxu0
    %2344 = vmatpush.bf16.msra.mxu0 %v1656
    %2345 = vmatpush.bf16.msra.mxu0 %v1654
    %2346 = vmatpush.bf16.msra.mxu0 %v1652
    %2347 = vmatpush.bf16.msra.mxu0 %v1650
    %2348 = vmatpush.bf16.msra.mxu0 %v1648
    %2349 = vmatpush.bf16.msra.mxu0 %v1646
    %2350 = vmatpush.bf16.msra.mxu0 %v1644
    %2351 = vmatpush.bf16.msra.mxu0 %v1642
    %2352 = vmatmul.bf16.gmra.mxu0 %v1280
    %v2353 = vpop.f32.mrf.mxu0
    %v2354 = vadd.f32 %v2265, %v2353
    %v2355 = vpop.f32.mrf.mxu0
    %v2356 = vadd.f32 %v2267, %v2355
    %2357 = vmatmul.bf16.gmra.mxu0 %v1288
    %v2358 = vpop.f32.mrf.mxu0
    %v2359 = vadd.f32 %v2270, %v2358
    %v2360 = vpop.f32.mrf.mxu0
    %v2361 = vadd.f32 %v2272, %v2360
    %2362 = vmatmul.bf16.gmra.mxu0 %v1296
    %v2363 = vpop.f32.mrf.mxu0
    %v2364 = vadd.f32 %v2275, %v2363
    %v2365 = vpop.f32.mrf.mxu0
    %v2366 = vadd.f32 %v2277, %v2365
    %2367 = vmatmul.bf16.gmra.mxu0 %v1304
    %v2368 = vpop.f32.mrf.mxu0
    %v2369 = vadd.f32 %v2280, %v2368
    %v2370 = vpop.f32.mrf.mxu0
    %v2371 = vadd.f32 %v2282, %v2370
    %2372 = vmatmul.bf16.gmra.mxu0 %v1312
    %v2373 = vpop.f32.mrf.mxu0
    %v2374 = vadd.f32 %v2285, %v2373
    %v2375 = vpop.f32.mrf.mxu0
    %v2376 = vadd.f32 %v2287, %v2375
    %2377 = vmatmul.bf16.gmra.mxu0 %v1320
    %v2378 = vpop.f32.mrf.mxu0
    %v2379 = vadd.f32 %v2290, %v2378
    %v2380 = vpop.f32.mrf.mxu0
    %v2381 = vadd.f32 %v2292, %v2380
    %2382 = vmatmul.bf16.gmra.mxu0 %v1328
    %v2383 = vpop.f32.mrf.mxu0
    %v2384 = vadd.f32 %v2295, %v2383
    %v2385 = vpop.f32.mrf.mxu0
    %v2386 = vadd.f32 %v2297, %v2385
    %2387 = vmatmul.bf16.gmra.mxu0 %v1336
    %v2388 = vpop.f32.mrf.mxu0
    %v2389 = vadd.f32 %v2300, %v2388
    %v2390 = vpop.f32.mrf.mxu0
    %v2391 = vadd.f32 %v2302, %v2390
    %2392 = vmatmul.bf16.gmra.mxu0 %v1344
    %v2393 = vpop.f32.mrf.mxu0
    %v2394 = vadd.f32 %v2305, %v2393
    %v2395 = vpop.f32.mrf.mxu0
    %v2396 = vadd.f32 %v2307, %v2395
    %2397 = vmatmul.bf16.gmra.mxu0 %v1352
    %v2398 = vpop.f32.mrf.mxu0
    %v2399 = vadd.f32 %v2310, %v2398
    %v2400 = vpop.f32.mrf.mxu0
    %v2401 = vadd.f32 %v2312, %v2400
    %2402 = vmatmul.bf16.gmra.mxu0 %v1360
    %v2403 = vpop.f32.mrf.mxu0
    %v2404 = vadd.f32 %v2315, %v2403
    %v2405 = vpop.f32.mrf.mxu0
    %v2406 = vadd.f32 %v2317, %v2405
    %2407 = vmatmul.bf16.gmra.mxu0 %v1368
    %v2408 = vpop.f32.mrf.mxu0
    %v2409 = vadd.f32 %v2320, %v2408
    %v2410 = vpop.f32.mrf.mxu0
    %v2411 = vadd.f32 %v2322, %v2410
    %2412 = vmatmul.bf16.gmra.mxu0 %v1376
    %v2413 = vpop.f32.mrf.mxu0
    %v2414 = vadd.f32 %v2325, %v2413
    %v2415 = vpop.f32.mrf.mxu0
    %v2416 = vadd.f32 %v2327, %v2415
    %2417 = vmatmul.bf16.gmra.mxu0 %v1384
    %v2418 = vpop.f32.mrf.mxu0
    %v2419 = vadd.f32 %v2330, %v2418
    %v2420 = vpop.f32.mrf.mxu0
    %v2421 = vadd.f32 %v2332, %v2420
    %2422 = vmatmul.bf16.gmra.mxu0 %v1392
    %v2423 = vpop.f32.mrf.mxu0
    %v2424 = vadd.f32 %v2335, %v2423
    %v2425 = vpop.f32.mrf.mxu0
    %v2426 = vadd.f32 %v2337, %v2425
    %2427 = vmatmul.bf16.gmra.mxu0 %v1400
    %v2428 = vpop.f32.mrf.mxu0
    %v2429 = vadd.f32 %v2340, %v2428
    %v2430 = vpop.f32.mrf.mxu0
    %v2431 = vadd.f32 %v2342, %v2430
    %2432 = vdwg.mxu0
    %v2433 = vld [vmem:[#allocation5] sm:$0xff]
    %v2434 = vld [vmem:[#allocation5 + $0x8] sm:$0xff]
    %v2435 = vld [vmem:[#allocation5 + $0x10] sm:$0xff]
    %v2436 = vld [vmem:[#allocation5 + $0x18] sm:$0xff]
    %v2437 = vld [vmem:[#allocation5 + $0x20] sm:$0xff]
    %v2438 = vld [vmem:[#allocation5 + $0x28] sm:$0xff]
    %v2439 = vld [vmem:[#allocation5 + $0x30] sm:$0xff]
    %v2440 = vld [vmem:[#allocation5 + $0x38] sm:$0xff]
    %v2441 = vld [vmem:[#allocation5 + $0x40] sm:$0xff]
    %v2442 = vld [vmem:[#allocation5 + $0x48] sm:$0xff]
    %v2443 = vld [vmem:[#allocation5 + $0x50] sm:$0xff]
    %v2444 = vld [vmem:[#allocation5 + $0x58] sm:$0xff]
    %v2445 = vld [vmem:[#allocation5 + $0x60] sm:$0xff]
    %v2446 = vld [vmem:[#allocation5 + $0x68] sm:$0xff]
    %v2447 = vld [vmem:[#allocation5 + $0x70] sm:$0xff]
    %v2448 = vld [vmem:[#allocation5 + $0x78] sm:$0xff]
    %v2449 = vld [vmem:[#allocation5 + $0x80] sm:$0xff]
    %v2450 = vld [vmem:[#allocation5 + $0x88] sm:$0xff]
    %v2451 = vld [vmem:[#allocation5 + $0x90] sm:$0xff]
    %v2452 = vld [vmem:[#allocation5 + $0x98] sm:$0xff]
    %v2453 = vld [vmem:[#allocation5 + $0xa0] sm:$0xff]
    %v2454 = vld [vmem:[#allocation5 + $0xa8] sm:$0xff]
    %v2455 = vld [vmem:[#allocation5 + $0xb0] sm:$0xff]
    %v2456 = vld [vmem:[#allocation5 + $0xb8] sm:$0xff]
    %v2457 = vld [vmem:[#allocation5 + $0xc0] sm:$0xff]
    %v2458 = vld [vmem:[#allocation5 + $0xc8] sm:$0xff]
    %v2459 = vld [vmem:[#allocation5 + $0xd0] sm:$0xff]
    %v2460 = vld [vmem:[#allocation5 + $0xd8] sm:$0xff]
    %v2461 = vld [vmem:[#allocation5 + $0xe0] sm:$0xff]
    %v2462 = vld [vmem:[#allocation5 + $0xe8] sm:$0xff]
    %v2463 = vld [vmem:[#allocation5 + $0xf0] sm:$0xff]
    %v2464 = vld [vmem:[#allocation5 + $0xf8] sm:$0xff]
    %v2465 = vld [vmem:[#allocation5 + $0x100] sm:$0xff]
    %v2466 = vld [vmem:[#allocation5 + $0x108] sm:$0xff]
    %v2467 = vld [vmem:[#allocation5 + $0x110] sm:$0xff]
    %v2468 = vld [vmem:[#allocation5 + $0x118] sm:$0xff]
    %v2469 = vld [vmem:[#allocation5 + $0x120] sm:$0xff]
    %v2470 = vld [vmem:[#allocation5 + $0x128] sm:$0xff]
    %v2471 = vld [vmem:[#allocation5 + $0x130] sm:$0xff]
    %v2472 = vld [vmem:[#allocation5 + $0x138] sm:$0xff]
    %v2473 = vld [vmem:[#allocation5 + $0x140] sm:$0xff]
    %v2474 = vld [vmem:[#allocation5 + $0x148] sm:$0xff]
    %v2475 = vld [vmem:[#allocation5 + $0x150] sm:$0xff]
    %v2476 = vld [vmem:[#allocation5 + $0x158] sm:$0xff]
    %v2477 = vld [vmem:[#allocation5 + $0x160] sm:$0xff]
    %v2478 = vld [vmem:[#allocation5 + $0x168] sm:$0xff]
    %v2479 = vld [vmem:[#allocation5 + $0x170] sm:$0xff]
    %v2480 = vld [vmem:[#allocation5 + $0x178] sm:$0xff]
    %v2481 = vld [vmem:[#allocation5 + $0x180] sm:$0xff]
    %v2482 = vld [vmem:[#allocation5 + $0x188] sm:$0xff]
    %v2483 = vld [vmem:[#allocation5 + $0x190] sm:$0xff]
    %v2484 = vld [vmem:[#allocation5 + $0x198] sm:$0xff]
    %v2485 = vld [vmem:[#allocation5 + $0x1a0] sm:$0xff]
    %v2486 = vld [vmem:[#allocation5 + $0x1a8] sm:$0xff]
    %v2487 = vld [vmem:[#allocation5 + $0x1b0] sm:$0xff]
    %v2488 = vld [vmem:[#allocation5 + $0x1b8] sm:$0xff]
    %v2489 = vld [vmem:[#allocation5 + $0x1c0] sm:$0xff]
    %v2490 = vld [vmem:[#allocation5 + $0x1c8] sm:$0xff]
    %v2491 = vld [vmem:[#allocation5 + $0x1d0] sm:$0xff]
    %v2492 = vld [vmem:[#allocation5 + $0x1d8] sm:$0xff]
    %v2493 = vld [vmem:[#allocation5 + $0x1e0] sm:$0xff]
    %v2494 = vld [vmem:[#allocation5 + $0x1e8] sm:$0xff]
    %v2495 = vld [vmem:[#allocation5 + $0x1f0] sm:$0xff]
    %v2496 = vld [vmem:[#allocation5 + $0x1f8] sm:$0xff]
    %v2497 = vld [vmem:[#allocation5 + $0x200] sm:$0xff]
    %v2498 = vld [vmem:[#allocation5 + $0x208] sm:$0xff]
    %v2499 = vld [vmem:[#allocation5 + $0x210] sm:$0xff]
    %v2500 = vld [vmem:[#allocation5 + $0x218] sm:$0xff]
    %v2501 = vld [vmem:[#allocation5 + $0x220] sm:$0xff]
    %v2502 = vld [vmem:[#allocation5 + $0x228] sm:$0xff]
    %v2503 = vld [vmem:[#allocation5 + $0x230] sm:$0xff]
    %v2504 = vld [vmem:[#allocation5 + $0x238] sm:$0xff]
    %v2505 = vld [vmem:[#allocation5 + $0x240] sm:$0xff]
    %v2506 = vld [vmem:[#allocation5 + $0x248] sm:$0xff]
    %v2507 = vld [vmem:[#allocation5 + $0x250] sm:$0xff]
    %v2508 = vld [vmem:[#allocation5 + $0x258] sm:$0xff]
    %v2509 = vld [vmem:[#allocation5 + $0x260] sm:$0xff]
    %v2510 = vld [vmem:[#allocation5 + $0x268] sm:$0xff]
    %v2511 = vld [vmem:[#allocation5 + $0x270] sm:$0xff]
    %v2512 = vld [vmem:[#allocation5 + $0x278] sm:$0xff]
    %v2513 = vld [vmem:[#allocation5 + $0x280] sm:$0xff]
    %v2514 = vld [vmem:[#allocation5 + $0x288] sm:$0xff]
    %v2515 = vld [vmem:[#allocation5 + $0x290] sm:$0xff]
    %v2516 = vld [vmem:[#allocation5 + $0x298] sm:$0xff]
    %v2517 = vld [vmem:[#allocation5 + $0x2a0] sm:$0xff]
    %v2518 = vld [vmem:[#allocation5 + $0x2a8] sm:$0xff]
    %v2519 = vld [vmem:[#allocation5 + $0x2b0] sm:$0xff]
    %v2520 = vld [vmem:[#allocation5 + $0x2b8] sm:$0xff]
    %v2521 = vld [vmem:[#allocation5 + $0x2c0] sm:$0xff]
    %v2522 = vld [vmem:[#allocation5 + $0x2c8] sm:$0xff]
    %v2523 = vld [vmem:[#allocation5 + $0x2d0] sm:$0xff]
    %v2524 = vld [vmem:[#allocation5 + $0x2d8] sm:$0xff]
    %v2525 = vld [vmem:[#allocation5 + $0x2e0] sm:$0xff]
    %v2526 = vld [vmem:[#allocation5 + $0x2e8] sm:$0xff]
    %v2527 = vld [vmem:[#allocation5 + $0x2f0] sm:$0xff]
    %v2528 = vld [vmem:[#allocation5 + $0x2f8] sm:$0xff]
    %v2529 = vld [vmem:[#allocation5 + $0x300] sm:$0xff]
    %v2530 = vld [vmem:[#allocation5 + $0x308] sm:$0xff]
    %v2531 = vld [vmem:[#allocation5 + $0x310] sm:$0xff]
    %v2532 = vld [vmem:[#allocation5 + $0x318] sm:$0xff]
    %v2533 = vld [vmem:[#allocation5 + $0x320] sm:$0xff]
    %v2534 = vld [vmem:[#allocation5 + $0x328] sm:$0xff]
    %v2535 = vld [vmem:[#allocation5 + $0x330] sm:$0xff]
    %v2536 = vld [vmem:[#allocation5 + $0x338] sm:$0xff]
    %v2537 = vld [vmem:[#allocation5 + $0x340] sm:$0xff]
    %v2538 = vld [vmem:[#allocation5 + $0x348] sm:$0xff]
    %v2539 = vld [vmem:[#allocation5 + $0x350] sm:$0xff]
    %v2540 = vld [vmem:[#allocation5 + $0x358] sm:$0xff]
    %v2541 = vld [vmem:[#allocation5 + $0x360] sm:$0xff]
    %v2542 = vld [vmem:[#allocation5 + $0x368] sm:$0xff]
    %v2543 = vld [vmem:[#allocation5 + $0x370] sm:$0xff]
    %v2544 = vld [vmem:[#allocation5 + $0x378] sm:$0xff]
    %v2545 = vld [vmem:[#allocation5 + $0x380] sm:$0xff]
    %v2546 = vld [vmem:[#allocation5 + $0x388] sm:$0xff]
    %v2547 = vld [vmem:[#allocation5 + $0x390] sm:$0xff]
    %v2548 = vld [vmem:[#allocation5 + $0x398] sm:$0xff]
    %v2549 = vld [vmem:[#allocation5 + $0x3a0] sm:$0xff]
    %v2550 = vld [vmem:[#allocation5 + $0x3a8] sm:$0xff]
    %v2551 = vld [vmem:[#allocation5 + $0x3b0] sm:$0xff]
    %v2552 = vld [vmem:[#allocation5 + $0x3b8] sm:$0xff]
    %v2553 = vld [vmem:[#allocation5 + $0x3c0] sm:$0xff]
    %v2554 = vld [vmem:[#allocation5 + $0x3c8] sm:$0xff]
    %v2555 = vld [vmem:[#allocation5 + $0x3d0] sm:$0xff]
    %v2556 = vld [vmem:[#allocation5 + $0x3d8] sm:$0xff]
    %v2557 = vld [vmem:[#allocation5 + $0x3e0] sm:$0xff]
    %v2558 = vld [vmem:[#allocation5 + $0x3e8] sm:$0xff]
    %v2559 = vld [vmem:[#allocation5 + $0x3f0] sm:$0xff]
    %v2560 = vld [vmem:[#allocation5 + $0x3f8] sm:$0xff]
    %v2689 = vunpack.c.l.b16 %v2433
    %v2690 = vunpack.c.h.b16 %v2433
    %v2691 = vunpack.c.l.b16 %v2434
    %v2692 = vunpack.c.h.b16 %v2434
    %v2693 = vunpack.c.l.b16 %v2435
    %v2694 = vunpack.c.h.b16 %v2435
    %v2695 = vunpack.c.l.b16 %v2436
    %v2696 = vunpack.c.h.b16 %v2436
    %v2697 = vunpack.c.l.b16 %v2437
    %v2698 = vunpack.c.h.b16 %v2437
    %v2699 = vunpack.c.l.b16 %v2438
    %v2700 = vunpack.c.h.b16 %v2438
    %v2701 = vunpack.c.l.b16 %v2439
    %v2702 = vunpack.c.h.b16 %v2439
    %v2703 = vunpack.c.l.b16 %v2440
    %v2704 = vunpack.c.h.b16 %v2440
    %v2705 = vunpack.c.l.b16 %v2441
    %v2706 = vunpack.c.h.b16 %v2441
    %v2707 = vunpack.c.l.b16 %v2442
    %v2708 = vunpack.c.h.b16 %v2442
    %v2709 = vunpack.c.l.b16 %v2443
    %v2710 = vunpack.c.h.b16 %v2443
    %v2711 = vunpack.c.l.b16 %v2444
    %v2712 = vunpack.c.h.b16 %v2444
    %v2713 = vunpack.c.l.b16 %v2445
    %v2714 = vunpack.c.h.b16 %v2445
    %v2715 = vunpack.c.l.b16 %v2446
    %v2716 = vunpack.c.h.b16 %v2446
    %v2717 = vunpack.c.l.b16 %v2447
    %v2718 = vunpack.c.h.b16 %v2447
    %v2719 = vunpack.c.l.b16 %v2448
    %v2720 = vunpack.c.h.b16 %v2448
    %v2721 = vunpack.c.l.b16 %v2449
    %v2722 = vunpack.c.h.b16 %v2449
    %v2723 = vunpack.c.l.b16 %v2450
    %v2724 = vunpack.c.h.b16 %v2450
    %v2725 = vunpack.c.l.b16 %v2451
    %v2726 = vunpack.c.h.b16 %v2451
    %v2727 = vunpack.c.l.b16 %v2452
    %v2728 = vunpack.c.h.b16 %v2452
    %v2729 = vunpack.c.l.b16 %v2453
    %v2730 = vunpack.c.h.b16 %v2453
    %v2731 = vunpack.c.l.b16 %v2454
    %v2732 = vunpack.c.h.b16 %v2454
    %v2733 = vunpack.c.l.b16 %v2455
    %v2734 = vunpack.c.h.b16 %v2455
    %v2735 = vunpack.c.l.b16 %v2456
    %v2736 = vunpack.c.h.b16 %v2456
    %v2737 = vunpack.c.l.b16 %v2457
    %v2738 = vunpack.c.h.b16 %v2457
    %v2739 = vunpack.c.l.b16 %v2458
    %v2740 = vunpack.c.h.b16 %v2458
    %v2741 = vunpack.c.l.b16 %v2459
    %v2742 = vunpack.c.h.b16 %v2459
    %v2743 = vunpack.c.l.b16 %v2460
    %v2744 = vunpack.c.h.b16 %v2460
    %v2745 = vunpack.c.l.b16 %v2461
    %v2746 = vunpack.c.h.b16 %v2461
    %v2747 = vunpack.c.l.b16 %v2462
    %v2748 = vunpack.c.h.b16 %v2462
    %v2749 = vunpack.c.l.b16 %v2463
    %v2750 = vunpack.c.h.b16 %v2463
    %v2751 = vunpack.c.l.b16 %v2464
    %v2752 = vunpack.c.h.b16 %v2464
    %v2753 = vunpack.c.l.b16 %v2465
    %v2754 = vunpack.c.h.b16 %v2465
    %v2755 = vunpack.c.l.b16 %v2466
    %v2756 = vunpack.c.h.b16 %v2466
    %v2757 = vunpack.c.l.b16 %v2467
    %v2758 = vunpack.c.h.b16 %v2467
    %v2759 = vunpack.c.l.b16 %v2468
    %v2760 = vunpack.c.h.b16 %v2468
    %v2761 = vunpack.c.l.b16 %v2469
    %v2762 = vunpack.c.h.b16 %v2469
    %v2763 = vunpack.c.l.b16 %v2470
    %v2764 = vunpack.c.h.b16 %v2470
    %v2765 = vunpack.c.l.b16 %v2471
    %v2766 = vunpack.c.h.b16 %v2471
    %v2767 = vunpack.c.l.b16 %v2472
    %v2768 = vunpack.c.h.b16 %v2472
    %v2769 = vunpack.c.l.b16 %v2473
    %v2770 = vunpack.c.h.b16 %v2473
    %v2771 = vunpack.c.l.b16 %v2474
    %v2772 = vunpack.c.h.b16 %v2474
    %v2773 = vunpack.c.l.b16 %v2475
    %v2774 = vunpack.c.h.b16 %v2475
    %v2775 = vunpack.c.l.b16 %v2476
    %v2776 = vunpack.c.h.b16 %v2476
    %v2777 = vunpack.c.l.b16 %v2477
    %v2778 = vunpack.c.h.b16 %v2477
    %v2779 = vunpack.c.l.b16 %v2478
    %v2780 = vunpack.c.h.b16 %v2478
    %v2781 = vunpack.c.l.b16 %v2479
    %v2782 = vunpack.c.h.b16 %v2479
    %v2783 = vunpack.c.l.b16 %v2480
    %v2784 = vunpack.c.h.b16 %v2480
    %v2785 = vunpack.c.l.b16 %v2481
    %v2786 = vunpack.c.h.b16 %v2481
    %v2787 = vunpack.c.l.b16 %v2482
    %v2788 = vunpack.c.h.b16 %v2482
    %v2789 = vunpack.c.l.b16 %v2483
    %v2790 = vunpack.c.h.b16 %v2483
    %v2791 = vunpack.c.l.b16 %v2484
    %v2792 = vunpack.c.h.b16 %v2484
    %v2793 = vunpack.c.l.b16 %v2485
    %v2794 = vunpack.c.h.b16 %v2485
    %v2795 = vunpack.c.l.b16 %v2486
    %v2796 = vunpack.c.h.b16 %v2486
    %v2797 = vunpack.c.l.b16 %v2487
    %v2798 = vunpack.c.h.b16 %v2487
    %v2799 = vunpack.c.l.b16 %v2488
    %v2800 = vunpack.c.h.b16 %v2488
    %v2801 = vunpack.c.l.b16 %v2489
    %v2802 = vunpack.c.h.b16 %v2489
    %v2803 = vunpack.c.l.b16 %v2490
    %v2804 = vunpack.c.h.b16 %v2490
    %v2805 = vunpack.c.l.b16 %v2491
    %v2806 = vunpack.c.h.b16 %v2491
    %v2807 = vunpack.c.l.b16 %v2492
    %v2808 = vunpack.c.h.b16 %v2492
    %v2809 = vunpack.c.l.b16 %v2493
    %v2810 = vunpack.c.h.b16 %v2493
    %v2811 = vunpack.c.l.b16 %v2494
    %v2812 = vunpack.c.h.b16 %v2494
    %v2813 = vunpack.c.l.b16 %v2495
    %v2814 = vunpack.c.h.b16 %v2495
    %v2815 = vunpack.c.l.b16 %v2496
    %v2816 = vunpack.c.h.b16 %v2496
    %v2817 = vunpack.c.l.b16 %v2497
    %v2818 = vunpack.c.h.b16 %v2497
    %v2819 = vunpack.c.l.b16 %v2498
    %v2820 = vunpack.c.h.b16 %v2498
    %v2821 = vunpack.c.l.b16 %v2499
    %v2822 = vunpack.c.h.b16 %v2499
    %v2823 = vunpack.c.l.b16 %v2500
    %v2824 = vunpack.c.h.b16 %v2500
    %v2825 = vunpack.c.l.b16 %v2501
    %v2826 = vunpack.c.h.b16 %v2501
    %v2827 = vunpack.c.l.b16 %v2502
    %v2828 = vunpack.c.h.b16 %v2502
    %v2829 = vunpack.c.l.b16 %v2503
    %v2830 = vunpack.c.h.b16 %v2503
    %v2831 = vunpack.c.l.b16 %v2504
    %v2832 = vunpack.c.h.b16 %v2504
    %v2833 = vunpack.c.l.b16 %v2505
    %v2834 = vunpack.c.h.b16 %v2505
    %v2835 = vunpack.c.l.b16 %v2506
    %v2836 = vunpack.c.h.b16 %v2506
    %v2837 = vunpack.c.l.b16 %v2507
    %v2838 = vunpack.c.h.b16 %v2507
    %v2839 = vunpack.c.l.b16 %v2508
    %v2840 = vunpack.c.h.b16 %v2508
    %v2841 = vunpack.c.l.b16 %v2509
    %v2842 = vunpack.c.h.b16 %v2509
    %v2843 = vunpack.c.l.b16 %v2510
    %v2844 = vunpack.c.h.b16 %v2510
    %v2845 = vunpack.c.l.b16 %v2511
    %v2846 = vunpack.c.h.b16 %v2511
    %v2847 = vunpack.c.l.b16 %v2512
    %v2848 = vunpack.c.h.b16 %v2512
    %v2849 = vunpack.c.l.b16 %v2513
    %v2850 = vunpack.c.h.b16 %v2513
    %v2851 = vunpack.c.l.b16 %v2514
    %v2852 = vunpack.c.h.b16 %v2514
    %v2853 = vunpack.c.l.b16 %v2515
    %v2854 = vunpack.c.h.b16 %v2515
    %v2855 = vunpack.c.l.b16 %v2516
    %v2856 = vunpack.c.h.b16 %v2516
    %v2857 = vunpack.c.l.b16 %v2517
    %v2858 = vunpack.c.h.b16 %v2517
    %v2859 = vunpack.c.l.b16 %v2518
    %v2860 = vunpack.c.h.b16 %v2518
    %v2861 = vunpack.c.l.b16 %v2519
    %v2862 = vunpack.c.h.b16 %v2519
    %v2863 = vunpack.c.l.b16 %v2520
    %v2864 = vunpack.c.h.b16 %v2520
    %v2865 = vunpack.c.l.b16 %v2521
    %v2866 = vunpack.c.h.b16 %v2521
    %v2867 = vunpack.c.l.b16 %v2522
    %v2868 = vunpack.c.h.b16 %v2522
    %v2869 = vunpack.c.l.b16 %v2523
    %v2870 = vunpack.c.h.b16 %v2523
    %v2871 = vunpack.c.l.b16 %v2524
    %v2872 = vunpack.c.h.b16 %v2524
    %v2873 = vunpack.c.l.b16 %v2525
    %v2874 = vunpack.c.h.b16 %v2525
    %v2875 = vunpack.c.l.b16 %v2526
    %v2876 = vunpack.c.h.b16 %v2526
    %v2877 = vunpack.c.l.b16 %v2527
    %v2878 = vunpack.c.h.b16 %v2527
    %v2879 = vunpack.c.l.b16 %v2528
    %v2880 = vunpack.c.h.b16 %v2528
    %v2881 = vunpack.c.l.b16 %v2529
    %v2882 = vunpack.c.h.b16 %v2529
    %v2883 = vunpack.c.l.b16 %v2530
    %v2884 = vunpack.c.h.b16 %v2530
    %v2885 = vunpack.c.l.b16 %v2531
    %v2886 = vunpack.c.h.b16 %v2531
    %v2887 = vunpack.c.l.b16 %v2532
    %v2888 = vunpack.c.h.b16 %v2532
    %v2889 = vunpack.c.l.b16 %v2533
    %v2890 = vunpack.c.h.b16 %v2533
    %v2891 = vunpack.c.l.b16 %v2534
    %v2892 = vunpack.c.h.b16 %v2534
    %v2893 = vunpack.c.l.b16 %v2535
    %v2894 = vunpack.c.h.b16 %v2535
    %v2895 = vunpack.c.l.b16 %v2536
    %v2896 = vunpack.c.h.b16 %v2536
    %v2897 = vunpack.c.l.b16 %v2537
    %v2898 = vunpack.c.h.b16 %v2537
    %v2899 = vunpack.c.l.b16 %v2538
    %v2900 = vunpack.c.h.b16 %v2538
    %v2901 = vunpack.c.l.b16 %v2539
    %v2902 = vunpack.c.h.b16 %v2539
    %v2903 = vunpack.c.l.b16 %v2540
    %v2904 = vunpack.c.h.b16 %v2540
    %v2905 = vunpack.c.l.b16 %v2541
    %v2906 = vunpack.c.h.b16 %v2541
    %v2907 = vunpack.c.l.b16 %v2542
    %v2908 = vunpack.c.h.b16 %v2542
    %v2909 = vunpack.c.l.b16 %v2543
    %v2910 = vunpack.c.h.b16 %v2543
    %v2911 = vunpack.c.l.b16 %v2544
    %v2912 = vunpack.c.h.b16 %v2544
    %v2913 = vunpack.c.l.b16 %v2545
    %v2914 = vunpack.c.h.b16 %v2545
    %v2915 = vunpack.c.l.b16 %v2546
    %v2916 = vunpack.c.h.b16 %v2546
    %v2917 = vunpack.c.l.b16 %v2547
    %v2918 = vunpack.c.h.b16 %v2547
    %v2919 = vunpack.c.l.b16 %v2548
    %v2920 = vunpack.c.h.b16 %v2548
    %v2921 = vunpack.c.l.b16 %v2549
    %v2922 = vunpack.c.h.b16 %v2549
    %v2923 = vunpack.c.l.b16 %v2550
    %v2924 = vunpack.c.h.b16 %v2550
    %v2925 = vunpack.c.l.b16 %v2551
    %v2926 = vunpack.c.h.b16 %v2551
    %v2927 = vunpack.c.l.b16 %v2552
    %v2928 = vunpack.c.h.b16 %v2552
    %v2929 = vunpack.c.l.b16 %v2553
    %v2930 = vunpack.c.h.b16 %v2553
    %v2931 = vunpack.c.l.b16 %v2554
    %v2932 = vunpack.c.h.b16 %v2554
    %v2933 = vunpack.c.l.b16 %v2555
    %v2934 = vunpack.c.h.b16 %v2555
    %v2935 = vunpack.c.l.b16 %v2556
    %v2936 = vunpack.c.h.b16 %v2556
    %v2937 = vunpack.c.l.b16 %v2557
    %v2938 = vunpack.c.h.b16 %v2557
    %v2939 = vunpack.c.l.b16 %v2558
    %v2940 = vunpack.c.h.b16 %v2558
    %v2941 = vunpack.c.l.b16 %v2559
    %v2942 = vunpack.c.h.b16 %v2559
    %v2943 = vunpack.c.l.b16 %v2560
    %v2944 = vunpack.c.h.b16 %v2560
    %v2945 = vpack.c.b16 %v2697, %v2689
    %v2946 = vpack.c.b16 %v2698, %v2690
    %v2947 = vpack.c.b16 %v2699, %v2691
    %v2948 = vpack.c.b16 %v2700, %v2692
    %v2949 = vpack.c.b16 %v2701, %v2693
    %v2950 = vpack.c.b16 %v2702, %v2694
    %v2951 = vpack.c.b16 %v2703, %v2695
    %v2952 = vpack.c.b16 %v2704, %v2696
    %v2953 = vpack.c.b16 %v2713, %v2705
    %v2954 = vpack.c.b16 %v2714, %v2706
    %v2955 = vpack.c.b16 %v2715, %v2707
    %v2956 = vpack.c.b16 %v2716, %v2708
    %v2957 = vpack.c.b16 %v2717, %v2709
    %v2958 = vpack.c.b16 %v2718, %v2710
    %v2959 = vpack.c.b16 %v2719, %v2711
    %v2960 = vpack.c.b16 %v2720, %v2712
    %v2961 = vpack.c.b16 %v2729, %v2721
    %v2962 = vpack.c.b16 %v2730, %v2722
    %v2963 = vpack.c.b16 %v2731, %v2723
    %v2964 = vpack.c.b16 %v2732, %v2724
    %v2965 = vpack.c.b16 %v2733, %v2725
    %v2966 = vpack.c.b16 %v2734, %v2726
    %v2967 = vpack.c.b16 %v2735, %v2727
    %v2968 = vpack.c.b16 %v2736, %v2728
    %v2969 = vpack.c.b16 %v2745, %v2737
    %v2970 = vpack.c.b16 %v2746, %v2738
    %v2971 = vpack.c.b16 %v2747, %v2739
    %v2972 = vpack.c.b16 %v2748, %v2740
    %v2973 = vpack.c.b16 %v2749, %v2741
    %v2974 = vpack.c.b16 %v2750, %v2742
    %v2975 = vpack.c.b16 %v2751, %v2743
    %v2976 = vpack.c.b16 %v2752, %v2744
    %v2977 = vpack.c.b16 %v2761, %v2753
    %v2978 = vpack.c.b16 %v2762, %v2754
    %v2979 = vpack.c.b16 %v2763, %v2755
    %v2980 = vpack.c.b16 %v2764, %v2756
    %v2981 = vpack.c.b16 %v2765, %v2757
    %v2982 = vpack.c.b16 %v2766, %v2758
    %v2983 = vpack.c.b16 %v2767, %v2759
    %v2984 = vpack.c.b16 %v2768, %v2760
    %v2985 = vpack.c.b16 %v2777, %v2769
    %v2986 = vpack.c.b16 %v2778, %v2770
    %v2987 = vpack.c.b16 %v2779, %v2771
    %v2988 = vpack.c.b16 %v2780, %v2772
    %v2989 = vpack.c.b16 %v2781, %v2773
    %v2990 = vpack.c.b16 %v2782, %v2774
    %v2991 = vpack.c.b16 %v2783, %v2775
    %v2992 = vpack.c.b16 %v2784, %v2776
    %v2993 = vpack.c.b16 %v2793, %v2785
    %v2994 = vpack.c.b16 %v2794, %v2786
    %v2995 = vpack.c.b16 %v2795, %v2787
    %v2996 = vpack.c.b16 %v2796, %v2788
    %v2997 = vpack.c.b16 %v2797, %v2789
    %v2998 = vpack.c.b16 %v2798, %v2790
    %v2999 = vpack.c.b16 %v2799, %v2791
    %v3000 = vpack.c.b16 %v2800, %v2792
    %v3001 = vpack.c.b16 %v2809, %v2801
    %v3002 = vpack.c.b16 %v2810, %v2802
    %v3003 = vpack.c.b16 %v2811, %v2803
    %v3004 = vpack.c.b16 %v2812, %v2804
    %v3005 = vpack.c.b16 %v2813, %v2805
    %v3006 = vpack.c.b16 %v2814, %v2806
    %v3007 = vpack.c.b16 %v2815, %v2807
    %v3008 = vpack.c.b16 %v2816, %v2808
    %v3009 = vpack.c.b16 %v2825, %v2817
    %v3010 = vpack.c.b16 %v2826, %v2818
    %v3011 = vpack.c.b16 %v2827, %v2819
    %v3012 = vpack.c.b16 %v2828, %v2820
    %v3013 = vpack.c.b16 %v2829, %v2821
    %v3014 = vpack.c.b16 %v2830, %v2822
    %v3015 = vpack.c.b16 %v2831, %v2823
    %v3016 = vpack.c.b16 %v2832, %v2824
    %v3017 = vpack.c.b16 %v2841, %v2833
    %v3018 = vpack.c.b16 %v2842, %v2834
    %v3019 = vpack.c.b16 %v2843, %v2835
    %v3020 = vpack.c.b16 %v2844, %v2836
    %v3021 = vpack.c.b16 %v2845, %v2837
    %v3022 = vpack.c.b16 %v2846, %v2838
    %v3023 = vpack.c.b16 %v2847, %v2839
    %v3024 = vpack.c.b16 %v2848, %v2840
    %v3025 = vpack.c.b16 %v2857, %v2849
    %v3026 = vpack.c.b16 %v2858, %v2850
    %v3027 = vpack.c.b16 %v2859, %v2851
    %v3028 = vpack.c.b16 %v2860, %v2852
    %v3029 = vpack.c.b16 %v2861, %v2853
    %v3030 = vpack.c.b16 %v2862, %v2854
    %v3031 = vpack.c.b16 %v2863, %v2855
    %v3032 = vpack.c.b16 %v2864, %v2856
    %v3033 = vpack.c.b16 %v2873, %v2865
    %v3034 = vpack.c.b16 %v2874, %v2866
    %v3035 = vpack.c.b16 %v2875, %v2867
    %v3036 = vpack.c.b16 %v2876, %v2868
    %v3037 = vpack.c.b16 %v2877, %v2869
    %v3038 = vpack.c.b16 %v2878, %v2870
    %v3039 = vpack.c.b16 %v2879, %v2871
    %v3040 = vpack.c.b16 %v2880, %v2872
    %v3041 = vpack.c.b16 %v2889, %v2881
    %v3042 = vpack.c.b16 %v2890, %v2882
    %v3043 = vpack.c.b16 %v2891, %v2883
    %v3044 = vpack.c.b16 %v2892, %v2884
    %v3045 = vpack.c.b16 %v2893, %v2885
    %v3046 = vpack.c.b16 %v2894, %v2886
    %v3047 = vpack.c.b16 %v2895, %v2887
    %v3048 = vpack.c.b16 %v2896, %v2888
    %v3049 = vpack.c.b16 %v2905, %v2897
    %v3050 = vpack.c.b16 %v2906, %v2898
    %v3051 = vpack.c.b16 %v2907, %v2899
    %v3052 = vpack.c.b16 %v2908, %v2900
    %v3053 = vpack.c.b16 %v2909, %v2901
    %v3054 = vpack.c.b16 %v2910, %v2902
    %v3055 = vpack.c.b16 %v2911, %v2903
    %v3056 = vpack.c.b16 %v2912, %v2904
    %v3057 = vpack.c.b16 %v2921, %v2913
    %v3058 = vpack.c.b16 %v2922, %v2914
    %v3059 = vpack.c.b16 %v2923, %v2915
    %v3060 = vpack.c.b16 %v2924, %v2916
    %v3061 = vpack.c.b16 %v2925, %v2917
    %v3062 = vpack.c.b16 %v2926, %v2918
    %v3063 = vpack.c.b16 %v2927, %v2919
    %v3064 = vpack.c.b16 %v2928, %v2920
    %v3065 = vpack.c.b16 %v2937, %v2929
    %v3066 = vpack.c.b16 %v2938, %v2930
    %v3067 = vpack.c.b16 %v2939, %v2931
    %v3068 = vpack.c.b16 %v2940, %v2932
    %v3069 = vpack.c.b16 %v2941, %v2933
    %v3070 = vpack.c.b16 %v2942, %v2934
    %v3071 = vpack.c.b16 %v2943, %v2935
    %v3072 = vpack.c.b16 %v2944, %v2936
    %3201 = vrot.lane.b32.xlu0 %v473, 126
    %v3202 = vpop.permute.xlu0 %3201
    %3203 = vrot.lane.b32.xlu0 %v474, 126
    %v3204 = vpop.permute.xlu0 %3203
    %3205 = vrot.lane.b32.xlu0 %v475, 126
    %v3206 = vpop.permute.xlu0 %3205
    %3207 = vrot.lane.b32.xlu0 %v476, 126
    %v3208 = vpop.permute.xlu0 %3207
    %3209 = vrot.lane.b32.xlu0 %v477, 126
    %v3210 = vpop.permute.xlu0 %3209
    %3211 = vrot.lane.b32.xlu0 %v478, 126
    %v3212 = vpop.permute.xlu0 %3211
    %3213 = vrot.lane.b32.xlu0 %v479, 126
    %v3214 = vpop.permute.xlu0 %3213
    %3215 = vrot.lane.b32.xlu0 %v480, 126
    %v3216 = vpop.permute.xlu0 %3215
    %3217 = vrot.lane.b32.xlu0 %v481, 126
    %v3218 = vpop.permute.xlu0 %3217
    %3219 = vrot.lane.b32.xlu0 %v482, 126
    %v3220 = vpop.permute.xlu0 %3219
    %3221 = vrot.lane.b32.xlu0 %v483, 126
    %v3222 = vpop.permute.xlu0 %3221
    %3223 = vrot.lane.b32.xlu0 %v484, 126
    %v3224 = vpop.permute.xlu0 %3223
    %3225 = vrot.lane.b32.xlu0 %v485, 126
    %v3226 = vpop.permute.xlu0 %3225
    %3227 = vrot.lane.b32.xlu0 %v486, 126
    %v3228 = vpop.permute.xlu0 %3227
    %3229 = vrot.lane.b32.xlu0 %v487, 126
    %v3230 = vpop.permute.xlu0 %3229
    %3231 = vrot.lane.b32.xlu0 %v488, 126
    %v3232 = vpop.permute.xlu0 %3231
    %3233 = vrot.lane.b32.xlu0 %v489, 126
    %v3234 = vpop.permute.xlu0 %3233
    %3235 = vrot.lane.b32.xlu0 %v490, 126
    %v3236 = vpop.permute.xlu0 %3235
    %3237 = vrot.lane.b32.xlu0 %v491, 126
    %v3238 = vpop.permute.xlu0 %3237
    %3239 = vrot.lane.b32.xlu0 %v492, 126
    %v3240 = vpop.permute.xlu0 %3239
    %3241 = vrot.lane.b32.xlu0 %v493, 126
    %v3242 = vpop.permute.xlu0 %3241
    %3243 = vrot.lane.b32.xlu0 %v494, 126
    %v3244 = vpop.permute.xlu0 %3243
    %3245 = vrot.lane.b32.xlu0 %v495, 126
    %v3246 = vpop.permute.xlu0 %3245
    %3247 = vrot.lane.b32.xlu0 %v496, 126
    %v3248 = vpop.permute.xlu0 %3247
    %3249 = vrot.lane.b32.xlu0 %v497, 126
    %v3250 = vpop.permute.xlu0 %3249
    %3251 = vrot.lane.b32.xlu0 %v498, 126
    %v3252 = vpop.permute.xlu0 %3251
    %3253 = vrot.lane.b32.xlu0 %v499, 126
    %v3254 = vpop.permute.xlu0 %3253
    %3255 = vrot.lane.b32.xlu0 %v500, 126
    %v3256 = vpop.permute.xlu0 %3255
    %3257 = vrot.lane.b32.xlu0 %v501, 126
    %v3258 = vpop.permute.xlu0 %3257
    %3259 = vrot.lane.b32.xlu0 %v502, 126
    %v3260 = vpop.permute.xlu0 %3259
    %3261 = vrot.lane.b32.xlu0 %v503, 126
    %v3262 = vpop.permute.xlu0 %3261
    %3263 = vrot.lane.b32.xlu0 %v504, 126
    %v3264 = vpop.permute.xlu0 %3263
    %3265 = vrot.lane.b32.xlu0 %v506, 126
    %v3266 = vpop.permute.xlu0 %3265
    %3267 = vrot.lane.b32.xlu0 %v508, 126
    %v3268 = vpop.permute.xlu0 %3267
    %3269 = vrot.lane.b32.xlu0 %v510, 126
    %v3270 = vpop.permute.xlu0 %3269
    %3271 = vrot.lane.b32.xlu0 %v512, 126
    %v3272 = vpop.permute.xlu0 %3271
    %3273 = vrot.lane.b32.xlu0 %v514, 126
    %v3274 = vpop.permute.xlu0 %3273
    %3275 = vrot.lane.b32.xlu0 %v516, 126
    %v3276 = vpop.permute.xlu0 %3275
    %3277 = vrot.lane.b32.xlu0 %v518, 126
    %v3278 = vpop.permute.xlu0 %3277
    %3279 = vrot.lane.b32.xlu0 %v520, 126
    %v3280 = vpop.permute.xlu0 %3279
    %3281 = vrot.lane.b32.xlu0 %v522, 126
    %v3282 = vpop.permute.xlu0 %3281
    %3283 = vrot.lane.b32.xlu0 %v524, 126
    %v3284 = vpop.permute.xlu0 %3283
    %3285 = vrot.lane.b32.xlu0 %v526, 126
    %v3286 = vpop.permute.xlu0 %3285
    %3287 = vrot.lane.b32.xlu0 %v528, 126
    %v3288 = vpop.permute.xlu0 %3287
    %3289 = vrot.lane.b32.xlu0 %v530, 126
    %v3290 = vpop.permute.xlu0 %3289
    %3291 = vrot.lane.b32.xlu0 %v532, 126
    %v3292 = vpop.permute.xlu0 %3291
    %3293 = vrot.lane.b32.xlu0 %v534, 126
    %v3294 = vpop.permute.xlu0 %3293
    %3295 = vrot.lane.b32.xlu0 %v536, 126
    %v3296 = vpop.permute.xlu0 %3295
    %3297 = vrot.lane.b32.xlu0 %v538, 126
    %v3298 = vpop.permute.xlu0 %3297
    %3299 = vrot.lane.b32.xlu0 %v540, 126
    %v3300 = vpop.permute.xlu0 %3299
    %3301 = vrot.lane.b32.xlu0 %v542, 126
    %v3302 = vpop.permute.xlu0 %3301
    %3303 = vrot.lane.b32.xlu0 %v544, 126
    %v3304 = vpop.permute.xlu0 %3303
    %3305 = vrot.lane.b32.xlu0 %v546, 126
    %v3306 = vpop.permute.xlu0 %3305
    %3307 = vrot.lane.b32.xlu0 %v548, 126
    %v3308 = vpop.permute.xlu0 %3307
    %3309 = vrot.lane.b32.xlu0 %v550, 126
    %v3310 = vpop.permute.xlu0 %3309
    %3311 = vrot.lane.b32.xlu0 %v552, 126
    %v3312 = vpop.permute.xlu0 %3311
    %3313 = vrot.lane.b32.xlu0 %v554, 126
    %v3314 = vpop.permute.xlu0 %3313
    %3315 = vrot.lane.b32.xlu0 %v556, 126
    %v3316 = vpop.permute.xlu0 %3315
    %3317 = vrot.lane.b32.xlu0 %v558, 126
    %v3318 = vpop.permute.xlu0 %3317
    %3319 = vrot.lane.b32.xlu0 %v560, 126
    %v3320 = vpop.permute.xlu0 %3319
    %3321 = vrot.lane.b32.xlu0 %v562, 126
    %v3322 = vpop.permute.xlu0 %3321
    %3323 = vrot.lane.b32.xlu0 %v564, 126
    %v3324 = vpop.permute.xlu0 %3323
    %3325 = vrot.lane.b32.xlu0 %v566, 126
    %v3326 = vpop.permute.xlu0 %3325
    %3327 = vrot.lane.b32.xlu0 %v568, 126
    %v3328 = vpop.permute.xlu0 %3327
    %3393 = vmatpush.bf16.msra.mxu0 %v3216
    %3394 = vmatpush.bf16.msra.mxu0 %v3214
    %3395 = vmatpush.bf16.msra.mxu0 %v3212
    %3396 = vmatpush.bf16.msra.mxu0 %v3210
    %3397 = vmatpush.bf16.msra.mxu0 %v3208
    %3398 = vmatpush.bf16.msra.mxu0 %v3206
    %3399 = vmatpush.bf16.msra.mxu0 %v3204
    %3400 = vmatpush.bf16.msra.mxu0 %v3202
    %3401 = vmatmul.bf16.gmra.mxu0 %v2945
    %v3402 = vpop.f32.mrf.mxu0
    %v3403 = vadd.f32 %v732, %v3402
    %v3404 = vpop.f32.mrf.mxu0
    %v3405 = vadd.f32 %v737, %v3404
    %3406 = vmatmul.bf16.gmra.mxu0 %v2953
    %v3407 = vpop.f32.mrf.mxu0
    %v3408 = vadd.f32 %v742, %v3407
    %v3409 = vpop.f32.mrf.mxu0
    %v3410 = vadd.f32 %v747, %v3409
    %3411 = vmatmul.bf16.gmra.mxu0 %v2961
    %v3412 = vpop.f32.mrf.mxu0
    %v3413 = vadd.f32 %v752, %v3412
    %v3414 = vpop.f32.mrf.mxu0
    %v3415 = vadd.f32 %v757, %v3414
    %3416 = vmatmul.bf16.gmra.mxu0 %v2969
    %v3417 = vpop.f32.mrf.mxu0
    %v3418 = vadd.f32 %v762, %v3417
    %v3419 = vpop.f32.mrf.mxu0
    %v3420 = vadd.f32 %v767, %v3419
    %3421 = vmatmul.bf16.gmra.mxu0 %v2977
    %v3422 = vpop.f32.mrf.mxu0
    %v3423 = vadd.f32 %v772, %v3422
    %v3424 = vpop.f32.mrf.mxu0
    %v3425 = vadd.f32 %v777, %v3424
    %3426 = vmatmul.bf16.gmra.mxu0 %v2985
    %v3427 = vpop.f32.mrf.mxu0
    %v3428 = vadd.f32 %v782, %v3427
    %v3429 = vpop.f32.mrf.mxu0
    %v3430 = vadd.f32 %v787, %v3429
    %3431 = vmatmul.bf16.gmra.mxu0 %v2993
    %v3432 = vpop.f32.mrf.mxu0
    %v3433 = vadd.f32 %v792, %v3432
    %v3434 = vpop.f32.mrf.mxu0
    %v3435 = vadd.f32 %v797, %v3434
    %3436 = vmatmul.bf16.gmra.mxu0 %v3001
    %v3437 = vpop.f32.mrf.mxu0
    %v3438 = vadd.f32 %v802, %v3437
    %v3439 = vpop.f32.mrf.mxu0
    %v3440 = vadd.f32 %v807, %v3439
    %3441 = vmatmul.bf16.gmra.mxu0 %v3009
    %v3442 = vpop.f32.mrf.mxu0
    %v3443 = vadd.f32 %v812, %v3442
    %v3444 = vpop.f32.mrf.mxu0
    %v3445 = vadd.f32 %v817, %v3444
    %3446 = vmatmul.bf16.gmra.mxu0 %v3017
    %v3447 = vpop.f32.mrf.mxu0
    %v3448 = vadd.f32 %v822, %v3447
    %v3449 = vpop.f32.mrf.mxu0
    %v3450 = vadd.f32 %v827, %v3449
    %3451 = vmatmul.bf16.gmra.mxu0 %v3025
    %v3452 = vpop.f32.mrf.mxu0
    %v3453 = vadd.f32 %v832, %v3452
    %v3454 = vpop.f32.mrf.mxu0
    %v3455 = vadd.f32 %v837, %v3454
    %3456 = vmatmul.bf16.gmra.mxu0 %v3033
    %v3457 = vpop.f32.mrf.mxu0
    %v3458 = vadd.f32 %v842, %v3457
    %v3459 = vpop.f32.mrf.mxu0
    %v3460 = vadd.f32 %v847, %v3459
    %3461 = vmatmul.bf16.gmra.mxu0 %v3041
    %v3462 = vpop.f32.mrf.mxu0
    %v3463 = vadd.f32 %v852, %v3462
    %v3464 = vpop.f32.mrf.mxu0
    %v3465 = vadd.f32 %v857, %v3464
    %3466 = vmatmul.bf16.gmra.mxu0 %v3049
    %v3467 = vpop.f32.mrf.mxu0
    %v3468 = vadd.f32 %v862, %v3467
    %v3469 = vpop.f32.mrf.mxu0
    %v3470 = vadd.f32 %v867, %v3469
    %3471 = vmatmul.bf16.gmra.mxu0 %v3057
    %v3472 = vpop.f32.mrf.mxu0
    %v3473 = vadd.f32 %v872, %v3472
    %v3474 = vpop.f32.mrf.mxu0
    %v3475 = vadd.f32 %v877, %v3474
    %3476 = vmatmul.bf16.gmra.mxu0 %v3065
    %v3477 = vpop.f32.mrf.mxu0
    %v3478 = vadd.f32 %v882, %v3477
    %v3479 = vpop.f32.mrf.mxu0
    %v3480 = vadd.f32 %v887, %v3479
    %3481 = vdwg.mxu0
    %3482 = vmatpush.bf16.msra.mxu0 %v3232
    %3483 = vmatpush.bf16.msra.mxu0 %v3230
    %3484 = vmatpush.bf16.msra.mxu0 %v3228
    %3485 = vmatpush.bf16.msra.mxu0 %v3226
    %3486 = vmatpush.bf16.msra.mxu0 %v3224
    %3487 = vmatpush.bf16.msra.mxu0 %v3222
    %3488 = vmatpush.bf16.msra.mxu0 %v3220
    %3489 = vmatpush.bf16.msra.mxu0 %v3218
    %3490 = vmatmul.bf16.gmra.mxu0 %v2946
    %v3491 = vpop.f32.mrf.mxu0
    %v3492 = vadd.f32 %v3403, %v3491
    %v3493 = vpop.f32.mrf.mxu0
    %v3494 = vadd.f32 %v3405, %v3493
    %3495 = vmatmul.bf16.gmra.mxu0 %v2954
    %v3496 = vpop.f32.mrf.mxu0
    %v3497 = vadd.f32 %v3408, %v3496
    %v3498 = vpop.f32.mrf.mxu0
    %v3499 = vadd.f32 %v3410, %v3498
    %3500 = vmatmul.bf16.gmra.mxu0 %v2962
    %v3501 = vpop.f32.mrf.mxu0
    %v3502 = vadd.f32 %v3413, %v3501
    %v3503 = vpop.f32.mrf.mxu0
    %v3504 = vadd.f32 %v3415, %v3503
    %3505 = vmatmul.bf16.gmra.mxu0 %v2970
    %v3506 = vpop.f32.mrf.mxu0
    %v3507 = vadd.f32 %v3418, %v3506
    %v3508 = vpop.f32.mrf.mxu0
    %v3509 = vadd.f32 %v3420, %v3508
    %3510 = vmatmul.bf16.gmra.mxu0 %v2978
    %v3511 = vpop.f32.mrf.mxu0
    %v3512 = vadd.f32 %v3423, %v3511
    %v3513 = vpop.f32.mrf.mxu0
    %v3514 = vadd.f32 %v3425, %v3513
    %3515 = vmatmul.bf16.gmra.mxu0 %v2986
    %v3516 = vpop.f32.mrf.mxu0
    %v3517 = vadd.f32 %v3428, %v3516
    %v3518 = vpop.f32.mrf.mxu0
    %v3519 = vadd.f32 %v3430, %v3518
    %3520 = vmatmul.bf16.gmra.mxu0 %v2994
    %v3521 = vpop.f32.mrf.mxu0
    %v3522 = vadd.f32 %v3433, %v3521
    %v3523 = vpop.f32.mrf.mxu0
    %v3524 = vadd.f32 %v3435, %v3523
    %3525 = vmatmul.bf16.gmra.mxu0 %v3002
    %v3526 = vpop.f32.mrf.mxu0
    %v3527 = vadd.f32 %v3438, %v3526
    %v3528 = vpop.f32.mrf.mxu0
    %v3529 = vadd.f32 %v3440, %v3528
    %3530 = vmatmul.bf16.gmra.mxu0 %v3010
    %v3531 = vpop.f32.mrf.mxu0
    %v3532 = vadd.f32 %v3443, %v3531
    %v3533 = vpop.f32.mrf.mxu0
    %v3534 = vadd.f32 %v3445, %v3533
    %3535 = vmatmul.bf16.gmra.mxu0 %v3018
    %v3536 = vpop.f32.mrf.mxu0
    %v3537 = vadd.f32 %v3448, %v3536
    %v3538 = vpop.f32.mrf.mxu0
    %v3539 = vadd.f32 %v3450, %v3538
    %3540 = vmatmul.bf16.gmra.mxu0 %v3026
    %v3541 = vpop.f32.mrf.mxu0
    %v3542 = vadd.f32 %v3453, %v3541
    %v3543 = vpop.f32.mrf.mxu0
    %v3544 = vadd.f32 %v3455, %v3543
    %3545 = vmatmul.bf16.gmra.mxu0 %v3034
    %v3546 = vpop.f32.mrf.mxu0
    %v3547 = vadd.f32 %v3458, %v3546
    %v3548 = vpop.f32.mrf.mxu0
    %v3549 = vadd.f32 %v3460, %v3548
    %3550 = vmatmul.bf16.gmra.mxu0 %v3042
    %v3551 = vpop.f32.mrf.mxu0
    %v3552 = vadd.f32 %v3463, %v3551
    %v3553 = vpop.f32.mrf.mxu0
    %v3554 = vadd.f32 %v3465, %v3553
    %3555 = vmatmul.bf16.gmra.mxu0 %v3050
    %v3556 = vpop.f32.mrf.mxu0
    %v3557 = vadd.f32 %v3468, %v3556
    %v3558 = vpop.f32.mrf.mxu0
    %v3559 = vadd.f32 %v3470, %v3558
    %3560 = vmatmul.bf16.gmra.mxu0 %v3058
    %v3561 = vpop.f32.mrf.mxu0
    %v3562 = vadd.f32 %v3473, %v3561
    %v3563 = vpop.f32.mrf.mxu0
    %v3564 = vadd.f32 %v3475, %v3563
    %3565 = vmatmul.bf16.gmra.mxu0 %v3066
    %v3566 = vpop.f32.mrf.mxu0
    %v3567 = vadd.f32 %v3478, %v3566
    %v3568 = vpop.f32.mrf.mxu0
    %v3569 = vadd.f32 %v3480, %v3568
    %3570 = vdwg.mxu0
    %3571 = vmatpush.bf16.msra.mxu0 %v3248
    %3572 = vmatpush.bf16.msra.mxu0 %v3246
    %3573 = vmatpush.bf16.msra.mxu0 %v3244
    %3574 = vmatpush.bf16.msra.mxu0 %v3242
    %3575 = vmatpush.bf16.msra.mxu0 %v3240
    %3576 = vmatpush.bf16.msra.mxu0 %v3238
    %3577 = vmatpush.bf16.msra.mxu0 %v3236
    %3578 = vmatpush.bf16.msra.mxu0 %v3234
    %3579 = vmatmul.bf16.gmra.mxu0 %v2947
    %v3580 = vpop.f32.mrf.mxu0
    %v3581 = vadd.f32 %v3492, %v3580
    %v3582 = vpop.f32.mrf.mxu0
    %v3583 = vadd.f32 %v3494, %v3582
    %3584 = vmatmul.bf16.gmra.mxu0 %v2955
    %v3585 = vpop.f32.mrf.mxu0
    %v3586 = vadd.f32 %v3497, %v3585
    %v3587 = vpop.f32.mrf.mxu0
    %v3588 = vadd.f32 %v3499, %v3587
    %3589 = vmatmul.bf16.gmra.mxu0 %v2963
    %v3590 = vpop.f32.mrf.mxu0
    %v3591 = vadd.f32 %v3502, %v3590
    %v3592 = vpop.f32.mrf.mxu0
    %v3593 = vadd.f32 %v3504, %v3592
    %3594 = vmatmul.bf16.gmra.mxu0 %v2971
    %v3595 = vpop.f32.mrf.mxu0
    %v3596 = vadd.f32 %v3507, %v3595
    %v3597 = vpop.f32.mrf.mxu0
    %v3598 = vadd.f32 %v3509, %v3597
    %3599 = vmatmul.bf16.gmra.mxu0 %v2979
    %v3600 = vpop.f32.mrf.mxu0
    %v3601 = vadd.f32 %v3512, %v3600
    %v3602 = vpop.f32.mrf.mxu0
    %v3603 = vadd.f32 %v3514, %v3602
    %3604 = vmatmul.bf16.gmra.mxu0 %v2987
    %v3605 = vpop.f32.mrf.mxu0
    %v3606 = vadd.f32 %v3517, %v3605
    %v3607 = vpop.f32.mrf.mxu0
    %v3608 = vadd.f32 %v3519, %v3607
    %3609 = vmatmul.bf16.gmra.mxu0 %v2995
    %v3610 = vpop.f32.mrf.mxu0
    %v3611 = vadd.f32 %v3522, %v3610
    %v3612 = vpop.f32.mrf.mxu0
    %v3613 = vadd.f32 %v3524, %v3612
    %3614 = vmatmul.bf16.gmra.mxu0 %v3003
    %v3615 = vpop.f32.mrf.mxu0
    %v3616 = vadd.f32 %v3527, %v3615
    %v3617 = vpop.f32.mrf.mxu0
    %v3618 = vadd.f32 %v3529, %v3617
    %3619 = vmatmul.bf16.gmra.mxu0 %v3011
    %v3620 = vpop.f32.mrf.mxu0
    %v3621 = vadd.f32 %v3532, %v3620
    %v3622 = vpop.f32.mrf.mxu0
    %v3623 = vadd.f32 %v3534, %v3622
    %3624 = vmatmul.bf16.gmra.mxu0 %v3019
    %v3625 = vpop.f32.mrf.mxu0
    %v3626 = vadd.f32 %v3537, %v3625
    %v3627 = vpop.f32.mrf.mxu0
    %v3628 = vadd.f32 %v3539, %v3627
    %3629 = vmatmul.bf16.gmra.mxu0 %v3027
    %v3630 = vpop.f32.mrf.mxu0
    %v3631 = vadd.f32 %v3542, %v3630
    %v3632 = vpop.f32.mrf.mxu0
    %v3633 = vadd.f32 %v3544, %v3632
    %3634 = vmatmul.bf16.gmra.mxu0 %v3035
    %v3635 = vpop.f32.mrf.mxu0
    %v3636 = vadd.f32 %v3547, %v3635
    %v3637 = vpop.f32.mrf.mxu0
    %v3638 = vadd.f32 %v3549, %v3637
    %3639 = vmatmul.bf16.gmra.mxu0 %v3043
    %v3640 = vpop.f32.mrf.mxu0
    %v3641 = vadd.f32 %v3552, %v3640
    %v3642 = vpop.f32.mrf.mxu0
    %v3643 = vadd.f32 %v3554, %v3642
    %3644 = vmatmul.bf16.gmra.mxu0 %v3051
    %v3645 = vpop.f32.mrf.mxu0
    %v3646 = vadd.f32 %v3557, %v3645
    %v3647 = vpop.f32.mrf.mxu0
    %v3648 = vadd.f32 %v3559, %v3647
    %3649 = vmatmul.bf16.gmra.mxu0 %v3059
    %v3650 = vpop.f32.mrf.mxu0
    %v3651 = vadd.f32 %v3562, %v3650
    %v3652 = vpop.f32.mrf.mxu0
    %v3653 = vadd.f32 %v3564, %v3652
    %3654 = vmatmul.bf16.gmra.mxu0 %v3067
    %v3655 = vpop.f32.mrf.mxu0
    %v3656 = vadd.f32 %v3567, %v3655
    %v3657 = vpop.f32.mrf.mxu0
    %v3658 = vadd.f32 %v3569, %v3657
    %3659 = vdwg.mxu0
    %3660 = vmatpush.bf16.msra.mxu0 %v3264
    %3661 = vmatpush.bf16.msra.mxu0 %v3262
    %3662 = vmatpush.bf16.msra.mxu0 %v3260
    %3663 = vmatpush.bf16.msra.mxu0 %v3258
    %3664 = vmatpush.bf16.msra.mxu0 %v3256
    %3665 = vmatpush.bf16.msra.mxu0 %v3254
    %3666 = vmatpush.bf16.msra.mxu0 %v3252
    %3667 = vmatpush.bf16.msra.mxu0 %v3250
    %3668 = vmatmul.bf16.gmra.mxu0 %v2948
    %v3669 = vpop.f32.mrf.mxu0
    %v3670 = vadd.f32 %v3581, %v3669
    %v3671 = vpop.f32.mrf.mxu0
    %v3672 = vadd.f32 %v3583, %v3671
    %3673 = vmatmul.bf16.gmra.mxu0 %v2956
    %v3674 = vpop.f32.mrf.mxu0
    %v3675 = vadd.f32 %v3586, %v3674
    %v3676 = vpop.f32.mrf.mxu0
    %v3677 = vadd.f32 %v3588, %v3676
    %3678 = vmatmul.bf16.gmra.mxu0 %v2964
    %v3679 = vpop.f32.mrf.mxu0
    %v3680 = vadd.f32 %v3591, %v3679
    %v3681 = vpop.f32.mrf.mxu0
    %v3682 = vadd.f32 %v3593, %v3681
    %3683 = vmatmul.bf16.gmra.mxu0 %v2972
    %v3684 = vpop.f32.mrf.mxu0
    %v3685 = vadd.f32 %v3596, %v3684
    %v3686 = vpop.f32.mrf.mxu0
    %v3687 = vadd.f32 %v3598, %v3686
    %3688 = vmatmul.bf16.gmra.mxu0 %v2980
    %v3689 = vpop.f32.mrf.mxu0
    %v3690 = vadd.f32 %v3601, %v3689
    %v3691 = vpop.f32.mrf.mxu0
    %v3692 = vadd.f32 %v3603, %v3691
    %3693 = vmatmul.bf16.gmra.mxu0 %v2988
    %v3694 = vpop.f32.mrf.mxu0
    %v3695 = vadd.f32 %v3606, %v3694
    %v3696 = vpop.f32.mrf.mxu0
    %v3697 = vadd.f32 %v3608, %v3696
    %3698 = vmatmul.bf16.gmra.mxu0 %v2996
    %v3699 = vpop.f32.mrf.mxu0
    %v3700 = vadd.f32 %v3611, %v3699
    %v3701 = vpop.f32.mrf.mxu0
    %v3702 = vadd.f32 %v3613, %v3701
    %3703 = vmatmul.bf16.gmra.mxu0 %v3004
    %v3704 = vpop.f32.mrf.mxu0
    %v3705 = vadd.f32 %v3616, %v3704
    %v3706 = vpop.f32.mrf.mxu0
    %v3707 = vadd.f32 %v3618, %v3706
    %3708 = vmatmul.bf16.gmra.mxu0 %v3012
    %v3709 = vpop.f32.mrf.mxu0
    %v3710 = vadd.f32 %v3621, %v3709
    %v3711 = vpop.f32.mrf.mxu0
    %v3712 = vadd.f32 %v3623, %v3711
    %3713 = vmatmul.bf16.gmra.mxu0 %v3020
    %v3714 = vpop.f32.mrf.mxu0
    %v3715 = vadd.f32 %v3626, %v3714
    %v3716 = vpop.f32.mrf.mxu0
    %v3717 = vadd.f32 %v3628, %v3716
    %3718 = vmatmul.bf16.gmra.mxu0 %v3028
    %v3719 = vpop.f32.mrf.mxu0
    %v3720 = vadd.f32 %v3631, %v3719
    %v3721 = vpop.f32.mrf.mxu0
    %v3722 = vadd.f32 %v3633, %v3721
    %3723 = vmatmul.bf16.gmra.mxu0 %v3036
    %v3724 = vpop.f32.mrf.mxu0
    %v3725 = vadd.f32 %v3636, %v3724
    %v3726 = vpop.f32.mrf.mxu0
    %v3727 = vadd.f32 %v3638, %v3726
    %3728 = vmatmul.bf16.gmra.mxu0 %v3044
    %v3729 = vpop.f32.mrf.mxu0
    %v3730 = vadd.f32 %v3641, %v3729
    %v3731 = vpop.f32.mrf.mxu0
    %v3732 = vadd.f32 %v3643, %v3731
    %3733 = vmatmul.bf16.gmra.mxu0 %v3052
    %v3734 = vpop.f32.mrf.mxu0
    %v3735 = vadd.f32 %v3646, %v3734
    %v3736 = vpop.f32.mrf.mxu0
    %v3737 = vadd.f32 %v3648, %v3736
    %3738 = vmatmul.bf16.gmra.mxu0 %v3060
    %v3739 = vpop.f32.mrf.mxu0
    %v3740 = vadd.f32 %v3651, %v3739
    %v3741 = vpop.f32.mrf.mxu0
    %v3742 = vadd.f32 %v3653, %v3741
    %3743 = vmatmul.bf16.gmra.mxu0 %v3068
    %v3744 = vpop.f32.mrf.mxu0
    %v3745 = vadd.f32 %v3656, %v3744
    %v3746 = vpop.f32.mrf.mxu0
    %v3747 = vadd.f32 %v3658, %v3746
    %3748 = vdwg.mxu0
    %3749 = vmatpush.bf16.msra.mxu0 %v3280
    %3750 = vmatpush.bf16.msra.mxu0 %v3278
    %3751 = vmatpush.bf16.msra.mxu0 %v3276
    %3752 = vmatpush.bf16.msra.mxu0 %v3274
    %3753 = vmatpush.bf16.msra.mxu0 %v3272
    %3754 = vmatpush.bf16.msra.mxu0 %v3270
    %3755 = vmatpush.bf16.msra.mxu0 %v3268
    %3756 = vmatpush.bf16.msra.mxu0 %v3266
    %3757 = vmatmul.bf16.gmra.mxu0 %v2949
    %v3758 = vpop.f32.mrf.mxu0
    %v3759 = vadd.f32 %v3670, %v3758
    %v3760 = vpop.f32.mrf.mxu0
    %v3761 = vadd.f32 %v3672, %v3760
    %3762 = vmatmul.bf16.gmra.mxu0 %v2957
    %v3763 = vpop.f32.mrf.mxu0
    %v3764 = vadd.f32 %v3675, %v3763
    %v3765 = vpop.f32.mrf.mxu0
    %v3766 = vadd.f32 %v3677, %v3765
    %3767 = vmatmul.bf16.gmra.mxu0 %v2965
    %v3768 = vpop.f32.mrf.mxu0
    %v3769 = vadd.f32 %v3680, %v3768
    %v3770 = vpop.f32.mrf.mxu0
    %v3771 = vadd.f32 %v3682, %v3770
    %3772 = vmatmul.bf16.gmra.mxu0 %v2973
    %v3773 = vpop.f32.mrf.mxu0
    %v3774 = vadd.f32 %v3685, %v3773
    %v3775 = vpop.f32.mrf.mxu0
    %v3776 = vadd.f32 %v3687, %v3775
    %3777 = vmatmul.bf16.gmra.mxu0 %v2981
    %v3778 = vpop.f32.mrf.mxu0
    %v3779 = vadd.f32 %v3690, %v3778
    %v3780 = vpop.f32.mrf.mxu0
    %v3781 = vadd.f32 %v3692, %v3780
    %3782 = vmatmul.bf16.gmra.mxu0 %v2989
    %v3783 = vpop.f32.mrf.mxu0
    %v3784 = vadd.f32 %v3695, %v3783
    %v3785 = vpop.f32.mrf.mxu0
    %v3786 = vadd.f32 %v3697, %v3785
    %3787 = vmatmul.bf16.gmra.mxu0 %v2997
    %v3788 = vpop.f32.mrf.mxu0
    %v3789 = vadd.f32 %v3700, %v3788
    %v3790 = vpop.f32.mrf.mxu0
    %v3791 = vadd.f32 %v3702, %v3790
    %3792 = vmatmul.bf16.gmra.mxu0 %v3005
    %v3793 = vpop.f32.mrf.mxu0
    %v3794 = vadd.f32 %v3705, %v3793
    %v3795 = vpop.f32.mrf.mxu0
    %v3796 = vadd.f32 %v3707, %v3795
    %3797 = vmatmul.bf16.gmra.mxu0 %v3013
    %v3798 = vpop.f32.mrf.mxu0
    %v3799 = vadd.f32 %v3710, %v3798
    %v3800 = vpop.f32.mrf.mxu0
    %v3801 = vadd.f32 %v3712, %v3800
    %3802 = vmatmul.bf16.gmra.mxu0 %v3021
    %v3803 = vpop.f32.mrf.mxu0
    %v3804 = vadd.f32 %v3715, %v3803
    %v3805 = vpop.f32.mrf.mxu0
    %v3806 = vadd.f32 %v3717, %v3805
    %3807 = vmatmul.bf16.gmra.mxu0 %v3029
    %v3808 = vpop.f32.mrf.mxu0
    %v3809 = vadd.f32 %v3720, %v3808
    %v3810 = vpop.f32.mrf.mxu0
    %v3811 = vadd.f32 %v3722, %v3810
    %3812 = vmatmul.bf16.gmra.mxu0 %v3037
    %v3813 = vpop.f32.mrf.mxu0
    %v3814 = vadd.f32 %v3725, %v3813
    %v3815 = vpop.f32.mrf.mxu0
    %v3816 = vadd.f32 %v3727, %v3815
    %3817 = vmatmul.bf16.gmra.mxu0 %v3045
    %v3818 = vpop.f32.mrf.mxu0
    %v3819 = vadd.f32 %v3730, %v3818
    %v3820 = vpop.f32.mrf.mxu0
    %v3821 = vadd.f32 %v3732, %v3820
    %3822 = vmatmul.bf16.gmra.mxu0 %v3053
    %v3823 = vpop.f32.mrf.mxu0
    %v3824 = vadd.f32 %v3735, %v3823
    %v3825 = vpop.f32.mrf.mxu0
    %v3826 = vadd.f32 %v3737, %v3825
    %3827 = vmatmul.bf16.gmra.mxu0 %v3061
    %v3828 = vpop.f32.mrf.mxu0
    %v3829 = vadd.f32 %v3740, %v3828
    %v3830 = vpop.f32.mrf.mxu0
    %v3831 = vadd.f32 %v3742, %v3830
    %3832 = vmatmul.bf16.gmra.mxu0 %v3069
    %v3833 = vpop.f32.mrf.mxu0
    %v3834 = vadd.f32 %v3745, %v3833
    %v3835 = vpop.f32.mrf.mxu0
    %v3836 = vadd.f32 %v3747, %v3835
    %3837 = vdwg.mxu0
    %3838 = vmatpush.bf16.msra.mxu0 %v3296
    %3839 = vmatpush.bf16.msra.mxu0 %v3294
    %3840 = vmatpush.bf16.msra.mxu0 %v3292
    %3841 = vmatpush.bf16.msra.mxu0 %v3290
    %3842 = vmatpush.bf16.msra.mxu0 %v3288
    %3843 = vmatpush.bf16.msra.mxu0 %v3286
    %3844 = vmatpush.bf16.msra.mxu0 %v3284
    %3845 = vmatpush.bf16.msra.mxu0 %v3282
    %3846 = vmatmul.bf16.gmra.mxu0 %v2950
    %v3847 = vpop.f32.mrf.mxu0
    %v3848 = vadd.f32 %v3759, %v3847
    %v3849 = vpop.f32.mrf.mxu0
    %v3850 = vadd.f32 %v3761, %v3849
    %3851 = vmatmul.bf16.gmra.mxu0 %v2958
    %v3852 = vpop.f32.mrf.mxu0
    %v3853 = vadd.f32 %v3764, %v3852
    %v3854 = vpop.f32.mrf.mxu0
    %v3855 = vadd.f32 %v3766, %v3854
    %3856 = vmatmul.bf16.gmra.mxu0 %v2966
    %v3857 = vpop.f32.mrf.mxu0
    %v3858 = vadd.f32 %v3769, %v3857
    %v3859 = vpop.f32.mrf.mxu0
    %v3860 = vadd.f32 %v3771, %v3859
    %3861 = vmatmul.bf16.gmra.mxu0 %v2974
    %v3862 = vpop.f32.mrf.mxu0
    %v3863 = vadd.f32 %v3774, %v3862
    %v3864 = vpop.f32.mrf.mxu0
    %v3865 = vadd.f32 %v3776, %v3864
    %3866 = vmatmul.bf16.gmra.mxu0 %v2982
    %v3867 = vpop.f32.mrf.mxu0
    %v3868 = vadd.f32 %v3779, %v3867
    %v3869 = vpop.f32.mrf.mxu0
    %v3870 = vadd.f32 %v3781, %v3869
    %3871 = vmatmul.bf16.gmra.mxu0 %v2990
    %v3872 = vpop.f32.mrf.mxu0
    %v3873 = vadd.f32 %v3784, %v3872
    %v3874 = vpop.f32.mrf.mxu0
    %v3875 = vadd.f32 %v3786, %v3874
    %3876 = vmatmul.bf16.gmra.mxu0 %v2998
    %v3877 = vpop.f32.mrf.mxu0
    %v3878 = vadd.f32 %v3789, %v3877
    %v3879 = vpop.f32.mrf.mxu0
    %v3880 = vadd.f32 %v3791, %v3879
    %3881 = vmatmul.bf16.gmra.mxu0 %v3006
    %v3882 = vpop.f32.mrf.mxu0
    %v3883 = vadd.f32 %v3794, %v3882
    %v3884 = vpop.f32.mrf.mxu0
    %v3885 = vadd.f32 %v3796, %v3884
    %3886 = vmatmul.bf16.gmra.mxu0 %v3014
    %v3887 = vpop.f32.mrf.mxu0
    %v3888 = vadd.f32 %v3799, %v3887
    %v3889 = vpop.f32.mrf.mxu0
    %v3890 = vadd.f32 %v3801, %v3889
    %3891 = vmatmul.bf16.gmra.mxu0 %v3022
    %v3892 = vpop.f32.mrf.mxu0
    %v3893 = vadd.f32 %v3804, %v3892
    %v3894 = vpop.f32.mrf.mxu0
    %v3895 = vadd.f32 %v3806, %v3894
    %3896 = vmatmul.bf16.gmra.mxu0 %v3030
    %v3897 = vpop.f32.mrf.mxu0
    %v3898 = vadd.f32 %v3809, %v3897
    %v3899 = vpop.f32.mrf.mxu0
    %v3900 = vadd.f32 %v3811, %v3899
    %3901 = vmatmul.bf16.gmra.mxu0 %v3038
    %v3902 = vpop.f32.mrf.mxu0
    %v3903 = vadd.f32 %v3814, %v3902
    %v3904 = vpop.f32.mrf.mxu0
    %v3905 = vadd.f32 %v3816, %v3904
    %3906 = vmatmul.bf16.gmra.mxu0 %v3046
    %v3907 = vpop.f32.mrf.mxu0
    %v3908 = vadd.f32 %v3819, %v3907
    %v3909 = vpop.f32.mrf.mxu0
    %v3910 = vadd.f32 %v3821, %v3909
    %3911 = vmatmul.bf16.gmra.mxu0 %v3054
    %v3912 = vpop.f32.mrf.mxu0
    %v3913 = vadd.f32 %v3824, %v3912
    %v3914 = vpop.f32.mrf.mxu0
    %v3915 = vadd.f32 %v3826, %v3914
    %3916 = vmatmul.bf16.gmra.mxu0 %v3062
    %v3917 = vpop.f32.mrf.mxu0
    %v3918 = vadd.f32 %v3829, %v3917
    %v3919 = vpop.f32.mrf.mxu0
    %v3920 = vadd.f32 %v3831, %v3919
    %3921 = vmatmul.bf16.gmra.mxu0 %v3070
    %v3922 = vpop.f32.mrf.mxu0
    %v3923 = vadd.f32 %v3834, %v3922
    %v3924 = vpop.f32.mrf.mxu0
    %v3925 = vadd.f32 %v3836, %v3924
    %3926 = vdwg.mxu0
    %3927 = vmatpush.bf16.msra.mxu0 %v3312
    %3928 = vmatpush.bf16.msra.mxu0 %v3310
    %3929 = vmatpush.bf16.msra.mxu0 %v3308
    %3930 = vmatpush.bf16.msra.mxu0 %v3306
    %3931 = vmatpush.bf16.msra.mxu0 %v3304
    %3932 = vmatpush.bf16.msra.mxu0 %v3302
    %3933 = vmatpush.bf16.msra.mxu0 %v3300
    %3934 = vmatpush.bf16.msra.mxu0 %v3298
    %3935 = vmatmul.bf16.gmra.mxu0 %v2951
    %v3936 = vpop.f32.mrf.mxu0
    %v3937 = vadd.f32 %v3848, %v3936
    %v3938 = vpop.f32.mrf.mxu0
    %v3939 = vadd.f32 %v3850, %v3938
    %3940 = vmatmul.bf16.gmra.mxu0 %v2959
    %v3941 = vpop.f32.mrf.mxu0
    %v3942 = vadd.f32 %v3853, %v3941
    %v3943 = vpop.f32.mrf.mxu0
    %v3944 = vadd.f32 %v3855, %v3943
    %3945 = vmatmul.bf16.gmra.mxu0 %v2967
    %v3946 = vpop.f32.mrf.mxu0
    %v3947 = vadd.f32 %v3858, %v3946
    %v3948 = vpop.f32.mrf.mxu0
    %v3949 = vadd.f32 %v3860, %v3948
    %3950 = vmatmul.bf16.gmra.mxu0 %v2975
    %v3951 = vpop.f32.mrf.mxu0
    %v3952 = vadd.f32 %v3863, %v3951
    %v3953 = vpop.f32.mrf.mxu0
    %v3954 = vadd.f32 %v3865, %v3953
    %3955 = vmatmul.bf16.gmra.mxu0 %v2983
    %v3956 = vpop.f32.mrf.mxu0
    %v3957 = vadd.f32 %v3868, %v3956
    %v3958 = vpop.f32.mrf.mxu0
    %v3959 = vadd.f32 %v3870, %v3958
    %3960 = vmatmul.bf16.gmra.mxu0 %v2991
    %v3961 = vpop.f32.mrf.mxu0
    %v3962 = vadd.f32 %v3873, %v3961
    %v3963 = vpop.f32.mrf.mxu0
    %v3964 = vadd.f32 %v3875, %v3963
    %3965 = vmatmul.bf16.gmra.mxu0 %v2999
    %v3966 = vpop.f32.mrf.mxu0
    %v3967 = vadd.f32 %v3878, %v3966
    %v3968 = vpop.f32.mrf.mxu0
    %v3969 = vadd.f32 %v3880, %v3968
    %3970 = vmatmul.bf16.gmra.mxu0 %v3007
    %v3971 = vpop.f32.mrf.mxu0
    %v3972 = vadd.f32 %v3883, %v3971
    %v3973 = vpop.f32.mrf.mxu0
    %v3974 = vadd.f32 %v3885, %v3973
    %3975 = vmatmul.bf16.gmra.mxu0 %v3015
    %v3976 = vpop.f32.mrf.mxu0
    %v3977 = vadd.f32 %v3888, %v3976
    %v3978 = vpop.f32.mrf.mxu0
    %v3979 = vadd.f32 %v3890, %v3978
    %3980 = vmatmul.bf16.gmra.mxu0 %v3023
    %v3981 = vpop.f32.mrf.mxu0
    %v3982 = vadd.f32 %v3893, %v3981
    %v3983 = vpop.f32.mrf.mxu0
    %v3984 = vadd.f32 %v3895, %v3983
    %3985 = vmatmul.bf16.gmra.mxu0 %v3031
    %v3986 = vpop.f32.mrf.mxu0
    %v3987 = vadd.f32 %v3898, %v3986
    %v3988 = vpop.f32.mrf.mxu0
    %v3989 = vadd.f32 %v3900, %v3988
    %3990 = vmatmul.bf16.gmra.mxu0 %v3039
    %v3991 = vpop.f32.mrf.mxu0
    %v3992 = vadd.f32 %v3903, %v3991
    %v3993 = vpop.f32.mrf.mxu0
    %v3994 = vadd.f32 %v3905, %v3993
    %3995 = vmatmul.bf16.gmra.mxu0 %v3047
    %v3996 = vpop.f32.mrf.mxu0
    %v3997 = vadd.f32 %v3908, %v3996
    %v3998 = vpop.f32.mrf.mxu0
    %v3999 = vadd.f32 %v3910, %v3998
    %4000 = vmatmul.bf16.gmra.mxu0 %v3055
    %v4001 = vpop.f32.mrf.mxu0
    %v4002 = vadd.f32 %v3913, %v4001
    %v4003 = vpop.f32.mrf.mxu0
    %v4004 = vadd.f32 %v3915, %v4003
    %4005 = vmatmul.bf16.gmra.mxu0 %v3063
    %v4006 = vpop.f32.mrf.mxu0
    %v4007 = vadd.f32 %v3918, %v4006
    %v4008 = vpop.f32.mrf.mxu0
    %v4009 = vadd.f32 %v3920, %v4008
    %4010 = vmatmul.bf16.gmra.mxu0 %v3071
    %v4011 = vpop.f32.mrf.mxu0
    %v4012 = vadd.f32 %v3923, %v4011
    %v4013 = vpop.f32.mrf.mxu0
    %v4014 = vadd.f32 %v3925, %v4013
    %4015 = vdwg.mxu0
    %4016 = vmatpush.bf16.msra.mxu0 %v3328
    %4017 = vmatpush.bf16.msra.mxu0 %v3326
    %4018 = vmatpush.bf16.msra.mxu0 %v3324
    %4019 = vmatpush.bf16.msra.mxu0 %v3322
    %4020 = vmatpush.bf16.msra.mxu0 %v3320
    %4021 = vmatpush.bf16.msra.mxu0 %v3318
    %4022 = vmatpush.bf16.msra.mxu0 %v3316
    %4023 = vmatpush.bf16.msra.mxu0 %v3314
    %4024 = vmatmul.bf16.gmra.mxu0 %v2952
    %v4025 = vpop.f32.mrf.mxu0
    %v4026 = vadd.f32 %v3937, %v4025
    %v4027 = vpop.f32.mrf.mxu0
    %v4028 = vadd.f32 %v3939, %v4027
    %4029 = vmatmul.bf16.gmra.mxu0 %v2960
    %v4030 = vpop.f32.mrf.mxu0
    %v4031 = vadd.f32 %v3942, %v4030
    %v4032 = vpop.f32.mrf.mxu0
    %v4033 = vadd.f32 %v3944, %v4032
    %4034 = vmatmul.bf16.gmra.mxu0 %v2968
    %v4035 = vpop.f32.mrf.mxu0
    %v4036 = vadd.f32 %v3947, %v4035
    %v4037 = vpop.f32.mrf.mxu0
    %v4038 = vadd.f32 %v3949, %v4037
    %4039 = vmatmul.bf16.gmra.mxu0 %v2976
    %v4040 = vpop.f32.mrf.mxu0
    %v4041 = vadd.f32 %v3952, %v4040
    %v4042 = vpop.f32.mrf.mxu0
    %v4043 = vadd.f32 %v3954, %v4042
    %4044 = vmatmul.bf16.gmra.mxu0 %v2984
    %v4045 = vpop.f32.mrf.mxu0
    %v4046 = vadd.f32 %v3957, %v4045
    %v4047 = vpop.f32.mrf.mxu0
    %v4048 = vadd.f32 %v3959, %v4047
    %4049 = vmatmul.bf16.gmra.mxu0 %v2992
    %v4050 = vpop.f32.mrf.mxu0
    %v4051 = vadd.f32 %v3962, %v4050
    %v4052 = vpop.f32.mrf.mxu0
    %v4053 = vadd.f32 %v3964, %v4052
    %4054 = vmatmul.bf16.gmra.mxu0 %v3000
    %v4055 = vpop.f32.mrf.mxu0
    %v4056 = vadd.f32 %v3967, %v4055
    %v4057 = vpop.f32.mrf.mxu0
    %v4058 = vadd.f32 %v3969, %v4057
    %4059 = vmatmul.bf16.gmra.mxu0 %v3008
    %v4060 = vpop.f32.mrf.mxu0
    %v4061 = vadd.f32 %v3972, %v4060
    %v4062 = vpop.f32.mrf.mxu0
    %v4063 = vadd.f32 %v3974, %v4062
    %4064 = vmatmul.bf16.gmra.mxu0 %v3016
    %v4065 = vpop.f32.mrf.mxu0
    %v4066 = vadd.f32 %v3977, %v4065
    %v4067 = vpop.f32.mrf.mxu0
    %v4068 = vadd.f32 %v3979, %v4067
    %4069 = vmatmul.bf16.gmra.mxu0 %v3024
    %v4070 = vpop.f32.mrf.mxu0
    %v4071 = vadd.f32 %v3982, %v4070
    %v4072 = vpop.f32.mrf.mxu0
    %v4073 = vadd.f32 %v3984, %v4072
    %4074 = vmatmul.bf16.gmra.mxu0 %v3032
    %v4075 = vpop.f32.mrf.mxu0
    %v4076 = vadd.f32 %v3987, %v4075
    %v4077 = vpop.f32.mrf.mxu0
    %v4078 = vadd.f32 %v3989, %v4077
    %4079 = vmatmul.bf16.gmra.mxu0 %v3040
    %v4080 = vpop.f32.mrf.mxu0
    %v4081 = vadd.f32 %v3992, %v4080
    %v4082 = vpop.f32.mrf.mxu0
    %v4083 = vadd.f32 %v3994, %v4082
    %4084 = vmatmul.bf16.gmra.mxu0 %v3048
    %v4085 = vpop.f32.mrf.mxu0
    %v4086 = vadd.f32 %v3997, %v4085
    %v4087 = vpop.f32.mrf.mxu0
    %v4088 = vadd.f32 %v3999, %v4087
    %4089 = vmatmul.bf16.gmra.mxu0 %v3056
    %v4090 = vpop.f32.mrf.mxu0
    %v4091 = vadd.f32 %v4002, %v4090
    %v4092 = vpop.f32.mrf.mxu0
    %v4093 = vadd.f32 %v4004, %v4092
    %4094 = vmatmul.bf16.gmra.mxu0 %v3064
    %v4095 = vpop.f32.mrf.mxu0
    %v4096 = vadd.f32 %v4007, %v4095
    %v4097 = vpop.f32.mrf.mxu0
    %v4098 = vadd.f32 %v4009, %v4097
    %4099 = vmatmul.bf16.gmra.mxu0 %v3072
    %v4100 = vpop.f32.mrf.mxu0
    %v4101 = vadd.f32 %v4012, %v4100
    %v4102 = vpop.f32.mrf.mxu0
    %v4103 = vadd.f32 %v4014, %v4102
    %4104 = vdwg.mxu0
    %v4105 = vmax.f32 %v2354, 0.0
    %v4106 = vmax.f32 %v2356, 0.0
    %v4107 = vmax.f32 %v2359, 0.0
    %v4108 = vmax.f32 %v2361, 0.0
    %v4109 = vmax.f32 %v2364, 0.0
    %v4110 = vmax.f32 %v2366, 0.0
    %v4111 = vmax.f32 %v2369, 0.0
    %v4112 = vmax.f32 %v2371, 0.0
    %v4113 = vmax.f32 %v2374, 0.0
    %v4114 = vmax.f32 %v2376, 0.0
    %v4115 = vmax.f32 %v2379, 0.0
    %v4116 = vmax.f32 %v2381, 0.0
    %v4117 = vmax.f32 %v2384, 0.0
    %v4118 = vmax.f32 %v2386, 0.0
    %v4119 = vmax.f32 %v2389, 0.0
    %v4120 = vmax.f32 %v2391, 0.0
    %v4121 = vmax.f32 %v2394, 0.0
    %v4122 = vmax.f32 %v2396, 0.0
    %v4123 = vmax.f32 %v2399, 0.0
    %v4124 = vmax.f32 %v2401, 0.0
    %v4125 = vmax.f32 %v2404, 0.0
    %v4126 = vmax.f32 %v2406, 0.0
    %v4127 = vmax.f32 %v2409, 0.0
    %v4128 = vmax.f32 %v2411, 0.0
    %v4129 = vmax.f32 %v2414, 0.0
    %v4130 = vmax.f32 %v2416, 0.0
    %v4131 = vmax.f32 %v2419, 0.0
    %v4132 = vmax.f32 %v2421, 0.0
    %v4133 = vmax.f32 %v2424, 0.0
    %v4134 = vmax.f32 %v2426, 0.0
    %v4135 = vmax.f32 %v2429, 0.0
    %v4136 = vmax.f32 %v2431, 0.0
    %v4137 = vmax.f32 %v4026, 0.0
    %v4138 = vmax.f32 %v4028, 0.0
    %v4139 = vmax.f32 %v4031, 0.0
    %v4140 = vmax.f32 %v4033, 0.0
    %v4141 = vmax.f32 %v4036, 0.0
    %v4142 = vmax.f32 %v4038, 0.0
    %v4143 = vmax.f32 %v4041, 0.0
    %v4144 = vmax.f32 %v4043, 0.0
    %v4145 = vmax.f32 %v4046, 0.0
    %v4146 = vmax.f32 %v4048, 0.0
    %v4147 = vmax.f32 %v4051, 0.0
    %v4148 = vmax.f32 %v4053, 0.0
    %v4149 = vmax.f32 %v4056, 0.0
    %v4150 = vmax.f32 %v4058, 0.0
    %v4151 = vmax.f32 %v4061, 0.0
    %v4152 = vmax.f32 %v4063, 0.0
    %v4153 = vmax.f32 %v4066, 0.0
    %v4154 = vmax.f32 %v4068, 0.0
    %v4155 = vmax.f32 %v4071, 0.0
    %v4156 = vmax.f32 %v4073, 0.0
    %v4157 = vmax.f32 %v4076, 0.0
    %v4158 = vmax.f32 %v4078, 0.0
    %v4159 = vmax.f32 %v4081, 0.0
    %v4160 = vmax.f32 %v4083, 0.0
    %v4161 = vmax.f32 %v4086, 0.0
    %v4162 = vmax.f32 %v4088, 0.0
    %v4163 = vmax.f32 %v4091, 0.0
    %v4164 = vmax.f32 %v4093, 0.0
    %v4165 = vmax.f32 %v4096, 0.0
    %v4166 = vmax.f32 %v4098, 0.0
    %v4167 = vmax.f32 %v4101, 0.0
    %v4168 = vmax.f32 %v4103, 0.0
    %v4169 = vpack.c.bf16 %v4106, %v4105
    %v4170 = vpack.c.bf16 %v4108, %v4107
    %v4171 = vpack.c.bf16 %v4110, %v4109
    %v4172 = vpack.c.bf16 %v4112, %v4111
    %v4173 = vpack.c.bf16 %v4114, %v4113
    %v4174 = vpack.c.bf16 %v4116, %v4115
    %v4175 = vpack.c.bf16 %v4118, %v4117
    %v4176 = vpack.c.bf16 %v4120, %v4119
    %v4177 = vpack.c.bf16 %v4122, %v4121
    %v4178 = vpack.c.bf16 %v4124, %v4123
    %v4179 = vpack.c.bf16 %v4126, %v4125
    %v4180 = vpack.c.bf16 %v4128, %v4127
    %v4181 = vpack.c.bf16 %v4130, %v4129
    %v4182 = vpack.c.bf16 %v4132, %v4131
    %v4183 = vpack.c.bf16 %v4134, %v4133
    %v4184 = vpack.c.bf16 %v4136, %v4135
    %v4185 = vpack.c.bf16 %v4138, %v4137
    %v4186 = vpack.c.bf16 %v4140, %v4139
    %v4187 = vpack.c.bf16 %v4142, %v4141
    %v4188 = vpack.c.bf16 %v4144, %v4143
    %v4189 = vpack.c.bf16 %v4146, %v4145
    %v4190 = vpack.c.bf16 %v4148, %v4147
    %v4191 = vpack.c.bf16 %v4150, %v4149
    %v4192 = vpack.c.bf16 %v4152, %v4151
    %v4193 = vpack.c.bf16 %v4154, %v4153
    %v4194 = vpack.c.bf16 %v4156, %v4155
    %v4195 = vpack.c.bf16 %v4158, %v4157
    %v4196 = vpack.c.bf16 %v4160, %v4159
    %v4197 = vpack.c.bf16 %v4162, %v4161
    %v4198 = vpack.c.bf16 %v4164, %v4163
    %v4199 = vpack.c.bf16 %v4166, %v4165
    %v4200 = vpack.c.bf16 %v4168, %v4167
    %v4201 = vld [vmem:[#allocation7] sm:$0xf]
    %v4202 = vld [vmem:[#allocation7 + $0x4] sm:$0xf]
    %v4203 = vld [vmem:[#allocation7 + $0x8] sm:$0xf]
    %v4204 = vld [vmem:[#allocation7 + $0xc] sm:$0xf]
    %v4205 = vld [vmem:[#allocation7 + $0x10] sm:$0xf]
    %v4206 = vld [vmem:[#allocation7 + $0x14] sm:$0xf]
    %v4207 = vld [vmem:[#allocation7 + $0x18] sm:$0x1]
    %v4208 = vld [vmem:[#allocation8] sm:$0xf]
    %v4209 = vld [vmem:[#allocation8 + $0x4] sm:$0xf]
    %v4210 = vld [vmem:[#allocation8 + $0x8] sm:$0xf]
    %v4211 = vld [vmem:[#allocation8 + $0xc] sm:$0xf]
    %v4212 = vld [vmem:[#allocation8 + $0x10] sm:$0xf]
    %v4213 = vld [vmem:[#allocation8 + $0x14] sm:$0xf]
    %v4214 = vld [vmem:[#allocation8 + $0x18] sm:$0x1]
    %v4222 = vunpack.c.l.b16 %v4208
    %v4223 = vunpack.c.l.b16 %v4209
    %v4224 = vunpack.c.l.b16 %v4210
    %v4225 = vunpack.c.l.b16 %v4211
    %v4226 = vunpack.c.l.b16 %v4212
    %v4227 = vunpack.c.l.b16 %v4213
    %v4228 = vunpack.c.l.b16 %v4214
    %v4229 = vpack.c.b16 %v4223, %v4222
    %v4230 = vpack.c.b16 %v4225, %v4224
    %v4231 = vpack.c.b16 %v4227, %v4226
    %v4232 = vpack.c.b16 %v4228, %v4228
    %vm4236 = vcmask 408576
    %v4238 = vsel %vm4236, %v4185, 0
    %v4241 = vsel %vm4236, %v4186, 0
    %v4244 = vsel %vm4236, %v4187, 0
    %v4247 = vsel %vm4236, %v4188, 0
    %v4250 = vsel %vm4236, %v4189, 0
    %v4253 = vsel %vm4236, %v4190, 0
    %v4256 = vsel %vm4236, %v4191, 0
    %v4259 = vsel %vm4236, %v4192, 0
    %v4262 = vsel %vm4236, %v4193, 0
    %v4265 = vsel %vm4236, %v4194, 0
    %v4268 = vsel %vm4236, %v4195, 0
    %v4271 = vsel %vm4236, %v4196, 0
    %v4274 = vsel %vm4236, %v4197, 0
    %v4277 = vsel %vm4236, %v4198, 0
    %v4280 = vsel %vm4236, %v4199, 0
    %v4283 = vsel %vm4236, %v4200, 0
    %vm4285 = vcmask 1040384
    %v4287 = vsel %vm4285, %v4232, 0
    %4289 = vmatpush.bf16.msra.mxu0 0
    %4290 = vmatpush.bf16.msra.mxu0 0
    %4291 = vmatpush.bf16.msra.mxu0 0
    %4292 = vmatpush.bf16.msra.mxu0 0
    %4293 = vmatpush.bf16.msra.mxu0 %v4287
    %4294 = vmatpush.bf16.msra.mxu0 %v4231
    %4295 = vmatpush.bf16.msra.mxu0 %v4230
    %4296 = vmatpush.bf16.msra.mxu0 %v4229
    %4297 = vmatmul.bf16.gmra.mxu0 %v4238
    %v4298 = vpop.f32.mrf.mxu0
    %v4299 = vadd.f32 0.0, %v4298
    %v4300 = vpop.f32.mrf.mxu0
    %v4301 = vadd.f32 0.0, %v4300
    %4302 = vmatmul.bf16.gmra.mxu0 %v4241
    %v4303 = vpop.f32.mrf.mxu0
    %v4304 = vadd.f32 0.0, %v4303
    %v4305 = vpop.f32.mrf.mxu0
    %v4306 = vadd.f32 0.0, %v4305
    %4307 = vmatmul.bf16.gmra.mxu0 %v4244
    %v4308 = vpop.f32.mrf.mxu0
    %v4309 = vadd.f32 0.0, %v4308
    %v4310 = vpop.f32.mrf.mxu0
    %v4311 = vadd.f32 0.0, %v4310
    %4312 = vmatmul.bf16.gmra.mxu0 %v4247
    %v4313 = vpop.f32.mrf.mxu0
    %v4314 = vadd.f32 0.0, %v4313
    %v4315 = vpop.f32.mrf.mxu0
    %v4316 = vadd.f32 0.0, %v4315
    %4317 = vmatmul.bf16.gmra.mxu0 %v4250
    %v4318 = vpop.f32.mrf.mxu0
    %v4319 = vadd.f32 0.0, %v4318
    %v4320 = vpop.f32.mrf.mxu0
    %v4321 = vadd.f32 0.0, %v4320
    %4322 = vmatmul.bf16.gmra.mxu0 %v4253
    %v4323 = vpop.f32.mrf.mxu0
    %v4324 = vadd.f32 0.0, %v4323
    %v4325 = vpop.f32.mrf.mxu0
    %v4326 = vadd.f32 0.0, %v4325
    %4327 = vmatmul.bf16.gmra.mxu0 %v4256
    %v4328 = vpop.f32.mrf.mxu0
    %v4329 = vadd.f32 0.0, %v4328
    %v4330 = vpop.f32.mrf.mxu0
    %v4331 = vadd.f32 0.0, %v4330
    %4332 = vmatmul.bf16.gmra.mxu0 %v4259
    %v4333 = vpop.f32.mrf.mxu0
    %v4334 = vadd.f32 0.0, %v4333
    %v4335 = vpop.f32.mrf.mxu0
    %v4336 = vadd.f32 0.0, %v4335
    %4337 = vmatmul.bf16.gmra.mxu0 %v4262
    %v4338 = vpop.f32.mrf.mxu0
    %v4339 = vadd.f32 0.0, %v4338
    %v4340 = vpop.f32.mrf.mxu0
    %v4341 = vadd.f32 0.0, %v4340
    %4342 = vmatmul.bf16.gmra.mxu0 %v4265
    %v4343 = vpop.f32.mrf.mxu0
    %v4344 = vadd.f32 0.0, %v4343
    %v4345 = vpop.f32.mrf.mxu0
    %v4346 = vadd.f32 0.0, %v4345
    %4347 = vmatmul.bf16.gmra.mxu0 %v4268
    %v4348 = vpop.f32.mrf.mxu0
    %v4349 = vadd.f32 0.0, %v4348
    %v4350 = vpop.f32.mrf.mxu0
    %v4351 = vadd.f32 0.0, %v4350
    %4352 = vmatmul.bf16.gmra.mxu0 %v4271
    %v4353 = vpop.f32.mrf.mxu0
    %v4354 = vadd.f32 0.0, %v4353
    %v4355 = vpop.f32.mrf.mxu0
    %v4356 = vadd.f32 0.0, %v4355
    %4357 = vmatmul.bf16.gmra.mxu0 %v4274
    %v4358 = vpop.f32.mrf.mxu0
    %v4359 = vadd.f32 0.0, %v4358
    %v4360 = vpop.f32.mrf.mxu0
    %v4361 = vadd.f32 0.0, %v4360
    %4362 = vmatmul.bf16.gmra.mxu0 %v4277
    %v4363 = vpop.f32.mrf.mxu0
    %v4364 = vadd.f32 0.0, %v4363
    %v4365 = vpop.f32.mrf.mxu0
    %v4366 = vadd.f32 0.0, %v4365
    %4367 = vmatmul.bf16.gmra.mxu0 %v4280
    %v4368 = vpop.f32.mrf.mxu0
    %v4369 = vadd.f32 0.0, %v4368
    %v4370 = vpop.f32.mrf.mxu0
    %v4371 = vadd.f32 0.0, %v4370
    %4372 = vmatmul.bf16.gmra.mxu0 %v4283
    %v4373 = vpop.f32.mrf.mxu0
    %v4374 = vadd.f32 0.0, %v4373
    %v4375 = vpop.f32.mrf.mxu0
    %v4376 = vadd.f32 0.0, %v4375
    %4377 = vdwg.mxu0
    %v4385 = vunpack.c.l.b16 %v4201
    %v4386 = vunpack.c.l.b16 %v4202
    %v4387 = vunpack.c.l.b16 %v4203
    %v4388 = vunpack.c.l.b16 %v4204
    %v4389 = vunpack.c.l.b16 %v4205
    %v4390 = vunpack.c.l.b16 %v4206
    %v4391 = vunpack.c.l.b16 %v4207
    %v4392 = vpack.c.b16 %v4386, %v4385
    %v4393 = vpack.c.b16 %v4388, %v4387
    %v4394 = vpack.c.b16 %v4390, %v4389
    %v4395 = vpack.c.b16 %v4391, %v4391
    %v4400 = vsel %vm4236, %v4169, 0
    %v4403 = vsel %vm4236, %v4170, 0
    %v4406 = vsel %vm4236, %v4171, 0
    %v4409 = vsel %vm4236, %v4172, 0
    %v4412 = vsel %vm4236, %v4173, 0
    %v4415 = vsel %vm4236, %v4174, 0
    %v4418 = vsel %vm4236, %v4175, 0
    %v4421 = vsel %vm4236, %v4176, 0
    %v4424 = vsel %vm4236, %v4177, 0
    %v4427 = vsel %vm4236, %v4178, 0
    %v4430 = vsel %vm4236, %v4179, 0
    %v4433 = vsel %vm4236, %v4180, 0
    %v4436 = vsel %vm4236, %v4181, 0
    %v4439 = vsel %vm4236, %v4182, 0
    %v4442 = vsel %vm4236, %v4183, 0
    %v4445 = vsel %vm4236, %v4184, 0
    %v4448 = vsel %vm4285, %v4395, 0
    %4450 = vmatpush.bf16.msra.mxu0 0
    %4451 = vmatpush.bf16.msra.mxu0 0
    %4452 = vmatpush.bf16.msra.mxu0 0
    %4453 = vmatpush.bf16.msra.mxu0 0
    %4454 = vmatpush.bf16.msra.mxu0 %v4448
    %4455 = vmatpush.bf16.msra.mxu0 %v4394
    %4456 = vmatpush.bf16.msra.mxu0 %v4393
    %4457 = vmatpush.bf16.msra.mxu0 %v4392
    %4458 = vmatmul.bf16.gmra.mxu0 %v4400
    %v4459 = vpop.f32.mrf.mxu0
    %v4460 = vadd.f32 %v4299, %v4459
    %v4461 = vpop.f32.mrf.mxu0
    %v4462 = vadd.f32 %v4301, %v4461
    %4463 = vmatmul.bf16.gmra.mxu0 %v4403
    %v4464 = vpop.f32.mrf.mxu0
    %v4465 = vadd.f32 %v4304, %v4464
    %v4466 = vpop.f32.mrf.mxu0
    %v4467 = vadd.f32 %v4306, %v4466
    %4468 = vmatmul.bf16.gmra.mxu0 %v4406
    %v4469 = vpop.f32.mrf.mxu0
    %v4470 = vadd.f32 %v4309, %v4469
    %v4471 = vpop.f32.mrf.mxu0
    %v4472 = vadd.f32 %v4311, %v4471
    %4473 = vmatmul.bf16.gmra.mxu0 %v4409
    %v4474 = vpop.f32.mrf.mxu0
    %v4475 = vadd.f32 %v4314, %v4474
    %v4476 = vpop.f32.mrf.mxu0
    %v4477 = vadd.f32 %v4316, %v4476
    %4478 = vmatmul.bf16.gmra.mxu0 %v4412
    %v4479 = vpop.f32.mrf.mxu0
    %v4480 = vadd.f32 %v4319, %v4479
    %v4481 = vpop.f32.mrf.mxu0
    %v4482 = vadd.f32 %v4321, %v4481
    %4483 = vmatmul.bf16.gmra.mxu0 %v4415
    %v4484 = vpop.f32.mrf.mxu0
    %v4485 = vadd.f32 %v4324, %v4484
    %v4486 = vpop.f32.mrf.mxu0
    %v4487 = vadd.f32 %v4326, %v4486
    %4488 = vmatmul.bf16.gmra.mxu0 %v4418
    %v4489 = vpop.f32.mrf.mxu0
    %v4490 = vadd.f32 %v4329, %v4489
    %v4491 = vpop.f32.mrf.mxu0
    %v4492 = vadd.f32 %v4331, %v4491
    %4493 = vmatmul.bf16.gmra.mxu0 %v4421
    %v4494 = vpop.f32.mrf.mxu0
    %v4495 = vadd.f32 %v4334, %v4494
    %v4496 = vpop.f32.mrf.mxu0
    %v4497 = vadd.f32 %v4336, %v4496
    %4498 = vmatmul.bf16.gmra.mxu0 %v4424
    %v4499 = vpop.f32.mrf.mxu0
    %v4500 = vadd.f32 %v4339, %v4499
    %v4501 = vpop.f32.mrf.mxu0
    %v4502 = vadd.f32 %v4341, %v4501
    %4503 = vmatmul.bf16.gmra.mxu0 %v4427
    %v4504 = vpop.f32.mrf.mxu0
    %v4505 = vadd.f32 %v4344, %v4504
    %v4506 = vpop.f32.mrf.mxu0
    %v4507 = vadd.f32 %v4346, %v4506
    %4508 = vmatmul.bf16.gmra.mxu0 %v4430
    %v4509 = vpop.f32.mrf.mxu0
    %v4510 = vadd.f32 %v4349, %v4509
    %v4511 = vpop.f32.mrf.mxu0
    %v4512 = vadd.f32 %v4351, %v4511
    %4513 = vmatmul.bf16.gmra.mxu0 %v4433
    %v4514 = vpop.f32.mrf.mxu0
    %v4515 = vadd.f32 %v4354, %v4514
    %v4516 = vpop.f32.mrf.mxu0
    %v4517 = vadd.f32 %v4356, %v4516
    %4518 = vmatmul.bf16.gmra.mxu0 %v4436
    %v4519 = vpop.f32.mrf.mxu0
    %v4520 = vadd.f32 %v4359, %v4519
    %v4521 = vpop.f32.mrf.mxu0
    %v4522 = vadd.f32 %v4361, %v4521
    %4523 = vmatmul.bf16.gmra.mxu0 %v4439
    %v4524 = vpop.f32.mrf.mxu0
    %v4525 = vadd.f32 %v4364, %v4524
    %v4526 = vpop.f32.mrf.mxu0
    %v4527 = vadd.f32 %v4366, %v4526
    %4528 = vmatmul.bf16.gmra.mxu0 %v4442
    %v4529 = vpop.f32.mrf.mxu0
    %v4530 = vadd.f32 %v4369, %v4529
    %v4531 = vpop.f32.mrf.mxu0
    %v4532 = vadd.f32 %v4371, %v4531
    %4533 = vmatmul.bf16.gmra.mxu0 %v4445
    %v4534 = vpop.f32.mrf.mxu0
    %v4535 = vadd.f32 %v4374, %v4534
    %v4536 = vpop.f32.mrf.mxu0
    %v4537 = vadd.f32 %v4376, %v4536
    %4538 = vdwg.mxu0
    %v4539 = vpack.c.bf16 %v4460, %v4460
    %v4540 = vpack.c.bf16 %v4462, %v4462
    %v4541 = vpack.c.bf16 %v4465, %v4465
    %v4542 = vpack.c.bf16 %v4467, %v4467
    %v4543 = vpack.c.bf16 %v4470, %v4470
    %v4544 = vpack.c.bf16 %v4472, %v4472
    %v4545 = vpack.c.bf16 %v4475, %v4475
    %v4546 = vpack.c.bf16 %v4477, %v4477
    %v4547 = vpack.c.bf16 %v4480, %v4480
    %v4548 = vpack.c.bf16 %v4482, %v4482
    %v4549 = vpack.c.bf16 %v4485, %v4485
    %v4550 = vpack.c.bf16 %v4487, %v4487
    %v4551 = vpack.c.bf16 %v4490, %v4490
    %v4552 = vpack.c.bf16 %v4492, %v4492
    %v4553 = vpack.c.bf16 %v4495, %v4495
    %v4554 = vpack.c.bf16 %v4497, %v4497
    %v4555 = vpack.c.bf16 %v4500, %v4500
    %v4556 = vpack.c.bf16 %v4502, %v4502
    %v4557 = vpack.c.bf16 %v4505, %v4505
    %v4558 = vpack.c.bf16 %v4507, %v4507
    %v4559 = vpack.c.bf16 %v4510, %v4510
    %v4560 = vpack.c.bf16 %v4512, %v4512
    %v4561 = vpack.c.bf16 %v4515, %v4515
    %v4562 = vpack.c.bf16 %v4517, %v4517
    %v4563 = vpack.c.bf16 %v4520, %v4520
    %v4564 = vpack.c.bf16 %v4522, %v4522
    %v4565 = vpack.c.bf16 %v4525, %v4525
    %v4566 = vpack.c.bf16 %v4527, %v4527
    %v4567 = vpack.c.bf16 %v4530, %v4530
    %v4568 = vpack.c.bf16 %v4532, %v4532
    %v4569 = vpack.c.bf16 %v4535, %v4535
    %v4570 = vpack.c.bf16 %v4537, %v4537
    %v4603 = vunpack.c.l.b16 %v4539
    %v4604 = vunpack.c.l.b16 %v4540
    %v4605 = vunpack.c.l.b16 %v4541
    %v4606 = vunpack.c.l.b16 %v4542
    %v4607 = vunpack.c.l.b16 %v4543
    %v4608 = vunpack.c.l.b16 %v4544
    %v4609 = vunpack.c.l.b16 %v4545
    %v4610 = vunpack.c.l.b16 %v4546
    %v4611 = vunpack.c.l.b16 %v4547
    %v4612 = vunpack.c.l.b16 %v4548
    %v4613 = vunpack.c.l.b16 %v4549
    %v4614 = vunpack.c.l.b16 %v4550
    %v4615 = vunpack.c.l.b16 %v4551
    %v4616 = vunpack.c.l.b16 %v4552
    %v4617 = vunpack.c.l.b16 %v4553
    %v4618 = vunpack.c.l.b16 %v4554
    %v4619 = vunpack.c.l.b16 %v4555
    %v4620 = vunpack.c.l.b16 %v4556
    %v4621 = vunpack.c.l.b16 %v4557
    %v4622 = vunpack.c.l.b16 %v4558
    %v4623 = vunpack.c.l.b16 %v4559
    %v4624 = vunpack.c.l.b16 %v4560
    %v4625 = vunpack.c.l.b16 %v4561
    %v4626 = vunpack.c.l.b16 %v4562
    %v4627 = vunpack.c.l.b16 %v4563
    %v4628 = vunpack.c.l.b16 %v4564
    %v4629 = vunpack.c.l.b16 %v4565
    %v4630 = vunpack.c.l.b16 %v4566
    %v4631 = vunpack.c.l.b16 %v4567
    %v4632 = vunpack.c.l.b16 %v4568
    %v4633 = vunpack.c.l.b16 %v4569
    %v4634 = vunpack.c.l.b16 %v4570
    %v4635 = vpack.c.b16 %v4604, %v4603
    %v4636 = vpack.c.b16 %v4606, %v4605
    %v4637 = vpack.c.b16 %v4608, %v4607
    %v4638 = vpack.c.b16 %v4610, %v4609
    %v4639 = vpack.c.b16 %v4612, %v4611
    %v4640 = vpack.c.b16 %v4614, %v4613
    %v4641 = vpack.c.b16 %v4616, %v4615
    %v4642 = vpack.c.b16 %v4618, %v4617
    %v4643 = vpack.c.b16 %v4620, %v4619
    %v4644 = vpack.c.b16 %v4622, %v4621
    %v4645 = vpack.c.b16 %v4624, %v4623
    %v4646 = vpack.c.b16 %v4626, %v4625
    %v4647 = vpack.c.b16 %v4628, %v4627
    %v4648 = vpack.c.b16 %v4630, %v4629
    %v4649 = vpack.c.b16 %v4632, %v4631
    %v4650 = vpack.c.b16 %v4634, %v4633
    %4651 = vrot.lane.b32.xlu0 %v4635, 1
    %v4652 = vpop.permute.xlu0 %4651
    %4653 = vrot.lane.b32.xlu0 %v4636, 1
    %v4654 = vpop.permute.xlu0 %4653
    %4655 = vrot.lane.b32.xlu0 %v4637, 1
    %v4656 = vpop.permute.xlu0 %4655
    %4657 = vrot.lane.b32.xlu0 %v4638, 1
    %v4658 = vpop.permute.xlu0 %4657
    %4659 = vrot.lane.b32.xlu0 %v4639, 1
    %v4660 = vpop.permute.xlu0 %4659
    %4661 = vrot.lane.b32.xlu0 %v4640, 1
    %v4662 = vpop.permute.xlu0 %4661
    %4663 = vrot.lane.b32.xlu0 %v4641, 1
    %v4664 = vpop.permute.xlu0 %4663
    %4665 = vrot.lane.b32.xlu0 %v4642, 1
    %v4666 = vpop.permute.xlu0 %4665
    %4667 = vrot.lane.b32.xlu0 %v4643, 1
    %v4668 = vpop.permute.xlu0 %4667
    %4669 = vrot.lane.b32.xlu0 %v4644, 1
    %v4670 = vpop.permute.xlu0 %4669
    %4671 = vrot.lane.b32.xlu0 %v4645, 1
    %v4672 = vpop.permute.xlu0 %4671
    %4673 = vrot.lane.b32.xlu0 %v4646, 1
    %v4674 = vpop.permute.xlu0 %4673
    %4675 = vrot.lane.b32.xlu0 %v4647, 1
    %v4676 = vpop.permute.xlu0 %4675
    %4677 = vrot.lane.b32.xlu0 %v4648, 1
    %v4678 = vpop.permute.xlu0 %4677
    %4679 = vrot.lane.b32.xlu0 %v4649, 1
    %v4680 = vpop.permute.xlu0 %4679
    %4681 = vrot.lane.b32.xlu0 %v4650, 1
    %v4682 = vpop.permute.xlu0 %4681
    %v4683 = vld [vmem:[%s8] sm:$0xff]
    %v4684 = vld [vmem:[%s8 + $0x8] sm:$0xff]
    %v4685 = vld [vmem:[%s8 + $0x10] sm:$0xff]
    %v4686 = vld [vmem:[%s8 + $0x18] sm:$0xff]
    %v4687 = vld [vmem:[%s8 + $0x20] sm:$0xff]
    %v4688 = vld [vmem:[%s8 + $0x28] sm:$0xff]
    %v4689 = vld [vmem:[%s8 + $0x30] sm:$0xff]
    %v4690 = vld [vmem:[%s8 + $0x38] sm:$0xff]
    %v4691 = vld [vmem:[%s8 + $0x40] sm:$0xff]
    %v4692 = vld [vmem:[%s8 + $0x48] sm:$0xff]
    %v4693 = vld [vmem:[%s8 + $0x50] sm:$0xff]
    %v4694 = vld [vmem:[%s8 + $0x58] sm:$0xff]
    %v4695 = vld [vmem:[%s8 + $0x60] sm:$0xff]
    %v4696 = vld [vmem:[%s8 + $0x68] sm:$0xff]
    %v4697 = vld [vmem:[%s8 + $0x70] sm:$0xff]
    %v4698 = vld [vmem:[%s8 + $0x78] sm:$0xff]
    %v4699 = vld [vmem:[#allocation10] sm:$0xff]
    %v4700 = vld [vmem:[#allocation10 + $0x8] sm:$0xff]
    %v4701 = vld [vmem:[#allocation10 + $0x10] sm:$0xff]
    %v4702 = vld [vmem:[#allocation10 + $0x18] sm:$0xff]
    %v4703 = vld [vmem:[#allocation10 + $0x20] sm:$0xff]
    %v4704 = vld [vmem:[#allocation10 + $0x28] sm:$0xff]
    %v4705 = vld [vmem:[#allocation10 + $0x30] sm:$0xff]
    %v4706 = vld [vmem:[#allocation10 + $0x38] sm:$0xff]
    %v4707 = vld [vmem:[#allocation10 + $0x40] sm:$0xff]
    %v4708 = vld [vmem:[#allocation10 + $0x48] sm:$0xff]
    %v4709 = vld [vmem:[#allocation10 + $0x50] sm:$0xff]
    %v4710 = vld [vmem:[#allocation10 + $0x58] sm:$0xff]
    %v4711 = vld [vmem:[#allocation10 + $0x60] sm:$0xff]
    %v4712 = vld [vmem:[#allocation10 + $0x68] sm:$0xff]
    %v4713 = vld [vmem:[#allocation10 + $0x70] sm:$0xff]
    %v4714 = vld [vmem:[#allocation10 + $0x78] sm:$0xff]
    %v4715 = vld [vmem:[#allocation10 + $0x80] sm:$0xff]
    %v4716 = vld [vmem:[#allocation10 + $0x88] sm:$0xff]
    %v4717 = vld [vmem:[#allocation10 + $0x90] sm:$0xff]
    %v4718 = vld [vmem:[#allocation10 + $0x98] sm:$0xff]
    %v4719 = vld [vmem:[#allocation10 + $0xa0] sm:$0xff]
    %v4720 = vld [vmem:[#allocation10 + $0xa8] sm:$0xff]
    %v4721 = vld [vmem:[#allocation10 + $0xb0] sm:$0xff]
    %v4722 = vld [vmem:[#allocation10 + $0xb8] sm:$0xff]
    %v4723 = vld [vmem:[#allocation10 + $0xc0] sm:$0xff]
    %v4724 = vld [vmem:[#allocation10 + $0xc8] sm:$0xff]
    %v4725 = vld [vmem:[#allocation10 + $0xd0] sm:$0xff]
    %v4726 = vld [vmem:[#allocation10 + $0xd8] sm:$0xff]
    %v4727 = vld [vmem:[#allocation10 + $0xe0] sm:$0xff]
    %v4728 = vld [vmem:[#allocation10 + $0xe8] sm:$0xff]
    %v4729 = vld [vmem:[#allocation10 + $0xf0] sm:$0xff]
    %v4730 = vld [vmem:[#allocation10 + $0xf8] sm:$0xff]
    %4732 = vset.pattern.permute.xlu0 0
    %4733 = vperm.xlu0 %4732, %v4683
    %v4734 = vpop.permute.xlu0 %4733
    %4737 = vset.pattern.permute.xlu0 0
    %4738 = vperm.xlu0 %4737, %v4684
    %v4739 = vpop.permute.xlu0 %4738
    %4742 = vset.pattern.permute.xlu0 0
    %4743 = vperm.xlu0 %4742, %v4685
    %v4744 = vpop.permute.xlu0 %4743
    %4747 = vset.pattern.permute.xlu0 0
    %4748 = vperm.xlu0 %4747, %v4686
    %v4749 = vpop.permute.xlu0 %4748
    %4752 = vset.pattern.permute.xlu0 0
    %4753 = vperm.xlu0 %4752, %v4687
    %v4754 = vpop.permute.xlu0 %4753
    %4757 = vset.pattern.permute.xlu0 0
    %4758 = vperm.xlu0 %4757, %v4688
    %v4759 = vpop.permute.xlu0 %4758
    %4762 = vset.pattern.permute.xlu0 0
    %4763 = vperm.xlu0 %4762, %v4689
    %v4764 = vpop.permute.xlu0 %4763
    %4767 = vset.pattern.permute.xlu0 0
    %4768 = vperm.xlu0 %4767, %v4690
    %v4769 = vpop.permute.xlu0 %4768
    %4772 = vset.pattern.permute.xlu0 0
    %4773 = vperm.xlu0 %4772, %v4691
    %v4774 = vpop.permute.xlu0 %4773
    %4777 = vset.pattern.permute.xlu0 0
    %4778 = vperm.xlu0 %4777, %v4692
    %v4779 = vpop.permute.xlu0 %4778
    %4782 = vset.pattern.permute.xlu0 0
    %4783 = vperm.xlu0 %4782, %v4693
    %v4784 = vpop.permute.xlu0 %4783
    %4787 = vset.pattern.permute.xlu0 0
    %4788 = vperm.xlu0 %4787, %v4694
    %v4789 = vpop.permute.xlu0 %4788
    %4792 = vset.pattern.permute.xlu0 0
    %4793 = vperm.xlu0 %4792, %v4695
    %v4794 = vpop.permute.xlu0 %4793
    %4797 = vset.pattern.permute.xlu0 0
    %4798 = vperm.xlu0 %4797, %v4696
    %v4799 = vpop.permute.xlu0 %4798
    %4802 = vset.pattern.permute.xlu0 0
    %4803 = vperm.xlu0 %4802, %v4697
    %v4804 = vpop.permute.xlu0 %4803
    %4807 = vset.pattern.permute.xlu0 0
    %4808 = vperm.xlu0 %4807, %v4698
    %v4809 = vpop.permute.xlu0 %4808
    %v4843 = vunpack.c.l.b16 %v4699
    %v4844 = vunpack.c.h.b16 %v4699
    %v4845 = vunpack.c.l.b16 %v4700
    %v4846 = vunpack.c.h.b16 %v4700
    %v4847 = vunpack.c.l.b16 %v4701
    %v4848 = vunpack.c.h.b16 %v4701
    %v4849 = vunpack.c.l.b16 %v4702
    %v4850 = vunpack.c.h.b16 %v4702
    %v4851 = vunpack.c.l.b16 %v4703
    %v4852 = vunpack.c.h.b16 %v4703
    %v4853 = vunpack.c.l.b16 %v4704
    %v4854 = vunpack.c.h.b16 %v4704
    %v4855 = vunpack.c.l.b16 %v4705
    %v4856 = vunpack.c.h.b16 %v4705
    %v4857 = vunpack.c.l.b16 %v4706
    %v4858 = vunpack.c.h.b16 %v4706
    %v4859 = vunpack.c.l.b16 %v4707
    %v4860 = vunpack.c.h.b16 %v4707
    %v4861 = vunpack.c.l.b16 %v4708
    %v4862 = vunpack.c.h.b16 %v4708
    %v4863 = vunpack.c.l.b16 %v4709
    %v4864 = vunpack.c.h.b16 %v4709
    %v4865 = vunpack.c.l.b16 %v4710
    %v4866 = vunpack.c.h.b16 %v4710
    %v4867 = vunpack.c.l.b16 %v4711
    %v4868 = vunpack.c.h.b16 %v4711
    %v4869 = vunpack.c.l.b16 %v4712
    %v4870 = vunpack.c.h.b16 %v4712
    %v4871 = vunpack.c.l.b16 %v4713
    %v4872 = vunpack.c.h.b16 %v4713
    %v4873 = vunpack.c.l.b16 %v4714
    %v4874 = vunpack.c.h.b16 %v4714
    %v4875 = vunpack.c.l.b16 %v4715
    %v4876 = vunpack.c.h.b16 %v4715
    %v4877 = vunpack.c.l.b16 %v4716
    %v4878 = vunpack.c.h.b16 %v4716
    %v4879 = vunpack.c.l.b16 %v4717
    %v4880 = vunpack.c.h.b16 %v4717
    %v4881 = vunpack.c.l.b16 %v4718
    %v4882 = vunpack.c.h.b16 %v4718
    %v4883 = vunpack.c.l.b16 %v4719
    %v4884 = vunpack.c.h.b16 %v4719
    %v4885 = vunpack.c.l.b16 %v4720
    %v4886 = vunpack.c.h.b16 %v4720
    %v4887 = vunpack.c.l.b16 %v4721
    %v4888 = vunpack.c.h.b16 %v4721
    %v4889 = vunpack.c.l.b16 %v4722
    %v4890 = vunpack.c.h.b16 %v4722
    %v4891 = vunpack.c.l.b16 %v4723
    %v4892 = vunpack.c.h.b16 %v4723
    %v4893 = vunpack.c.l.b16 %v4724
    %v4894 = vunpack.c.h.b16 %v4724
    %v4895 = vunpack.c.l.b16 %v4725
    %v4896 = vunpack.c.h.b16 %v4725
    %v4897 = vunpack.c.l.b16 %v4726
    %v4898 = vunpack.c.h.b16 %v4726
    %v4899 = vunpack.c.l.b16 %v4727
    %v4900 = vunpack.c.h.b16 %v4727
    %v4901 = vunpack.c.l.b16 %v4728
    %v4902 = vunpack.c.h.b16 %v4728
    %v4903 = vunpack.c.l.b16 %v4729
    %v4904 = vunpack.c.h.b16 %v4729
    %v4905 = vunpack.c.l.b16 %v4730
    %v4906 = vunpack.c.h.b16 %v4730
    %v4907 = vpack.c.b16 %v4847, %v4843
    %v4908 = vpack.c.b16 %v4848, %v4844
    %v4909 = vpack.c.b16 %v4849, %v4845
    %v4910 = vpack.c.b16 %v4850, %v4846
    %v4911 = vpack.c.b16 %v4855, %v4851
    %v4912 = vpack.c.b16 %v4856, %v4852
    %v4913 = vpack.c.b16 %v4857, %v4853
    %v4914 = vpack.c.b16 %v4858, %v4854
    %v4915 = vpack.c.b16 %v4863, %v4859
    %v4916 = vpack.c.b16 %v4864, %v4860
    %v4917 = vpack.c.b16 %v4865, %v4861
    %v4918 = vpack.c.b16 %v4866, %v4862
    %v4919 = vpack.c.b16 %v4871, %v4867
    %v4920 = vpack.c.b16 %v4872, %v4868
    %v4921 = vpack.c.b16 %v4873, %v4869
    %v4922 = vpack.c.b16 %v4874, %v4870
    %v4923 = vpack.c.b16 %v4879, %v4875
    %v4924 = vpack.c.b16 %v4880, %v4876
    %v4925 = vpack.c.b16 %v4881, %v4877
    %v4926 = vpack.c.b16 %v4882, %v4878
    %v4927 = vpack.c.b16 %v4887, %v4883
    %v4928 = vpack.c.b16 %v4888, %v4884
    %v4929 = vpack.c.b16 %v4889, %v4885
    %v4930 = vpack.c.b16 %v4890, %v4886
    %v4931 = vpack.c.b16 %v4895, %v4891
    %v4932 = vpack.c.b16 %v4896, %v4892
    %v4933 = vpack.c.b16 %v4897, %v4893
    %v4934 = vpack.c.b16 %v4898, %v4894
    %v4935 = vpack.c.b16 %v4903, %v4899
    %v4936 = vpack.c.b16 %v4904, %v4900
    %v4937 = vpack.c.b16 %v4905, %v4901
    %v4938 = vpack.c.b16 %v4906, %v4902
    %4971 = vrot.lane.b32.xlu0 %v4635, 127
    %v4972 = vpop.permute.xlu0 %4971
    %4973 = vrot.lane.b32.xlu0 %v4636, 127
    %v4974 = vpop.permute.xlu0 %4973
    %4975 = vrot.lane.b32.xlu0 %v4637, 127
    %v4976 = vpop.permute.xlu0 %4975
    %4977 = vrot.lane.b32.xlu0 %v4638, 127
    %v4978 = vpop.permute.xlu0 %4977
    %4979 = vrot.lane.b32.xlu0 %v4639, 127
    %v4980 = vpop.permute.xlu0 %4979
    %4981 = vrot.lane.b32.xlu0 %v4640, 127
    %v4982 = vpop.permute.xlu0 %4981
    %4983 = vrot.lane.b32.xlu0 %v4641, 127
    %v4984 = vpop.permute.xlu0 %4983
    %4985 = vrot.lane.b32.xlu0 %v4642, 127
    %v4986 = vpop.permute.xlu0 %4985
    %4987 = vrot.lane.b32.xlu0 %v4643, 127
    %v4988 = vpop.permute.xlu0 %4987
    %4989 = vrot.lane.b32.xlu0 %v4644, 127
    %v4990 = vpop.permute.xlu0 %4989
    %4991 = vrot.lane.b32.xlu0 %v4645, 127
    %v4992 = vpop.permute.xlu0 %4991
    %4993 = vrot.lane.b32.xlu0 %v4646, 127
    %v4994 = vpop.permute.xlu0 %4993
    %4995 = vrot.lane.b32.xlu0 %v4647, 127
    %v4996 = vpop.permute.xlu0 %4995
    %4997 = vrot.lane.b32.xlu0 %v4648, 127
    %v4998 = vpop.permute.xlu0 %4997
    %4999 = vrot.lane.b32.xlu0 %v4649, 127
    %v5000 = vpop.permute.xlu0 %4999
    %5001 = vrot.lane.b32.xlu0 %v4650, 127
    %v5002 = vpop.permute.xlu0 %5001
    %5003 = vrot.lane.b32.xlu0 %v4652, 127
    %v5004 = vpop.permute.xlu0 %5003
    %5005 = vrot.lane.b32.xlu0 %v4654, 127
    %v5006 = vpop.permute.xlu0 %5005
    %5007 = vrot.lane.b32.xlu0 %v4656, 127
    %v5008 = vpop.permute.xlu0 %5007
    %5009 = vrot.lane.b32.xlu0 %v4658, 127
    %v5010 = vpop.permute.xlu0 %5009
    %5011 = vrot.lane.b32.xlu0 %v4660, 127
    %v5012 = vpop.permute.xlu0 %5011
    %5013 = vrot.lane.b32.xlu0 %v4662, 127
    %v5014 = vpop.permute.xlu0 %5013
    %5015 = vrot.lane.b32.xlu0 %v4664, 127
    %v5016 = vpop.permute.xlu0 %5015
    %5017 = vrot.lane.b32.xlu0 %v4666, 127
    %v5018 = vpop.permute.xlu0 %5017
    %5019 = vrot.lane.b32.xlu0 %v4668, 127
    %v5020 = vpop.permute.xlu0 %5019
    %5021 = vrot.lane.b32.xlu0 %v4670, 127
    %v5022 = vpop.permute.xlu0 %5021
    %5023 = vrot.lane.b32.xlu0 %v4672, 127
    %v5024 = vpop.permute.xlu0 %5023
    %5025 = vrot.lane.b32.xlu0 %v4674, 127
    %v5026 = vpop.permute.xlu0 %5025
    %5027 = vrot.lane.b32.xlu0 %v4676, 127
    %v5028 = vpop.permute.xlu0 %5027
    %5029 = vrot.lane.b32.xlu0 %v4678, 127
    %v5030 = vpop.permute.xlu0 %5029
    %5031 = vrot.lane.b32.xlu0 %v4680, 127
    %v5032 = vpop.permute.xlu0 %5031
    %5033 = vrot.lane.b32.xlu0 %v4682, 127
    %v5034 = vpop.permute.xlu0 %5033
    %5067 = vmatpush.bf16.msra.mxu0 %v4986
    %5068 = vmatpush.bf16.msra.mxu0 %v4984
    %5069 = vmatpush.bf16.msra.mxu0 %v4982
    %5070 = vmatpush.bf16.msra.mxu0 %v4980
    %5071 = vmatpush.bf16.msra.mxu0 %v4978
    %5072 = vmatpush.bf16.msra.mxu0 %v4976
    %5073 = vmatpush.bf16.msra.mxu0 %v4974
    %5074 = vmatpush.bf16.msra.mxu0 %v4972
    %5075 = vmatmul.bf16.gmra.mxu0 %v4907
    %v5076 = vpop.f32.mrf.mxu0
    %v5077 = vadd.f32 %v4734, %v5076
    %v5078 = vpop.f32.mrf.mxu0
    %v5079 = vadd.f32 %v4739, %v5078
    %5080 = vmatmul.bf16.gmra.mxu0 %v4911
    %v5081 = vpop.f32.mrf.mxu0
    %v5082 = vadd.f32 %v4744, %v5081
    %v5083 = vpop.f32.mrf.mxu0
    %v5084 = vadd.f32 %v4749, %v5083
    %5085 = vmatmul.bf16.gmra.mxu0 %v4915
    %v5086 = vpop.f32.mrf.mxu0
    %v5087 = vadd.f32 %v4754, %v5086
    %v5088 = vpop.f32.mrf.mxu0
    %v5089 = vadd.f32 %v4759, %v5088
    %5090 = vmatmul.bf16.gmra.mxu0 %v4919
    %v5091 = vpop.f32.mrf.mxu0
    %v5092 = vadd.f32 %v4764, %v5091
    %v5093 = vpop.f32.mrf.mxu0
    %v5094 = vadd.f32 %v4769, %v5093
    %5095 = vmatmul.bf16.gmra.mxu0 %v4923
    %v5096 = vpop.f32.mrf.mxu0
    %v5097 = vadd.f32 %v4774, %v5096
    %v5098 = vpop.f32.mrf.mxu0
    %v5099 = vadd.f32 %v4779, %v5098
    %5100 = vmatmul.bf16.gmra.mxu0 %v4927
    %v5101 = vpop.f32.mrf.mxu0
    %v5102 = vadd.f32 %v4784, %v5101
    %v5103 = vpop.f32.mrf.mxu0
    %v5104 = vadd.f32 %v4789, %v5103
    %5105 = vmatmul.bf16.gmra.mxu0 %v4931
    %v5106 = vpop.f32.mrf.mxu0
    %v5107 = vadd.f32 %v4794, %v5106
    %v5108 = vpop.f32.mrf.mxu0
    %v5109 = vadd.f32 %v4799, %v5108
    %5110 = vmatmul.bf16.gmra.mxu0 %v4935
    %v5111 = vpop.f32.mrf.mxu0
    %v5112 = vadd.f32 %v4804, %v5111
    %v5113 = vpop.f32.mrf.mxu0
    %v5114 = vadd.f32 %v4809, %v5113
    %5115 = vdwg.mxu0
    %5116 = vmatpush.bf16.msra.mxu0 %v5002
    %5117 = vmatpush.bf16.msra.mxu0 %v5000
    %5118 = vmatpush.bf16.msra.mxu0 %v4998
    %5119 = vmatpush.bf16.msra.mxu0 %v4996
    %5120 = vmatpush.bf16.msra.mxu0 %v4994
    %5121 = vmatpush.bf16.msra.mxu0 %v4992
    %5122 = vmatpush.bf16.msra.mxu0 %v4990
    %5123 = vmatpush.bf16.msra.mxu0 %v4988
    %5124 = vmatmul.bf16.gmra.mxu0 %v4908
    %v5125 = vpop.f32.mrf.mxu0
    %v5126 = vadd.f32 %v5077, %v5125
    %v5127 = vpop.f32.mrf.mxu0
    %v5128 = vadd.f32 %v5079, %v5127
    %5129 = vmatmul.bf16.gmra.mxu0 %v4912
    %v5130 = vpop.f32.mrf.mxu0
    %v5131 = vadd.f32 %v5082, %v5130
    %v5132 = vpop.f32.mrf.mxu0
    %v5133 = vadd.f32 %v5084, %v5132
    %5134 = vmatmul.bf16.gmra.mxu0 %v4916
    %v5135 = vpop.f32.mrf.mxu0
    %v5136 = vadd.f32 %v5087, %v5135
    %v5137 = vpop.f32.mrf.mxu0
    %v5138 = vadd.f32 %v5089, %v5137
    %5139 = vmatmul.bf16.gmra.mxu0 %v4920
    %v5140 = vpop.f32.mrf.mxu0
    %v5141 = vadd.f32 %v5092, %v5140
    %v5142 = vpop.f32.mrf.mxu0
    %v5143 = vadd.f32 %v5094, %v5142
    %5144 = vmatmul.bf16.gmra.mxu0 %v4924
    %v5145 = vpop.f32.mrf.mxu0
    %v5146 = vadd.f32 %v5097, %v5145
    %v5147 = vpop.f32.mrf.mxu0
    %v5148 = vadd.f32 %v5099, %v5147
    %5149 = vmatmul.bf16.gmra.mxu0 %v4928
    %v5150 = vpop.f32.mrf.mxu0
    %v5151 = vadd.f32 %v5102, %v5150
    %v5152 = vpop.f32.mrf.mxu0
    %v5153 = vadd.f32 %v5104, %v5152
    %5154 = vmatmul.bf16.gmra.mxu0 %v4932
    %v5155 = vpop.f32.mrf.mxu0
    %v5156 = vadd.f32 %v5107, %v5155
    %v5157 = vpop.f32.mrf.mxu0
    %v5158 = vadd.f32 %v5109, %v5157
    %5159 = vmatmul.bf16.gmra.mxu0 %v4936
    %v5160 = vpop.f32.mrf.mxu0
    %v5161 = vadd.f32 %v5112, %v5160
    %v5162 = vpop.f32.mrf.mxu0
    %v5163 = vadd.f32 %v5114, %v5162
    %5164 = vdwg.mxu0
    %5165 = vmatpush.bf16.msra.mxu0 %v5018
    %5166 = vmatpush.bf16.msra.mxu0 %v5016
    %5167 = vmatpush.bf16.msra.mxu0 %v5014
    %5168 = vmatpush.bf16.msra.mxu0 %v5012
    %5169 = vmatpush.bf16.msra.mxu0 %v5010
    %5170 = vmatpush.bf16.msra.mxu0 %v5008
    %5171 = vmatpush.bf16.msra.mxu0 %v5006
    %5172 = vmatpush.bf16.msra.mxu0 %v5004
    %5173 = vmatmul.bf16.gmra.mxu0 %v4909
    %v5174 = vpop.f32.mrf.mxu0
    %v5175 = vadd.f32 %v5126, %v5174
    %v5176 = vpop.f32.mrf.mxu0
    %v5177 = vadd.f32 %v5128, %v5176
    %5178 = vmatmul.bf16.gmra.mxu0 %v4913
    %v5179 = vpop.f32.mrf.mxu0
    %v5180 = vadd.f32 %v5131, %v5179
    %v5181 = vpop.f32.mrf.mxu0
    %v5182 = vadd.f32 %v5133, %v5181
    %5183 = vmatmul.bf16.gmra.mxu0 %v4917
    %v5184 = vpop.f32.mrf.mxu0
    %v5185 = vadd.f32 %v5136, %v5184
    %v5186 = vpop.f32.mrf.mxu0
    %v5187 = vadd.f32 %v5138, %v5186
    %5188 = vmatmul.bf16.gmra.mxu0 %v4921
    %v5189 = vpop.f32.mrf.mxu0
    %v5190 = vadd.f32 %v5141, %v5189
    %v5191 = vpop.f32.mrf.mxu0
    %v5192 = vadd.f32 %v5143, %v5191
    %5193 = vmatmul.bf16.gmra.mxu0 %v4925
    %v5194 = vpop.f32.mrf.mxu0
    %v5195 = vadd.f32 %v5146, %v5194
    %v5196 = vpop.f32.mrf.mxu0
    %v5197 = vadd.f32 %v5148, %v5196
    %5198 = vmatmul.bf16.gmra.mxu0 %v4929
    %v5199 = vpop.f32.mrf.mxu0
    %v5200 = vadd.f32 %v5151, %v5199
    %v5201 = vpop.f32.mrf.mxu0
    %v5202 = vadd.f32 %v5153, %v5201
    %5203 = vmatmul.bf16.gmra.mxu0 %v4933
    %v5204 = vpop.f32.mrf.mxu0
    %v5205 = vadd.f32 %v5156, %v5204
    %v5206 = vpop.f32.mrf.mxu0
    %v5207 = vadd.f32 %v5158, %v5206
    %5208 = vmatmul.bf16.gmra.mxu0 %v4937
    %v5209 = vpop.f32.mrf.mxu0
    %v5210 = vadd.f32 %v5161, %v5209
    %v5211 = vpop.f32.mrf.mxu0
    %v5212 = vadd.f32 %v5163, %v5211
    %5213 = vdwg.mxu0
    %5214 = vmatpush.bf16.msra.mxu0 %v5034
    %5215 = vmatpush.bf16.msra.mxu0 %v5032
    %5216 = vmatpush.bf16.msra.mxu0 %v5030
    %5217 = vmatpush.bf16.msra.mxu0 %v5028
    %5218 = vmatpush.bf16.msra.mxu0 %v5026
    %5219 = vmatpush.bf16.msra.mxu0 %v5024
    %5220 = vmatpush.bf16.msra.mxu0 %v5022
    %5221 = vmatpush.bf16.msra.mxu0 %v5020
    %5222 = vmatmul.bf16.gmra.mxu0 %v4910
    %v5223 = vpop.f32.mrf.mxu0
    %v5224 = vadd.f32 %v5175, %v5223
    %v5225 = vpop.f32.mrf.mxu0
    %v5226 = vadd.f32 %v5177, %v5225
    %5227 = vmatmul.bf16.gmra.mxu0 %v4914
    %v5228 = vpop.f32.mrf.mxu0
    %v5229 = vadd.f32 %v5180, %v5228
    %v5230 = vpop.f32.mrf.mxu0
    %v5231 = vadd.f32 %v5182, %v5230
    %5232 = vmatmul.bf16.gmra.mxu0 %v4918
    %v5233 = vpop.f32.mrf.mxu0
    %v5234 = vadd.f32 %v5185, %v5233
    %v5235 = vpop.f32.mrf.mxu0
    %v5236 = vadd.f32 %v5187, %v5235
    %5237 = vmatmul.bf16.gmra.mxu0 %v4922
    %v5238 = vpop.f32.mrf.mxu0
    %v5239 = vadd.f32 %v5190, %v5238
    %v5240 = vpop.f32.mrf.mxu0
    %v5241 = vadd.f32 %v5192, %v5240
    %5242 = vmatmul.bf16.gmra.mxu0 %v4926
    %v5243 = vpop.f32.mrf.mxu0
    %v5244 = vadd.f32 %v5195, %v5243
    %v5245 = vpop.f32.mrf.mxu0
    %v5246 = vadd.f32 %v5197, %v5245
    %5247 = vmatmul.bf16.gmra.mxu0 %v4930
    %v5248 = vpop.f32.mrf.mxu0
    %v5249 = vadd.f32 %v5200, %v5248
    %v5250 = vpop.f32.mrf.mxu0
    %v5251 = vadd.f32 %v5202, %v5250
    %5252 = vmatmul.bf16.gmra.mxu0 %v4934
    %v5253 = vpop.f32.mrf.mxu0
    %v5254 = vadd.f32 %v5205, %v5253
    %v5255 = vpop.f32.mrf.mxu0
    %v5256 = vadd.f32 %v5207, %v5255
    %5257 = vmatmul.bf16.gmra.mxu0 %v4938
    %v5258 = vpop.f32.mrf.mxu0
    %v5259 = vadd.f32 %v5210, %v5258
    %v5260 = vpop.f32.mrf.mxu0
    %v5261 = vadd.f32 %v5212, %v5260
    %5262 = vdwg.mxu0
    %v5263 = vld [vmem:[#allocation11] sm:$0xff]
    %v5264 = vld [vmem:[#allocation11 + $0x8] sm:$0xff]
    %v5265 = vld [vmem:[#allocation11 + $0x10] sm:$0xff]
    %v5266 = vld [vmem:[#allocation11 + $0x18] sm:$0xff]
    %v5267 = vld [vmem:[#allocation11 + $0x20] sm:$0xff]
    %v5268 = vld [vmem:[#allocation11 + $0x28] sm:$0xff]
    %v5269 = vld [vmem:[#allocation11 + $0x30] sm:$0xff]
    %v5270 = vld [vmem:[#allocation11 + $0x38] sm:$0xff]
    %v5271 = vld [vmem:[#allocation11 + $0x40] sm:$0xff]
    %v5272 = vld [vmem:[#allocation11 + $0x48] sm:$0xff]
    %v5273 = vld [vmem:[#allocation11 + $0x50] sm:$0xff]
    %v5274 = vld [vmem:[#allocation11 + $0x58] sm:$0xff]
    %v5275 = vld [vmem:[#allocation11 + $0x60] sm:$0xff]
    %v5276 = vld [vmem:[#allocation11 + $0x68] sm:$0xff]
    %v5277 = vld [vmem:[#allocation11 + $0x70] sm:$0xff]
    %v5278 = vld [vmem:[#allocation11 + $0x78] sm:$0xff]
    %v5279 = vld [vmem:[#allocation11 + $0x80] sm:$0xff]
    %v5280 = vld [vmem:[#allocation11 + $0x88] sm:$0xff]
    %v5281 = vld [vmem:[#allocation11 + $0x90] sm:$0xff]
    %v5282 = vld [vmem:[#allocation11 + $0x98] sm:$0xff]
    %v5283 = vld [vmem:[#allocation11 + $0xa0] sm:$0xff]
    %v5284 = vld [vmem:[#allocation11 + $0xa8] sm:$0xff]
    %v5285 = vld [vmem:[#allocation11 + $0xb0] sm:$0xff]
    %v5286 = vld [vmem:[#allocation11 + $0xb8] sm:$0xff]
    %v5287 = vld [vmem:[#allocation11 + $0xc0] sm:$0xff]
    %v5288 = vld [vmem:[#allocation11 + $0xc8] sm:$0xff]
    %v5289 = vld [vmem:[#allocation11 + $0xd0] sm:$0xff]
    %v5290 = vld [vmem:[#allocation11 + $0xd8] sm:$0xff]
    %v5291 = vld [vmem:[#allocation11 + $0xe0] sm:$0xff]
    %v5292 = vld [vmem:[#allocation11 + $0xe8] sm:$0xff]
    %v5293 = vld [vmem:[#allocation11 + $0xf0] sm:$0xff]
    %v5294 = vld [vmem:[#allocation11 + $0xf8] sm:$0xff]
    %v5327 = vunpack.c.l.b16 %v5263
    %v5328 = vunpack.c.h.b16 %v5263
    %v5329 = vunpack.c.l.b16 %v5264
    %v5330 = vunpack.c.h.b16 %v5264
    %v5331 = vunpack.c.l.b16 %v5265
    %v5332 = vunpack.c.h.b16 %v5265
    %v5333 = vunpack.c.l.b16 %v5266
    %v5334 = vunpack.c.h.b16 %v5266
    %v5335 = vunpack.c.l.b16 %v5267
    %v5336 = vunpack.c.h.b16 %v5267
    %v5337 = vunpack.c.l.b16 %v5268
    %v5338 = vunpack.c.h.b16 %v5268
    %v5339 = vunpack.c.l.b16 %v5269
    %v5340 = vunpack.c.h.b16 %v5269
    %v5341 = vunpack.c.l.b16 %v5270
    %v5342 = vunpack.c.h.b16 %v5270
    %v5343 = vunpack.c.l.b16 %v5271
    %v5344 = vunpack.c.h.b16 %v5271
    %v5345 = vunpack.c.l.b16 %v5272
    %v5346 = vunpack.c.h.b16 %v5272
    %v5347 = vunpack.c.l.b16 %v5273
    %v5348 = vunpack.c.h.b16 %v5273
    %v5349 = vunpack.c.l.b16 %v5274
    %v5350 = vunpack.c.h.b16 %v5274
    %v5351 = vunpack.c.l.b16 %v5275
    %v5352 = vunpack.c.h.b16 %v5275
    %v5353 = vunpack.c.l.b16 %v5276
    %v5354 = vunpack.c.h.b16 %v5276
    %v5355 = vunpack.c.l.b16 %v5277
    %v5356 = vunpack.c.h.b16 %v5277
    %v5357 = vunpack.c.l.b16 %v5278
    %v5358 = vunpack.c.h.b16 %v5278
    %v5359 = vunpack.c.l.b16 %v5279
    %v5360 = vunpack.c.h.b16 %v5279
    %v5361 = vunpack.c.l.b16 %v5280
    %v5362 = vunpack.c.h.b16 %v5280
    %v5363 = vunpack.c.l.b16 %v5281
    %v5364 = vunpack.c.h.b16 %v5281
    %v5365 = vunpack.c.l.b16 %v5282
    %v5366 = vunpack.c.h.b16 %v5282
    %v5367 = vunpack.c.l.b16 %v5283
    %v5368 = vunpack.c.h.b16 %v5283
    %v5369 = vunpack.c.l.b16 %v5284
    %v5370 = vunpack.c.h.b16 %v5284
    %v5371 = vunpack.c.l.b16 %v5285
    %v5372 = vunpack.c.h.b16 %v5285
    %v5373 = vunpack.c.l.b16 %v5286
    %v5374 = vunpack.c.h.b16 %v5286
    %v5375 = vunpack.c.l.b16 %v5287
    %v5376 = vunpack.c.h.b16 %v5287
    %v5377 = vunpack.c.l.b16 %v5288
    %v5378 = vunpack.c.h.b16 %v5288
    %v5379 = vunpack.c.l.b16 %v5289
    %v5380 = vunpack.c.h.b16 %v5289
    %v5381 = vunpack.c.l.b16 %v5290
    %v5382 = vunpack.c.h.b16 %v5290
    %v5383 = vunpack.c.l.b16 %v5291
    %v5384 = vunpack.c.h.b16 %v5291
    %v5385 = vunpack.c.l.b16 %v5292
    %v5386 = vunpack.c.h.b16 %v5292
    %v5387 = vunpack.c.l.b16 %v5293
    %v5388 = vunpack.c.h.b16 %v5293
    %v5389 = vunpack.c.l.b16 %v5294
    %v5390 = vunpack.c.h.b16 %v5294
    %v5391 = vpack.c.b16 %v5331, %v5327
    %v5392 = vpack.c.b16 %v5332, %v5328
    %v5393 = vpack.c.b16 %v5333, %v5329
    %v5394 = vpack.c.b16 %v5334, %v5330
    %v5395 = vpack.c.b16 %v5339, %v5335
    %v5396 = vpack.c.b16 %v5340, %v5336
    %v5397 = vpack.c.b16 %v5341, %v5337
    %v5398 = vpack.c.b16 %v5342, %v5338
    %v5399 = vpack.c.b16 %v5347, %v5343
    %v5400 = vpack.c.b16 %v5348, %v5344
    %v5401 = vpack.c.b16 %v5349, %v5345
    %v5402 = vpack.c.b16 %v5350, %v5346
    %v5403 = vpack.c.b16 %v5355, %v5351
    %v5404 = vpack.c.b16 %v5356, %v5352
    %v5405 = vpack.c.b16 %v5357, %v5353
    %v5406 = vpack.c.b16 %v5358, %v5354
    %v5407 = vpack.c.b16 %v5363, %v5359
    %v5408 = vpack.c.b16 %v5364, %v5360
    %v5409 = vpack.c.b16 %v5365, %v5361
    %v5410 = vpack.c.b16 %v5366, %v5362
    %v5411 = vpack.c.b16 %v5371, %v5367
    %v5412 = vpack.c.b16 %v5372, %v5368
    %v5413 = vpack.c.b16 %v5373, %v5369
    %v5414 = vpack.c.b16 %v5374, %v5370
    %v5415 = vpack.c.b16 %v5379, %v5375
    %v5416 = vpack.c.b16 %v5380, %v5376
    %v5417 = vpack.c.b16 %v5381, %v5377
    %v5418 = vpack.c.b16 %v5382, %v5378
    %v5419 = vpack.c.b16 %v5387, %v5383
    %v5420 = vpack.c.b16 %v5388, %v5384
    %v5421 = vpack.c.b16 %v5389, %v5385
    %v5422 = vpack.c.b16 %v5390, %v5386
    %5455 = vrot.lane.b32.xlu0 %v4635, 126
    %v5456 = vpop.permute.xlu0 %5455
    %5457 = vrot.lane.b32.xlu0 %v4636, 126
    %v5458 = vpop.permute.xlu0 %5457
    %5459 = vrot.lane.b32.xlu0 %v4637, 126
    %v5460 = vpop.permute.xlu0 %5459
    %5461 = vrot.lane.b32.xlu0 %v4638, 126
    %v5462 = vpop.permute.xlu0 %5461
    %5463 = vrot.lane.b32.xlu0 %v4639, 126
    %v5464 = vpop.permute.xlu0 %5463
    %5465 = vrot.lane.b32.xlu0 %v4640, 126
    %v5466 = vpop.permute.xlu0 %5465
    %5467 = vrot.lane.b32.xlu0 %v4641, 126
    %v5468 = vpop.permute.xlu0 %5467
    %5469 = vrot.lane.b32.xlu0 %v4642, 126
    %v5470 = vpop.permute.xlu0 %5469
    %5471 = vrot.lane.b32.xlu0 %v4643, 126
    %v5472 = vpop.permute.xlu0 %5471
    %5473 = vrot.lane.b32.xlu0 %v4644, 126
    %v5474 = vpop.permute.xlu0 %5473
    %5475 = vrot.lane.b32.xlu0 %v4645, 126
    %v5476 = vpop.permute.xlu0 %5475
    %5477 = vrot.lane.b32.xlu0 %v4646, 126
    %v5478 = vpop.permute.xlu0 %5477
    %5479 = vrot.lane.b32.xlu0 %v4647, 126
    %v5480 = vpop.permute.xlu0 %5479
    %5481 = vrot.lane.b32.xlu0 %v4648, 126
    %v5482 = vpop.permute.xlu0 %5481
    %5483 = vrot.lane.b32.xlu0 %v4649, 126
    %v5484 = vpop.permute.xlu0 %5483
    %5485 = vrot.lane.b32.xlu0 %v4650, 126
    %v5486 = vpop.permute.xlu0 %5485
    %5487 = vrot.lane.b32.xlu0 %v4652, 126
    %v5488 = vpop.permute.xlu0 %5487
    %5489 = vrot.lane.b32.xlu0 %v4654, 126
    %v5490 = vpop.permute.xlu0 %5489
    %5491 = vrot.lane.b32.xlu0 %v4656, 126
    %v5492 = vpop.permute.xlu0 %5491
    %5493 = vrot.lane.b32.xlu0 %v4658, 126
    %v5494 = vpop.permute.xlu0 %5493
    %5495 = vrot.lane.b32.xlu0 %v4660, 126
    %v5496 = vpop.permute.xlu0 %5495
    %5497 = vrot.lane.b32.xlu0 %v4662, 126
    %v5498 = vpop.permute.xlu0 %5497
    %5499 = vrot.lane.b32.xlu0 %v4664, 126
    %v5500 = vpop.permute.xlu0 %5499
    %5501 = vrot.lane.b32.xlu0 %v4666, 126
    %v5502 = vpop.permute.xlu0 %5501
    %5503 = vrot.lane.b32.xlu0 %v4668, 126
    %v5504 = vpop.permute.xlu0 %5503
    %5505 = vrot.lane.b32.xlu0 %v4670, 126
    %v5506 = vpop.permute.xlu0 %5505
    %5507 = vrot.lane.b32.xlu0 %v4672, 126
    %v5508 = vpop.permute.xlu0 %5507
    %5509 = vrot.lane.b32.xlu0 %v4674, 126
    %v5510 = vpop.permute.xlu0 %5509
    %5511 = vrot.lane.b32.xlu0 %v4676, 126
    %v5512 = vpop.permute.xlu0 %5511
    %5513 = vrot.lane.b32.xlu0 %v4678, 126
    %v5514 = vpop.permute.xlu0 %5513
    %5515 = vrot.lane.b32.xlu0 %v4680, 126
    %v5516 = vpop.permute.xlu0 %5515
    %5517 = vrot.lane.b32.xlu0 %v4682, 126
    %v5518 = vpop.permute.xlu0 %5517
    %5551 = vmatpush.bf16.msra.mxu0 %v5470
    %5552 = vmatpush.bf16.msra.mxu0 %v5468
    %5553 = vmatpush.bf16.msra.mxu0 %v5466
    %5554 = vmatpush.bf16.msra.mxu0 %v5464
    %5555 = vmatpush.bf16.msra.mxu0 %v5462
    %5556 = vmatpush.bf16.msra.mxu0 %v5460
    %5557 = vmatpush.bf16.msra.mxu0 %v5458
    %5558 = vmatpush.bf16.msra.mxu0 %v5456
    %5559 = vmatmul.bf16.gmra.mxu0 %v5391
    %v5560 = vpop.f32.mrf.mxu0
    %v5561 = vadd.f32 %v4734, %v5560
    %v5562 = vpop.f32.mrf.mxu0
    %v5563 = vadd.f32 %v4739, %v5562
    %5564 = vmatmul.bf16.gmra.mxu0 %v5395
    %v5565 = vpop.f32.mrf.mxu0
    %v5566 = vadd.f32 %v4744, %v5565
    %v5567 = vpop.f32.mrf.mxu0
    %v5568 = vadd.f32 %v4749, %v5567
    %5569 = vmatmul.bf16.gmra.mxu0 %v5399
    %v5570 = vpop.f32.mrf.mxu0
    %v5571 = vadd.f32 %v4754, %v5570
    %v5572 = vpop.f32.mrf.mxu0
    %v5573 = vadd.f32 %v4759, %v5572
    %5574 = vmatmul.bf16.gmra.mxu0 %v5403
    %v5575 = vpop.f32.mrf.mxu0
    %v5576 = vadd.f32 %v4764, %v5575
    %v5577 = vpop.f32.mrf.mxu0
    %v5578 = vadd.f32 %v4769, %v5577
    %5579 = vmatmul.bf16.gmra.mxu0 %v5407
    %v5580 = vpop.f32.mrf.mxu0
    %v5581 = vadd.f32 %v4774, %v5580
    %v5582 = vpop.f32.mrf.mxu0
    %v5583 = vadd.f32 %v4779, %v5582
    %5584 = vmatmul.bf16.gmra.mxu0 %v5411
    %v5585 = vpop.f32.mrf.mxu0
    %v5586 = vadd.f32 %v4784, %v5585
    %v5587 = vpop.f32.mrf.mxu0
    %v5588 = vadd.f32 %v4789, %v5587
    %5589 = vmatmul.bf16.gmra.mxu0 %v5415
    %v5590 = vpop.f32.mrf.mxu0
    %v5591 = vadd.f32 %v4794, %v5590
    %v5592 = vpop.f32.mrf.mxu0
    %v5593 = vadd.f32 %v4799, %v5592
    %5594 = vmatmul.bf16.gmra.mxu0 %v5419
    %v5595 = vpop.f32.mrf.mxu0
    %v5596 = vadd.f32 %v4804, %v5595
    %v5597 = vpop.f32.mrf.mxu0
    %v5598 = vadd.f32 %v4809, %v5597
    %5599 = vdwg.mxu0
    %5600 = vmatpush.bf16.msra.mxu0 %v5486
    %5601 = vmatpush.bf16.msra.mxu0 %v5484
    %5602 = vmatpush.bf16.msra.mxu0 %v5482
    %5603 = vmatpush.bf16.msra.mxu0 %v5480
    %5604 = vmatpush.bf16.msra.mxu0 %v5478
    %5605 = vmatpush.bf16.msra.mxu0 %v5476
    %5606 = vmatpush.bf16.msra.mxu0 %v5474
    %5607 = vmatpush.bf16.msra.mxu0 %v5472
    %5608 = vmatmul.bf16.gmra.mxu0 %v5392
    %v5609 = vpop.f32.mrf.mxu0
    %v5610 = vadd.f32 %v5561, %v5609
    %v5611 = vpop.f32.mrf.mxu0
    %v5612 = vadd.f32 %v5563, %v5611
    %5613 = vmatmul.bf16.gmra.mxu0 %v5396
    %v5614 = vpop.f32.mrf.mxu0
    %v5615 = vadd.f32 %v5566, %v5614
    %v5616 = vpop.f32.mrf.mxu0
    %v5617 = vadd.f32 %v5568, %v5616
    %5618 = vmatmul.bf16.gmra.mxu0 %v5400
    %v5619 = vpop.f32.mrf.mxu0
    %v5620 = vadd.f32 %v5571, %v5619
    %v5621 = vpop.f32.mrf.mxu0
    %v5622 = vadd.f32 %v5573, %v5621
    %5623 = vmatmul.bf16.gmra.mxu0 %v5404
    %v5624 = vpop.f32.mrf.mxu0
    %v5625 = vadd.f32 %v5576, %v5624
    %v5626 = vpop.f32.mrf.mxu0
    %v5627 = vadd.f32 %v5578, %v5626
    %5628 = vmatmul.bf16.gmra.mxu0 %v5408
    %v5629 = vpop.f32.mrf.mxu0
    %v5630 = vadd.f32 %v5581, %v5629
    %v5631 = vpop.f32.mrf.mxu0
    %v5632 = vadd.f32 %v5583, %v5631
    %5633 = vmatmul.bf16.gmra.mxu0 %v5412
    %v5634 = vpop.f32.mrf.mxu0
    %v5635 = vadd.f32 %v5586, %v5634
    %v5636 = vpop.f32.mrf.mxu0
    %v5637 = vadd.f32 %v5588, %v5636
    %5638 = vmatmul.bf16.gmra.mxu0 %v5416
    %v5639 = vpop.f32.mrf.mxu0
    %v5640 = vadd.f32 %v5591, %v5639
    %v5641 = vpop.f32.mrf.mxu0
    %v5642 = vadd.f32 %v5593, %v5641
    %5643 = vmatmul.bf16.gmra.mxu0 %v5420
    %v5644 = vpop.f32.mrf.mxu0
    %v5645 = vadd.f32 %v5596, %v5644
    %v5646 = vpop.f32.mrf.mxu0
    %v5647 = vadd.f32 %v5598, %v5646
    %5648 = vdwg.mxu0
    %5649 = vmatpush.bf16.msra.mxu0 %v5502
    %5650 = vmatpush.bf16.msra.mxu0 %v5500
    %5651 = vmatpush.bf16.msra.mxu0 %v5498
    %5652 = vmatpush.bf16.msra.mxu0 %v5496
    %5653 = vmatpush.bf16.msra.mxu0 %v5494
    %5654 = vmatpush.bf16.msra.mxu0 %v5492
    %5655 = vmatpush.bf16.msra.mxu0 %v5490
    %5656 = vmatpush.bf16.msra.mxu0 %v5488
    %5657 = vmatmul.bf16.gmra.mxu0 %v5393
    %v5658 = vpop.f32.mrf.mxu0
    %v5659 = vadd.f32 %v5610, %v5658
    %v5660 = vpop.f32.mrf.mxu0
    %v5661 = vadd.f32 %v5612, %v5660
    %5662 = vmatmul.bf16.gmra.mxu0 %v5397
    %v5663 = vpop.f32.mrf.mxu0
    %v5664 = vadd.f32 %v5615, %v5663
    %v5665 = vpop.f32.mrf.mxu0
    %v5666 = vadd.f32 %v5617, %v5665
    %5667 = vmatmul.bf16.gmra.mxu0 %v5401
    %v5668 = vpop.f32.mrf.mxu0
    %v5669 = vadd.f32 %v5620, %v5668
    %v5670 = vpop.f32.mrf.mxu0
    %v5671 = vadd.f32 %v5622, %v5670
    %5672 = vmatmul.bf16.gmra.mxu0 %v5405
    %v5673 = vpop.f32.mrf.mxu0
    %v5674 = vadd.f32 %v5625, %v5673
    %v5675 = vpop.f32.mrf.mxu0
    %v5676 = vadd.f32 %v5627, %v5675
    %5677 = vmatmul.bf16.gmra.mxu0 %v5409
    %v5678 = vpop.f32.mrf.mxu0
    %v5679 = vadd.f32 %v5630, %v5678
    %v5680 = vpop.f32.mrf.mxu0
    %v5681 = vadd.f32 %v5632, %v5680
    %5682 = vmatmul.bf16.gmra.mxu0 %v5413
    %v5683 = vpop.f32.mrf.mxu0
    %v5684 = vadd.f32 %v5635, %v5683
    %v5685 = vpop.f32.mrf.mxu0
    %v5686 = vadd.f32 %v5637, %v5685
    %5687 = vmatmul.bf16.gmra.mxu0 %v5417
    %v5688 = vpop.f32.mrf.mxu0
    %v5689 = vadd.f32 %v5640, %v5688
    %v5690 = vpop.f32.mrf.mxu0
    %v5691 = vadd.f32 %v5642, %v5690
    %5692 = vmatmul.bf16.gmra.mxu0 %v5421
    %v5693 = vpop.f32.mrf.mxu0
    %v5694 = vadd.f32 %v5645, %v5693
    %v5695 = vpop.f32.mrf.mxu0
    %v5696 = vadd.f32 %v5647, %v5695
    %5697 = vdwg.mxu0
    %5698 = vmatpush.bf16.msra.mxu0 %v5518
    %5699 = vmatpush.bf16.msra.mxu0 %v5516
    %5700 = vmatpush.bf16.msra.mxu0 %v5514
    %5701 = vmatpush.bf16.msra.mxu0 %v5512
    %5702 = vmatpush.bf16.msra.mxu0 %v5510
    %5703 = vmatpush.bf16.msra.mxu0 %v5508
    %5704 = vmatpush.bf16.msra.mxu0 %v5506
    %5705 = vmatpush.bf16.msra.mxu0 %v5504
    %5706 = vmatmul.bf16.gmra.mxu0 %v5394
    %v5707 = vpop.f32.mrf.mxu0
    %v5708 = vadd.f32 %v5659, %v5707
    %v5709 = vpop.f32.mrf.mxu0
    %v5710 = vadd.f32 %v5661, %v5709
    %5711 = vmatmul.bf16.gmra.mxu0 %v5398
    %v5712 = vpop.f32.mrf.mxu0
    %v5713 = vadd.f32 %v5664, %v5712
    %v5714 = vpop.f32.mrf.mxu0
    %v5715 = vadd.f32 %v5666, %v5714
    %5716 = vmatmul.bf16.gmra.mxu0 %v5402
    %v5717 = vpop.f32.mrf.mxu0
    %v5718 = vadd.f32 %v5669, %v5717
    %v5719 = vpop.f32.mrf.mxu0
    %v5720 = vadd.f32 %v5671, %v5719
    %5721 = vmatmul.bf16.gmra.mxu0 %v5406
    %v5722 = vpop.f32.mrf.mxu0
    %v5723 = vadd.f32 %v5674, %v5722
    %v5724 = vpop.f32.mrf.mxu0
    %v5725 = vadd.f32 %v5676, %v5724
    %5726 = vmatmul.bf16.gmra.mxu0 %v5410
    %v5727 = vpop.f32.mrf.mxu0
    %v5728 = vadd.f32 %v5679, %v5727
    %v5729 = vpop.f32.mrf.mxu0
    %v5730 = vadd.f32 %v5681, %v5729
    %5731 = vmatmul.bf16.gmra.mxu0 %v5414
    %v5732 = vpop.f32.mrf.mxu0
    %v5733 = vadd.f32 %v5684, %v5732
    %v5734 = vpop.f32.mrf.mxu0
    %v5735 = vadd.f32 %v5686, %v5734
    %5736 = vmatmul.bf16.gmra.mxu0 %v5418
    %v5737 = vpop.f32.mrf.mxu0
    %v5738 = vadd.f32 %v5689, %v5737
    %v5739 = vpop.f32.mrf.mxu0
    %v5740 = vadd.f32 %v5691, %v5739
    %5741 = vmatmul.bf16.gmra.mxu0 %v5422
    %v5742 = vpop.f32.mrf.mxu0
    %v5743 = vadd.f32 %v5694, %v5742
    %v5744 = vpop.f32.mrf.mxu0
    %v5745 = vadd.f32 %v5696, %v5744
    %5746 = vdwg.mxu0
    %v5747 = vmax.f32 %v5224, 0.0
    %v5748 = vmax.f32 %v5226, 0.0
    %v5749 = vmax.f32 %v5229, 0.0
    %v5750 = vmax.f32 %v5231, 0.0
    %v5751 = vmax.f32 %v5234, 0.0
    %v5752 = vmax.f32 %v5236, 0.0
    %v5753 = vmax.f32 %v5239, 0.0
    %v5754 = vmax.f32 %v5241, 0.0
    %v5755 = vmax.f32 %v5244, 0.0
    %v5756 = vmax.f32 %v5246, 0.0
    %v5757 = vmax.f32 %v5249, 0.0
    %v5758 = vmax.f32 %v5251, 0.0
    %v5759 = vmax.f32 %v5254, 0.0
    %v5760 = vmax.f32 %v5256, 0.0
    %v5761 = vmax.f32 %v5259, 0.0
    %v5762 = vmax.f32 %v5261, 0.0
    %v5763 = vmax.f32 %v5708, 0.0
    %v5764 = vmax.f32 %v5710, 0.0
    %v5765 = vmax.f32 %v5713, 0.0
    %v5766 = vmax.f32 %v5715, 0.0
    %v5767 = vmax.f32 %v5718, 0.0
    %v5768 = vmax.f32 %v5720, 0.0
    %v5769 = vmax.f32 %v5723, 0.0
    %v5770 = vmax.f32 %v5725, 0.0
    %v5771 = vmax.f32 %v5728, 0.0
    %v5772 = vmax.f32 %v5730, 0.0
    %v5773 = vmax.f32 %v5733, 0.0
    %v5774 = vmax.f32 %v5735, 0.0
    %v5775 = vmax.f32 %v5738, 0.0
    %v5776 = vmax.f32 %v5740, 0.0
    %v5777 = vmax.f32 %v5743, 0.0
    %v5778 = vmax.f32 %v5745, 0.0
    %v5779 = vpack.c.bf16 %v5748, %v5747
    %v5780 = vpack.c.bf16 %v5750, %v5749
    %v5781 = vpack.c.bf16 %v5752, %v5751
    %v5782 = vpack.c.bf16 %v5754, %v5753
    %v5783 = vpack.c.bf16 %v5756, %v5755
    %v5784 = vpack.c.bf16 %v5758, %v5757
    %v5785 = vpack.c.bf16 %v5760, %v5759
    %v5786 = vpack.c.bf16 %v5762, %v5761
    %v5787 = vpack.c.bf16 %v5764, %v5763
    %v5788 = vpack.c.bf16 %v5766, %v5765
    %v5789 = vpack.c.bf16 %v5768, %v5767
    %v5790 = vpack.c.bf16 %v5770, %v5769
    %v5791 = vpack.c.bf16 %v5772, %v5771
    %v5792 = vpack.c.bf16 %v5774, %v5773
    %v5793 = vpack.c.bf16 %v5776, %v5775
    %v5794 = vpack.c.bf16 %v5778, %v5777
    %v5795 = vld [vmem:[#allocation13] sm:$0xff]
    %v5796 = vld [vmem:[#allocation13 + $0x8] sm:$0xff]
    %v5797 = vld [vmem:[#allocation13 + $0x10] sm:$0xff]
    %v5798 = vld [vmem:[#allocation13 + $0x18] sm:$0xff]
    %v5799 = vld [vmem:[#allocation13 + $0x20] sm:$0xff]
    %v5800 = vld [vmem:[#allocation13 + $0x28] sm:$0xff]
    %v5801 = vld [vmem:[#allocation13 + $0x30] sm:$0xff]
    %v5802 = vld [vmem:[#allocation13 + $0x38] sm:$0xff]
    %v5803 = vld [vmem:[#allocation13 + $0x40] sm:$0xff]
    %v5804 = vld [vmem:[#allocation13 + $0x48] sm:$0xff]
    %v5805 = vld [vmem:[#allocation13 + $0x50] sm:$0xff]
    %v5806 = vld [vmem:[#allocation13 + $0x58] sm:$0xff]
    %v5807 = vld [vmem:[#allocation13 + $0x60] sm:$0x33]
    %v5808 = vld [vmem:[#allocation14] sm:$0xff]
    %v5809 = vld [vmem:[#allocation14 + $0x8] sm:$0xff]
    %v5810 = vld [vmem:[#allocation14 + $0x10] sm:$0xff]
    %v5811 = vld [vmem:[#allocation14 + $0x18] sm:$0xff]
    %v5812 = vld [vmem:[#allocation14 + $0x20] sm:$0xff]
    %v5813 = vld [vmem:[#allocation14 + $0x28] sm:$0xff]
    %v5814 = vld [vmem:[#allocation14 + $0x30] sm:$0xff]
    %v5815 = vld [vmem:[#allocation14 + $0x38] sm:$0xff]
    %v5816 = vld [vmem:[#allocation14 + $0x40] sm:$0xff]
    %v5817 = vld [vmem:[#allocation14 + $0x48] sm:$0xff]
    %v5818 = vld [vmem:[#allocation14 + $0x50] sm:$0xff]
    %v5819 = vld [vmem:[#allocation14 + $0x58] sm:$0xff]
    %v5820 = vld [vmem:[#allocation14 + $0x60] sm:$0x33]
    %v5834 = vunpack.c.l.b16 %v5808
    %v5835 = vunpack.c.h.b16 %v5808
    %v5836 = vunpack.c.l.b16 %v5809
    %v5837 = vunpack.c.h.b16 %v5809
    %v5838 = vunpack.c.l.b16 %v5810
    %v5839 = vunpack.c.h.b16 %v5810
    %v5840 = vunpack.c.l.b16 %v5811
    %v5841 = vunpack.c.h.b16 %v5811
    %v5842 = vunpack.c.l.b16 %v5812
    %v5843 = vunpack.c.h.b16 %v5812
    %v5844 = vunpack.c.l.b16 %v5813
    %v5845 = vunpack.c.h.b16 %v5813
    %v5846 = vunpack.c.l.b16 %v5814
    %v5847 = vunpack.c.h.b16 %v5814
    %v5848 = vunpack.c.l.b16 %v5815
    %v5849 = vunpack.c.h.b16 %v5815
    %v5850 = vunpack.c.l.b16 %v5816
    %v5851 = vunpack.c.h.b16 %v5816
    %v5852 = vunpack.c.l.b16 %v5817
    %v5853 = vunpack.c.h.b16 %v5817
    %v5854 = vunpack.c.l.b16 %v5818
    %v5855 = vunpack.c.h.b16 %v5818
    %v5856 = vunpack.c.l.b16 %v5819
    %v5857 = vunpack.c.h.b16 %v5819
    %v5858 = vunpack.c.l.b16 %v5820
    %v5859 = vunpack.c.h.b16 %v5820
    %v5860 = vpack.c.b16 %v5836, %v5834
    %v5861 = vpack.c.b16 %v5837, %v5835
    %v5862 = vpack.c.b16 %v5840, %v5838
    %v5863 = vpack.c.b16 %v5841, %v5839
    %v5864 = vpack.c.b16 %v5844, %v5842
    %v5865 = vpack.c.b16 %v5845, %v5843
    %v5866 = vpack.c.b16 %v5848, %v5846
    %v5867 = vpack.c.b16 %v5849, %v5847
    %v5868 = vpack.c.b16 %v5852, %v5850
    %v5869 = vpack.c.b16 %v5853, %v5851
    %v5870 = vpack.c.b16 %v5856, %v5854
    %v5871 = vpack.c.b16 %v5857, %v5855
    %v5872 = vpack.c.b16 %v5858, %v5858
    %v5873 = vpack.c.b16 %v5859, %v5859
    %vm5886 = vcmask 818176
    %v5888 = vsel %vm5886, %v5787, 0
    %v5891 = vsel %vm5886, %v5788, 0
    %v5894 = vsel %vm5886, %v5789, 0
    %v5897 = vsel %vm5886, %v5790, 0
    %v5900 = vsel %vm5886, %v5791, 0
    %v5903 = vsel %vm5886, %v5792, 0
    %v5906 = vsel %vm5886, %v5793, 0
    %v5909 = vsel %vm5886, %v5794, 0
    %vm5911 = vcmask 1041408
    %v5913 = vsel %vm5911, %v5872, 0
    %v5916 = vsel %vm5911, %v5873, 0
    %5918 = vmatpush.bf16.msra.mxu0 0
    %5919 = vmatpush.bf16.msra.mxu0 %v5913
    %5920 = vmatpush.bf16.msra.mxu0 %v5870
    %5921 = vmatpush.bf16.msra.mxu0 %v5868
    %5922 = vmatpush.bf16.msra.mxu0 %v5866
    %5923 = vmatpush.bf16.msra.mxu0 %v5864
    %5924 = vmatpush.bf16.msra.mxu0 %v5862
    %5925 = vmatpush.bf16.msra.mxu0 %v5860
    %5926 = vmatmul.bf16.gmra.mxu0 %v5888
    %v5927 = vpop.f32.mrf.mxu0
    %v5928 = vadd.f32 0.0, %v5927
    %v5929 = vpop.f32.mrf.mxu0
    %v5930 = vadd.f32 0.0, %v5929
    %5931 = vmatmul.bf16.gmra.mxu0 %v5891
    %v5932 = vpop.f32.mrf.mxu0
    %v5933 = vadd.f32 0.0, %v5932
    %v5934 = vpop.f32.mrf.mxu0
    %v5935 = vadd.f32 0.0, %v5934
    %5936 = vmatmul.bf16.gmra.mxu0 %v5894
    %v5937 = vpop.f32.mrf.mxu0
    %v5938 = vadd.f32 0.0, %v5937
    %v5939 = vpop.f32.mrf.mxu0
    %v5940 = vadd.f32 0.0, %v5939
    %5941 = vmatmul.bf16.gmra.mxu0 %v5897
    %v5942 = vpop.f32.mrf.mxu0
    %v5943 = vadd.f32 0.0, %v5942
    %v5944 = vpop.f32.mrf.mxu0
    %v5945 = vadd.f32 0.0, %v5944
    %5946 = vmatmul.bf16.gmra.mxu0 %v5900
    %v5947 = vpop.f32.mrf.mxu0
    %v5948 = vadd.f32 0.0, %v5947
    %v5949 = vpop.f32.mrf.mxu0
    %v5950 = vadd.f32 0.0, %v5949
    %5951 = vmatmul.bf16.gmra.mxu0 %v5903
    %v5952 = vpop.f32.mrf.mxu0
    %v5953 = vadd.f32 0.0, %v5952
    %v5954 = vpop.f32.mrf.mxu0
    %v5955 = vadd.f32 0.0, %v5954
    %5956 = vmatmul.bf16.gmra.mxu0 %v5906
    %v5957 = vpop.f32.mrf.mxu0
    %v5958 = vadd.f32 0.0, %v5957
    %v5959 = vpop.f32.mrf.mxu0
    %v5960 = vadd.f32 0.0, %v5959
    %5961 = vmatmul.bf16.gmra.mxu0 %v5909
    %v5962 = vpop.f32.mrf.mxu0
    %v5963 = vadd.f32 0.0, %v5962
    %v5964 = vpop.f32.mrf.mxu0
    %v5965 = vadd.f32 0.0, %v5964
    %5966 = vdwg.mxu0
    %5967 = vmatpush.bf16.msra.mxu0 0
    %5968 = vmatpush.bf16.msra.mxu0 %v5916
    %5969 = vmatpush.bf16.msra.mxu0 %v5871
    %5970 = vmatpush.bf16.msra.mxu0 %v5869
    %5971 = vmatpush.bf16.msra.mxu0 %v5867
    %5972 = vmatpush.bf16.msra.mxu0 %v5865
    %5973 = vmatpush.bf16.msra.mxu0 %v5863
    %5974 = vmatpush.bf16.msra.mxu0 %v5861
    %5975 = vmatmul.bf16.gmra.mxu0 %v5888
    %v5976 = vpop.f32.mrf.mxu0
    %v5977 = vadd.f32 0.0, %v5976
    %v5978 = vpop.f32.mrf.mxu0
    %v5979 = vadd.f32 0.0, %v5978
    %5980 = vmatmul.bf16.gmra.mxu0 %v5891
    %v5981 = vpop.f32.mrf.mxu0
    %v5982 = vadd.f32 0.0, %v5981
    %v5983 = vpop.f32.mrf.mxu0
    %v5984 = vadd.f32 0.0, %v5983
    %5985 = vmatmul.bf16.gmra.mxu0 %v5894
    %v5986 = vpop.f32.mrf.mxu0
    %v5987 = vadd.f32 0.0, %v5986
    %v5988 = vpop.f32.mrf.mxu0
    %v5989 = vadd.f32 0.0, %v5988
    %5990 = vmatmul.bf16.gmra.mxu0 %v5897
    %v5991 = vpop.f32.mrf.mxu0
    %v5992 = vadd.f32 0.0, %v5991
    %v5993 = vpop.f32.mrf.mxu0
    %v5994 = vadd.f32 0.0, %v5993
    %5995 = vmatmul.bf16.gmra.mxu0 %v5900
    %v5996 = vpop.f32.mrf.mxu0
    %v5997 = vadd.f32 0.0, %v5996
    %v5998 = vpop.f32.mrf.mxu0
    %v5999 = vadd.f32 0.0, %v5998
    %6000 = vmatmul.bf16.gmra.mxu0 %v5903
    %v6001 = vpop.f32.mrf.mxu0
    %v6002 = vadd.f32 0.0, %v6001
    %v6003 = vpop.f32.mrf.mxu0
    %v6004 = vadd.f32 0.0, %v6003
    %6005 = vmatmul.bf16.gmra.mxu0 %v5906
    %v6006 = vpop.f32.mrf.mxu0
    %v6007 = vadd.f32 0.0, %v6006
    %v6008 = vpop.f32.mrf.mxu0
    %v6009 = vadd.f32 0.0, %v6008
    %6010 = vmatmul.bf16.gmra.mxu0 %v5909
    %v6011 = vpop.f32.mrf.mxu0
    %v6012 = vadd.f32 0.0, %v6011
    %v6013 = vpop.f32.mrf.mxu0
    %v6014 = vadd.f32 0.0, %v6013
    %6015 = vdwg.mxu0
    %v6029 = vunpack.c.l.b16 %v5795
    %v6030 = vunpack.c.h.b16 %v5795
    %v6031 = vunpack.c.l.b16 %v5796
    %v6032 = vunpack.c.h.b16 %v5796
    %v6033 = vunpack.c.l.b16 %v5797
    %v6034 = vunpack.c.h.b16 %v5797
    %v6035 = vunpack.c.l.b16 %v5798
    %v6036 = vunpack.c.h.b16 %v5798
    %v6037 = vunpack.c.l.b16 %v5799
    %v6038 = vunpack.c.h.b16 %v5799
    %v6039 = vunpack.c.l.b16 %v5800
    %v6040 = vunpack.c.h.b16 %v5800
    %v6041 = vunpack.c.l.b16 %v5801
    %v6042 = vunpack.c.h.b16 %v5801
    %v6043 = vunpack.c.l.b16 %v5802
    %v6044 = vunpack.c.h.b16 %v5802
    %v6045 = vunpack.c.l.b16 %v5803
    %v6046 = vunpack.c.h.b16 %v5803
    %v6047 = vunpack.c.l.b16 %v5804
    %v6048 = vunpack.c.h.b16 %v5804
    %v6049 = vunpack.c.l.b16 %v5805
    %v6050 = vunpack.c.h.b16 %v5805
    %v6051 = vunpack.c.l.b16 %v5806
    %v6052 = vunpack.c.h.b16 %v5806
    %v6053 = vunpack.c.l.b16 %v5807
    %v6054 = vunpack.c.h.b16 %v5807
    %v6055 = vpack.c.b16 %v6031, %v6029
    %v6056 = vpack.c.b16 %v6032, %v6030
    %v6057 = vpack.c.b16 %v6035, %v6033
    %v6058 = vpack.c.b16 %v6036, %v6034
    %v6059 = vpack.c.b16 %v6039, %v6037
    %v6060 = vpack.c.b16 %v6040, %v6038
    %v6061 = vpack.c.b16 %v6043, %v6041
    %v6062 = vpack.c.b16 %v6044, %v6042
    %v6063 = vpack.c.b16 %v6047, %v6045
    %v6064 = vpack.c.b16 %v6048, %v6046
    %v6065 = vpack.c.b16 %v6051, %v6049
    %v6066 = vpack.c.b16 %v6052, %v6050
    %v6067 = vpack.c.b16 %v6053, %v6053
    %v6068 = vpack.c.b16 %v6054, %v6054
    %v6082 = vsel %vm5886, %v5779, 0
    %v6085 = vsel %vm5886, %v5780, 0
    %v6088 = vsel %vm5886, %v5781, 0
    %v6091 = vsel %vm5886, %v5782, 0
    %v6094 = vsel %vm5886, %v5783, 0
    %v6097 = vsel %vm5886, %v5784, 0
    %v6100 = vsel %vm5886, %v5785, 0
    %v6103 = vsel %vm5886, %v5786, 0
    %v6106 = vsel %vm5911, %v6067, 0
    %v6109 = vsel %vm5911, %v6068, 0
    %6111 = vmatpush.bf16.msra.mxu0 0
    %6112 = vmatpush.bf16.msra.mxu0 %v6106
    %6113 = vmatpush.bf16.msra.mxu0 %v6065
    %6114 = vmatpush.bf16.msra.mxu0 %v6063
    %6115 = vmatpush.bf16.msra.mxu0 %v6061
    %6116 = vmatpush.bf16.msra.mxu0 %v6059
    %6117 = vmatpush.bf16.msra.mxu0 %v6057
    %6118 = vmatpush.bf16.msra.mxu0 %v6055
    %6119 = vmatmul.bf16.gmra.mxu0 %v6082
    %v6120 = vpop.f32.mrf.mxu0
    %v6121 = vadd.f32 %v5928, %v6120
    %v6122 = vpop.f32.mrf.mxu0
    %v6123 = vadd.f32 %v5930, %v6122
    %6124 = vmatmul.bf16.gmra.mxu0 %v6085
    %v6125 = vpop.f32.mrf.mxu0
    %v6126 = vadd.f32 %v5933, %v6125
    %v6127 = vpop.f32.mrf.mxu0
    %v6128 = vadd.f32 %v5935, %v6127
    %6129 = vmatmul.bf16.gmra.mxu0 %v6088
    %v6130 = vpop.f32.mrf.mxu0
    %v6131 = vadd.f32 %v5938, %v6130
    %v6132 = vpop.f32.mrf.mxu0
    %v6133 = vadd.f32 %v5940, %v6132
    %6134 = vmatmul.bf16.gmra.mxu0 %v6091
    %v6135 = vpop.f32.mrf.mxu0
    %v6136 = vadd.f32 %v5943, %v6135
    %v6137 = vpop.f32.mrf.mxu0
    %v6138 = vadd.f32 %v5945, %v6137
    %6139 = vmatmul.bf16.gmra.mxu0 %v6094
    %v6140 = vpop.f32.mrf.mxu0
    %v6141 = vadd.f32 %v5948, %v6140
    %v6142 = vpop.f32.mrf.mxu0
    %v6143 = vadd.f32 %v5950, %v6142
    %6144 = vmatmul.bf16.gmra.mxu0 %v6097
    %v6145 = vpop.f32.mrf.mxu0
    %v6146 = vadd.f32 %v5953, %v6145
    %v6147 = vpop.f32.mrf.mxu0
    %v6148 = vadd.f32 %v5955, %v6147
    %6149 = vmatmul.bf16.gmra.mxu0 %v6100
    %v6150 = vpop.f32.mrf.mxu0
    %v6151 = vadd.f32 %v5958, %v6150
    %v6152 = vpop.f32.mrf.mxu0
    %v6153 = vadd.f32 %v5960, %v6152
    %6154 = vmatmul.bf16.gmra.mxu0 %v6103
    %v6155 = vpop.f32.mrf.mxu0
    %v6156 = vadd.f32 %v5963, %v6155
    %v6157 = vpop.f32.mrf.mxu0
    %v6158 = vadd.f32 %v5965, %v6157
    %6159 = vdwg.mxu0
    %6160 = vmatpush.bf16.msra.mxu0 0
    %6161 = vmatpush.bf16.msra.mxu0 %v6109
    %6162 = vmatpush.bf16.msra.mxu0 %v6066
    %6163 = vmatpush.bf16.msra.mxu0 %v6064
    %6164 = vmatpush.bf16.msra.mxu0 %v6062
    %6165 = vmatpush.bf16.msra.mxu0 %v6060
    %6166 = vmatpush.bf16.msra.mxu0 %v6058
    %6167 = vmatpush.bf16.msra.mxu0 %v6056
    %6168 = vmatmul.bf16.gmra.mxu0 %v6082
    %v6169 = vpop.f32.mrf.mxu0
    %v6170 = vadd.f32 %v5977, %v6169
    %v6171 = vpop.f32.mrf.mxu0
    %v6172 = vadd.f32 %v5979, %v6171
    %6173 = vmatmul.bf16.gmra.mxu0 %v6085
    %v6174 = vpop.f32.mrf.mxu0
    %v6175 = vadd.f32 %v5982, %v6174
    %v6176 = vpop.f32.mrf.mxu0
    %v6177 = vadd.f32 %v5984, %v6176
    %6178 = vmatmul.bf16.gmra.mxu0 %v6088
    %v6179 = vpop.f32.mrf.mxu0
    %v6180 = vadd.f32 %v5987, %v6179
    %v6181 = vpop.f32.mrf.mxu0
    %v6182 = vadd.f32 %v5989, %v6181
    %6183 = vmatmul.bf16.gmra.mxu0 %v6091
    %v6184 = vpop.f32.mrf.mxu0
    %v6185 = vadd.f32 %v5992, %v6184
    %v6186 = vpop.f32.mrf.mxu0
    %v6187 = vadd.f32 %v5994, %v6186
    %6188 = vmatmul.bf16.gmra.mxu0 %v6094
    %v6189 = vpop.f32.mrf.mxu0
    %v6190 = vadd.f32 %v5997, %v6189
    %v6191 = vpop.f32.mrf.mxu0
    %v6192 = vadd.f32 %v5999, %v6191
    %6193 = vmatmul.bf16.gmra.mxu0 %v6097
    %v6194 = vpop.f32.mrf.mxu0
    %v6195 = vadd.f32 %v6002, %v6194
    %v6196 = vpop.f32.mrf.mxu0
    %v6197 = vadd.f32 %v6004, %v6196
    %6198 = vmatmul.bf16.gmra.mxu0 %v6100
    %v6199 = vpop.f32.mrf.mxu0
    %v6200 = vadd.f32 %v6007, %v6199
    %v6201 = vpop.f32.mrf.mxu0
    %v6202 = vadd.f32 %v6009, %v6201
    %6203 = vmatmul.bf16.gmra.mxu0 %v6103
    %v6204 = vpop.f32.mrf.mxu0
    %v6205 = vadd.f32 %v6012, %v6204
    %v6206 = vpop.f32.mrf.mxu0
    %v6207 = vadd.f32 %v6014, %v6206
    %6208 = vdwg.mxu0
    %v6209 = vpack.c.bf16 %v6170, %v6121
    %v6210 = vpack.c.bf16 %v6172, %v6123
    %v6211 = vpack.c.bf16 %v6175, %v6126
    %v6212 = vpack.c.bf16 %v6177, %v6128
    %v6213 = vpack.c.bf16 %v6180, %v6131
    %v6214 = vpack.c.bf16 %v6182, %v6133
    %v6215 = vpack.c.bf16 %v6185, %v6136
    %v6216 = vpack.c.bf16 %v6187, %v6138
    %v6217 = vpack.c.bf16 %v6190, %v6141
    %v6218 = vpack.c.bf16 %v6192, %v6143
    %v6219 = vpack.c.bf16 %v6195, %v6146
    %v6220 = vpack.c.bf16 %v6197, %v6148
    %v6221 = vpack.c.bf16 %v6200, %v6151
    %v6222 = vpack.c.bf16 %v6202, %v6153
    %v6223 = vpack.c.bf16 %v6205, %v6156
    %v6224 = vpack.c.bf16 %v6207, %v6158
    %v6241 = vunpack.c.l.b16 %v6209
    %v6242 = vunpack.c.h.b16 %v6209
    %v6243 = vunpack.c.l.b16 %v6210
    %v6244 = vunpack.c.h.b16 %v6210
    %v6245 = vunpack.c.l.b16 %v6211
    %v6246 = vunpack.c.h.b16 %v6211
    %v6247 = vunpack.c.l.b16 %v6212
    %v6248 = vunpack.c.h.b16 %v6212
    %v6249 = vunpack.c.l.b16 %v6213
    %v6250 = vunpack.c.h.b16 %v6213
    %v6251 = vunpack.c.l.b16 %v6214
    %v6252 = vunpack.c.h.b16 %v6214
    %v6253 = vunpack.c.l.b16 %v6215
    %v6254 = vunpack.c.h.b16 %v6215
    %v6255 = vunpack.c.l.b16 %v6216
    %v6256 = vunpack.c.h.b16 %v6216
    %v6257 = vunpack.c.l.b16 %v6217
    %v6258 = vunpack.c.h.b16 %v6217
    %v6259 = vunpack.c.l.b16 %v6218
    %v6260 = vunpack.c.h.b16 %v6218
    %v6261 = vunpack.c.l.b16 %v6219
    %v6262 = vunpack.c.h.b16 %v6219
    %v6263 = vunpack.c.l.b16 %v6220
    %v6264 = vunpack.c.h.b16 %v6220
    %v6265 = vunpack.c.l.b16 %v6221
    %v6266 = vunpack.c.h.b16 %v6221
    %v6267 = vunpack.c.l.b16 %v6222
    %v6268 = vunpack.c.h.b16 %v6222
    %v6269 = vunpack.c.l.b16 %v6223
    %v6270 = vunpack.c.h.b16 %v6223
    %v6271 = vunpack.c.l.b16 %v6224
    %v6272 = vunpack.c.h.b16 %v6224
    %v6273 = vpack.c.b16 %v6243, %v6241
    %v6274 = vpack.c.b16 %v6244, %v6242
    %v6275 = vpack.c.b16 %v6247, %v6245
    %v6276 = vpack.c.b16 %v6248, %v6246
    %v6277 = vpack.c.b16 %v6251, %v6249
    %v6278 = vpack.c.b16 %v6252, %v6250
    %v6279 = vpack.c.b16 %v6255, %v6253
    %v6280 = vpack.c.b16 %v6256, %v6254
    %v6281 = vpack.c.b16 %v6259, %v6257
    %v6282 = vpack.c.b16 %v6260, %v6258
    %v6283 = vpack.c.b16 %v6263, %v6261
    %v6284 = vpack.c.b16 %v6264, %v6262
    %v6285 = vpack.c.b16 %v6267, %v6265
    %v6286 = vpack.c.b16 %v6268, %v6266
    %v6287 = vpack.c.b16 %v6271, %v6269
    %v6288 = vpack.c.b16 %v6272, %v6270
    %6289 = vrot.lane.b32.xlu0 %v6273, 1
    %v6290 = vpop.permute.xlu0 %6289
    %6291 = vrot.lane.b32.xlu0 %v6274, 1
    %v6292 = vpop.permute.xlu0 %6291
    %6293 = vrot.lane.b32.xlu0 %v6275, 1
    %v6294 = vpop.permute.xlu0 %6293
    %6295 = vrot.lane.b32.xlu0 %v6276, 1
    %v6296 = vpop.permute.xlu0 %6295
    %6297 = vrot.lane.b32.xlu0 %v6277, 1
    %v6298 = vpop.permute.xlu0 %6297
    %6299 = vrot.lane.b32.xlu0 %v6278, 1
    %v6300 = vpop.permute.xlu0 %6299
    %6301 = vrot.lane.b32.xlu0 %v6279, 1
    %v6302 = vpop.permute.xlu0 %6301
    %6303 = vrot.lane.b32.xlu0 %v6280, 1
    %v6304 = vpop.permute.xlu0 %6303
    %6305 = vrot.lane.b32.xlu0 %v6281, 1
    %v6306 = vpop.permute.xlu0 %6305
    %6307 = vrot.lane.b32.xlu0 %v6282, 1
    %v6308 = vpop.permute.xlu0 %6307
    %6309 = vrot.lane.b32.xlu0 %v6283, 1
    %v6310 = vpop.permute.xlu0 %6309
    %6311 = vrot.lane.b32.xlu0 %v6284, 1
    %v6312 = vpop.permute.xlu0 %6311
    %6313 = vrot.lane.b32.xlu0 %v6285, 1
    %v6314 = vpop.permute.xlu0 %6313
    %6315 = vrot.lane.b32.xlu0 %v6286, 1
    %v6316 = vpop.permute.xlu0 %6315
    %6317 = vrot.lane.b32.xlu0 %v6287, 1
    %v6318 = vpop.permute.xlu0 %6317
    %6319 = vrot.lane.b32.xlu0 %v6288, 1
    %v6320 = vpop.permute.xlu0 %6319
    %vm6321 = vcmask 7168
    %v6322 = vsel %vm6321, %v6290, %v6292
    %v6323 = vsel %vm6321, %v6294, %v6296
    %v6324 = vsel %vm6321, %v6298, %v6300
    %v6325 = vsel %vm6321, %v6302, %v6304
    %v6326 = vsel %vm6321, %v6306, %v6308
    %v6327 = vsel %vm6321, %v6310, %v6312
    %v6328 = vsel %vm6321, %v6314, %v6316
    %v6329 = vsel %vm6321, %v6318, %v6320
    %v6330 = vld [vmem:[%s13] sm:$0xff]
    %v6331 = vld [vmem:[%s13 + $0x8] sm:$0xff]
    %v6332 = vld [vmem:[%s13 + $0x10] sm:$0xff]
    %v6333 = vld [vmem:[%s13 + $0x18] sm:$0xff]
    %v6334 = vld [vmem:[%s13 + $0x20] sm:$0xff]
    %v6335 = vld [vmem:[%s13 + $0x28] sm:$0xff]
    %v6336 = vld [vmem:[%s13 + $0x30] sm:$0xff]
    %v6337 = vld [vmem:[%s13 + $0x38] sm:$0xff]
    %v6338 = vld [vmem:[#allocation16] sm:$0xff]
    %v6339 = vld [vmem:[#allocation16 + $0x8] sm:$0xff]
    %v6340 = vld [vmem:[#allocation16 + $0x10] sm:$0xff]
    %v6341 = vld [vmem:[#allocation16 + $0x18] sm:$0xff]
    %v6342 = vld [vmem:[#allocation16 + $0x20] sm:$0xff]
    %v6343 = vld [vmem:[#allocation16 + $0x28] sm:$0xff]
    %v6344 = vld [vmem:[#allocation16 + $0x30] sm:$0xff]
    %v6345 = vld [vmem:[#allocation16 + $0x38] sm:$0xff]
    %6347 = vset.pattern.permute.xlu0 0
    %6348 = vperm.xlu0 %6347, %v6330
    %v6349 = vpop.permute.xlu0 %6348
    %6352 = vset.pattern.permute.xlu0 0
    %6353 = vperm.xlu0 %6352, %v6331
    %v6354 = vpop.permute.xlu0 %6353
    %6357 = vset.pattern.permute.xlu0 0
    %6358 = vperm.xlu0 %6357, %v6332
    %v6359 = vpop.permute.xlu0 %6358
    %6362 = vset.pattern.permute.xlu0 0
    %6363 = vperm.xlu0 %6362, %v6333
    %v6364 = vpop.permute.xlu0 %6363
    %6367 = vset.pattern.permute.xlu0 0
    %6368 = vperm.xlu0 %6367, %v6334
    %v6369 = vpop.permute.xlu0 %6368
    %6372 = vset.pattern.permute.xlu0 0
    %6373 = vperm.xlu0 %6372, %v6335
    %v6374 = vpop.permute.xlu0 %6373
    %6377 = vset.pattern.permute.xlu0 0
    %6378 = vperm.xlu0 %6377, %v6336
    %v6379 = vpop.permute.xlu0 %6378
    %6382 = vset.pattern.permute.xlu0 0
    %6383 = vperm.xlu0 %6382, %v6337
    %v6384 = vpop.permute.xlu0 %6383
    %v6394 = vunpack.c.l.b16 %v6338
    %v6395 = vunpack.c.h.b16 %v6338
    %v6396 = vunpack.c.l.b16 %v6339
    %v6397 = vunpack.c.h.b16 %v6339
    %v6398 = vunpack.c.l.b16 %v6340
    %v6399 = vunpack.c.h.b16 %v6340
    %v6400 = vunpack.c.l.b16 %v6341
    %v6401 = vunpack.c.h.b16 %v6341
    %v6402 = vunpack.c.l.b16 %v6342
    %v6403 = vunpack.c.h.b16 %v6342
    %v6404 = vunpack.c.l.b16 %v6343
    %v6405 = vunpack.c.h.b16 %v6343
    %v6406 = vunpack.c.l.b16 %v6344
    %v6407 = vunpack.c.h.b16 %v6344
    %v6408 = vunpack.c.l.b16 %v6345
    %v6409 = vunpack.c.h.b16 %v6345
    %v6410 = vpack.c.b16 %v6396, %v6394
    %v6411 = vpack.c.b16 %v6397, %v6395
    %v6412 = vpack.c.b16 %v6400, %v6398
    %v6413 = vpack.c.b16 %v6401, %v6399
    %v6414 = vpack.c.b16 %v6404, %v6402
    %v6415 = vpack.c.b16 %v6405, %v6403
    %v6416 = vpack.c.b16 %v6408, %v6406
    %v6417 = vpack.c.b16 %v6409, %v6407
    %6426 = vrot.lane.b32.xlu0 %v6273, 127
    %v6427 = vpop.permute.xlu0 %6426
    %6428 = vrot.lane.b32.xlu0 %v6274, 127
    %v6429 = vpop.permute.xlu0 %6428
    %6430 = vrot.lane.b32.xlu0 %v6275, 127
    %v6431 = vpop.permute.xlu0 %6430
    %6432 = vrot.lane.b32.xlu0 %v6276, 127
    %v6433 = vpop.permute.xlu0 %6432
    %6434 = vrot.lane.b32.xlu0 %v6277, 127
    %v6435 = vpop.permute.xlu0 %6434
    %6436 = vrot.lane.b32.xlu0 %v6278, 127
    %v6437 = vpop.permute.xlu0 %6436
    %6438 = vrot.lane.b32.xlu0 %v6279, 127
    %v6439 = vpop.permute.xlu0 %6438
    %6440 = vrot.lane.b32.xlu0 %v6280, 127
    %v6441 = vpop.permute.xlu0 %6440
    %6442 = vrot.lane.b32.xlu0 %v6281, 127
    %v6443 = vpop.permute.xlu0 %6442
    %6444 = vrot.lane.b32.xlu0 %v6282, 127
    %v6445 = vpop.permute.xlu0 %6444
    %6446 = vrot.lane.b32.xlu0 %v6283, 127
    %v6447 = vpop.permute.xlu0 %6446
    %6448 = vrot.lane.b32.xlu0 %v6284, 127
    %v6449 = vpop.permute.xlu0 %6448
    %6450 = vrot.lane.b32.xlu0 %v6285, 127
    %v6451 = vpop.permute.xlu0 %6450
    %6452 = vrot.lane.b32.xlu0 %v6286, 127
    %v6453 = vpop.permute.xlu0 %6452
    %6454 = vrot.lane.b32.xlu0 %v6287, 127
    %v6455 = vpop.permute.xlu0 %6454
    %6456 = vrot.lane.b32.xlu0 %v6288, 127
    %v6457 = vpop.permute.xlu0 %6456
    %6458 = vrot.lane.b32.xlu0 %v6290, 127
    %v6459 = vpop.permute.xlu0 %6458
    %6460 = vrot.lane.b32.xlu0 %v6322, 127
    %v6461 = vpop.permute.xlu0 %6460
    %6462 = vrot.lane.b32.xlu0 %v6294, 127
    %v6463 = vpop.permute.xlu0 %6462
    %6464 = vrot.lane.b32.xlu0 %v6323, 127
    %v6465 = vpop.permute.xlu0 %6464
    %6466 = vrot.lane.b32.xlu0 %v6298, 127
    %v6467 = vpop.permute.xlu0 %6466
    %6468 = vrot.lane.b32.xlu0 %v6324, 127
    %v6469 = vpop.permute.xlu0 %6468
    %6470 = vrot.lane.b32.xlu0 %v6302, 127
    %v6471 = vpop.permute.xlu0 %6470
    %6472 = vrot.lane.b32.xlu0 %v6325, 127
    %v6473 = vpop.permute.xlu0 %6472
    %6474 = vrot.lane.b32.xlu0 %v6306, 127
    %v6475 = vpop.permute.xlu0 %6474
    %6476 = vrot.lane.b32.xlu0 %v6326, 127
    %v6477 = vpop.permute.xlu0 %6476
    %6478 = vrot.lane.b32.xlu0 %v6310, 127
    %v6479 = vpop.permute.xlu0 %6478
    %6480 = vrot.lane.b32.xlu0 %v6327, 127
    %v6481 = vpop.permute.xlu0 %6480
    %6482 = vrot.lane.b32.xlu0 %v6314, 127
    %v6483 = vpop.permute.xlu0 %6482
    %6484 = vrot.lane.b32.xlu0 %v6328, 127
    %v6485 = vpop.permute.xlu0 %6484
    %6486 = vrot.lane.b32.xlu0 %v6318, 127
    %v6487 = vpop.permute.xlu0 %6486
    %6488 = vrot.lane.b32.xlu0 %v6329, 127
    %v6489 = vpop.permute.xlu0 %6488
    %vm6490 = vcmask 1039360
    %v6491 = vsel %vm6490, %v6427, %v6429
    %v6492 = vsel %vm6490, %v6431, %v6433
    %v6493 = vsel %vm6490, %v6435, %v6437
    %v6494 = vsel %vm6490, %v6439, %v6441
    %v6495 = vsel %vm6490, %v6443, %v6445
    %v6496 = vsel %vm6490, %v6447, %v6449
    %v6497 = vsel %vm6490, %v6451, %v6453
    %v6498 = vsel %vm6490, %v6455, %v6457
    %v6499 = vsel %vm6490, %v6459, %v6461
    %v6500 = vsel %vm6490, %v6463, %v6465
    %v6501 = vsel %vm6490, %v6467, %v6469
    %v6502 = vsel %vm6490, %v6471, %v6473
    %v6503 = vsel %vm6490, %v6475, %v6477
    %v6504 = vsel %vm6490, %v6479, %v6481
    %v6505 = vsel %vm6490, %v6483, %v6485
    %v6506 = vsel %vm6490, %v6487, %v6489
    %6539 = vmatpush.bf16.msra.mxu0 %v6498
    %6540 = vmatpush.bf16.msra.mxu0 %v6497
    %6541 = vmatpush.bf16.msra.mxu0 %v6496
    %6542 = vmatpush.bf16.msra.mxu0 %v6495
    %6543 = vmatpush.bf16.msra.mxu0 %v6494
    %6544 = vmatpush.bf16.msra.mxu0 %v6493
    %6545 = vmatpush.bf16.msra.mxu0 %v6492
    %6546 = vmatpush.bf16.msra.mxu0 %v6491
    %6547 = vmatmul.bf16.gmra.mxu0 %v6410
    %v6548 = vpop.f32.mrf.mxu0
    %v6549 = vadd.f32 %v6349, %v6548
    %v6550 = vpop.f32.mrf.mxu0
    %v6551 = vadd.f32 %v6354, %v6550
    %6552 = vmatmul.bf16.gmra.mxu0 %v6412
    %v6553 = vpop.f32.mrf.mxu0
    %v6554 = vadd.f32 %v6359, %v6553
    %v6555 = vpop.f32.mrf.mxu0
    %v6556 = vadd.f32 %v6364, %v6555
    %6557 = vmatmul.bf16.gmra.mxu0 %v6414
    %v6558 = vpop.f32.mrf.mxu0
    %v6559 = vadd.f32 %v6369, %v6558
    %v6560 = vpop.f32.mrf.mxu0
    %v6561 = vadd.f32 %v6374, %v6560
    %6562 = vmatmul.bf16.gmra.mxu0 %v6416
    %v6563 = vpop.f32.mrf.mxu0
    %v6564 = vadd.f32 %v6379, %v6563
    %v6565 = vpop.f32.mrf.mxu0
    %v6566 = vadd.f32 %v6384, %v6565
    %6567 = vdwg.mxu0
    %6568 = vmatpush.bf16.msra.mxu0 %v6506
    %6569 = vmatpush.bf16.msra.mxu0 %v6505
    %6570 = vmatpush.bf16.msra.mxu0 %v6504
    %6571 = vmatpush.bf16.msra.mxu0 %v6503
    %6572 = vmatpush.bf16.msra.mxu0 %v6502
    %6573 = vmatpush.bf16.msra.mxu0 %v6501
    %6574 = vmatpush.bf16.msra.mxu0 %v6500
    %6575 = vmatpush.bf16.msra.mxu0 %v6499
    %6576 = vmatmul.bf16.gmra.mxu0 %v6411
    %v6577 = vpop.f32.mrf.mxu0
    %v6578 = vadd.f32 %v6549, %v6577
    %v6579 = vpop.f32.mrf.mxu0
    %v6580 = vadd.f32 %v6551, %v6579
    %6581 = vmatmul.bf16.gmra.mxu0 %v6413
    %v6582 = vpop.f32.mrf.mxu0
    %v6583 = vadd.f32 %v6554, %v6582
    %v6584 = vpop.f32.mrf.mxu0
    %v6585 = vadd.f32 %v6556, %v6584
    %6586 = vmatmul.bf16.gmra.mxu0 %v6415
    %v6587 = vpop.f32.mrf.mxu0
    %v6588 = vadd.f32 %v6559, %v6587
    %v6589 = vpop.f32.mrf.mxu0
    %v6590 = vadd.f32 %v6561, %v6589
    %6591 = vmatmul.bf16.gmra.mxu0 %v6417
    %v6592 = vpop.f32.mrf.mxu0
    %v6593 = vadd.f32 %v6564, %v6592
    %v6594 = vpop.f32.mrf.mxu0
    %v6595 = vadd.f32 %v6566, %v6594
    %6596 = vdwg.mxu0
    %6597 = vmatpush.bf16.msra.mxu0 %v6457
    %6598 = vmatpush.bf16.msra.mxu0 %v6453
    %6599 = vmatpush.bf16.msra.mxu0 %v6449
    %6600 = vmatpush.bf16.msra.mxu0 %v6445
    %6601 = vmatpush.bf16.msra.mxu0 %v6441
    %6602 = vmatpush.bf16.msra.mxu0 %v6437
    %6603 = vmatpush.bf16.msra.mxu0 %v6433
    %6604 = vmatpush.bf16.msra.mxu0 %v6429
    %6605 = vmatmul.bf16.gmra.mxu0 %v6410
    %v6606 = vpop.f32.mrf.mxu0
    %v6607 = vadd.f32 %v6349, %v6606
    %v6608 = vpop.f32.mrf.mxu0
    %v6609 = vadd.f32 %v6354, %v6608
    %6610 = vmatmul.bf16.gmra.mxu0 %v6412
    %v6611 = vpop.f32.mrf.mxu0
    %v6612 = vadd.f32 %v6359, %v6611
    %v6613 = vpop.f32.mrf.mxu0
    %v6614 = vadd.f32 %v6364, %v6613
    %6615 = vmatmul.bf16.gmra.mxu0 %v6414
    %v6616 = vpop.f32.mrf.mxu0
    %v6617 = vadd.f32 %v6369, %v6616
    %v6618 = vpop.f32.mrf.mxu0
    %v6619 = vadd.f32 %v6374, %v6618
    %6620 = vmatmul.bf16.gmra.mxu0 %v6416
    %v6621 = vpop.f32.mrf.mxu0
    %v6622 = vadd.f32 %v6379, %v6621
    %v6623 = vpop.f32.mrf.mxu0
    %v6624 = vadd.f32 %v6384, %v6623
    %6625 = vdwg.mxu0
    %6626 = vmatpush.bf16.msra.mxu0 %v6489
    %6627 = vmatpush.bf16.msra.mxu0 %v6485
    %6628 = vmatpush.bf16.msra.mxu0 %v6481
    %6629 = vmatpush.bf16.msra.mxu0 %v6477
    %6630 = vmatpush.bf16.msra.mxu0 %v6473
    %6631 = vmatpush.bf16.msra.mxu0 %v6469
    %6632 = vmatpush.bf16.msra.mxu0 %v6465
    %6633 = vmatpush.bf16.msra.mxu0 %v6461
    %6634 = vmatmul.bf16.gmra.mxu0 %v6411
    %v6635 = vpop.f32.mrf.mxu0
    %v6636 = vadd.f32 %v6607, %v6635
    %v6637 = vpop.f32.mrf.mxu0
    %v6638 = vadd.f32 %v6609, %v6637
    %6639 = vmatmul.bf16.gmra.mxu0 %v6413
    %v6640 = vpop.f32.mrf.mxu0
    %v6641 = vadd.f32 %v6612, %v6640
    %v6642 = vpop.f32.mrf.mxu0
    %v6643 = vadd.f32 %v6614, %v6642
    %6644 = vmatmul.bf16.gmra.mxu0 %v6415
    %v6645 = vpop.f32.mrf.mxu0
    %v6646 = vadd.f32 %v6617, %v6645
    %v6647 = vpop.f32.mrf.mxu0
    %v6648 = vadd.f32 %v6619, %v6647
    %6649 = vmatmul.bf16.gmra.mxu0 %v6417
    %v6650 = vpop.f32.mrf.mxu0
    %v6651 = vadd.f32 %v6622, %v6650
    %v6652 = vpop.f32.mrf.mxu0
    %v6653 = vadd.f32 %v6624, %v6652
    %6654 = vdwg.mxu0
    %v6655 = vld [vmem:[#allocation17] sm:$0xff]
    %v6656 = vld [vmem:[#allocation17 + $0x8] sm:$0xff]
    %v6657 = vld [vmem:[#allocation17 + $0x10] sm:$0xff]
    %v6658 = vld [vmem:[#allocation17 + $0x18] sm:$0xff]
    %v6659 = vld [vmem:[#allocation17 + $0x20] sm:$0xff]
    %v6660 = vld [vmem:[#allocation17 + $0x28] sm:$0xff]
    %v6661 = vld [vmem:[#allocation17 + $0x30] sm:$0xff]
    %v6662 = vld [vmem:[#allocation17 + $0x38] sm:$0xff]
    %v6671 = vunpack.c.l.b16 %v6655
    %v6672 = vunpack.c.h.b16 %v6655
    %v6673 = vunpack.c.l.b16 %v6656
    %v6674 = vunpack.c.h.b16 %v6656
    %v6675 = vunpack.c.l.b16 %v6657
    %v6676 = vunpack.c.h.b16 %v6657
    %v6677 = vunpack.c.l.b16 %v6658
    %v6678 = vunpack.c.h.b16 %v6658
    %v6679 = vunpack.c.l.b16 %v6659
    %v6680 = vunpack.c.h.b16 %v6659
    %v6681 = vunpack.c.l.b16 %v6660
    %v6682 = vunpack.c.h.b16 %v6660
    %v6683 = vunpack.c.l.b16 %v6661
    %v6684 = vunpack.c.h.b16 %v6661
    %v6685 = vunpack.c.l.b16 %v6662
    %v6686 = vunpack.c.h.b16 %v6662
    %v6687 = vpack.c.b16 %v6673, %v6671
    %v6688 = vpack.c.b16 %v6674, %v6672
    %v6689 = vpack.c.b16 %v6677, %v6675
    %v6690 = vpack.c.b16 %v6678, %v6676
    %v6691 = vpack.c.b16 %v6681, %v6679
    %v6692 = vpack.c.b16 %v6682, %v6680
    %v6693 = vpack.c.b16 %v6685, %v6683
    %v6694 = vpack.c.b16 %v6686, %v6684
    %6703 = vrot.lane.b32.xlu0 %v6273, 126
    %v6704 = vpop.permute.xlu0 %6703
    %6705 = vrot.lane.b32.xlu0 %v6274, 126
    %v6706 = vpop.permute.xlu0 %6705
    %6707 = vrot.lane.b32.xlu0 %v6275, 126
    %v6708 = vpop.permute.xlu0 %6707
    %6709 = vrot.lane.b32.xlu0 %v6276, 126
    %v6710 = vpop.permute.xlu0 %6709
    %6711 = vrot.lane.b32.xlu0 %v6277, 126
    %v6712 = vpop.permute.xlu0 %6711
    %6713 = vrot.lane.b32.xlu0 %v6278, 126
    %v6714 = vpop.permute.xlu0 %6713
    %6715 = vrot.lane.b32.xlu0 %v6279, 126
    %v6716 = vpop.permute.xlu0 %6715
    %6717 = vrot.lane.b32.xlu0 %v6280, 126
    %v6718 = vpop.permute.xlu0 %6717
    %6719 = vrot.lane.b32.xlu0 %v6281, 126
    %v6720 = vpop.permute.xlu0 %6719
    %6721 = vrot.lane.b32.xlu0 %v6282, 126
    %v6722 = vpop.permute.xlu0 %6721
    %6723 = vrot.lane.b32.xlu0 %v6283, 126
    %v6724 = vpop.permute.xlu0 %6723
    %6725 = vrot.lane.b32.xlu0 %v6284, 126
    %v6726 = vpop.permute.xlu0 %6725
    %6727 = vrot.lane.b32.xlu0 %v6285, 126
    %v6728 = vpop.permute.xlu0 %6727
    %6729 = vrot.lane.b32.xlu0 %v6286, 126
    %v6730 = vpop.permute.xlu0 %6729
    %6731 = vrot.lane.b32.xlu0 %v6287, 126
    %v6732 = vpop.permute.xlu0 %6731
    %6733 = vrot.lane.b32.xlu0 %v6288, 126
    %v6734 = vpop.permute.xlu0 %6733
    %6735 = vrot.lane.b32.xlu0 %v6290, 126
    %v6736 = vpop.permute.xlu0 %6735
    %6737 = vrot.lane.b32.xlu0 %v6322, 126
    %v6738 = vpop.permute.xlu0 %6737
    %6739 = vrot.lane.b32.xlu0 %v6294, 126
    %v6740 = vpop.permute.xlu0 %6739
    %6741 = vrot.lane.b32.xlu0 %v6323, 126
    %v6742 = vpop.permute.xlu0 %6741
    %6743 = vrot.lane.b32.xlu0 %v6298, 126
    %v6744 = vpop.permute.xlu0 %6743
    %6745 = vrot.lane.b32.xlu0 %v6324, 126
    %v6746 = vpop.permute.xlu0 %6745
    %6747 = vrot.lane.b32.xlu0 %v6302, 126
    %v6748 = vpop.permute.xlu0 %6747
    %6749 = vrot.lane.b32.xlu0 %v6325, 126
    %v6750 = vpop.permute.xlu0 %6749
    %6751 = vrot.lane.b32.xlu0 %v6306, 126
    %v6752 = vpop.permute.xlu0 %6751
    %6753 = vrot.lane.b32.xlu0 %v6326, 126
    %v6754 = vpop.permute.xlu0 %6753
    %6755 = vrot.lane.b32.xlu0 %v6310, 126
    %v6756 = vpop.permute.xlu0 %6755
    %6757 = vrot.lane.b32.xlu0 %v6327, 126
    %v6758 = vpop.permute.xlu0 %6757
    %6759 = vrot.lane.b32.xlu0 %v6314, 126
    %v6760 = vpop.permute.xlu0 %6759
    %6761 = vrot.lane.b32.xlu0 %v6328, 126
    %v6762 = vpop.permute.xlu0 %6761
    %6763 = vrot.lane.b32.xlu0 %v6318, 126
    %v6764 = vpop.permute.xlu0 %6763
    %6765 = vrot.lane.b32.xlu0 %v6329, 126
    %v6766 = vpop.permute.xlu0 %6765
    %vm6767 = vcmask 1031168
    %v6768 = vsel %vm6767, %v6704, %v6706
    %v6769 = vsel %vm6767, %v6708, %v6710
    %v6770 = vsel %vm6767, %v6712, %v6714
    %v6771 = vsel %vm6767, %v6716, %v6718
    %v6772 = vsel %vm6767, %v6720, %v6722
    %v6773 = vsel %vm6767, %v6724, %v6726
    %v6774 = vsel %vm6767, %v6728, %v6730
    %v6775 = vsel %vm6767, %v6732, %v6734
    %v6776 = vsel %vm6767, %v6736, %v6738
    %v6777 = vsel %vm6767, %v6740, %v6742
    %v6778 = vsel %vm6767, %v6744, %v6746
    %v6779 = vsel %vm6767, %v6748, %v6750
    %v6780 = vsel %vm6767, %v6752, %v6754
    %v6781 = vsel %vm6767, %v6756, %v6758
    %v6782 = vsel %vm6767, %v6760, %v6762
    %v6783 = vsel %vm6767, %v6764, %v6766
    %6816 = vmatpush.bf16.msra.mxu0 %v6775
    %6817 = vmatpush.bf16.msra.mxu0 %v6774
    %6818 = vmatpush.bf16.msra.mxu0 %v6773
    %6819 = vmatpush.bf16.msra.mxu0 %v6772
    %6820 = vmatpush.bf16.msra.mxu0 %v6771
    %6821 = vmatpush.bf16.msra.mxu0 %v6770
    %6822 = vmatpush.bf16.msra.mxu0 %v6769
    %6823 = vmatpush.bf16.msra.mxu0 %v6768
    %6824 = vmatmul.bf16.gmra.mxu0 %v6687
    %v6825 = vpop.f32.mrf.mxu0
    %v6826 = vadd.f32 %v6349, %v6825
    %v6827 = vpop.f32.mrf.mxu0
    %v6828 = vadd.f32 %v6354, %v6827
    %6829 = vmatmul.bf16.gmra.mxu0 %v6689
    %v6830 = vpop.f32.mrf.mxu0
    %v6831 = vadd.f32 %v6359, %v6830
    %v6832 = vpop.f32.mrf.mxu0
    %v6833 = vadd.f32 %v6364, %v6832
    %6834 = vmatmul.bf16.gmra.mxu0 %v6691
    %v6835 = vpop.f32.mrf.mxu0
    %v6836 = vadd.f32 %v6369, %v6835
    %v6837 = vpop.f32.mrf.mxu0
    %v6838 = vadd.f32 %v6374, %v6837
    %6839 = vmatmul.bf16.gmra.mxu0 %v6693
    %v6840 = vpop.f32.mrf.mxu0
    %v6841 = vadd.f32 %v6379, %v6840
    %v6842 = vpop.f32.mrf.mxu0
    %v6843 = vadd.f32 %v6384, %v6842
    %6844 = vdwg.mxu0
    %6845 = vmatpush.bf16.msra.mxu0 %v6783
    %6846 = vmatpush.bf16.msra.mxu0 %v6782
    %6847 = vmatpush.bf16.msra.mxu0 %v6781
    %6848 = vmatpush.bf16.msra.mxu0 %v6780
    %6849 = vmatpush.bf16.msra.mxu0 %v6779
    %6850 = vmatpush.bf16.msra.mxu0 %v6778
    %6851 = vmatpush.bf16.msra.mxu0 %v6777
    %6852 = vmatpush.bf16.msra.mxu0 %v6776
    %6853 = vmatmul.bf16.gmra.mxu0 %v6688
    %v6854 = vpop.f32.mrf.mxu0
    %v6855 = vadd.f32 %v6826, %v6854
    %v6856 = vpop.f32.mrf.mxu0
    %v6857 = vadd.f32 %v6828, %v6856
    %6858 = vmatmul.bf16.gmra.mxu0 %v6690
    %v6859 = vpop.f32.mrf.mxu0
    %v6860 = vadd.f32 %v6831, %v6859
    %v6861 = vpop.f32.mrf.mxu0
    %v6862 = vadd.f32 %v6833, %v6861
    %6863 = vmatmul.bf16.gmra.mxu0 %v6692
    %v6864 = vpop.f32.mrf.mxu0
    %v6865 = vadd.f32 %v6836, %v6864
    %v6866 = vpop.f32.mrf.mxu0
    %v6867 = vadd.f32 %v6838, %v6866
    %6868 = vmatmul.bf16.gmra.mxu0 %v6694
    %v6869 = vpop.f32.mrf.mxu0
    %v6870 = vadd.f32 %v6841, %v6869
    %v6871 = vpop.f32.mrf.mxu0
    %v6872 = vadd.f32 %v6843, %v6871
    %6873 = vdwg.mxu0
    %6874 = vmatpush.bf16.msra.mxu0 %v6734
    %6875 = vmatpush.bf16.msra.mxu0 %v6730
    %6876 = vmatpush.bf16.msra.mxu0 %v6726
    %6877 = vmatpush.bf16.msra.mxu0 %v6722
    %6878 = vmatpush.bf16.msra.mxu0 %v6718
    %6879 = vmatpush.bf16.msra.mxu0 %v6714
    %6880 = vmatpush.bf16.msra.mxu0 %v6710
    %6881 = vmatpush.bf16.msra.mxu0 %v6706
    %6882 = vmatmul.bf16.gmra.mxu0 %v6687
    %v6883 = vpop.f32.mrf.mxu0
    %v6884 = vadd.f32 %v6349, %v6883
    %v6885 = vpop.f32.mrf.mxu0
    %v6886 = vadd.f32 %v6354, %v6885
    %6887 = vmatmul.bf16.gmra.mxu0 %v6689
    %v6888 = vpop.f32.mrf.mxu0
    %v6889 = vadd.f32 %v6359, %v6888
    %v6890 = vpop.f32.mrf.mxu0
    %v6891 = vadd.f32 %v6364, %v6890
    %6892 = vmatmul.bf16.gmra.mxu0 %v6691
    %v6893 = vpop.f32.mrf.mxu0
    %v6894 = vadd.f32 %v6369, %v6893
    %v6895 = vpop.f32.mrf.mxu0
    %v6896 = vadd.f32 %v6374, %v6895
    %6897 = vmatmul.bf16.gmra.mxu0 %v6693
    %v6898 = vpop.f32.mrf.mxu0
    %v6899 = vadd.f32 %v6379, %v6898
    %v6900 = vpop.f32.mrf.mxu0
    %v6901 = vadd.f32 %v6384, %v6900
    %6902 = vdwg.mxu0
    %6903 = vmatpush.bf16.msra.mxu0 %v6766
    %6904 = vmatpush.bf16.msra.mxu0 %v6762
    %6905 = vmatpush.bf16.msra.mxu0 %v6758
    %6906 = vmatpush.bf16.msra.mxu0 %v6754
    %6907 = vmatpush.bf16.msra.mxu0 %v6750
    %6908 = vmatpush.bf16.msra.mxu0 %v6746
    %6909 = vmatpush.bf16.msra.mxu0 %v6742
    %6910 = vmatpush.bf16.msra.mxu0 %v6738
    %6911 = vmatmul.bf16.gmra.mxu0 %v6688
    %v6912 = vpop.f32.mrf.mxu0
    %v6913 = vadd.f32 %v6884, %v6912
    %v6914 = vpop.f32.mrf.mxu0
    %v6915 = vadd.f32 %v6886, %v6914
    %6916 = vmatmul.bf16.gmra.mxu0 %v6690
    %v6917 = vpop.f32.mrf.mxu0
    %v6918 = vadd.f32 %v6889, %v6917
    %v6919 = vpop.f32.mrf.mxu0
    %v6920 = vadd.f32 %v6891, %v6919
    %6921 = vmatmul.bf16.gmra.mxu0 %v6692
    %v6922 = vpop.f32.mrf.mxu0
    %v6923 = vadd.f32 %v6894, %v6922
    %v6924 = vpop.f32.mrf.mxu0
    %v6925 = vadd.f32 %v6896, %v6924
    %6926 = vmatmul.bf16.gmra.mxu0 %v6694
    %v6927 = vpop.f32.mrf.mxu0
    %v6928 = vadd.f32 %v6899, %v6927
    %v6929 = vpop.f32.mrf.mxu0
    %v6930 = vadd.f32 %v6901, %v6929
    %6931 = vdwg.mxu0
    %v6932 = vmax.f32 %v6578, 0.0
    %v6933 = vmax.f32 %v6636, 0.0
    %v6934 = vmax.f32 %v6580, 0.0
    %v6935 = vmax.f32 %v6638, 0.0
    %v6936 = vmax.f32 %v6583, 0.0
    %v6937 = vmax.f32 %v6641, 0.0
    %v6938 = vmax.f32 %v6585, 0.0
    %v6939 = vmax.f32 %v6643, 0.0
    %v6940 = vmax.f32 %v6588, 0.0
    %v6941 = vmax.f32 %v6646, 0.0
    %v6942 = vmax.f32 %v6590, 0.0
    %v6943 = vmax.f32 %v6648, 0.0
    %v6944 = vmax.f32 %v6593, 0.0
    %v6945 = vmax.f32 %v6651, 0.0
    %v6946 = vmax.f32 %v6595, 0.0
    %v6947 = vmax.f32 %v6653, 0.0
    %v6948 = vmax.f32 %v6855, 0.0
    %v6949 = vmax.f32 %v6913, 0.0
    %v6950 = vmax.f32 %v6857, 0.0
    %v6951 = vmax.f32 %v6915, 0.0
    %v6952 = vmax.f32 %v6860, 0.0
    %v6953 = vmax.f32 %v6918, 0.0
    %v6954 = vmax.f32 %v6862, 0.0
    %v6955 = vmax.f32 %v6920, 0.0
    %v6956 = vmax.f32 %v6865, 0.0
    %v6957 = vmax.f32 %v6923, 0.0
    %v6958 = vmax.f32 %v6867, 0.0
    %v6959 = vmax.f32 %v6925, 0.0
    %v6960 = vmax.f32 %v6870, 0.0
    %v6961 = vmax.f32 %v6928, 0.0
    %v6962 = vmax.f32 %v6872, 0.0
    %v6963 = vmax.f32 %v6930, 0.0
    %v6964 = vpack.c.bf16 %v6934, %v6932
    %v6965 = vpack.c.bf16 %v6935, %v6933
    %v6966 = vpack.c.bf16 %v6938, %v6936
    %v6967 = vpack.c.bf16 %v6939, %v6937
    %v6968 = vpack.c.bf16 %v6942, %v6940
    %v6969 = vpack.c.bf16 %v6943, %v6941
    %v6970 = vpack.c.bf16 %v6946, %v6944
    %v6971 = vpack.c.bf16 %v6947, %v6945
    %v6972 = vpack.c.bf16 %v6950, %v6948
    %v6973 = vpack.c.bf16 %v6951, %v6949
    %v6974 = vpack.c.bf16 %v6954, %v6952
    %v6975 = vpack.c.bf16 %v6955, %v6953
    %v6976 = vpack.c.bf16 %v6958, %v6956
    %v6977 = vpack.c.bf16 %v6959, %v6957
    %v6978 = vpack.c.bf16 %v6962, %v6960
    %v6979 = vpack.c.bf16 %v6963, %v6961
    %v6980 = vld [vmem:[#allocation19] sm:$0xff]
    %v6981 = vld [vmem:[#allocation19 + $0x8] sm:$0xff]
    %v6982 = vld [vmem:[#allocation19 + $0x10] sm:$0xff]
    %v6983 = vld [vmem:[#allocation19 + $0x18] sm:$0xff]
    %v6984 = vld [vmem:[#allocation19 + $0x20] sm:$0xff]
    %v6985 = vld [vmem:[#allocation19 + $0x28] sm:$0xff]
    %v6986 = vld [vmem:[#allocation19 + $0x30] sm:$0xff]
    %v6987 = vld [vmem:[#allocation19 + $0x38] sm:$0xff]
    %v6988 = vld [vmem:[#allocation19 + $0x40] sm:$0xff]
    %v6989 = vld [vmem:[#allocation19 + $0x48] sm:$0xff]
    %v6990 = vld [vmem:[#allocation19 + $0x50] sm:$0xff]
    %v6991 = vld [vmem:[#allocation19 + $0x58] sm:$0xff]
    %v6992 = vld [vmem:[#allocation19 + $0x60] sm:$0xff]
    %v6993 = vld [vmem:[#allocation19 + $0x68] sm:$0xff]
    %v6994 = vld [vmem:[#allocation19 + $0x70] sm:$0xff]
    %v6995 = vld [vmem:[#allocation19 + $0x78] sm:$0xff]
    %v6996 = vld [vmem:[#allocation19 + $0x80] sm:$0xff]
    %v6997 = vld [vmem:[#allocation19 + $0x88] sm:$0xff]
    %v6998 = vld [vmem:[#allocation19 + $0x90] sm:$0xff]
    %v6999 = vld [vmem:[#allocation19 + $0x98] sm:$0xff]
    %v7000 = vld [vmem:[#allocation19 + $0xa0] sm:$0xff]
    %v7001 = vld [vmem:[#allocation19 + $0xa8] sm:$0xff]
    %v7002 = vld [vmem:[#allocation19 + $0xb0] sm:$0xff]
    %v7003 = vld [vmem:[#allocation19 + $0xb8] sm:$0xff]
    %v7004 = vld [vmem:[#allocation19 + $0xc0] sm:$0xff]
    %v7005 = vld [vmem:[#allocation19 + $0xc8] sm:$0xff]
    %v7006 = vld [vmem:[#allocation19 + $0xd0] sm:$0xff]
    %v7007 = vld [vmem:[#allocation19 + $0xd8] sm:$0xff]
    %v7008 = vld [vmem:[#allocation19 + $0xe0] sm:$0xff]
    %v7009 = vld [vmem:[#allocation19 + $0xe8] sm:$0xff]
    %v7010 = vld [vmem:[#allocation19 + $0xf0] sm:$0xff]
    %v7011 = vld [vmem:[#allocation19 + $0xf8] sm:$0xff]
    %v7012 = vld [vmem:[#allocation19 + $0x100] sm:$0xff]
    %v7013 = vld [vmem:[#allocation19 + $0x108] sm:$0xff]
    %v7014 = vld [vmem:[#allocation19 + $0x110] sm:$0xff]
    %v7015 = vld [vmem:[#allocation19 + $0x118] sm:$0xff]
    %v7016 = vld [vmem:[#allocation19 + $0x120] sm:$0xff]
    %v7017 = vld [vmem:[#allocation19 + $0x128] sm:$0xff]
    %v7018 = vld [vmem:[#allocation19 + $0x130] sm:$0xff]
    %v7019 = vld [vmem:[#allocation19 + $0x138] sm:$0xff]
    %v7020 = vld [vmem:[#allocation19 + $0x140] sm:$0xff]
    %v7021 = vld [vmem:[#allocation19 + $0x148] sm:$0xff]
    %v7022 = vld [vmem:[#allocation19 + $0x150] sm:$0xff]
    %v7023 = vld [vmem:[#allocation19 + $0x158] sm:$0xff]
    %v7024 = vld [vmem:[#allocation19 + $0x160] sm:$0xff]
    %v7025 = vld [vmem:[#allocation19 + $0x168] sm:$0xff]
    %v7026 = vld [vmem:[#allocation19 + $0x170] sm:$0xff]
    %v7027 = vld [vmem:[#allocation19 + $0x178] sm:$0xff]
    %v7028 = vld [vmem:[#allocation19 + $0x180] sm:$0xff]
    %v7029 = vld [vmem:[#allocation19 + $0x188] sm:$0xff]
    %v7030 = vld [vmem:[#allocation20] sm:$0xff]
    %v7031 = vld [vmem:[#allocation20 + $0x8] sm:$0xff]
    %v7032 = vld [vmem:[#allocation20 + $0x10] sm:$0xff]
    %v7033 = vld [vmem:[#allocation20 + $0x18] sm:$0xff]
    %v7034 = vld [vmem:[#allocation20 + $0x20] sm:$0xff]
    %v7035 = vld [vmem:[#allocation20 + $0x28] sm:$0xff]
    %v7036 = vld [vmem:[#allocation20 + $0x30] sm:$0xff]
    %v7037 = vld [vmem:[#allocation20 + $0x38] sm:$0xff]
    %v7038 = vld [vmem:[#allocation20 + $0x40] sm:$0xff]
    %v7039 = vld [vmem:[#allocation20 + $0x48] sm:$0xff]
    %v7040 = vld [vmem:[#allocation20 + $0x50] sm:$0xff]
    %v7041 = vld [vmem:[#allocation20 + $0x58] sm:$0xff]
    %v7042 = vld [vmem:[#allocation20 + $0x60] sm:$0xff]
    %v7043 = vld [vmem:[#allocation20 + $0x68] sm:$0xff]
    %v7044 = vld [vmem:[#allocation20 + $0x70] sm:$0xff]
    %v7045 = vld [vmem:[#allocation20 + $0x78] sm:$0xff]
    %v7046 = vld [vmem:[#allocation20 + $0x80] sm:$0xff]
    %v7047 = vld [vmem:[#allocation20 + $0x88] sm:$0xff]
    %v7048 = vld [vmem:[#allocation20 + $0x90] sm:$0xff]
    %v7049 = vld [vmem:[#allocation20 + $0x98] sm:$0xff]
    %v7050 = vld [vmem:[#allocation20 + $0xa0] sm:$0xff]
    %v7051 = vld [vmem:[#allocation20 + $0xa8] sm:$0xff]
    %v7052 = vld [vmem:[#allocation20 + $0xb0] sm:$0xff]
    %v7053 = vld [vmem:[#allocation20 + $0xb8] sm:$0xff]
    %v7054 = vld [vmem:[#allocation20 + $0xc0] sm:$0xff]
    %v7055 = vld [vmem:[#allocation20 + $0xc8] sm:$0xff]
    %v7056 = vld [vmem:[#allocation20 + $0xd0] sm:$0xff]
    %v7057 = vld [vmem:[#allocation20 + $0xd8] sm:$0xff]
    %v7058 = vld [vmem:[#allocation20 + $0xe0] sm:$0xff]
    %v7059 = vld [vmem:[#allocation20 + $0xe8] sm:$0xff]
    %v7060 = vld [vmem:[#allocation20 + $0xf0] sm:$0xff]
    %v7061 = vld [vmem:[#allocation20 + $0xf8] sm:$0xff]
    %v7062 = vld [vmem:[#allocation20 + $0x100] sm:$0xff]
    %v7063 = vld [vmem:[#allocation20 + $0x108] sm:$0xff]
    %v7064 = vld [vmem:[#allocation20 + $0x110] sm:$0xff]
    %v7065 = vld [vmem:[#allocation20 + $0x118] sm:$0xff]
    %v7066 = vld [vmem:[#allocation20 + $0x120] sm:$0xff]
    %v7067 = vld [vmem:[#allocation20 + $0x128] sm:$0xff]
    %v7068 = vld [vmem:[#allocation20 + $0x130] sm:$0xff]
    %v7069 = vld [vmem:[#allocation20 + $0x138] sm:$0xff]
    %v7070 = vld [vmem:[#allocation20 + $0x140] sm:$0xff]
    %v7071 = vld [vmem:[#allocation20 + $0x148] sm:$0xff]
    %v7072 = vld [vmem:[#allocation20 + $0x150] sm:$0xff]
    %v7073 = vld [vmem:[#allocation20 + $0x158] sm:$0xff]
    %v7074 = vld [vmem:[#allocation20 + $0x160] sm:$0xff]
    %v7075 = vld [vmem:[#allocation20 + $0x168] sm:$0xff]
    %v7076 = vld [vmem:[#allocation20 + $0x170] sm:$0xff]
    %v7077 = vld [vmem:[#allocation20 + $0x178] sm:$0xff]
    %v7078 = vld [vmem:[#allocation20 + $0x180] sm:$0xff]
    %v7079 = vld [vmem:[#allocation20 + $0x188] sm:$0xff]
    %v7130 = vunpack.c.l.b16 %v7030
    %v7131 = vunpack.c.h.b16 %v7030
    %v7132 = vunpack.c.l.b16 %v7031
    %v7133 = vunpack.c.h.b16 %v7031
    %v7134 = vunpack.c.l.b16 %v7032
    %v7135 = vunpack.c.h.b16 %v7032
    %v7136 = vunpack.c.l.b16 %v7033
    %v7137 = vunpack.c.h.b16 %v7033
    %v7138 = vunpack.c.l.b16 %v7034
    %v7139 = vunpack.c.h.b16 %v7034
    %v7140 = vunpack.c.l.b16 %v7035
    %v7141 = vunpack.c.h.b16 %v7035
    %v7142 = vunpack.c.l.b16 %v7036
    %v7143 = vunpack.c.h.b16 %v7036
    %v7144 = vunpack.c.l.b16 %v7037
    %v7145 = vunpack.c.h.b16 %v7037
    %v7146 = vunpack.c.l.b16 %v7038
    %v7147 = vunpack.c.h.b16 %v7038
    %v7148 = vunpack.c.l.b16 %v7039
    %v7149 = vunpack.c.h.b16 %v7039
    %v7150 = vunpack.c.l.b16 %v7040
    %v7151 = vunpack.c.h.b16 %v7040
    %v7152 = vunpack.c.l.b16 %v7041
    %v7153 = vunpack.c.h.b16 %v7041
    %v7154 = vunpack.c.l.b16 %v7042
    %v7155 = vunpack.c.h.b16 %v7042
    %v7156 = vunpack.c.l.b16 %v7043
    %v7157 = vunpack.c.h.b16 %v7043
    %v7158 = vunpack.c.l.b16 %v7044
    %v7159 = vunpack.c.h.b16 %v7044
    %v7160 = vunpack.c.l.b16 %v7045
    %v7161 = vunpack.c.h.b16 %v7045
    %v7162 = vunpack.c.l.b16 %v7046
    %v7163 = vunpack.c.h.b16 %v7046
    %v7164 = vunpack.c.l.b16 %v7047
    %v7165 = vunpack.c.h.b16 %v7047
    %v7166 = vunpack.c.l.b16 %v7048
    %v7167 = vunpack.c.h.b16 %v7048
    %v7168 = vunpack.c.l.b16 %v7049
    %v7169 = vunpack.c.h.b16 %v7049
    %v7170 = vunpack.c.l.b16 %v7050
    %v7171 = vunpack.c.h.b16 %v7050
    %v7172 = vunpack.c.l.b16 %v7051
    %v7173 = vunpack.c.h.b16 %v7051
    %v7174 = vunpack.c.l.b16 %v7052
    %v7175 = vunpack.c.h.b16 %v7052
    %v7176 = vunpack.c.l.b16 %v7053
    %v7177 = vunpack.c.h.b16 %v7053
    %v7178 = vunpack.c.l.b16 %v7054
    %v7179 = vunpack.c.h.b16 %v7054
    %v7180 = vunpack.c.l.b16 %v7055
    %v7181 = vunpack.c.h.b16 %v7055
    %v7182 = vunpack.c.l.b16 %v7056
    %v7183 = vunpack.c.h.b16 %v7056
    %v7184 = vunpack.c.l.b16 %v7057
    %v7185 = vunpack.c.h.b16 %v7057
    %v7186 = vunpack.c.l.b16 %v7058
    %v7187 = vunpack.c.h.b16 %v7058
    %v7188 = vunpack.c.l.b16 %v7059
    %v7189 = vunpack.c.h.b16 %v7059
    %v7190 = vunpack.c.l.b16 %v7060
    %v7191 = vunpack.c.h.b16 %v7060
    %v7192 = vunpack.c.l.b16 %v7061
    %v7193 = vunpack.c.h.b16 %v7061
    %v7194 = vunpack.c.l.b16 %v7062
    %v7195 = vunpack.c.h.b16 %v7062
    %v7196 = vunpack.c.l.b16 %v7063
    %v7197 = vunpack.c.h.b16 %v7063
    %v7198 = vunpack.c.l.b16 %v7064
    %v7199 = vunpack.c.h.b16 %v7064
    %v7200 = vunpack.c.l.b16 %v7065
    %v7201 = vunpack.c.h.b16 %v7065
    %v7202 = vunpack.c.l.b16 %v7066
    %v7203 = vunpack.c.h.b16 %v7066
    %v7204 = vunpack.c.l.b16 %v7067
    %v7205 = vunpack.c.h.b16 %v7067
    %v7206 = vunpack.c.l.b16 %v7068
    %v7207 = vunpack.c.h.b16 %v7068
    %v7208 = vunpack.c.l.b16 %v7069
    %v7209 = vunpack.c.h.b16 %v7069
    %v7210 = vunpack.c.l.b16 %v7070
    %v7211 = vunpack.c.h.b16 %v7070
    %v7212 = vunpack.c.l.b16 %v7071
    %v7213 = vunpack.c.h.b16 %v7071
    %v7214 = vunpack.c.l.b16 %v7072
    %v7215 = vunpack.c.h.b16 %v7072
    %v7216 = vunpack.c.l.b16 %v7073
    %v7217 = vunpack.c.h.b16 %v7073
    %v7218 = vunpack.c.l.b16 %v7074
    %v7219 = vunpack.c.h.b16 %v7074
    %v7220 = vunpack.c.l.b16 %v7075
    %v7221 = vunpack.c.h.b16 %v7075
    %v7222 = vunpack.c.l.b16 %v7076
    %v7223 = vunpack.c.h.b16 %v7076
    %v7224 = vunpack.c.l.b16 %v7077
    %v7225 = vunpack.c.h.b16 %v7077
    %v7226 = vunpack.c.l.b16 %v7078
    %v7227 = vunpack.c.h.b16 %v7078
    %v7228 = vunpack.c.l.b16 %v7079
    %v7229 = vunpack.c.h.b16 %v7079
    %v7230 = vpack.c.b16 %v7134, %v7130
    %v7231 = vpack.c.b16 %v7135, %v7131
    %v7232 = vpack.c.b16 %v7136, %v7132
    %v7233 = vpack.c.b16 %v7137, %v7133
    %v7234 = vpack.c.b16 %v7142, %v7138
    %v7235 = vpack.c.b16 %v7143, %v7139
    %v7236 = vpack.c.b16 %v7144, %v7140
    %v7237 = vpack.c.b16 %v7145, %v7141
    %v7238 = vpack.c.b16 %v7150, %v7146
    %v7239 = vpack.c.b16 %v7151, %v7147
    %v7240 = vpack.c.b16 %v7152, %v7148
    %v7241 = vpack.c.b16 %v7153, %v7149
    %v7242 = vpack.c.b16 %v7158, %v7154
    %v7243 = vpack.c.b16 %v7159, %v7155
    %v7244 = vpack.c.b16 %v7160, %v7156
    %v7245 = vpack.c.b16 %v7161, %v7157
    %v7246 = vpack.c.b16 %v7166, %v7162
    %v7247 = vpack.c.b16 %v7167, %v7163
    %v7248 = vpack.c.b16 %v7168, %v7164
    %v7249 = vpack.c.b16 %v7169, %v7165
    %v7250 = vpack.c.b16 %v7174, %v7170
    %v7251 = vpack.c.b16 %v7175, %v7171
    %v7252 = vpack.c.b16 %v7176, %v7172
    %v7253 = vpack.c.b16 %v7177, %v7173
    %v7254 = vpack.c.b16 %v7182, %v7178
    %v7255 = vpack.c.b16 %v7183, %v7179
    %v7256 = vpack.c.b16 %v7184, %v7180
    %v7257 = vpack.c.b16 %v7185, %v7181
    %v7258 = vpack.c.b16 %v7190, %v7186
    %v7259 = vpack.c.b16 %v7191, %v7187
    %v7260 = vpack.c.b16 %v7192, %v7188
    %v7261 = vpack.c.b16 %v7193, %v7189
    %v7262 = vpack.c.b16 %v7198, %v7194
    %v7263 = vpack.c.b16 %v7199, %v7195
    %v7264 = vpack.c.b16 %v7200, %v7196
    %v7265 = vpack.c.b16 %v7201, %v7197
    %v7266 = vpack.c.b16 %v7206, %v7202
    %v7267 = vpack.c.b16 %v7207, %v7203
    %v7268 = vpack.c.b16 %v7208, %v7204
    %v7269 = vpack.c.b16 %v7209, %v7205
    %v7270 = vpack.c.b16 %v7214, %v7210
    %v7271 = vpack.c.b16 %v7215, %v7211
    %v7272 = vpack.c.b16 %v7216, %v7212
    %v7273 = vpack.c.b16 %v7217, %v7213
    %v7274 = vpack.c.b16 %v7222, %v7218
    %v7275 = vpack.c.b16 %v7223, %v7219
    %v7276 = vpack.c.b16 %v7224, %v7220
    %v7277 = vpack.c.b16 %v7225, %v7221
    %v7278 = vpack.c.b16 %v7226, %v7226
    %v7279 = vpack.c.b16 %v7227, %v7227
    %v7280 = vpack.c.b16 %v7228, %v7228
    %v7281 = vpack.c.b16 %v7229, %v7229
    %vm7330 = vcmask 588800
    %v7332 = vsel %vm7330, %v6973, 0
    %v7335 = vsel %vm7330, %v6975, 0
    %v7338 = vsel %vm7330, %v6977, 0
    %v7341 = vsel %vm7330, %v6979, 0
    %vm7343 = vcmask 1043456
    %v7345 = vsel %vm7343, %v7278, 0
    %v7348 = vsel %vm7343, %v7279, 0
    %v7351 = vsel %vm7343, %v7280, 0
    %v7354 = vsel %vm7343, %v7281, 0
    %7356 = vmatpush.bf16.msra.mxu0 %v7258
    %7357 = vmatpush.bf16.msra.mxu0 %v7254
    %7358 = vmatpush.bf16.msra.mxu0 %v7250
    %7359 = vmatpush.bf16.msra.mxu0 %v7246
    %7360 = vmatpush.bf16.msra.mxu0 %v7242
    %7361 = vmatpush.bf16.msra.mxu0 %v7238
    %7362 = vmatpush.bf16.msra.mxu0 %v7234
    %7363 = vmatpush.bf16.msra.mxu0 %v7230
    %7364 = vmatmul.bf16.gmra.mxu0 %v6972
    %v7365 = vpop.f32.mrf.mxu0
    %v7366 = vadd.f32 0.0, %v7365
    %v7367 = vpop.f32.mrf.mxu0
    %v7368 = vadd.f32 0.0, %v7367
    %7369 = vmatmul.bf16.gmra.mxu0 %v6974
    %v7370 = vpop.f32.mrf.mxu0
    %v7371 = vadd.f32 0.0, %v7370
    %v7372 = vpop.f32.mrf.mxu0
    %v7373 = vadd.f32 0.0, %v7372
    %7374 = vmatmul.bf16.gmra.mxu0 %v6976
    %v7375 = vpop.f32.mrf.mxu0
    %v7376 = vadd.f32 0.0, %v7375
    %v7377 = vpop.f32.mrf.mxu0
    %v7378 = vadd.f32 0.0, %v7377
    %7379 = vmatmul.bf16.gmra.mxu0 %v6978
    %v7380 = vpop.f32.mrf.mxu0
    %v7381 = vadd.f32 0.0, %v7380
    %v7382 = vpop.f32.mrf.mxu0
    %v7383 = vadd.f32 0.0, %v7382
    %7384 = vdwg.mxu0
    %7385 = vmatpush.bf16.msra.mxu0 0
    %7386 = vmatpush.bf16.msra.mxu0 0
    %7387 = vmatpush.bf16.msra.mxu0 0
    %7388 = vmatpush.bf16.msra.mxu0 %v7345
    %7389 = vmatpush.bf16.msra.mxu0 %v7274
    %7390 = vmatpush.bf16.msra.mxu0 %v7270
    %7391 = vmatpush.bf16.msra.mxu0 %v7266
    %7392 = vmatpush.bf16.msra.mxu0 %v7262
    %7393 = vmatmul.bf16.gmra.mxu0 %v7332
    %v7394 = vpop.f32.mrf.mxu0
    %v7395 = vadd.f32 %v7366, %v7394
    %v7396 = vpop.f32.mrf.mxu0
    %v7397 = vadd.f32 %v7368, %v7396
    %7398 = vmatmul.bf16.gmra.mxu0 %v7335
    %v7399 = vpop.f32.mrf.mxu0
    %v7400 = vadd.f32 %v7371, %v7399
    %v7401 = vpop.f32.mrf.mxu0
    %v7402 = vadd.f32 %v7373, %v7401
    %7403 = vmatmul.bf16.gmra.mxu0 %v7338
    %v7404 = vpop.f32.mrf.mxu0
    %v7405 = vadd.f32 %v7376, %v7404
    %v7406 = vpop.f32.mrf.mxu0
    %v7407 = vadd.f32 %v7378, %v7406
    %7408 = vmatmul.bf16.gmra.mxu0 %v7341
    %v7409 = vpop.f32.mrf.mxu0
    %v7410 = vadd.f32 %v7381, %v7409
    %v7411 = vpop.f32.mrf.mxu0
    %v7412 = vadd.f32 %v7383, %v7411
    %7413 = vdwg.mxu0
    %7414 = vmatpush.bf16.msra.mxu0 %v7259
    %7415 = vmatpush.bf16.msra.mxu0 %v7255
    %7416 = vmatpush.bf16.msra.mxu0 %v7251
    %7417 = vmatpush.bf16.msra.mxu0 %v7247
    %7418 = vmatpush.bf16.msra.mxu0 %v7243
    %7419 = vmatpush.bf16.msra.mxu0 %v7239
    %7420 = vmatpush.bf16.msra.mxu0 %v7235
    %7421 = vmatpush.bf16.msra.mxu0 %v7231
    %7422 = vmatmul.bf16.gmra.mxu0 %v6972
    %v7423 = vpop.f32.mrf.mxu0
    %v7424 = vadd.f32 0.0, %v7423
    %v7425 = vpop.f32.mrf.mxu0
    %v7426 = vadd.f32 0.0, %v7425
    %7427 = vmatmul.bf16.gmra.mxu0 %v6974
    %v7428 = vpop.f32.mrf.mxu0
    %v7429 = vadd.f32 0.0, %v7428
    %v7430 = vpop.f32.mrf.mxu0
    %v7431 = vadd.f32 0.0, %v7430
    %7432 = vmatmul.bf16.gmra.mxu0 %v6976
    %v7433 = vpop.f32.mrf.mxu0
    %v7434 = vadd.f32 0.0, %v7433
    %v7435 = vpop.f32.mrf.mxu0
    %v7436 = vadd.f32 0.0, %v7435
    %7437 = vmatmul.bf16.gmra.mxu0 %v6978
    %v7438 = vpop.f32.mrf.mxu0
    %v7439 = vadd.f32 0.0, %v7438
    %v7440 = vpop.f32.mrf.mxu0
    %v7441 = vadd.f32 0.0, %v7440
    %7442 = vdwg.mxu0
    %7443 = vmatpush.bf16.msra.mxu0 0
    %7444 = vmatpush.bf16.msra.mxu0 0
    %7445 = vmatpush.bf16.msra.mxu0 0
    %7446 = vmatpush.bf16.msra.mxu0 %v7348
    %7447 = vmatpush.bf16.msra.mxu0 %v7275
    %7448 = vmatpush.bf16.msra.mxu0 %v7271
    %7449 = vmatpush.bf16.msra.mxu0 %v7267
    %7450 = vmatpush.bf16.msra.mxu0 %v7263
    %7451 = vmatmul.bf16.gmra.mxu0 %v7332
    %v7452 = vpop.f32.mrf.mxu0
    %v7453 = vadd.f32 %v7424, %v7452
    %v7454 = vpop.f32.mrf.mxu0
    %v7455 = vadd.f32 %v7426, %v7454
    %7456 = vmatmul.bf16.gmra.mxu0 %v7335
    %v7457 = vpop.f32.mrf.mxu0
    %v7458 = vadd.f32 %v7429, %v7457
    %v7459 = vpop.f32.mrf.mxu0
    %v7460 = vadd.f32 %v7431, %v7459
    %7461 = vmatmul.bf16.gmra.mxu0 %v7338
    %v7462 = vpop.f32.mrf.mxu0
    %v7463 = vadd.f32 %v7434, %v7462
    %v7464 = vpop.f32.mrf.mxu0
    %v7465 = vadd.f32 %v7436, %v7464
    %7466 = vmatmul.bf16.gmra.mxu0 %v7341
    %v7467 = vpop.f32.mrf.mxu0
    %v7468 = vadd.f32 %v7439, %v7467
    %v7469 = vpop.f32.mrf.mxu0
    %v7470 = vadd.f32 %v7441, %v7469
    %7471 = vdwg.mxu0
    %7472 = vmatpush.bf16.msra.mxu0 %v7260
    %7473 = vmatpush.bf16.msra.mxu0 %v7256
    %7474 = vmatpush.bf16.msra.mxu0 %v7252
    %7475 = vmatpush.bf16.msra.mxu0 %v7248
    %7476 = vmatpush.bf16.msra.mxu0 %v7244
    %7477 = vmatpush.bf16.msra.mxu0 %v7240
    %7478 = vmatpush.bf16.msra.mxu0 %v7236
    %7479 = vmatpush.bf16.msra.mxu0 %v7232
    %7480 = vmatmul.bf16.gmra.mxu0 %v6972
    %v7481 = vpop.f32.mrf.mxu0
    %v7482 = vadd.f32 0.0, %v7481
    %v7483 = vpop.f32.mrf.mxu0
    %v7484 = vadd.f32 0.0, %v7483
    %7485 = vmatmul.bf16.gmra.mxu0 %v6974
    %v7486 = vpop.f32.mrf.mxu0
    %v7487 = vadd.f32 0.0, %v7486
    %v7488 = vpop.f32.mrf.mxu0
    %v7489 = vadd.f32 0.0, %v7488
    %7490 = vmatmul.bf16.gmra.mxu0 %v6976
    %v7491 = vpop.f32.mrf.mxu0
    %v7492 = vadd.f32 0.0, %v7491
    %v7493 = vpop.f32.mrf.mxu0
    %v7494 = vadd.f32 0.0, %v7493
    %7495 = vmatmul.bf16.gmra.mxu0 %v6978
    %v7496 = vpop.f32.mrf.mxu0
    %v7497 = vadd.f32 0.0, %v7496
    %v7498 = vpop.f32.mrf.mxu0
    %v7499 = vadd.f32 0.0, %v7498
    %7500 = vdwg.mxu0
    %7501 = vmatpush.bf16.msra.mxu0 0
    %7502 = vmatpush.bf16.msra.mxu0 0
    %7503 = vmatpush.bf16.msra.mxu0 0
    %7504 = vmatpush.bf16.msra.mxu0 %v7351
    %7505 = vmatpush.bf16.msra.mxu0 %v7276
    %7506 = vmatpush.bf16.msra.mxu0 %v7272
    %7507 = vmatpush.bf16.msra.mxu0 %v7268
    %7508 = vmatpush.bf16.msra.mxu0 %v7264
    %7509 = vmatmul.bf16.gmra.mxu0 %v7332
    %v7510 = vpop.f32.mrf.mxu0
    %v7511 = vadd.f32 %v7482, %v7510
    %v7512 = vpop.f32.mrf.mxu0
    %v7513 = vadd.f32 %v7484, %v7512
    %7514 = vmatmul.bf16.gmra.mxu0 %v7335
    %v7515 = vpop.f32.mrf.mxu0
    %v7516 = vadd.f32 %v7487, %v7515
    %v7517 = vpop.f32.mrf.mxu0
    %v7518 = vadd.f32 %v7489, %v7517
    %7519 = vmatmul.bf16.gmra.mxu0 %v7338
    %v7520 = vpop.f32.mrf.mxu0
    %v7521 = vadd.f32 %v7492, %v7520
    %v7522 = vpop.f32.mrf.mxu0
    %v7523 = vadd.f32 %v7494, %v7522
    %7524 = vmatmul.bf16.gmra.mxu0 %v7341
    %v7525 = vpop.f32.mrf.mxu0
    %v7526 = vadd.f32 %v7497, %v7525
    %v7527 = vpop.f32.mrf.mxu0
    %v7528 = vadd.f32 %v7499, %v7527
    %7529 = vdwg.mxu0
    %7530 = vmatpush.bf16.msra.mxu0 %v7261
    %7531 = vmatpush.bf16.msra.mxu0 %v7257
    %7532 = vmatpush.bf16.msra.mxu0 %v7253
    %7533 = vmatpush.bf16.msra.mxu0 %v7249
    %7534 = vmatpush.bf16.msra.mxu0 %v7245
    %7535 = vmatpush.bf16.msra.mxu0 %v7241
    %7536 = vmatpush.bf16.msra.mxu0 %v7237
    %7537 = vmatpush.bf16.msra.mxu0 %v7233
    %7538 = vmatmul.bf16.gmra.mxu0 %v6972
    %v7539 = vpop.f32.mrf.mxu0
    %v7540 = vadd.f32 0.0, %v7539
    %v7541 = vpop.f32.mrf.mxu0
    %v7542 = vadd.f32 0.0, %v7541
    %7543 = vmatmul.bf16.gmra.mxu0 %v6974
    %v7544 = vpop.f32.mrf.mxu0
    %v7545 = vadd.f32 0.0, %v7544
    %v7546 = vpop.f32.mrf.mxu0
    %v7547 = vadd.f32 0.0, %v7546
    %7548 = vmatmul.bf16.gmra.mxu0 %v6976
    %v7549 = vpop.f32.mrf.mxu0
    %v7550 = vadd.f32 0.0, %v7549
    %v7551 = vpop.f32.mrf.mxu0
    %v7552 = vadd.f32 0.0, %v7551
    %7553 = vmatmul.bf16.gmra.mxu0 %v6978
    %v7554 = vpop.f32.mrf.mxu0
    %v7555 = vadd.f32 0.0, %v7554
    %v7556 = vpop.f32.mrf.mxu0
    %v7557 = vadd.f32 0.0, %v7556
    %7558 = vdwg.mxu0
    %7559 = vmatpush.bf16.msra.mxu0 0
    %7560 = vmatpush.bf16.msra.mxu0 0
    %7561 = vmatpush.bf16.msra.mxu0 0
    %7562 = vmatpush.bf16.msra.mxu0 %v7354
    %7563 = vmatpush.bf16.msra.mxu0 %v7277
    %7564 = vmatpush.bf16.msra.mxu0 %v7273
    %7565 = vmatpush.bf16.msra.mxu0 %v7269
    %7566 = vmatpush.bf16.msra.mxu0 %v7265
    %7567 = vmatmul.bf16.gmra.mxu0 %v7332
    %v7568 = vpop.f32.mrf.mxu0
    %v7569 = vadd.f32 %v7540, %v7568
    %v7570 = vpop.f32.mrf.mxu0
    %v7571 = vadd.f32 %v7542, %v7570
    %7572 = vmatmul.bf16.gmra.mxu0 %v7335
    %v7573 = vpop.f32.mrf.mxu0
    %v7574 = vadd.f32 %v7545, %v7573
    %v7575 = vpop.f32.mrf.mxu0
    %v7576 = vadd.f32 %v7547, %v7575
    %7577 = vmatmul.bf16.gmra.mxu0 %v7338
    %v7578 = vpop.f32.mrf.mxu0
    %v7579 = vadd.f32 %v7550, %v7578
    %v7580 = vpop.f32.mrf.mxu0
    %v7581 = vadd.f32 %v7552, %v7580
    %7582 = vmatmul.bf16.gmra.mxu0 %v7341
    %v7583 = vpop.f32.mrf.mxu0
    %v7584 = vadd.f32 %v7555, %v7583
    %v7585 = vpop.f32.mrf.mxu0
    %v7586 = vadd.f32 %v7557, %v7585
    %7587 = vdwg.mxu0
    %v7638 = vunpack.c.l.b16 %v6980
    %v7639 = vunpack.c.h.b16 %v6980
    %v7640 = vunpack.c.l.b16 %v6981
    %v7641 = vunpack.c.h.b16 %v6981
    %v7642 = vunpack.c.l.b16 %v6982
    %v7643 = vunpack.c.h.b16 %v6982
    %v7644 = vunpack.c.l.b16 %v6983
    %v7645 = vunpack.c.h.b16 %v6983
    %v7646 = vunpack.c.l.b16 %v6984
    %v7647 = vunpack.c.h.b16 %v6984
    %v7648 = vunpack.c.l.b16 %v6985
    %v7649 = vunpack.c.h.b16 %v6985
    %v7650 = vunpack.c.l.b16 %v6986
    %v7651 = vunpack.c.h.b16 %v6986
    %v7652 = vunpack.c.l.b16 %v6987
    %v7653 = vunpack.c.h.b16 %v6987
    %v7654 = vunpack.c.l.b16 %v6988
    %v7655 = vunpack.c.h.b16 %v6988
    %v7656 = vunpack.c.l.b16 %v6989
    %v7657 = vunpack.c.h.b16 %v6989
    %v7658 = vunpack.c.l.b16 %v6990
    %v7659 = vunpack.c.h.b16 %v6990
    %v7660 = vunpack.c.l.b16 %v6991
    %v7661 = vunpack.c.h.b16 %v6991
    %v7662 = vunpack.c.l.b16 %v6992
    %v7663 = vunpack.c.h.b16 %v6992
    %v7664 = vunpack.c.l.b16 %v6993
    %v7665 = vunpack.c.h.b16 %v6993
    %v7666 = vunpack.c.l.b16 %v6994
    %v7667 = vunpack.c.h.b16 %v6994
    %v7668 = vunpack.c.l.b16 %v6995
    %v7669 = vunpack.c.h.b16 %v6995
    %v7670 = vunpack.c.l.b16 %v6996
    %v7671 = vunpack.c.h.b16 %v6996
    %v7672 = vunpack.c.l.b16 %v6997
    %v7673 = vunpack.c.h.b16 %v6997
    %v7674 = vunpack.c.l.b16 %v6998
    %v7675 = vunpack.c.h.b16 %v6998
    %v7676 = vunpack.c.l.b16 %v6999
    %v7677 = vunpack.c.h.b16 %v6999
    %v7678 = vunpack.c.l.b16 %v7000
    %v7679 = vunpack.c.h.b16 %v7000
    %v7680 = vunpack.c.l.b16 %v7001
    %v7681 = vunpack.c.h.b16 %v7001
    %v7682 = vunpack.c.l.b16 %v7002
    %v7683 = vunpack.c.h.b16 %v7002
    %v7684 = vunpack.c.l.b16 %v7003
    %v7685 = vunpack.c.h.b16 %v7003
    %v7686 = vunpack.c.l.b16 %v7004
    %v7687 = vunpack.c.h.b16 %v7004
    %v7688 = vunpack.c.l.b16 %v7005
    %v7689 = vunpack.c.h.b16 %v7005
    %v7690 = vunpack.c.l.b16 %v7006
    %v7691 = vunpack.c.h.b16 %v7006
    %v7692 = vunpack.c.l.b16 %v7007
    %v7693 = vunpack.c.h.b16 %v7007
    %v7694 = vunpack.c.l.b16 %v7008
    %v7695 = vunpack.c.h.b16 %v7008
    %v7696 = vunpack.c.l.b16 %v7009
    %v7697 = vunpack.c.h.b16 %v7009
    %v7698 = vunpack.c.l.b16 %v7010
    %v7699 = vunpack.c.h.b16 %v7010
    %v7700 = vunpack.c.l.b16 %v7011
    %v7701 = vunpack.c.h.b16 %v7011
    %v7702 = vunpack.c.l.b16 %v7012
    %v7703 = vunpack.c.h.b16 %v7012
    %v7704 = vunpack.c.l.b16 %v7013
    %v7705 = vunpack.c.h.b16 %v7013
    %v7706 = vunpack.c.l.b16 %v7014
    %v7707 = vunpack.c.h.b16 %v7014
    %v7708 = vunpack.c.l.b16 %v7015
    %v7709 = vunpack.c.h.b16 %v7015
    %v7710 = vunpack.c.l.b16 %v7016
    %v7711 = vunpack.c.h.b16 %v7016
    %v7712 = vunpack.c.l.b16 %v7017
    %v7713 = vunpack.c.h.b16 %v7017
    %v7714 = vunpack.c.l.b16 %v7018
    %v7715 = vunpack.c.h.b16 %v7018
    %v7716 = vunpack.c.l.b16 %v7019
    %v7717 = vunpack.c.h.b16 %v7019
    %v7718 = vunpack.c.l.b16 %v7020
    %v7719 = vunpack.c.h.b16 %v7020
    %v7720 = vunpack.c.l.b16 %v7021
    %v7721 = vunpack.c.h.b16 %v7021
    %v7722 = vunpack.c.l.b16 %v7022
    %v7723 = vunpack.c.h.b16 %v7022
    %v7724 = vunpack.c.l.b16 %v7023
    %v7725 = vunpack.c.h.b16 %v7023
    %v7726 = vunpack.c.l.b16 %v7024
    %v7727 = vunpack.c.h.b16 %v7024
    %v7728 = vunpack.c.l.b16 %v7025
    %v7729 = vunpack.c.h.b16 %v7025
    %v7730 = vunpack.c.l.b16 %v7026
    %v7731 = vunpack.c.h.b16 %v7026
    %v7732 = vunpack.c.l.b16 %v7027
    %v7733 = vunpack.c.h.b16 %v7027
    %v7734 = vunpack.c.l.b16 %v7028
    %v7735 = vunpack.c.h.b16 %v7028
    %v7736 = vunpack.c.l.b16 %v7029
    %v7737 = vunpack.c.h.b16 %v7029
    %v7738 = vpack.c.b16 %v7642, %v7638
    %v7739 = vpack.c.b16 %v7643, %v7639
    %v7740 = vpack.c.b16 %v7644, %v7640
    %v7741 = vpack.c.b16 %v7645, %v7641
    %v7742 = vpack.c.b16 %v7650, %v7646
    %v7743 = vpack.c.b16 %v7651, %v7647
    %v7744 = vpack.c.b16 %v7652, %v7648
    %v7745 = vpack.c.b16 %v7653, %v7649
    %v7746 = vpack.c.b16 %v7658, %v7654
    %v7747 = vpack.c.b16 %v7659, %v7655
    %v7748 = vpack.c.b16 %v7660, %v7656
    %v7749 = vpack.c.b16 %v7661, %v7657
    %v7750 = vpack.c.b16 %v7666, %v7662
    %v7751 = vpack.c.b16 %v7667, %v7663
    %v7752 = vpack.c.b16 %v7668, %v7664
    %v7753 = vpack.c.b16 %v7669, %v7665
    %v7754 = vpack.c.b16 %v7674, %v7670
    %v7755 = vpack.c.b16 %v7675, %v7671
    %v7756 = vpack.c.b16 %v7676, %v7672
    %v7757 = vpack.c.b16 %v7677, %v7673
    %v7758 = vpack.c.b16 %v7682, %v7678
    %v7759 = vpack.c.b16 %v7683, %v7679
    %v7760 = vpack.c.b16 %v7684, %v7680
    %v7761 = vpack.c.b16 %v7685, %v7681
    %v7762 = vpack.c.b16 %v7690, %v7686
    %v7763 = vpack.c.b16 %v7691, %v7687
    %v7764 = vpack.c.b16 %v7692, %v7688
    %v7765 = vpack.c.b16 %v7693, %v7689
    %v7766 = vpack.c.b16 %v7698, %v7694
    %v7767 = vpack.c.b16 %v7699, %v7695
    %v7768 = vpack.c.b16 %v7700, %v7696
    %v7769 = vpack.c.b16 %v7701, %v7697
    %v7770 = vpack.c.b16 %v7706, %v7702
    %v7771 = vpack.c.b16 %v7707, %v7703
    %v7772 = vpack.c.b16 %v7708, %v7704
    %v7773 = vpack.c.b16 %v7709, %v7705
    %v7774 = vpack.c.b16 %v7714, %v7710
    %v7775 = vpack.c.b16 %v7715, %v7711
    %v7776 = vpack.c.b16 %v7716, %v7712
    %v7777 = vpack.c.b16 %v7717, %v7713
    %v7778 = vpack.c.b16 %v7722, %v7718
    %v7779 = vpack.c.b16 %v7723, %v7719
    %v7780 = vpack.c.b16 %v7724, %v7720
    %v7781 = vpack.c.b16 %v7725, %v7721
    %v7782 = vpack.c.b16 %v7730, %v7726
    %v7783 = vpack.c.b16 %v7731, %v7727
    %v7784 = vpack.c.b16 %v7732, %v7728
    %v7785 = vpack.c.b16 %v7733, %v7729
    %v7786 = vpack.c.b16 %v7734, %v7734
    %v7787 = vpack.c.b16 %v7735, %v7735
    %v7788 = vpack.c.b16 %v7736, %v7736
    %v7789 = vpack.c.b16 %v7737, %v7737
    %v7839 = vsel %vm7330, %v6965, 0
    %v7842 = vsel %vm7330, %v6967, 0
    %v7845 = vsel %vm7330, %v6969, 0
    %v7848 = vsel %vm7330, %v6971, 0
    %v7851 = vsel %vm7343, %v7786, 0
    %v7854 = vsel %vm7343, %v7787, 0
    %v7857 = vsel %vm7343, %v7788, 0
    %v7860 = vsel %vm7343, %v7789, 0
    %7862 = vmatpush.bf16.msra.mxu0 %v7766
    %7863 = vmatpush.bf16.msra.mxu0 %v7762
    %7864 = vmatpush.bf16.msra.mxu0 %v7758
    %7865 = vmatpush.bf16.msra.mxu0 %v7754
    %7866 = vmatpush.bf16.msra.mxu0 %v7750
    %7867 = vmatpush.bf16.msra.mxu0 %v7746
    %7868 = vmatpush.bf16.msra.mxu0 %v7742
    %7869 = vmatpush.bf16.msra.mxu0 %v7738
    %7870 = vmatmul.bf16.gmra.mxu0 %v6964
    %v7871 = vpop.f32.mrf.mxu0
    %v7872 = vadd.f32 %v7395, %v7871
    %v7873 = vpop.f32.mrf.mxu0
    %v7874 = vadd.f32 %v7397, %v7873
    %7875 = vmatmul.bf16.gmra.mxu0 %v6966
    %v7876 = vpop.f32.mrf.mxu0
    %v7877 = vadd.f32 %v7400, %v7876
    %v7878 = vpop.f32.mrf.mxu0
    %v7879 = vadd.f32 %v7402, %v7878
    %7880 = vmatmul.bf16.gmra.mxu0 %v6968
    %v7881 = vpop.f32.mrf.mxu0
    %v7882 = vadd.f32 %v7405, %v7881
    %v7883 = vpop.f32.mrf.mxu0
    %v7884 = vadd.f32 %v7407, %v7883
    %7885 = vmatmul.bf16.gmra.mxu0 %v6970
    %v7886 = vpop.f32.mrf.mxu0
    %v7887 = vadd.f32 %v7410, %v7886
    %v7888 = vpop.f32.mrf.mxu0
    %v7889 = vadd.f32 %v7412, %v7888
    %7890 = vdwg.mxu0
    %7891 = vmatpush.bf16.msra.mxu0 0
    %7892 = vmatpush.bf16.msra.mxu0 0
    %7893 = vmatpush.bf16.msra.mxu0 0
    %7894 = vmatpush.bf16.msra.mxu0 %v7851
    %7895 = vmatpush.bf16.msra.mxu0 %v7782
    %7896 = vmatpush.bf16.msra.mxu0 %v7778
    %7897 = vmatpush.bf16.msra.mxu0 %v7774
    %7898 = vmatpush.bf16.msra.mxu0 %v7770
    %7899 = vmatmul.bf16.gmra.mxu0 %v7839
    %v7900 = vpop.f32.mrf.mxu0
    %v7901 = vadd.f32 %v7872, %v7900
    %v7902 = vpop.f32.mrf.mxu0
    %v7903 = vadd.f32 %v7874, %v7902
    %7904 = vmatmul.bf16.gmra.mxu0 %v7842
    %v7905 = vpop.f32.mrf.mxu0
    %v7906 = vadd.f32 %v7877, %v7905
    %v7907 = vpop.f32.mrf.mxu0
    %v7908 = vadd.f32 %v7879, %v7907
    %7909 = vmatmul.bf16.gmra.mxu0 %v7845
    %v7910 = vpop.f32.mrf.mxu0
    %v7911 = vadd.f32 %v7882, %v7910
    %v7912 = vpop.f32.mrf.mxu0
    %v7913 = vadd.f32 %v7884, %v7912
    %7914 = vmatmul.bf16.gmra.mxu0 %v7848
    %v7915 = vpop.f32.mrf.mxu0
    %v7916 = vadd.f32 %v7887, %v7915
    %v7917 = vpop.f32.mrf.mxu0
    %v7918 = vadd.f32 %v7889, %v7917
    %7919 = vdwg.mxu0
    %7920 = vmatpush.bf16.msra.mxu0 %v7767
    %7921 = vmatpush.bf16.msra.mxu0 %v7763
    %7922 = vmatpush.bf16.msra.mxu0 %v7759
    %7923 = vmatpush.bf16.msra.mxu0 %v7755
    %7924 = vmatpush.bf16.msra.mxu0 %v7751
    %7925 = vmatpush.bf16.msra.mxu0 %v7747
    %7926 = vmatpush.bf16.msra.mxu0 %v7743
    %7927 = vmatpush.bf16.msra.mxu0 %v7739
    %7928 = vmatmul.bf16.gmra.mxu0 %v6964
    %v7929 = vpop.f32.mrf.mxu0
    %v7930 = vadd.f32 %v7453, %v7929
    %v7931 = vpop.f32.mrf.mxu0
    %v7932 = vadd.f32 %v7455, %v7931
    %7933 = vmatmul.bf16.gmra.mxu0 %v6966
    %v7934 = vpop.f32.mrf.mxu0
    %v7935 = vadd.f32 %v7458, %v7934
    %v7936 = vpop.f32.mrf.mxu0
    %v7937 = vadd.f32 %v7460, %v7936
    %7938 = vmatmul.bf16.gmra.mxu0 %v6968
    %v7939 = vpop.f32.mrf.mxu0
    %v7940 = vadd.f32 %v7463, %v7939
    %v7941 = vpop.f32.mrf.mxu0
    %v7942 = vadd.f32 %v7465, %v7941
    %7943 = vmatmul.bf16.gmra.mxu0 %v6970
    %v7944 = vpop.f32.mrf.mxu0
    %v7945 = vadd.f32 %v7468, %v7944
    %v7946 = vpop.f32.mrf.mxu0
    %v7947 = vadd.f32 %v7470, %v7946
    %7948 = vdwg.mxu0
    %7949 = vmatpush.bf16.msra.mxu0 0
    %7950 = vmatpush.bf16.msra.mxu0 0
    %7951 = vmatpush.bf16.msra.mxu0 0
    %7952 = vmatpush.bf16.msra.mxu0 %v7854
    %7953 = vmatpush.bf16.msra.mxu0 %v7783
    %7954 = vmatpush.bf16.msra.mxu0 %v7779
    %7955 = vmatpush.bf16.msra.mxu0 %v7775
    %7956 = vmatpush.bf16.msra.mxu0 %v7771
    %7957 = vmatmul.bf16.gmra.mxu0 %v7839
    %v7958 = vpop.f32.mrf.mxu0
    %v7959 = vadd.f32 %v7930, %v7958
    %v7960 = vpop.f32.mrf.mxu0
    %v7961 = vadd.f32 %v7932, %v7960
    %7962 = vmatmul.bf16.gmra.mxu0 %v7842
    %v7963 = vpop.f32.mrf.mxu0
    %v7964 = vadd.f32 %v7935, %v7963
    %v7965 = vpop.f32.mrf.mxu0
    %v7966 = vadd.f32 %v7937, %v7965
    %7967 = vmatmul.bf16.gmra.mxu0 %v7845
    %v7968 = vpop.f32.mrf.mxu0
    %v7969 = vadd.f32 %v7940, %v7968
    %v7970 = vpop.f32.mrf.mxu0
    %v7971 = vadd.f32 %v7942, %v7970
    %7972 = vmatmul.bf16.gmra.mxu0 %v7848
    %v7973 = vpop.f32.mrf.mxu0
    %v7974 = vadd.f32 %v7945, %v7973
    %v7975 = vpop.f32.mrf.mxu0
    %v7976 = vadd.f32 %v7947, %v7975
    %7977 = vdwg.mxu0
    %7978 = vmatpush.bf16.msra.mxu0 %v7768
    %7979 = vmatpush.bf16.msra.mxu0 %v7764
    %7980 = vmatpush.bf16.msra.mxu0 %v7760
    %7981 = vmatpush.bf16.msra.mxu0 %v7756
    %7982 = vmatpush.bf16.msra.mxu0 %v7752
    %7983 = vmatpush.bf16.msra.mxu0 %v7748
    %7984 = vmatpush.bf16.msra.mxu0 %v7744
    %7985 = vmatpush.bf16.msra.mxu0 %v7740
    %7986 = vmatmul.bf16.gmra.mxu0 %v6964
    %v7987 = vpop.f32.mrf.mxu0
    %v7988 = vadd.f32 %v7511, %v7987
    %v7989 = vpop.f32.mrf.mxu0
    %v7990 = vadd.f32 %v7513, %v7989
    %7991 = vmatmul.bf16.gmra.mxu0 %v6966
    %v7992 = vpop.f32.mrf.mxu0
    %v7993 = vadd.f32 %v7516, %v7992
    %v7994 = vpop.f32.mrf.mxu0
    %v7995 = vadd.f32 %v7518, %v7994
    %7996 = vmatmul.bf16.gmra.mxu0 %v6968
    %v7997 = vpop.f32.mrf.mxu0
    %v7998 = vadd.f32 %v7521, %v7997
    %v7999 = vpop.f32.mrf.mxu0
    %v8000 = vadd.f32 %v7523, %v7999
    %8001 = vmatmul.bf16.gmra.mxu0 %v6970
    %v8002 = vpop.f32.mrf.mxu0
    %v8003 = vadd.f32 %v7526, %v8002
    %v8004 = vpop.f32.mrf.mxu0
    %v8005 = vadd.f32 %v7528, %v8004
    %8006 = vdwg.mxu0
    %8007 = vmatpush.bf16.msra.mxu0 0
    %8008 = vmatpush.bf16.msra.mxu0 0
    %8009 = vmatpush.bf16.msra.mxu0 0
    %8010 = vmatpush.bf16.msra.mxu0 %v7857
    %8011 = vmatpush.bf16.msra.mxu0 %v7784
    %8012 = vmatpush.bf16.msra.mxu0 %v7780
    %8013 = vmatpush.bf16.msra.mxu0 %v7776
    %8014 = vmatpush.bf16.msra.mxu0 %v7772
    %8015 = vmatmul.bf16.gmra.mxu0 %v7839
    %v8016 = vpop.f32.mrf.mxu0
    %v8017 = vadd.f32 %v7988, %v8016
    %v8018 = vpop.f32.mrf.mxu0
    %v8019 = vadd.f32 %v7990, %v8018
    %8020 = vmatmul.bf16.gmra.mxu0 %v7842
    %v8021 = vpop.f32.mrf.mxu0
    %v8022 = vadd.f32 %v7993, %v8021
    %v8023 = vpop.f32.mrf.mxu0
    %v8024 = vadd.f32 %v7995, %v8023
    %8025 = vmatmul.bf16.gmra.mxu0 %v7845
    %v8026 = vpop.f32.mrf.mxu0
    %v8027 = vadd.f32 %v7998, %v8026
    %v8028 = vpop.f32.mrf.mxu0
    %v8029 = vadd.f32 %v8000, %v8028
    %8030 = vmatmul.bf16.gmra.mxu0 %v7848
    %v8031 = vpop.f32.mrf.mxu0
    %v8032 = vadd.f32 %v8003, %v8031
    %v8033 = vpop.f32.mrf.mxu0
    %v8034 = vadd.f32 %v8005, %v8033
    %8035 = vdwg.mxu0
    %8036 = vmatpush.bf16.msra.mxu0 %v7769
    %8037 = vmatpush.bf16.msra.mxu0 %v7765
    %8038 = vmatpush.bf16.msra.mxu0 %v7761
    %8039 = vmatpush.bf16.msra.mxu0 %v7757
    %8040 = vmatpush.bf16.msra.mxu0 %v7753
    %8041 = vmatpush.bf16.msra.mxu0 %v7749
    %8042 = vmatpush.bf16.msra.mxu0 %v7745
    %8043 = vmatpush.bf16.msra.mxu0 %v7741
    %8044 = vmatmul.bf16.gmra.mxu0 %v6964
    %v8045 = vpop.f32.mrf.mxu0
    %v8046 = vadd.f32 %v7569, %v8045
    %v8047 = vpop.f32.mrf.mxu0
    %v8048 = vadd.f32 %v7571, %v8047
    %8049 = vmatmul.bf16.gmra.mxu0 %v6966
    %v8050 = vpop.f32.mrf.mxu0
    %v8051 = vadd.f32 %v7574, %v8050
    %v8052 = vpop.f32.mrf.mxu0
    %v8053 = vadd.f32 %v7576, %v8052
    %8054 = vmatmul.bf16.gmra.mxu0 %v6968
    %v8055 = vpop.f32.mrf.mxu0
    %v8056 = vadd.f32 %v7579, %v8055
    %v8057 = vpop.f32.mrf.mxu0
    %v8058 = vadd.f32 %v7581, %v8057
    %8059 = vmatmul.bf16.gmra.mxu0 %v6970
    %v8060 = vpop.f32.mrf.mxu0
    %v8061 = vadd.f32 %v7584, %v8060
    %v8062 = vpop.f32.mrf.mxu0
    %v8063 = vadd.f32 %v7586, %v8062
    %8064 = vdwg.mxu0
    %8065 = vmatpush.bf16.msra.mxu0 0
    %8066 = vmatpush.bf16.msra.mxu0 0
    %8067 = vmatpush.bf16.msra.mxu0 0
    %8068 = vmatpush.bf16.msra.mxu0 %v7860
    %8069 = vmatpush.bf16.msra.mxu0 %v7785
    %8070 = vmatpush.bf16.msra.mxu0 %v7781
    %8071 = vmatpush.bf16.msra.mxu0 %v7777
    %8072 = vmatpush.bf16.msra.mxu0 %v7773
    %8073 = vmatmul.bf16.gmra.mxu0 %v7839
    %v8074 = vpop.f32.mrf.mxu0
    %v8075 = vadd.f32 %v8046, %v8074
    %v8076 = vpop.f32.mrf.mxu0
    %v8077 = vadd.f32 %v8048, %v8076
    %8078 = vmatmul.bf16.gmra.mxu0 %v7842
    %v8079 = vpop.f32.mrf.mxu0
    %v8080 = vadd.f32 %v8051, %v8079
    %v8081 = vpop.f32.mrf.mxu0
    %v8082 = vadd.f32 %v8053, %v8081
    %8083 = vmatmul.bf16.gmra.mxu0 %v7845
    %v8084 = vpop.f32.mrf.mxu0
    %v8085 = vadd.f32 %v8056, %v8084
    %v8086 = vpop.f32.mrf.mxu0
    %v8087 = vadd.f32 %v8058, %v8086
    %8088 = vmatmul.bf16.gmra.mxu0 %v7848
    %v8089 = vpop.f32.mrf.mxu0
    %v8090 = vadd.f32 %v8061, %v8089
    %v8091 = vpop.f32.mrf.mxu0
    %v8092 = vadd.f32 %v8063, %v8091
    %8093 = vdwg.mxu0
    %v8094 = vpack.c.bf16 %v7959, %v7901
    %v8095 = vpack.c.bf16 %v8075, %v8017
    %v8096 = vpack.c.bf16 %v7961, %v7903
    %v8097 = vpack.c.bf16 %v8077, %v8019
    %v8098 = vpack.c.bf16 %v7964, %v7906
    %v8099 = vpack.c.bf16 %v8080, %v8022
    %v8100 = vpack.c.bf16 %v7966, %v7908
    %v8101 = vpack.c.bf16 %v8082, %v8024
    %v8102 = vpack.c.bf16 %v7969, %v7911
    %v8103 = vpack.c.bf16 %v8085, %v8027
    %v8104 = vpack.c.bf16 %v7971, %v7913
    %v8105 = vpack.c.bf16 %v8087, %v8029
    %v8106 = vpack.c.bf16 %v7974, %v7916
    %v8107 = vpack.c.bf16 %v8090, %v8032
    %v8108 = vpack.c.bf16 %v7976, %v7918
    %v8109 = vpack.c.bf16 %v8092, %v8034
    %v8126 = vunpack.c.l.b16 %v8094
    %v8127 = vunpack.c.h.b16 %v8094
    %v8128 = vunpack.c.l.b16 %v8095
    %v8129 = vunpack.c.h.b16 %v8095
    %v8130 = vunpack.c.l.b16 %v8096
    %v8131 = vunpack.c.h.b16 %v8096
    %v8132 = vunpack.c.l.b16 %v8097
    %v8133 = vunpack.c.h.b16 %v8097
    %v8134 = vunpack.c.l.b16 %v8098
    %v8135 = vunpack.c.h.b16 %v8098
    %v8136 = vunpack.c.l.b16 %v8099
    %v8137 = vunpack.c.h.b16 %v8099
    %v8138 = vunpack.c.l.b16 %v8100
    %v8139 = vunpack.c.h.b16 %v8100
    %v8140 = vunpack.c.l.b16 %v8101
    %v8141 = vunpack.c.h.b16 %v8101
    %v8142 = vunpack.c.l.b16 %v8102
    %v8143 = vunpack.c.h.b16 %v8102
    %v8144 = vunpack.c.l.b16 %v8103
    %v8145 = vunpack.c.h.b16 %v8103
    %v8146 = vunpack.c.l.b16 %v8104
    %v8147 = vunpack.c.h.b16 %v8104
    %v8148 = vunpack.c.l.b16 %v8105
    %v8149 = vunpack.c.h.b16 %v8105
    %v8150 = vunpack.c.l.b16 %v8106
    %v8151 = vunpack.c.h.b16 %v8106
    %v8152 = vunpack.c.l.b16 %v8107
    %v8153 = vunpack.c.h.b16 %v8107
    %v8154 = vunpack.c.l.b16 %v8108
    %v8155 = vunpack.c.h.b16 %v8108
    %v8156 = vunpack.c.l.b16 %v8109
    %v8157 = vunpack.c.h.b16 %v8109
    %v8158 = vpack.c.b16 %v8130, %v8126
    %v8159 = vpack.c.b16 %v8131, %v8127
    %v8160 = vpack.c.b16 %v8132, %v8128
    %v8161 = vpack.c.b16 %v8133, %v8129
    %v8162 = vpack.c.b16 %v8138, %v8134
    %v8163 = vpack.c.b16 %v8139, %v8135
    %v8164 = vpack.c.b16 %v8140, %v8136
    %v8165 = vpack.c.b16 %v8141, %v8137
    %v8166 = vpack.c.b16 %v8146, %v8142
    %v8167 = vpack.c.b16 %v8147, %v8143
    %v8168 = vpack.c.b16 %v8148, %v8144
    %v8169 = vpack.c.b16 %v8149, %v8145
    %v8170 = vpack.c.b16 %v8154, %v8150
    %v8171 = vpack.c.b16 %v8155, %v8151
    %v8172 = vpack.c.b16 %v8156, %v8152
    %v8173 = vpack.c.b16 %v8157, %v8153
    %8174 = vrot.lane.b32.xlu0 %v8158, 1
    %v8175 = vpop.permute.xlu0 %8174
    %8176 = vrot.lane.b32.xlu0 %v8159, 1
    %v8177 = vpop.permute.xlu0 %8176
    %8178 = vrot.lane.b32.xlu0 %v8160, 1
    %v8179 = vpop.permute.xlu0 %8178
    %8180 = vrot.lane.b32.xlu0 %v8161, 1
    %v8181 = vpop.permute.xlu0 %8180
    %8182 = vrot.lane.b32.xlu0 %v8162, 1
    %v8183 = vpop.permute.xlu0 %8182
    %8184 = vrot.lane.b32.xlu0 %v8163, 1
    %v8185 = vpop.permute.xlu0 %8184
    %8186 = vrot.lane.b32.xlu0 %v8164, 1
    %v8187 = vpop.permute.xlu0 %8186
    %8188 = vrot.lane.b32.xlu0 %v8165, 1
    %v8189 = vpop.permute.xlu0 %8188
    %8190 = vrot.lane.b32.xlu0 %v8166, 1
    %v8191 = vpop.permute.xlu0 %8190
    %8192 = vrot.lane.b32.xlu0 %v8167, 1
    %v8193 = vpop.permute.xlu0 %8192
    %8194 = vrot.lane.b32.xlu0 %v8168, 1
    %v8195 = vpop.permute.xlu0 %8194
    %8196 = vrot.lane.b32.xlu0 %v8169, 1
    %v8197 = vpop.permute.xlu0 %8196
    %8198 = vrot.lane.b32.xlu0 %v8170, 1
    %v8199 = vpop.permute.xlu0 %8198
    %8200 = vrot.lane.b32.xlu0 %v8171, 1
    %v8201 = vpop.permute.xlu0 %8200
    %8202 = vrot.lane.b32.xlu0 %v8172, 1
    %v8203 = vpop.permute.xlu0 %8202
    %8204 = vrot.lane.b32.xlu0 %v8173, 1
    %v8205 = vpop.permute.xlu0 %8204
    %v8206 = vsel %vm6321, %v8175, %v8177
    %v8207 = vsel %vm6321, %v8177, %v8179
    %v8208 = vsel %vm6321, %v8179, %v8181
    %v8209 = vsel %vm6321, %v8183, %v8185
    %v8210 = vsel %vm6321, %v8185, %v8187
    %v8211 = vsel %vm6321, %v8187, %v8189
    %v8212 = vsel %vm6321, %v8191, %v8193
    %v8213 = vsel %vm6321, %v8193, %v8195
    %v8214 = vsel %vm6321, %v8195, %v8197
    %v8215 = vsel %vm6321, %v8199, %v8201
    %v8216 = vsel %vm6321, %v8201, %v8203
    %v8217 = vsel %vm6321, %v8203, %v8205
    %v8218 = vld [vmem:[#allocation2] sm:$0x1]
    %v8219 = vld [vmem:[#allocation22] sm:$0x1]
    %8221 = vset.pattern.permute.xlu0 0
    %8222 = vperm.xlu0 %8221, %v8218
    %v8223 = vpop.permute.xlu0 %8222
    %v8225 = vperm.slane %v8223, 0
    %8226 = vrot.lane.b32.xlu0 %v8158, 127
    %v8227 = vpop.permute.xlu0 %8226
    %8228 = vrot.lane.b32.xlu0 %v8159, 127
    %v8229 = vpop.permute.xlu0 %8228
    %8230 = vrot.lane.b32.xlu0 %v8160, 127
    %v8231 = vpop.permute.xlu0 %8230
    %8232 = vrot.lane.b32.xlu0 %v8161, 127
    %v8233 = vpop.permute.xlu0 %8232
    %8234 = vrot.lane.b32.xlu0 %v8162, 127
    %v8235 = vpop.permute.xlu0 %8234
    %8236 = vrot.lane.b32.xlu0 %v8163, 127
    %v8237 = vpop.permute.xlu0 %8236
    %8238 = vrot.lane.b32.xlu0 %v8164, 127
    %v8239 = vpop.permute.xlu0 %8238
    %8240 = vrot.lane.b32.xlu0 %v8165, 127
    %v8241 = vpop.permute.xlu0 %8240
    %8242 = vrot.lane.b32.xlu0 %v8166, 127
    %v8243 = vpop.permute.xlu0 %8242
    %8244 = vrot.lane.b32.xlu0 %v8167, 127
    %v8245 = vpop.permute.xlu0 %8244
    %8246 = vrot.lane.b32.xlu0 %v8168, 127
    %v8247 = vpop.permute.xlu0 %8246
    %8248 = vrot.lane.b32.xlu0 %v8169, 127
    %v8249 = vpop.permute.xlu0 %8248
    %8250 = vrot.lane.b32.xlu0 %v8170, 127
    %v8251 = vpop.permute.xlu0 %8250
    %8252 = vrot.lane.b32.xlu0 %v8171, 127
    %v8253 = vpop.permute.xlu0 %8252
    %8254 = vrot.lane.b32.xlu0 %v8172, 127
    %v8255 = vpop.permute.xlu0 %8254
    %8256 = vrot.lane.b32.xlu0 %v8173, 127
    %v8257 = vpop.permute.xlu0 %8256
    %8258 = vrot.lane.b32.xlu0 %v8175, 127
    %v8259 = vpop.permute.xlu0 %8258
    %8260 = vrot.lane.b32.xlu0 %v8206, 127
    %v8261 = vpop.permute.xlu0 %8260
    %8262 = vrot.lane.b32.xlu0 %v8207, 127
    %v8263 = vpop.permute.xlu0 %8262
    %8264 = vrot.lane.b32.xlu0 %v8208, 127
    %v8265 = vpop.permute.xlu0 %8264
    %8266 = vrot.lane.b32.xlu0 %v8183, 127
    %v8267 = vpop.permute.xlu0 %8266
    %8268 = vrot.lane.b32.xlu0 %v8209, 127
    %v8269 = vpop.permute.xlu0 %8268
    %8270 = vrot.lane.b32.xlu0 %v8210, 127
    %v8271 = vpop.permute.xlu0 %8270
    %8272 = vrot.lane.b32.xlu0 %v8211, 127
    %v8273 = vpop.permute.xlu0 %8272
    %8274 = vrot.lane.b32.xlu0 %v8191, 127
    %v8275 = vpop.permute.xlu0 %8274
    %8276 = vrot.lane.b32.xlu0 %v8212, 127
    %v8277 = vpop.permute.xlu0 %8276
    %8278 = vrot.lane.b32.xlu0 %v8213, 127
    %v8279 = vpop.permute.xlu0 %8278
    %8280 = vrot.lane.b32.xlu0 %v8214, 127
    %v8281 = vpop.permute.xlu0 %8280
    %8282 = vrot.lane.b32.xlu0 %v8199, 127
    %v8283 = vpop.permute.xlu0 %8282
    %8284 = vrot.lane.b32.xlu0 %v8215, 127
    %v8285 = vpop.permute.xlu0 %8284
    %8286 = vrot.lane.b32.xlu0 %v8216, 127
    %v8287 = vpop.permute.xlu0 %8286
    %8288 = vrot.lane.b32.xlu0 %v8217, 127
    %v8289 = vpop.permute.xlu0 %8288
    %v8290 = vsel %vm6490, %v8227, %v8229
    %v8291 = vsel %vm6490, %v8229, %v8231
    %v8292 = vsel %vm6490, %v8231, %v8233
    %v8293 = vsel %vm6490, %v8235, %v8237
    %v8294 = vsel %vm6490, %v8237, %v8239
    %v8295 = vsel %vm6490, %v8239, %v8241
    %v8296 = vsel %vm6490, %v8243, %v8245
    %v8297 = vsel %vm6490, %v8245, %v8247
    %v8298 = vsel %vm6490, %v8247, %v8249
    %v8299 = vsel %vm6490, %v8251, %v8253
    %v8300 = vsel %vm6490, %v8253, %v8255
    %v8301 = vsel %vm6490, %v8255, %v8257
    %v8302 = vsel %vm6490, %v8259, %v8261
    %v8303 = vsel %vm6490, %v8261, %v8263
    %v8304 = vsel %vm6490, %v8263, %v8265
    %v8305 = vsel %vm6490, %v8267, %v8269
    %v8306 = vsel %vm6490, %v8269, %v8271
    %v8307 = vsel %vm6490, %v8271, %v8273
    %v8308 = vsel %vm6490, %v8275, %v8277
    %v8309 = vsel %vm6490, %v8277, %v8279
    %v8310 = vsel %vm6490, %v8279, %v8281
    %v8311 = vsel %vm6490, %v8283, %v8285
    %v8312 = vsel %vm6490, %v8285, %v8287
    %v8313 = vsel %vm6490, %v8287, %v8289
    %8346 = vmatpush.bf16.msra.mxu0 %v8311
    %8347 = vmatpush.bf16.msra.mxu0 %v8308
    %8348 = vmatpush.bf16.msra.mxu0 %v8305
    %8349 = vmatpush.bf16.msra.mxu0 %v8302
    %8350 = vmatpush.bf16.msra.mxu0 %v8299
    %8351 = vmatpush.bf16.msra.mxu0 %v8296
    %8352 = vmatpush.bf16.msra.mxu0 %v8293
    %8353 = vmatpush.bf16.msra.mxu0 %v8290
    %8354 = vmatmul.bf16.gmra.mxu0 %v8219
    %v8355 = vpop.f32.mrf.mxu0
    %v8356 = vadd.f32 %v8225, %v8355
    %v8357 = vpop.f32.mrf.mxu0
    %8358 = vdwg.mxu0
    %8359 = vmatpush.bf16.msra.mxu0 %v8312
    %8360 = vmatpush.bf16.msra.mxu0 %v8309
    %8361 = vmatpush.bf16.msra.mxu0 %v8306
    %8362 = vmatpush.bf16.msra.mxu0 %v8303
    %8363 = vmatpush.bf16.msra.mxu0 %v8300
    %8364 = vmatpush.bf16.msra.mxu0 %v8297
    %8365 = vmatpush.bf16.msra.mxu0 %v8294
    %8366 = vmatpush.bf16.msra.mxu0 %v8291
    %8367 = vmatmul.bf16.gmra.mxu0 %v8219
    %v8368 = vpop.f32.mrf.mxu0
    %v8369 = vadd.f32 %v8225, %v8368
    %v8370 = vpop.f32.mrf.mxu0
    %8371 = vdwg.mxu0
    %8372 = vmatpush.bf16.msra.mxu0 %v8313
    %8373 = vmatpush.bf16.msra.mxu0 %v8310
    %8374 = vmatpush.bf16.msra.mxu0 %v8307
    %8375 = vmatpush.bf16.msra.mxu0 %v8304
    %8376 = vmatpush.bf16.msra.mxu0 %v8301
    %8377 = vmatpush.bf16.msra.mxu0 %v8298
    %8378 = vmatpush.bf16.msra.mxu0 %v8295
    %8379 = vmatpush.bf16.msra.mxu0 %v8292
    %8380 = vmatmul.bf16.gmra.mxu0 %v8219
    %v8381 = vpop.f32.mrf.mxu0
    %v8382 = vadd.f32 %v8225, %v8381
    %v8383 = vpop.f32.mrf.mxu0
    %8384 = vdwg.mxu0
    %8385 = vmatpush.bf16.msra.mxu0 %v8289
    %8386 = vmatpush.bf16.msra.mxu0 %v8281
    %8387 = vmatpush.bf16.msra.mxu0 %v8273
    %8388 = vmatpush.bf16.msra.mxu0 %v8265
    %8389 = vmatpush.bf16.msra.mxu0 %v8257
    %8390 = vmatpush.bf16.msra.mxu0 %v8249
    %8391 = vmatpush.bf16.msra.mxu0 %v8241
    %8392 = vmatpush.bf16.msra.mxu0 %v8233
    %8393 = vmatmul.bf16.gmra.mxu0 %v8219
    %v8394 = vpop.f32.mrf.mxu0
    %v8395 = vadd.f32 %v8225, %v8394
    %v8396 = vpop.f32.mrf.mxu0
    %8397 = vdwg.mxu0
    %v8398 = vld [vmem:[#allocation23] sm:$0x1]
    %8399 = vrot.lane.b32.xlu0 %v8158, 126
    %v8400 = vpop.permute.xlu0 %8399
    %8401 = vrot.lane.b32.xlu0 %v8159, 126
    %v8402 = vpop.permute.xlu0 %8401
    %8403 = vrot.lane.b32.xlu0 %v8160, 126
    %v8404 = vpop.permute.xlu0 %8403
    %8405 = vrot.lane.b32.xlu0 %v8161, 126
    %v8406 = vpop.permute.xlu0 %8405
    %8407 = vrot.lane.b32.xlu0 %v8162, 126
    %v8408 = vpop.permute.xlu0 %8407
    %8409 = vrot.lane.b32.xlu0 %v8163, 126
    %v8410 = vpop.permute.xlu0 %8409
    %8411 = vrot.lane.b32.xlu0 %v8164, 126
    %v8412 = vpop.permute.xlu0 %8411
    %8413 = vrot.lane.b32.xlu0 %v8165, 126
    %v8414 = vpop.permute.xlu0 %8413
    %8415 = vrot.lane.b32.xlu0 %v8166, 126
    %v8416 = vpop.permute.xlu0 %8415
    %8417 = vrot.lane.b32.xlu0 %v8167, 126
    %v8418 = vpop.permute.xlu0 %8417
    %8419 = vrot.lane.b32.xlu0 %v8168, 126
    %v8420 = vpop.permute.xlu0 %8419
    %8421 = vrot.lane.b32.xlu0 %v8169, 126
    %v8422 = vpop.permute.xlu0 %8421
    %8423 = vrot.lane.b32.xlu0 %v8170, 126
    %v8424 = vpop.permute.xlu0 %8423
    %8425 = vrot.lane.b32.xlu0 %v8171, 126
    %v8426 = vpop.permute.xlu0 %8425
    %8427 = vrot.lane.b32.xlu0 %v8172, 126
    %v8428 = vpop.permute.xlu0 %8427
    %8429 = vrot.lane.b32.xlu0 %v8173, 126
    %v8430 = vpop.permute.xlu0 %8429
    %8431 = vrot.lane.b32.xlu0 %v8175, 126
    %v8432 = vpop.permute.xlu0 %8431
    %8433 = vrot.lane.b32.xlu0 %v8206, 126
    %v8434 = vpop.permute.xlu0 %8433
    %8435 = vrot.lane.b32.xlu0 %v8207, 126
    %v8436 = vpop.permute.xlu0 %8435
    %8437 = vrot.lane.b32.xlu0 %v8208, 126
    %v8438 = vpop.permute.xlu0 %8437
    %8439 = vrot.lane.b32.xlu0 %v8183, 126
    %v8440 = vpop.permute.xlu0 %8439
    %8441 = vrot.lane.b32.xlu0 %v8209, 126
    %v8442 = vpop.permute.xlu0 %8441
    %8443 = vrot.lane.b32.xlu0 %v8210, 126
    %v8444 = vpop.permute.xlu0 %8443
    %8445 = vrot.lane.b32.xlu0 %v8211, 126
    %v8446 = vpop.permute.xlu0 %8445
    %8447 = vrot.lane.b32.xlu0 %v8191, 126
    %v8448 = vpop.permute.xlu0 %8447
    %8449 = vrot.lane.b32.xlu0 %v8212, 126
    %v8450 = vpop.permute.xlu0 %8449
    %8451 = vrot.lane.b32.xlu0 %v8213, 126
    %v8452 = vpop.permute.xlu0 %8451
    %8453 = vrot.lane.b32.xlu0 %v8214, 126
    %v8454 = vpop.permute.xlu0 %8453
    %8455 = vrot.lane.b32.xlu0 %v8199, 126
    %v8456 = vpop.permute.xlu0 %8455
    %8457 = vrot.lane.b32.xlu0 %v8215, 126
    %v8458 = vpop.permute.xlu0 %8457
    %8459 = vrot.lane.b32.xlu0 %v8216, 126
    %v8460 = vpop.permute.xlu0 %8459
    %8461 = vrot.lane.b32.xlu0 %v8217, 126
    %v8462 = vpop.permute.xlu0 %8461
    %v8463 = vsel %vm6767, %v8400, %v8402
    %v8464 = vsel %vm6767, %v8402, %v8404
    %v8465 = vsel %vm6767, %v8404, %v8406
    %v8466 = vsel %vm6767, %v8408, %v8410
    %v8467 = vsel %vm6767, %v8410, %v8412
    %v8468 = vsel %vm6767, %v8412, %v8414
    %v8469 = vsel %vm6767, %v8416, %v8418
    %v8470 = vsel %vm6767, %v8418, %v8420
    %v8471 = vsel %vm6767, %v8420, %v8422
    %v8472 = vsel %vm6767, %v8424, %v8426
    %v8473 = vsel %vm6767, %v8426, %v8428
    %v8474 = vsel %vm6767, %v8428, %v8430
    %v8475 = vsel %vm6767, %v8432, %v8434
    %v8476 = vsel %vm6767, %v8434, %v8436
    %v8477 = vsel %vm6767, %v8436, %v8438
    %v8478 = vsel %vm6767, %v8440, %v8442
    %v8479 = vsel %vm6767, %v8442, %v8444
    %v8480 = vsel %vm6767, %v8444, %v8446
    %v8481 = vsel %vm6767, %v8448, %v8450
    %v8482 = vsel %vm6767, %v8450, %v8452
    %v8483 = vsel %vm6767, %v8452, %v8454
    %v8484 = vsel %vm6767, %v8456, %v8458
    %v8485 = vsel %vm6767, %v8458, %v8460
    %v8486 = vsel %vm6767, %v8460, %v8462
    %8519 = vmatpush.bf16.msra.mxu0 %v8484
    %8520 = vmatpush.bf16.msra.mxu0 %v8481
    %8521 = vmatpush.bf16.msra.mxu0 %v8478
    %8522 = vmatpush.bf16.msra.mxu0 %v8475
    %8523 = vmatpush.bf16.msra.mxu0 %v8472
    %8524 = vmatpush.bf16.msra.mxu0 %v8469
    %8525 = vmatpush.bf16.msra.mxu0 %v8466
    %8526 = vmatpush.bf16.msra.mxu0 %v8463
    %8527 = vmatmul.bf16.gmra.mxu0 %v8398
    %v8528 = vpop.f32.mrf.mxu0
    %v8529 = vadd.f32 %v8225, %v8528
    %v8530 = vpop.f32.mrf.mxu0
    %8531 = vdwg.mxu0
    %8532 = vmatpush.bf16.msra.mxu0 %v8485
    %8533 = vmatpush.bf16.msra.mxu0 %v8482
    %8534 = vmatpush.bf16.msra.mxu0 %v8479
    %8535 = vmatpush.bf16.msra.mxu0 %v8476
    %8536 = vmatpush.bf16.msra.mxu0 %v8473
    %8537 = vmatpush.bf16.msra.mxu0 %v8470
    %8538 = vmatpush.bf16.msra.mxu0 %v8467
    %8539 = vmatpush.bf16.msra.mxu0 %v8464
    %8540 = vmatmul.bf16.gmra.mxu0 %v8398
    %v8541 = vpop.f32.mrf.mxu0
    %v8542 = vadd.f32 %v8225, %v8541
    %v8543 = vpop.f32.mrf.mxu0
    %8544 = vdwg.mxu0
    %8545 = vmatpush.bf16.msra.mxu0 %v8486
    %8546 = vmatpush.bf16.msra.mxu0 %v8483
    %8547 = vmatpush.bf16.msra.mxu0 %v8480
    %8548 = vmatpush.bf16.msra.mxu0 %v8477
    %8549 = vmatpush.bf16.msra.mxu0 %v8474
    %8550 = vmatpush.bf16.msra.mxu0 %v8471
    %8551 = vmatpush.bf16.msra.mxu0 %v8468
    %8552 = vmatpush.bf16.msra.mxu0 %v8465
    %8553 = vmatmul.bf16.gmra.mxu0 %v8398
    %v8554 = vpop.f32.mrf.mxu0
    %v8555 = vadd.f32 %v8225, %v8554
    %v8556 = vpop.f32.mrf.mxu0
    %8557 = vdwg.mxu0
    %8558 = vmatpush.bf16.msra.mxu0 %v8462
    %8559 = vmatpush.bf16.msra.mxu0 %v8454
    %8560 = vmatpush.bf16.msra.mxu0 %v8446
    %8561 = vmatpush.bf16.msra.mxu0 %v8438
    %8562 = vmatpush.bf16.msra.mxu0 %v8430
    %8563 = vmatpush.bf16.msra.mxu0 %v8422
    %8564 = vmatpush.bf16.msra.mxu0 %v8414
    %8565 = vmatpush.bf16.msra.mxu0 %v8406
    %8566 = vmatmul.bf16.gmra.mxu0 %v8398
    %v8567 = vpop.f32.mrf.mxu0
    %v8568 = vadd.f32 %v8225, %v8567
    %v8569 = vpop.f32.mrf.mxu0
    %8570 = vdwg.mxu0
    %v8571 = vxor.u32 %v8356, 2147483648
    %v8572 = vxor.u32 %v8369, 2147483648
    %v8573 = vxor.u32 %v8382, 2147483648
    %v8574 = vxor.u32 %v8395, 2147483648
    %v8575 = vmul.f32 %v8571, 1.442695
    %v8576 = vpow.pop %v8575
    %v8577 = vmul.f32 %v8572, 1.442695
    %v8578 = vpow.pop %v8577
    %v8579 = vmul.f32 %v8573, 1.442695
    %v8580 = vpow.pop %v8579
    %v8581 = vmul.f32 %v8574, 1.442695
    %v8582 = vpow.pop %v8581
    %v8583 = vadd.f32 %v8576, 1.0
    %v8584 = vadd.f32 %v8578, 1.0
    %v8585 = vadd.f32 %v8580, 1.0
    %v8586 = vadd.f32 %v8582, 1.0
    %v8587 = vrcp.pop %v8583
    %v8588 = vmul.f32 %v8583, %v8587
    %v8589 = vsub.f32 1.0, %v8588
    %v8590 = vmul.f32 %v8587, %v8589
    %v8591 = vadd.f32 %v8587, %v8590
    %vm8592 = vweird.f32 %v8583
    %vm8593 = vweird.f32 %v8587
    %vm8594 = vmor %vm8592, %vm8593
    %v8595 = vsel %vm8594, %v8587, %v8591
    %v8596 = vand.u32 2147483647, %v8583
    %vm8597 = vcmp.eq.f32.partialorder %v8596, 8.507059e+37
    %v8598 = vand.u32 %v8583, 2147483648
    %v8599 = vor.u32 1.1754944e-38, %v8598
    %v8600 = vsel %vm8597, %v8599, %v8595
    %v8601 = vmul.f32 1.0, %v8600
    %v8602 = vrcp.pop %v8584
    %v8603 = vmul.f32 %v8584, %v8602
    %v8604 = vsub.f32 1.0, %v8603
    %v8605 = vmul.f32 %v8602, %v8604
    %v8606 = vadd.f32 %v8602, %v8605
    %vm8607 = vweird.f32 %v8584
    %vm8608 = vweird.f32 %v8602
    %vm8609 = vmor %vm8607, %vm8608
    %v8610 = vsel %vm8609, %v8602, %v8606
    %v8611 = vand.u32 2147483647, %v8584
    %vm8612 = vcmp.eq.f32.partialorder %v8611, 8.507059e+37
    %v8613 = vand.u32 %v8584, 2147483648
    %v8614 = vor.u32 1.1754944e-38, %v8613
    %v8615 = vsel %vm8612, %v8614, %v8610
    %v8616 = vmul.f32 1.0, %v8615
    %v8617 = vrcp.pop %v8585
    %v8618 = vmul.f32 %v8585, %v8617
    %v8619 = vsub.f32 1.0, %v8618
    %v8620 = vmul.f32 %v8617, %v8619
    %v8621 = vadd.f32 %v8617, %v8620
    %vm8622 = vweird.f32 %v8585
    %vm8623 = vweird.f32 %v8617
    %vm8624 = vmor %vm8622, %vm8623
    %v8625 = vsel %vm8624, %v8617, %v8621
    %v8626 = vand.u32 2147483647, %v8585
    %vm8627 = vcmp.eq.f32.partialorder %v8626, 8.507059e+37
    %v8628 = vand.u32 %v8585, 2147483648
    %v8629 = vor.u32 1.1754944e-38, %v8628
    %v8630 = vsel %vm8627, %v8629, %v8625
    %v8631 = vmul.f32 1.0, %v8630
    %v8632 = vrcp.pop %v8586
    %v8633 = vmul.f32 %v8586, %v8632
    %v8634 = vsub.f32 1.0, %v8633
    %v8635 = vmul.f32 %v8632, %v8634
    %v8636 = vadd.f32 %v8632, %v8635
    %vm8637 = vweird.f32 %v8586
    %vm8638 = vweird.f32 %v8632
    %vm8639 = vmor %vm8637, %vm8638
    %v8640 = vsel %vm8639, %v8632, %v8636
    %v8641 = vand.u32 2147483647, %v8586
    %vm8642 = vcmp.eq.f32.partialorder %v8641, 8.507059e+37
    %v8643 = vand.u32 %v8586, 2147483648
    %v8644 = vor.u32 1.1754944e-38, %v8643
    %v8645 = vsel %vm8642, %v8644, %v8640
    %v8646 = vmul.f32 1.0, %v8645
    %v8647 = vxor.u32 %v8529, 2147483648
    %v8648 = vxor.u32 %v8542, 2147483648
    %v8649 = vxor.u32 %v8555, 2147483648
    %v8650 = vxor.u32 %v8568, 2147483648
    %v8651 = vmul.f32 %v8647, 1.442695
    %v8652 = vpow.pop %v8651
    %v8653 = vmul.f32 %v8648, 1.442695
    %v8654 = vpow.pop %v8653
    %v8655 = vmul.f32 %v8649, 1.442695
    %v8656 = vpow.pop %v8655
    %v8657 = vmul.f32 %v8650, 1.442695
    %v8658 = vpow.pop %v8657
    %v8659 = vadd.f32 %v8652, 1.0
    %v8660 = vadd.f32 %v8654, 1.0
    %v8661 = vadd.f32 %v8656, 1.0
    %v8662 = vadd.f32 %v8658, 1.0
    %v8663 = vrcp.pop %v8659
    %v8664 = vmul.f32 %v8659, %v8663
    %v8665 = vsub.f32 1.0, %v8664
    %v8666 = vmul.f32 %v8663, %v8665
    %v8667 = vadd.f32 %v8663, %v8666
    %vm8668 = vweird.f32 %v8659
    %vm8669 = vweird.f32 %v8663
    %vm8670 = vmor %vm8668, %vm8669
    %v8671 = vsel %vm8670, %v8663, %v8667
    %v8672 = vand.u32 2147483647, %v8659
    %vm8673 = vcmp.eq.f32.partialorder %v8672, 8.507059e+37
    %v8674 = vand.u32 %v8659, 2147483648
    %v8675 = vor.u32 1.1754944e-38, %v8674
    %v8676 = vsel %vm8673, %v8675, %v8671
    %v8677 = vmul.f32 1.0, %v8676
    %v8678 = vrcp.pop %v8660
    %v8679 = vmul.f32 %v8660, %v8678
    %v8680 = vsub.f32 1.0, %v8679
    %v8681 = vmul.f32 %v8678, %v8680
    %v8682 = vadd.f32 %v8678, %v8681
    %vm8683 = vweird.f32 %v8660
    %vm8684 = vweird.f32 %v8678
    %vm8685 = vmor %vm8683, %vm8684
    %v8686 = vsel %vm8685, %v8678, %v8682
    %v8687 = vand.u32 2147483647, %v8660
    %vm8688 = vcmp.eq.f32.partialorder %v8687, 8.507059e+37
    %v8689 = vand.u32 %v8660, 2147483648
    %v8690 = vor.u32 1.1754944e-38, %v8689
    %v8691 = vsel %vm8688, %v8690, %v8686
    %v8692 = vmul.f32 1.0, %v8691
    %v8693 = vrcp.pop %v8661
    %v8694 = vmul.f32 %v8661, %v8693
    %v8695 = vsub.f32 1.0, %v8694
    %v8696 = vmul.f32 %v8693, %v8695
    %v8697 = vadd.f32 %v8693, %v8696
    %vm8698 = vweird.f32 %v8661
    %vm8699 = vweird.f32 %v8693
    %vm8700 = vmor %vm8698, %vm8699
    %v8701 = vsel %vm8700, %v8693, %v8697
    %v8702 = vand.u32 2147483647, %v8661
    %vm8703 = vcmp.eq.f32.partialorder %v8702, 8.507059e+37
    %v8704 = vand.u32 %v8661, 2147483648
    %v8705 = vor.u32 1.1754944e-38, %v8704
    %v8706 = vsel %vm8703, %v8705, %v8701
    %v8707 = vmul.f32 1.0, %v8706
    %v8708 = vrcp.pop %v8662
    %v8709 = vmul.f32 %v8662, %v8708
    %v8710 = vsub.f32 1.0, %v8709
    %v8711 = vmul.f32 %v8708, %v8710
    %v8712 = vadd.f32 %v8708, %v8711
    %vm8713 = vweird.f32 %v8662
    %vm8714 = vweird.f32 %v8708
    %vm8715 = vmor %vm8713, %vm8714
    %v8716 = vsel %vm8715, %v8708, %v8712
    %v8717 = vand.u32 2147483647, %v8662
    %vm8718 = vcmp.eq.f32.partialorder %v8717, 8.507059e+37
    %v8719 = vand.u32 %v8662, 2147483648
    %v8720 = vor.u32 1.1754944e-38, %v8719
    %v8721 = vsel %vm8718, %v8720, %v8716
    %v8722 = vmul.f32 1.0, %v8721
    %v8727 = vrot.slane %v8616, 7
    %v8728 = vrot.slane %v8631, 6
    %v8729 = vrot.slane %v8646, 5
    %v8730 = vsel %vm4285, %v8601, %v8727
    %vm8731 = vcmask 1042434
    %v8732 = vsel %vm8731, %v8728, %v8729
    %v8733 = vsel %vm5911, %v8730, %v8732
    %v8735 = vlaneseq
    %vm8736 = vcmp.ge.s32.totalorder %v8735, 0
    %vm8737 = vcmp.lt.s32.totalorder %v8735, 400
    %vm8738 = vmand %vm8736, %vm8737
    %8739 = vst.msk [vmem:[%s19] sm:$0xf] %vm8738, %v8733
    %v8744 = vrot.slane %v8692, 7
    %v8745 = vrot.slane %v8707, 6
    %v8746 = vrot.slane %v8722, 5
    %v8747 = vsel %vm4285, %v8677, %v8744
    %v8748 = vsel %vm8731, %v8745, %v8746
    %v8749 = vsel %vm5911, %v8747, %v8748
    %8751 = vst.msk [vmem:[%s20] sm:$0xf] %vm8738, %v8749
    // Predicated region
    $region134: #{g_forward.3} parent=1 // pred_check
      _
    $region135: #{g_forward.3} parent=1 // pred_check_branch
      %8753 = sbr.rel (0) target = $region137
    $region136: #{g_forward.3} parent=1 // pred_region
      _
    $region137: #{g_forward.3} parent=1 // pred_fallthru
      _
    // Predicated region
    $region138: #{g_forward.3} parent=1 // pred_check
      _
    $region139: #{g_forward.3} parent=1 // pred_check_branch
      %8755 = sbr.rel (0) target = $region141
    $region140: #{g_forward.3} parent=1 // pred_region
      _
    $region141: #{g_forward.3} parent=1 // pred_fallthru
      _
    // Predicated region
    $region142: #{g_forward.3} parent=1 // pred_check
      _
    $region143: #{g_forward.3} parent=1 // pred_check_branch
      %8757 = sbr.rel (0) target = $region145
    $region144: #{g_forward.3} parent=1 // pred_region
      _
    $region145: #{g_forward.3} parent=1 // pred_fallthru
      _
    // Predicated region
    $region146: #{g_forward.3} parent=1 // pred_check
      _
    $region147: #{g_forward.3} parent=1 // pred_check_branch
      %8759 = sbr.rel (0) target = $region149
    $region148: #{g_forward.3} parent=1 // pred_region
      _
    $region149: #{g_forward.3} parent=1 // pred_fallthru
      _
    %8760 = vsyncpa [#allocation4], 1
    %8761 = vsyncpa [#allocation6], 1
    %8762 = vsyncpa [#allocation9], 1
    %8763 = vsyncpa [#allocation12], 1
    %8764 = vsyncpa [#allocation15], 1
    %8765 = vsyncpa [#allocation18], 1
    %8766 = vsyncpa [#allocation21], 1
    %8767 = vsyncpa [#allocation24], 1

</llo_original>
